<compile_context>
chip_gen: v6e
topology: v6e:2x2x1
jax: 0.10.0
libtpu: 0.0.40
codegen_flags: <defaults>
</compile_context>

<pallas_src>
import functools

import jax
import jax.numpy as jnp
from jax import lax
from jax.experimental import pallas as pl
from jax.experimental.pallas import tpu as pltpu

LN_EPS = 1e-5       # torch.nn.LayerNorm default
NEG_INF = -1e30     # finite mask value: NaN-safe even for fully-masked rows


def _layernorm(v, gamma, beta):
    mu = jnp.mean(v, axis=-1, keepdims=True)
    var = jnp.mean((v - mu) ** 2, axis=-1, keepdims=True)  # biased, like torch
    return (v - mu) * lax.rsqrt(var + LN_EPS) * gamma + beta


def block_kernel(
    x_ref,                    # (bb, T, C)   f32
    g1_ref, b1_ref,           # (1, C)       f32   LayerNorm 1
    wqkv_ref,                 # (C, 3C)      bf16  fused Q|K|V (Q pre-scaled)
    wp_ref, bp_ref,           # (C, C) bf16, (1, C) f32   output projection
    g2_ref, b2_ref,           # (1, C)       f32   LayerNorm 2
    w1_ref, bf1_ref,          # (C, 4C) bf16, (1, 4C) f32  feed-forward 1
    w2_ref, bf2_ref,          # (4C, C) bf16, (1, C)  f32  feed-forward 2
    o_ref,                    # (bb, T, C)   f32
    heads_ref,                # (bb*T, C)    bf16  scratch: per-head AV tiles
    *, n_heads,
):
    bb, T, C = x_ref.shape
    H = n_heads
    hs = C // H

    # Flatten batch so all dense matmuls see M = bb*T rows.
    x = x_ref[...].reshape(bb * T, C)

    # ---- self-attention branch: x + proj(heads(softmax(q k^T) v)) ----
    xn = _layernorm(x, g1_ref[0], b1_ref[0])
    # One lane-dense projection for all heads & Q/K/V (scale folded into Q).
    qkv = jnp.dot(xn.astype(jnp.bfloat16), wqkv_ref[...],
                  preferred_element_type=jnp.float32).astype(jnp.bfloat16)

    row = lax.broadcasted_iota(jnp.int32, (T, T), 0)
    col = lax.broadcasted_iota(jnp.int32, (T, T), 1)
    causal = row >= col

    for b in range(bb):                                   # static unroll (bb capped small)
        base = b * T
        qkv_b = qkv[base:base + T]                        # (T, 3C) bf16
        for h in range(H):                                # static unroll over heads
            q = qkv_b[:, h * hs:(h + 1) * hs]             # (T, hs), Q pre-scaled
            k = qkv_b[:, C + h * hs:C + (h + 1) * hs]
            v = qkv_b[:, 2 * C + h * hs:2 * C + (h + 1) * hs]
            # q @ k^T without an explicit transpose (contract head dim).
            s = lax.dot_general(q, k, (((1,), (1,)), ((), ())),
                                preferred_element_type=jnp.float32)   # (T, T)
            s = jnp.where(causal, s, NEG_INF)
            s = s - jnp.max(s, axis=-1, keepdims=True)
            p = jnp.exp(s)
            denom = jnp.sum(p, axis=-1, keepdims=True)                 # (T, 1)
            # TODO(synk): attention/projection/FFN dropout omitted (eval mode -> identity)
            av = jnp.dot(p.astype(jnp.bfloat16), v,
                         preferred_element_type=jnp.float32)           # (T, hs)
            # Normalize AFTER p@v: T*hs multiplies instead of T*T.
            av = av * pl.reciprocal(denom, approx=True)
            # Assemble heads lane-dense; the full-K projection runs after the loop.
            heads_ref[base:base + T, h * hs:(h + 1) * hs] = av.astype(jnp.bfloat16)

    # Single (bb*T, C) @ (C, C) output projection: full K = C MXU contraction.
    sa = jnp.dot(heads_ref[...], wp_ref[...],
                 preferred_element_type=jnp.float32)
    x1 = x + sa + bp_ref[0]

    # ---- feed-forward branch: x1 + W2 @ relu(W1 @ ln2(x1)) ----
    xn2 = _layernorm(x1, g2_ref[0], b2_ref[0])
    h1 = jnp.dot(xn2.astype(jnp.bfloat16), w1_ref[...],
                 preferred_element_type=jnp.float32) + bf1_ref[0]
    h1 = jnp.maximum(h1, 0.0)
    ff = jnp.dot(h1.astype(jnp.bfloat16), w2_ref[...],
                 preferred_element_type=jnp.float32) + bf2_ref[0]

    o_ref[...] = (x1 + ff).reshape(bb, T, C)


def _full_spec(shape):
    ndim = len(shape)
    return pl.BlockSpec(shape, lambda i, _n=ndim: (0,) * _n)


def _tpu_vmem_capacity_bytes():
    """Physical VMEM capacity; conservative 64 MiB (v7x) fallback."""
    cap = 64 << 20
    try:
        info = pltpu.get_tpu_info()
        cap = int(getattr(info, "vmem_capacity_bytes", cap))
    except Exception:
        pass
    return cap


def _per_item_vmem_bytes(T, C, H):
    """Rough per-batch-item VMEM footprint of one kernel step (bytes)."""
    f32, bf16 = 4, 2
    attn = T * T * (2 * f32 + bf16)          # s/p f32 + p bf16 (one head live at a time)
    qkv = T * 3 * C * (f32 + bf16)           # projection output f32 + bf16 copy
    ffn = T * 4 * C * (f32 + bf16)           # FFN hidden
    resid = 8 * T * C * f32                  # x in/out (double-buffered) + xn/x1/xn2/ff
    heads = T * C * bf16                     # scratch
    return attn + qkv + ffn + resid + heads


def _pick_batch_block(B, T, C, H, vmem_cap):
    """Largest divisor of B whose per-step footprint fits a VMEM budget.

    Collapsing batch into fewer grid steps lets the dense matmuls see
    M = bb*T rows and removes per-step grid overhead; the cap keeps the
    footprint under the chip's VMEM (64 MiB on v7x) and bounds the static
    unroll of the head loop.
    """
    budget = vmem_cap // 3
    per_item = max(_per_item_vmem_bytes(T, C, H), 1)
    max_bb = max(1, min(B, budget // per_item, 8))
    bb = 1
    for d in range(1, B + 1):
        if B % d == 0 and d <= max_bb:
            bb = d
    return bb


@jax.jit
def transformer_block(x, params):
    B, T, C = x.shape
    (g1, b1, wq, wk, wv, wp, bp, g2, b2, w1, bf1, w2, bf2) = params
    H = wq.shape[0]
    hs = C // H
    scale = C ** (-0.5)   # NOTE: MinGPT Head scales by n_embd**-0.5 (C), not head_size**-0.5.

    # Trace-time weight preparation (no in-kernel cost):
    #  * fuse per-head Q/K/V into one lane-dense (C, 3C) matrix,
    #  * fold the attention scale into the Q columns,
    #  * cast all MXU operands to bf16 (halves weight DMA/VMEM bytes).
    wq_f = jnp.transpose(wq, (1, 0, 2)).reshape(C, H * hs) * scale
    wk_f = jnp.transpose(wk, (1, 0, 2)).reshape(C, H * hs)
    wv_f = jnp.transpose(wv, (1, 0, 2)).reshape(C, H * hs)
    wqkv = jnp.concatenate([wq_f, wk_f, wv_f], axis=-1).astype(jnp.bfloat16)
    wp_b = wp.astype(jnp.bfloat16)
    w1_b = w1.astype(jnp.bfloat16)
    w2_b = w2.astype(jnp.bfloat16)

    vmem_cap = _tpu_vmem_capacity_bytes()
    bb = _pick_batch_block(B, T, C, H, vmem_cap)
    vmem_limit = int(min((vmem_cap * 3) // 4, 128 << 20))

    weights = [g1, b1, wqkv, wp_b, bp, g2, b2, w1_b, bf1, w2_b, bf2]
    in_specs = [pl.BlockSpec((bb, T, C), lambda i: (i, 0, 0))] + [
        _full_spec(w.shape) for w in weights
    ]
    out_specs = pl.BlockSpec((bb, T, C), lambda i: (i, 0, 0))

    kernel = functools.partial(block_kernel, n_heads=H)
    return pl.pallas_call(
        kernel,
        out_shape=jax.ShapeDtypeStruct((B, T, C), jnp.float32),
        grid=(B // bb,),
        in_specs=in_specs,
        out_specs=out_specs,
        scratch_shapes=[pltpu.VMEM((bb * T, C), jnp.bfloat16)],
        compiler_params=pltpu.CompilerParams(
            dimension_semantics=("parallel",),
            vmem_limit_bytes=vmem_limit),
    )(x, *weights)


def reference_block(x, params):
    """Pure-JAX f32 reference with the module's exact semantics."""
    (g1, b1, wq, wk, wv, wp, bp, g2, b2, w1, bf1, w2, bf2) = params
    B, T, C = x.shape
    H = wq.shape[0]

    xn = _layernorm(x, g1[0], b1[0])
    causal = jnp.tril(jnp.ones((T, T), dtype=bool))
    outs = []
    for h in range(H):
        q = xn @ wq[h]
        k = xn @ wk[h]
        v = xn @ wv[h]
        wei = (q @ jnp.swapaxes(k, -1, -2)) * (C ** (-0.5))
        wei = jnp.where(causal, wei, -jnp.inf)
        wei = jax.nn.softmax(wei, axis=-1)
        outs.append(wei @ v)
    sa = jnp.concatenate(outs, axis=-1) @ wp + bp[0]
    x1 = x + sa
    xn2 = _layernorm(x1, g2[0], b2[0])
    ff = jnp.maximum(xn2 @ w1 + bf1[0], 0.0) @ w2 + bf2[0]
    return x1 + ff


if __name__ == "__main__":
    # Small, module-consistent shapes: B=2, T=128, n_embd=128, n_heads=4 (head_size=32).
    B, T, C, H = 2, 128, 128, 4
    hs = C // H

    key = jax.random.PRNGKey(0)
    keys = jax.random.split(key, 10)
    std = 0.02

    x = jax.random.normal(keys[0], (B, T, C), jnp.float32)

    g1 = jnp.ones((1, C), jnp.float32)
    b1 = jnp.zeros((1, C), jnp.float32)
    wq = jax.random.normal(keys[1], (H, C, hs), jnp.float32) * std
    wk = jax.random.normal(keys[2], (H, C, hs), jnp.float32) * std
    wv = jax.random.normal(keys[3], (H, C, hs), jnp.float32) * std
    wp = jax.random.normal(keys[4], (C, C), jnp.float32) * std
    bp = jax.random.normal(keys[5], (1, C), jnp.float32) * std
    g2 = jnp.ones((1, C), jnp.float32)
    b2 = jnp.zeros((1, C), jnp.float32)
    w1 = jax.random.normal(keys[6], (C, 4 * C), jnp.float32) * std
    bf1 = jax.random.normal(keys[7], (1, 4 * C), jnp.float32) * std
    w2 = jax.random.normal(keys[8], (4 * C, C), jnp.float32) * std
    bf2 = jax.random.normal(keys[9], (1, C), jnp.float32) * std

    params = (g1, b1, wq, wk, wv, wp, bp, g2, b2, w1, bf1, w2, bf2)

    out = transformer_block(x, params)
    out = jax.block_until_ready(out)

    ref = reference_block(x, params)
    assert out.shape == (B, T, C)
    # bf16 MXU operands + approx reciprocal -> bf16-level tolerance vs f32 ref.
    assert jnp.allclose(out, ref, atol=2e-2, rtol=2e-2), (
        f"max abs err {jnp.max(jnp.abs(out - ref))}"
    )
    print("KERNEL_OK")
</pallas_src>

<mosaic_0001>
module attributes {stable_mosaic.version = 11 : i64} {
  func.func @block_kernel(%arg0: i32, %arg1: memref<2x128x128xf32, #tpu.memory_space<vmem>>, %arg2: memref<1x128xf32, #tpu.memory_space<vmem>>, %arg3: memref<1x128xf32, #tpu.memory_space<vmem>>, %arg4: memref<128x384xbf16, #tpu.memory_space<vmem>>, %arg5: memref<128x128xbf16, #tpu.memory_space<vmem>>, %arg6: memref<1x128xf32, #tpu.memory_space<vmem>>, %arg7: memref<1x128xf32, #tpu.memory_space<vmem>>, %arg8: memref<1x128xf32, #tpu.memory_space<vmem>>, %arg9: memref<128x512xbf16, #tpu.memory_space<vmem>>, %arg10: memref<1x512xf32, #tpu.memory_space<vmem>>, %arg11: memref<512x128xbf16, #tpu.memory_space<vmem>>, %arg12: memref<1x128xf32, #tpu.memory_space<vmem>>, %arg13: memref<2x128x128xf32, #tpu.memory_space<vmem>>, %arg14: memref<256x128xbf16, #tpu.memory_space<vmem>>) attributes {dimension_semantics = [#tpu.dimension_semantics<parallel>], iteration_bounds = array<i64: 1>, scalar_prefetch = 0 : i64, scratch_operands = 1 : i64, tpu.core_type = #tpu.core_type<tc>, window_params = [{transform_indices = @transform_0, window_bounds = array<i64: 2, 128, 128>}, {pipeline_mode = #tpu.pipeline_mode<synchronous>, transform_indices = @transform_1, window_bounds = array<i64: 1, 128>}, {pipeline_mode = #tpu.pipeline_mode<synchronous>, transform_indices = @transform_2, window_bounds = array<i64: 1, 128>}, {pipeline_mode = #tpu.pipeline_mode<synchronous>, transform_indices = @transform_3, window_bounds = array<i64: 128, 384>}, {pipeline_mode = #tpu.pipeline_mode<synchronous>, transform_indices = @transform_4, window_bounds = array<i64: 128, 128>}, {pipeline_mode = #tpu.pipeline_mode<synchronous>, transform_indices = @transform_5, window_bounds = array<i64: 1, 128>}, {pipeline_mode = #tpu.pipeline_mode<synchronous>, transform_indices = @transform_6, window_bounds = array<i64: 1, 128>}, {pipeline_mode = #tpu.pipeline_mode<synchronous>, transform_indices = @transform_7, window_bounds = array<i64: 1, 128>}, {pipeline_mode = #tpu.pipeline_mode<synchronous>, transform_indices = @transform_8, window_bounds = array<i64: 128, 512>}, {pipeline_mode = #tpu.pipeline_mode<synchronous>, transform_indices = @transform_9, window_bounds = array<i64: 1, 512>}, {pipeline_mode = #tpu.pipeline_mode<synchronous>, transform_indices = @transform_10, window_bounds = array<i64: 512, 128>}, {pipeline_mode = #tpu.pipeline_mode<synchronous>, transform_indices = @transform_11, window_bounds = array<i64: 1, 128>}, {transform_indices = @transform_12, window_bounds = array<i64: 2, 128, 128>}]} {
    %c0 = arith.constant 0 : index
    %c0_0 = arith.constant 0 : index
    %c0_1 = arith.constant 0 : index
    %0 = vector.load %arg1[%c0, %c0_0, %c0_1] : memref<2x128x128xf32, #tpu.memory_space<vmem>>, vector<2x128x128xf32>
    %1 = vector.shape_cast %0 : vector<2x128x128xf32> to vector<256x128xf32>
    %c0_2 = arith.constant 0 : index
    %c0_3 = arith.constant 0 : index
    %2 = vector.load %arg2[%c0_2, %c0_3] : memref<1x128xf32, #tpu.memory_space<vmem>>, vector<1x128xf32>
    %3 = vector.shape_cast %2 : vector<1x128xf32> to vector<128xf32>
    %c0_4 = arith.constant 0 : index
    %c0_5 = arith.constant 0 : index
    %4 = vector.load %arg3[%c0_4, %c0_5] : memref<1x128xf32, #tpu.memory_space<vmem>>, vector<1x128xf32>
    %5 = vector.shape_cast %4 : vector<1x128xf32> to vector<128xf32>
    %cst = arith.constant dense<0.000000e+00> : vector<256xf32>
    %6 = vector.multi_reduction <add>, %1, %cst [1] : vector<256x128xf32> to vector<256xf32>
    %7 = vector.shape_cast %6 : vector<256xf32> to vector<256x1xf32>
    %cst_6 = arith.constant 1.280000e+02 : f32
    %8 = vector.broadcast %cst_6 : f32 to vector<256x1xf32>
    %9 = arith.divf %7, %8 : vector<256x1xf32>
    %10 = vector.broadcast %9 : vector<256x1xf32> to vector<256x128xf32>
    %11 = arith.subf %1, %10 : vector<256x128xf32>
    %12 = arith.mulf %11, %11 : vector<256x128xf32>
    %cst_7 = arith.constant dense<0.000000e+00> : vector<256xf32>
    %13 = vector.multi_reduction <add>, %12, %cst_7 [1] : vector<256x128xf32> to vector<256xf32>
    %14 = vector.shape_cast %13 : vector<256xf32> to vector<256x1xf32>
    %cst_8 = arith.constant 1.280000e+02 : f32
    %15 = vector.broadcast %cst_8 : f32 to vector<256x1xf32>
    %16 = arith.divf %14, %15 : vector<256x1xf32>
    %17 = vector.broadcast %9 : vector<256x1xf32> to vector<256x128xf32>
    %18 = arith.subf %1, %17 : vector<256x128xf32>
    %cst_9 = arith.constant 9.99999974E-6 : f32
    %19 = vector.broadcast %cst_9 : f32 to vector<256x1xf32>
    %20 = arith.addf %16, %19 : vector<256x1xf32>
    %21 = math.rsqrt %20 : vector<256x1xf32>
    %22 = vector.broadcast %21 : vector<256x1xf32> to vector<256x128xf32>
    %23 = arith.mulf %18, %22 : vector<256x128xf32>
    %24 = vector.shape_cast %3 : vector<128xf32> to vector<1x128xf32>
    %25 = vector.broadcast %24 : vector<1x128xf32> to vector<256x128xf32>
    %26 = arith.mulf %23, %25 : vector<256x128xf32>
    %27 = vector.shape_cast %5 : vector<128xf32> to vector<1x128xf32>
    %28 = vector.broadcast %27 : vector<1x128xf32> to vector<256x128xf32>
    %29 = arith.addf %26, %28 : vector<256x128xf32>
    %30 = arith.truncf %29 : vector<256x128xf32> to vector<256x128xbf16>
    %c0_10 = arith.constant 0 : index
    %c0_11 = arith.constant 0 : index
    %31 = vector.load %arg4[%c0_10, %c0_11] : memref<128x384xbf16, #tpu.memory_space<vmem>>, vector<128x384xbf16>
    %cst_12 = arith.constant dense<0.000000e+00> : vector<256x384xf32>
    %32 = tpu.matmul %30, %31, %cst_12 {dimension_numbers = #tpu.dot_dimension_numbers<[1], [0], [0], [1], [0, 0, 1, 1], [], []>} : vector<256x128xbf16>, vector<128x384xbf16>, vector<256x384xf32> -> vector<256x384xf32>
    %33 = arith.truncf %32 : vector<256x384xf32> to vector<256x384xbf16>
    %34 = tpu.iota {dimensions = array<i32: 0>} : vector<128x128xi32>
    %35 = tpu.iota {dimensions = array<i32: 1>} : vector<128x128xi32>
    %36 = arith.cmpi sge, %34, %35 : vector<128x128xi32>
    %37 = vector.extract_strided_slice %33 {offsets = [0, 0], sizes = [128, 384], strides = [1, 1]} : vector<256x384xbf16> to vector<128x384xbf16>
    %38 = vector.extract_strided_slice %37 {offsets = [0, 0], sizes = [128, 32], strides = [1, 1]} : vector<128x384xbf16> to vector<128x32xbf16>
    %39 = vector.extract_strided_slice %37 {offsets = [0, 128], sizes = [128, 32], strides = [1, 1]} : vector<128x384xbf16> to vector<128x32xbf16>
    %40 = vector.extract_strided_slice %37 {offsets = [0, 256], sizes = [128, 32], strides = [1, 1]} : vector<128x384xbf16> to vector<128x32xbf16>
    %cst_13 = arith.constant dense<0.000000e+00> : vector<128x128xf32>
    %41 = tpu.matmul %38, %39, %cst_13 {dimension_numbers = #tpu.dot_dimension_numbers<[1], [1], [0], [0], [0, 0, 1, 0], [], []>} : vector<128x32xbf16>, vector<128x32xbf16>, vector<128x128xf32> -> vector<128x128xf32>
    %cst_14 = arith.constant -1.000000e+30 : f32
    %42 = vector.broadcast %cst_14 : f32 to vector<128x128xf32>
    %43 = arith.select %36, %41, %42 : vector<128x128xi1>, vector<128x128xf32>
    %cst_15 = arith.constant dense<0xFF800000> : vector<128xf32>
    %44 = vector.multi_reduction <maximumf>, %43, %cst_15 [1] : vector<128x128xf32> to vector<128xf32>
    %45 = vector.shape_cast %44 : vector<128xf32> to vector<128x1xf32>
    %46 = vector.broadcast %45 : vector<128x1xf32> to vector<128x128xf32>
    %47 = arith.subf %43, %46 : vector<128x128xf32>
    %48 = math.exp %47 : vector<128x128xf32>
    %cst_16 = arith.constant dense<0.000000e+00> : vector<128xf32>
    %49 = vector.multi_reduction <add>, %48, %cst_16 [1] : vector<128x128xf32> to vector<128xf32>
    %50 = vector.shape_cast %49 : vector<128xf32> to vector<128x1xf32>
    %51 = arith.truncf %48 : vector<128x128xf32> to vector<128x128xbf16>
    %cst_17 = arith.constant dense<0.000000e+00> : vector<128x32xf32>
    %52 = tpu.matmul %51, %40, %cst_17 {dimension_numbers = #tpu.dot_dimension_numbers<[1], [0], [0], [1], [0, 0, 1, 1], [], []>} : vector<128x128xbf16>, vector<128x32xbf16>, vector<128x32xf32> -> vector<128x32xf32>
    %53 = tpu.reciprocal %50 {approx = true} : vector<128x1xf32> -> vector<128x1xf32>
    %54 = vector.broadcast %53 : vector<128x1xf32> to vector<128x32xf32>
    %55 = arith.mulf %52, %54 : vector<128x32xf32>
    %56 = arith.truncf %55 : vector<128x32xf32> to vector<128x32xbf16>
    %c0_18 = arith.constant 0 : index
    %c0_19 = arith.constant 0 : index
    %57 = vector.load %arg14[%c0_18, %c0_19] : memref<256x128xbf16, #tpu.memory_space<vmem>>, vector<128x32xbf16>
    tpu.vector_store %arg14[%c0_18, %c0_19], %56 {strides = array<i32>} : memref<256x128xbf16, #tpu.memory_space<vmem>>, vector<128x32xbf16>,
    %58 = vector.extract_strided_slice %37 {offsets = [0, 32], sizes = [128, 32], strides = [1, 1]} : vector<128x384xbf16> to vector<128x32xbf16>
    %59 = vector.extract_strided_slice %37 {offsets = [0, 160], sizes = [128, 32], strides = [1, 1]} : vector<128x384xbf16> to vector<128x32xbf16>
    %60 = vector.extract_strided_slice %37 {offsets = [0, 288], sizes = [128, 32], strides = [1, 1]} : vector<128x384xbf16> to vector<128x32xbf16>
    %cst_20 = arith.constant dense<0.000000e+00> : vector<128x128xf32>
    %61 = tpu.matmul %58, %59, %cst_20 {dimension_numbers = #tpu.dot_dimension_numbers<[1], [1], [0], [0], [0, 0, 1, 0], [], []>} : vector<128x32xbf16>, vector<128x32xbf16>, vector<128x128xf32> -> vector<128x128xf32>
    %cst_21 = arith.constant -1.000000e+30 : f32
    %62 = vector.broadcast %cst_21 : f32 to vector<128x128xf32>
    %63 = arith.select %36, %61, %62 : vector<128x128xi1>, vector<128x128xf32>
    %cst_22 = arith.constant dense<0xFF800000> : vector<128xf32>
    %64 = vector.multi_reduction <maximumf>, %63, %cst_22 [1] : vector<128x128xf32> to vector<128xf32>
    %65 = vector.shape_cast %64 : vector<128xf32> to vector<128x1xf32>
    %66 = vector.broadcast %65 : vector<128x1xf32> to vector<128x128xf32>
    %67 = arith.subf %63, %66 : vector<128x128xf32>
    %68 = math.exp %67 : vector<128x128xf32>
    %cst_23 = arith.constant dense<0.000000e+00> : vector<128xf32>
    %69 = vector.multi_reduction <add>, %68, %cst_23 [1] : vector<128x128xf32> to vector<128xf32>
    %70 = vector.shape_cast %69 : vector<128xf32> to vector<128x1xf32>
    %71 = arith.truncf %68 : vector<128x128xf32> to vector<128x128xbf16>
    %cst_24 = arith.constant dense<0.000000e+00> : vector<128x32xf32>
    %72 = tpu.matmul %71, %60, %cst_24 {dimension_numbers = #tpu.dot_dimension_numbers<[1], [0], [0], [1], [0, 0, 1, 1], [], []>} : vector<128x128xbf16>, vector<128x32xbf16>, vector<128x32xf32> -> vector<128x32xf32>
    %73 = tpu.reciprocal %70 {approx = true} : vector<128x1xf32> -> vector<128x1xf32>
    %74 = vector.broadcast %73 : vector<128x1xf32> to vector<128x32xf32>
    %75 = arith.mulf %72, %74 : vector<128x32xf32>
    %76 = arith.truncf %75 : vector<128x32xf32> to vector<128x32xbf16>
    %c0_25 = arith.constant 0 : index
    %c32 = arith.constant 32 : index
    %77 = vector.load %arg14[%c0_25, %c32] : memref<256x128xbf16, #tpu.memory_space<vmem>>, vector<128x32xbf16>
    tpu.vector_store %arg14[%c0_25, %c32], %76 {strides = array<i32>} : memref<256x128xbf16, #tpu.memory_space<vmem>>, vector<128x32xbf16>,
    %78 = vector.extract_strided_slice %37 {offsets = [0, 64], sizes = [128, 32], strides = [1, 1]} : vector<128x384xbf16> to vector<128x32xbf16>
    %79 = vector.extract_strided_slice %37 {offsets = [0, 192], sizes = [128, 32], strides = [1, 1]} : vector<128x384xbf16> to vector<128x32xbf16>
    %80 = vector.extract_strided_slice %37 {offsets = [0, 320], sizes = [128, 32], strides = [1, 1]} : vector<128x384xbf16> to vector<128x32xbf16>
    %cst_26 = arith.constant dense<0.000000e+00> : vector<128x128xf32>
    %81 = tpu.matmul %78, %79, %cst_26 {dimension_numbers = #tpu.dot_dimension_numbers<[1], [1], [0], [0], [0, 0, 1, 0], [], []>} : vector<128x32xbf16>, vector<128x32xbf16>, vector<128x128xf32> -> vector<128x128xf32>
    %cst_27 = arith.constant -1.000000e+30 : f32
    %82 = vector.broadcast %cst_27 : f32 to vector<128x128xf32>
    %83 = arith.select %36, %81, %82 : vector<128x128xi1>, vector<128x128xf32>
    %cst_28 = arith.constant dense<0xFF800000> : vector<128xf32>
    %84 = vector.multi_reduction <maximumf>, %83, %cst_28 [1] : vector<128x128xf32> to vector<128xf32>
    %85 = vector.shape_cast %84 : vector<128xf32> to vector<128x1xf32>
    %86 = vector.broadcast %85 : vector<128x1xf32> to vector<128x128xf32>
    %87 = arith.subf %83, %86 : vector<128x128xf32>
    %88 = math.exp %87 : vector<128x128xf32>
    %cst_29 = arith.constant dense<0.000000e+00> : vector<128xf32>
    %89 = vector.multi_reduction <add>, %88, %cst_29 [1] : vector<128x128xf32> to vector<128xf32>
    %90 = vector.shape_cast %89 : vector<128xf32> to vector<128x1xf32>
    %91 = arith.truncf %88 : vector<128x128xf32> to vector<128x128xbf16>
    %cst_30 = arith.constant dense<0.000000e+00> : vector<128x32xf32>
    %92 = tpu.matmul %91, %80, %cst_30 {dimension_numbers = #tpu.dot_dimension_numbers<[1], [0], [0], [1], [0, 0, 1, 1], [], []>} : vector<128x128xbf16>, vector<128x32xbf16>, vector<128x32xf32> -> vector<128x32xf32>
    %93 = tpu.reciprocal %90 {approx = true} : vector<128x1xf32> -> vector<128x1xf32>
    %94 = vector.broadcast %93 : vector<128x1xf32> to vector<128x32xf32>
    %95 = arith.mulf %92, %94 : vector<128x32xf32>
    %96 = arith.truncf %95 : vector<128x32xf32> to vector<128x32xbf16>
    %c0_31 = arith.constant 0 : index
    %c64 = arith.constant 64 : index
    %97 = vector.load %arg14[%c0_31, %c64] : memref<256x128xbf16, #tpu.memory_space<vmem>>, vector<128x32xbf16>
    tpu.vector_store %arg14[%c0_31, %c64], %96 {strides = array<i32>} : memref<256x128xbf16, #tpu.memory_space<vmem>>, vector<128x32xbf16>,
    %98 = vector.extract_strided_slice %37 {offsets = [0, 96], sizes = [128, 32], strides = [1, 1]} : vector<128x384xbf16> to vector<128x32xbf16>
    %99 = vector.extract_strided_slice %37 {offsets = [0, 224], sizes = [128, 32], strides = [1, 1]} : vector<128x384xbf16> to vector<128x32xbf16>
    %100 = vector.extract_strided_slice %37 {offsets = [0, 352], sizes = [128, 32], strides = [1, 1]} : vector<128x384xbf16> to vector<128x32xbf16>
    %cst_32 = arith.constant dense<0.000000e+00> : vector<128x128xf32>
    %101 = tpu.matmul %98, %99, %cst_32 {dimension_numbers = #tpu.dot_dimension_numbers<[1], [1], [0], [0], [0, 0, 1, 0], [], []>} : vector<128x32xbf16>, vector<128x32xbf16>, vector<128x128xf32> -> vector<128x128xf32>
    %cst_33 = arith.constant -1.000000e+30 : f32
    %102 = vector.broadcast %cst_33 : f32 to vector<128x128xf32>
    %103 = arith.select %36, %101, %102 : vector<128x128xi1>, vector<128x128xf32>
    %cst_34 = arith.constant dense<0xFF800000> : vector<128xf32>
    %104 = vector.multi_reduction <maximumf>, %103, %cst_34 [1] : vector<128x128xf32> to vector<128xf32>
    %105 = vector.shape_cast %104 : vector<128xf32> to vector<128x1xf32>
    %106 = vector.broadcast %105 : vector<128x1xf32> to vector<128x128xf32>
    %107 = arith.subf %103, %106 : vector<128x128xf32>
    %108 = math.exp %107 : vector<128x128xf32>
    %cst_35 = arith.constant dense<0.000000e+00> : vector<128xf32>
    %109 = vector.multi_reduction <add>, %108, %cst_35 [1] : vector<128x128xf32> to vector<128xf32>
    %110 = vector.shape_cast %109 : vector<128xf32> to vector<128x1xf32>
    %111 = arith.truncf %108 : vector<128x128xf32> to vector<128x128xbf16>
    %cst_36 = arith.constant dense<0.000000e+00> : vector<128x32xf32>
    %112 = tpu.matmul %111, %100, %cst_36 {dimension_numbers = #tpu.dot_dimension_numbers<[1], [0], [0], [1], [0, 0, 1, 1], [], []>} : vector<128x128xbf16>, vector<128x32xbf16>, vector<128x32xf32> -> vector<128x32xf32>
    %113 = tpu.reciprocal %110 {approx = true} : vector<128x1xf32> -> vector<128x1xf32>
    %114 = vector.broadcast %113 : vector<128x1xf32> to vector<128x32xf32>
    %115 = arith.mulf %112, %114 : vector<128x32xf32>
    %116 = arith.truncf %115 : vector<128x32xf32> to vector<128x32xbf16>
    %c0_37 = arith.constant 0 : index
    %c96 = arith.constant 96 : index
    %117 = vector.load %arg14[%c0_37, %c96] : memref<256x128xbf16, #tpu.memory_space<vmem>>, vector<128x32xbf16>
    tpu.vector_store %arg14[%c0_37, %c96], %116 {strides = array<i32>} : memref<256x128xbf16, #tpu.memory_space<vmem>>, vector<128x32xbf16>,
    %118 = vector.extract_strided_slice %33 {offsets = [128, 0], sizes = [128, 384], strides = [1, 1]} : vector<256x384xbf16> to vector<128x384xbf16>
    %119 = vector.extract_strided_slice %118 {offsets = [0, 0], sizes = [128, 32], strides = [1, 1]} : vector<128x384xbf16> to vector<128x32xbf16>
    %120 = vector.extract_strided_slice %118 {offsets = [0, 128], sizes = [128, 32], strides = [1, 1]} : vector<128x384xbf16> to vector<128x32xbf16>
    %121 = vector.extract_strided_slice %118 {offsets = [0, 256], sizes = [128, 32], strides = [1, 1]} : vector<128x384xbf16> to vector<128x32xbf16>
    %cst_38 = arith.constant dense<0.000000e+00> : vector<128x128xf32>
    %122 = tpu.matmul %119, %120, %cst_38 {dimension_numbers = #tpu.dot_dimension_numbers<[1], [1], [0], [0], [0, 0, 1, 0], [], []>} : vector<128x32xbf16>, vector<128x32xbf16>, vector<128x128xf32> -> vector<128x128xf32>
    %cst_39 = arith.constant -1.000000e+30 : f32
    %123 = vector.broadcast %cst_39 : f32 to vector<128x128xf32>
    %124 = arith.select %36, %122, %123 : vector<128x128xi1>, vector<128x128xf32>
    %cst_40 = arith.constant dense<0xFF800000> : vector<128xf32>
    %125 = vector.multi_reduction <maximumf>, %124, %cst_40 [1] : vector<128x128xf32> to vector<128xf32>
    %126 = vector.shape_cast %125 : vector<128xf32> to vector<128x1xf32>
    %127 = vector.broadcast %126 : vector<128x1xf32> to vector<128x128xf32>
    %128 = arith.subf %124, %127 : vector<128x128xf32>
    %129 = math.exp %128 : vector<128x128xf32>
    %cst_41 = arith.constant dense<0.000000e+00> : vector<128xf32>
    %130 = vector.multi_reduction <add>, %129, %cst_41 [1] : vector<128x128xf32> to vector<128xf32>
    %131 = vector.shape_cast %130 : vector<128xf32> to vector<128x1xf32>
    %132 = arith.truncf %129 : vector<128x128xf32> to vector<128x128xbf16>
    %cst_42 = arith.constant dense<0.000000e+00> : vector<128x32xf32>
    %133 = tpu.matmul %132, %121, %cst_42 {dimension_numbers = #tpu.dot_dimension_numbers<[1], [0], [0], [1], [0, 0, 1, 1], [], []>} : vector<128x128xbf16>, vector<128x32xbf16>, vector<128x32xf32> -> vector<128x32xf32>
    %134 = tpu.reciprocal %131 {approx = true} : vector<128x1xf32> -> vector<128x1xf32>
    %135 = vector.broadcast %134 : vector<128x1xf32> to vector<128x32xf32>
    %136 = arith.mulf %133, %135 : vector<128x32xf32>
    %137 = arith.truncf %136 : vector<128x32xf32> to vector<128x32xbf16>
    %c128 = arith.constant 128 : index
    %c0_43 = arith.constant 0 : index
    %138 = vector.load %arg14[%c128, %c0_43] : memref<256x128xbf16, #tpu.memory_space<vmem>>, vector<128x32xbf16>
    tpu.vector_store %arg14[%c128, %c0_43], %137 {strides = array<i32>} : memref<256x128xbf16, #tpu.memory_space<vmem>>, vector<128x32xbf16>,
    %139 = vector.extract_strided_slice %118 {offsets = [0, 32], sizes = [128, 32], strides = [1, 1]} : vector<128x384xbf16> to vector<128x32xbf16>
    %140 = vector.extract_strided_slice %118 {offsets = [0, 160], sizes = [128, 32], strides = [1, 1]} : vector<128x384xbf16> to vector<128x32xbf16>
    %141 = vector.extract_strided_slice %118 {offsets = [0, 288], sizes = [128, 32], strides = [1, 1]} : vector<128x384xbf16> to vector<128x32xbf16>
    %cst_44 = arith.constant dense<0.000000e+00> : vector<128x128xf32>
    %142 = tpu.matmul %139, %140, %cst_44 {dimension_numbers = #tpu.dot_dimension_numbers<[1], [1], [0], [0], [0, 0, 1, 0], [], []>} : vector<128x32xbf16>, vector<128x32xbf16>, vector<128x128xf32> -> vector<128x128xf32>
    %cst_45 = arith.constant -1.000000e+30 : f32
    %143 = vector.broadcast %cst_45 : f32 to vector<128x128xf32>
    %144 = arith.select %36, %142, %143 : vector<128x128xi1>, vector<128x128xf32>
    %cst_46 = arith.constant dense<0xFF800000> : vector<128xf32>
    %145 = vector.multi_reduction <maximumf>, %144, %cst_46 [1] : vector<128x128xf32> to vector<128xf32>
    %146 = vector.shape_cast %145 : vector<128xf32> to vector<128x1xf32>
    %147 = vector.broadcast %146 : vector<128x1xf32> to vector<128x128xf32>
    %148 = arith.subf %144, %147 : vector<128x128xf32>
    %149 = math.exp %148 : vector<128x128xf32>
    %cst_47 = arith.constant dense<0.000000e+00> : vector<128xf32>
    %150 = vector.multi_reduction <add>, %149, %cst_47 [1] : vector<128x128xf32> to vector<128xf32>
    %151 = vector.shape_cast %150 : vector<128xf32> to vector<128x1xf32>
    %152 = arith.truncf %149 : vector<128x128xf32> to vector<128x128xbf16>
    %cst_48 = arith.constant dense<0.000000e+00> : vector<128x32xf32>
    %153 = tpu.matmul %152, %141, %cst_48 {dimension_numbers = #tpu.dot_dimension_numbers<[1], [0], [0], [1], [0, 0, 1, 1], [], []>} : vector<128x128xbf16>, vector<128x32xbf16>, vector<128x32xf32> -> vector<128x32xf32>
    %154 = tpu.reciprocal %151 {approx = true} : vector<128x1xf32> -> vector<128x1xf32>
    %155 = vector.broadcast %154 : vector<128x1xf32> to vector<128x32xf32>
    %156 = arith.mulf %153, %155 : vector<128x32xf32>
    %157 = arith.truncf %156 : vector<128x32xf32> to vector<128x32xbf16>
    %c128_49 = arith.constant 128 : index
    %c32_50 = arith.constant 32 : index
    %158 = vector.load %arg14[%c128_49, %c32_50] : memref<256x128xbf16, #tpu.memory_space<vmem>>, vector<128x32xbf16>
    tpu.vector_store %arg14[%c128_49, %c32_50], %157 {strides = array<i32>} : memref<256x128xbf16, #tpu.memory_space<vmem>>, vector<128x32xbf16>,
    %159 = vector.extract_strided_slice %118 {offsets = [0, 64], sizes = [128, 32], strides = [1, 1]} : vector<128x384xbf16> to vector<128x32xbf16>
    %160 = vector.extract_strided_slice %118 {offsets = [0, 192], sizes = [128, 32], strides = [1, 1]} : vector<128x384xbf16> to vector<128x32xbf16>
    %161 = vector.extract_strided_slice %118 {offsets = [0, 320], sizes = [128, 32], strides = [1, 1]} : vector<128x384xbf16> to vector<128x32xbf16>
    %cst_51 = arith.constant dense<0.000000e+00> : vector<128x128xf32>
    %162 = tpu.matmul %159, %160, %cst_51 {dimension_numbers = #tpu.dot_dimension_numbers<[1], [1], [0], [0], [0, 0, 1, 0], [], []>} : vector<128x32xbf16>, vector<128x32xbf16>, vector<128x128xf32> -> vector<128x128xf32>
    %cst_52 = arith.constant -1.000000e+30 : f32
    %163 = vector.broadcast %cst_52 : f32 to vector<128x128xf32>
    %164 = arith.select %36, %162, %163 : vector<128x128xi1>, vector<128x128xf32>
    %cst_53 = arith.constant dense<0xFF800000> : vector<128xf32>
    %165 = vector.multi_reduction <maximumf>, %164, %cst_53 [1] : vector<128x128xf32> to vector<128xf32>
    %166 = vector.shape_cast %165 : vector<128xf32> to vector<128x1xf32>
    %167 = vector.broadcast %166 : vector<128x1xf32> to vector<128x128xf32>
    %168 = arith.subf %164, %167 : vector<128x128xf32>
    %169 = math.exp %168 : vector<128x128xf32>
    %cst_54 = arith.constant dense<0.000000e+00> : vector<128xf32>
    %170 = vector.multi_reduction <add>, %169, %cst_54 [1] : vector<128x128xf32> to vector<128xf32>
    %171 = vector.shape_cast %170 : vector<128xf32> to vector<128x1xf32>
    %172 = arith.truncf %169 : vector<128x128xf32> to vector<128x128xbf16>
    %cst_55 = arith.constant dense<0.000000e+00> : vector<128x32xf32>
    %173 = tpu.matmul %172, %161, %cst_55 {dimension_numbers = #tpu.dot_dimension_numbers<[1], [0], [0], [1], [0, 0, 1, 1], [], []>} : vector<128x128xbf16>, vector<128x32xbf16>, vector<128x32xf32> -> vector<128x32xf32>
    %174 = tpu.reciprocal %171 {approx = true} : vector<128x1xf32> -> vector<128x1xf32>
    %175 = vector.broadcast %174 : vector<128x1xf32> to vector<128x32xf32>
    %176 = arith.mulf %173, %175 : vector<128x32xf32>
    %177 = arith.truncf %176 : vector<128x32xf32> to vector<128x32xbf16>
    %c128_56 = arith.constant 128 : index
    %c64_57 = arith.constant 64 : index
    %178 = vector.load %arg14[%c128_56, %c64_57] : memref<256x128xbf16, #tpu.memory_space<vmem>>, vector<128x32xbf16>
    tpu.vector_store %arg14[%c128_56, %c64_57], %177 {strides = array<i32>} : memref<256x128xbf16, #tpu.memory_space<vmem>>, vector<128x32xbf16>,
    %179 = vector.extract_strided_slice %118 {offsets = [0, 96], sizes = [128, 32], strides = [1, 1]} : vector<128x384xbf16> to vector<128x32xbf16>
    %180 = vector.extract_strided_slice %118 {offsets = [0, 224], sizes = [128, 32], strides = [1, 1]} : vector<128x384xbf16> to vector<128x32xbf16>
    %181 = vector.extract_strided_slice %118 {offsets = [0, 352], sizes = [128, 32], strides = [1, 1]} : vector<128x384xbf16> to vector<128x32xbf16>
    %cst_58 = arith.constant dense<0.000000e+00> : vector<128x128xf32>
    %182 = tpu.matmul %179, %180, %cst_58 {dimension_numbers = #tpu.dot_dimension_numbers<[1], [1], [0], [0], [0, 0, 1, 0], [], []>} : vector<128x32xbf16>, vector<128x32xbf16>, vector<128x128xf32> -> vector<128x128xf32>
    %cst_59 = arith.constant -1.000000e+30 : f32
    %183 = vector.broadcast %cst_59 : f32 to vector<128x128xf32>
    %184 = arith.select %36, %182, %183 : vector<128x128xi1>, vector<128x128xf32>
    %cst_60 = arith.constant dense<0xFF800000> : vector<128xf32>
    %185 = vector.multi_reduction <maximumf>, %184, %cst_60 [1] : vector<128x128xf32> to vector<128xf32>
    %186 = vector.shape_cast %185 : vector<128xf32> to vector<128x1xf32>
    %187 = vector.broadcast %186 : vector<128x1xf32> to vector<128x128xf32>
    %188 = arith.subf %184, %187 : vector<128x128xf32>
    %189 = math.exp %188 : vector<128x128xf32>
    %cst_61 = arith.constant dense<0.000000e+00> : vector<128xf32>
    %190 = vector.multi_reduction <add>, %189, %cst_61 [1] : vector<128x128xf32> to vector<128xf32>
    %191 = vector.shape_cast %190 : vector<128xf32> to vector<128x1xf32>
    %192 = arith.truncf %189 : vector<128x128xf32> to vector<128x128xbf16>
    %cst_62 = arith.constant dense<0.000000e+00> : vector<128x32xf32>
    %193 = tpu.matmul %192, %181, %cst_62 {dimension_numbers = #tpu.dot_dimension_numbers<[1], [0], [0], [1], [0, 0, 1, 1], [], []>} : vector<128x128xbf16>, vector<128x32xbf16>, vector<128x32xf32> -> vector<128x32xf32>
    %194 = tpu.reciprocal %191 {approx = true} : vector<128x1xf32> -> vector<128x1xf32>
    %195 = vector.broadcast %194 : vector<128x1xf32> to vector<128x32xf32>
    %196 = arith.mulf %193, %195 : vector<128x32xf32>
    %197 = arith.truncf %196 : vector<128x32xf32> to vector<128x32xbf16>
    %c128_63 = arith.constant 128 : index
    %c96_64 = arith.constant 96 : index
    %198 = vector.load %arg14[%c128_63, %c96_64] : memref<256x128xbf16, #tpu.memory_space<vmem>>, vector<128x32xbf16>
    tpu.vector_store %arg14[%c128_63, %c96_64], %197 {strides = array<i32>} : memref<256x128xbf16, #tpu.memory_space<vmem>>, vector<128x32xbf16>,
    %c0_65 = arith.constant 0 : index
    %c0_66 = arith.constant 0 : index
    %199 = vector.load %arg14[%c0_65, %c0_66] : memref<256x128xbf16, #tpu.memory_space<vmem>>, vector<256x128xbf16>
    %c0_67 = arith.constant 0 : index
    %c0_68 = arith.constant 0 : index
    %200 = vector.load %arg5[%c0_67, %c0_68] : memref<128x128xbf16, #tpu.memory_space<vmem>>, vector<128x128xbf16>
    %cst_69 = arith.constant dense<0.000000e+00> : vector<256x128xf32>
    %201 = tpu.matmul %199, %200, %cst_69 {dimension_numbers = #tpu.dot_dimension_numbers<[1], [0], [0], [1], [0, 0, 1, 1], [], []>} : vector<256x128xbf16>, vector<128x128xbf16>, vector<256x128xf32> -> vector<256x128xf32>
    %202 = arith.addf %1, %201 : vector<256x128xf32>
    %c0_70 = arith.constant 0 : index
    %c0_71 = arith.constant 0 : index
    %203 = vector.load %arg6[%c0_70, %c0_71] : memref<1x128xf32, #tpu.memory_space<vmem>>, vector<1x128xf32>
    %204 = vector.shape_cast %203 : vector<1x128xf32> to vector<128xf32>
    %205 = vector.shape_cast %204 : vector<128xf32> to vector<1x128xf32>
    %206 = vector.broadcast %205 : vector<1x128xf32> to vector<256x128xf32>
    %207 = arith.addf %202, %206 : vector<256x128xf32>
    %c0_72 = arith.constant 0 : index
    %c0_73 = arith.constant 0 : index
    %208 = vector.load %arg7[%c0_72, %c0_73] : memref<1x128xf32, #tpu.memory_space<vmem>>, vector<1x128xf32>
    %209 = vector.shape_cast %208 : vector<1x128xf32> to vector<128xf32>
    %c0_74 = arith.constant 0 : index
    %c0_75 = arith.constant 0 : index
    %210 = vector.load %arg8[%c0_74, %c0_75] : memref<1x128xf32, #tpu.memory_space<vmem>>, vector<1x128xf32>
    %211 = vector.shape_cast %210 : vector<1x128xf32> to vector<128xf32>
    %cst_76 = arith.constant dense<0.000000e+00> : vector<256xf32>
    %212 = vector.multi_reduction <add>, %207, %cst_76 [1] : vector<256x128xf32> to vector<256xf32>
    %213 = vector.shape_cast %212 : vector<256xf32> to vector<256x1xf32>
    %cst_77 = arith.constant 1.280000e+02 : f32
    %214 = vector.broadcast %cst_77 : f32 to vector<256x1xf32>
    %215 = arith.divf %213, %214 : vector<256x1xf32>
    %216 = vector.broadcast %215 : vector<256x1xf32> to vector<256x128xf32>
    %217 = arith.subf %207, %216 : vector<256x128xf32>
    %218 = arith.mulf %217, %217 : vector<256x128xf32>
    %cst_78 = arith.constant dense<0.000000e+00> : vector<256xf32>
    %219 = vector.multi_reduction <add>, %218, %cst_78 [1] : vector<256x128xf32> to vector<256xf32>
    %220 = vector.shape_cast %219 : vector<256xf32> to vector<256x1xf32>
    %cst_79 = arith.constant 1.280000e+02 : f32
    %221 = vector.broadcast %cst_79 : f32 to vector<256x1xf32>
    %222 = arith.divf %220, %221 : vector<256x1xf32>
    %223 = vector.broadcast %215 : vector<256x1xf32> to vector<256x128xf32>
    %224 = arith.subf %207, %223 : vector<256x128xf32>
    %cst_80 = arith.constant 9.99999974E-6 : f32
    %225 = vector.broadcast %cst_80 : f32 to vector<256x1xf32>
    %226 = arith.addf %222, %225 : vector<256x1xf32>
    %227 = math.rsqrt %226 : vector<256x1xf32>
    %228 = vector.broadcast %227 : vector<256x1xf32> to vector<256x128xf32>
    %229 = arith.mulf %224, %228 : vector<256x128xf32>
    %230 = vector.shape_cast %209 : vector<128xf32> to vector<1x128xf32>
    %231 = vector.broadcast %230 : vector<1x128xf32> to vector<256x128xf32>
    %232 = arith.mulf %229, %231 : vector<256x128xf32>
    %233 = vector.shape_cast %211 : vector<128xf32> to vector<1x128xf32>
    %234 = vector.broadcast %233 : vector<1x128xf32> to vector<256x128xf32>
    %235 = arith.addf %232, %234 : vector<256x128xf32>
    %236 = arith.truncf %235 : vector<256x128xf32> to vector<256x128xbf16>
    %c0_81 = arith.constant 0 : index
    %c0_82 = arith.constant 0 : index
    %237 = vector.load %arg9[%c0_81, %c0_82] : memref<128x512xbf16, #tpu.memory_space<vmem>>, vector<128x512xbf16>
    %cst_83 = arith.constant dense<0.000000e+00> : vector<256x512xf32>
    %238 = tpu.matmul %236, %237, %cst_83 {dimension_numbers = #tpu.dot_dimension_numbers<[1], [0], [0], [1], [0, 0, 1, 1], [], []>} : vector<256x128xbf16>, vector<128x512xbf16>, vector<256x512xf32> -> vector<256x512xf32>
    %c0_84 = arith.constant 0 : index
    %c0_85 = arith.constant 0 : index
    %239 = vector.load %arg10[%c0_84, %c0_85] : memref<1x512xf32, #tpu.memory_space<vmem>>, vector<1x512xf32>
    %240 = vector.shape_cast %239 : vector<1x512xf32> to vector<512xf32>
    %241 = vector.shape_cast %240 : vector<512xf32> to vector<1x512xf32>
    %242 = vector.broadcast %241 : vector<1x512xf32> to vector<256x512xf32>
    %243 = arith.addf %238, %242 : vector<256x512xf32>
    %cst_86 = arith.constant 0.000000e+00 : f32
    %244 = vector.broadcast %cst_86 : f32 to vector<256x512xf32>
    %245 = arith.maximumf %243, %244 : vector<256x512xf32>
    %246 = arith.truncf %245 : vector<256x512xf32> to vector<256x512xbf16>
    %c0_87 = arith.constant 0 : index
    %c0_88 = arith.constant 0 : index
    %247 = vector.load %arg11[%c0_87, %c0_88] : memref<512x128xbf16, #tpu.memory_space<vmem>>, vector<512x128xbf16>
    %cst_89 = arith.constant dense<0.000000e+00> : vector<256x128xf32>
    %248 = tpu.matmul %246, %247, %cst_89 {dimension_numbers = #tpu.dot_dimension_numbers<[1], [0], [0], [1], [0, 0, 1, 1], [], []>} : vector<256x512xbf16>, vector<512x128xbf16>, vector<256x128xf32> -> vector<256x128xf32>
    %c0_90 = arith.constant 0 : index
    %c0_91 = arith.constant 0 : index
    %249 = vector.load %arg12[%c0_90, %c0_91] : memref<1x128xf32, #tpu.memory_space<vmem>>, vector<1x128xf32>
    %250 = vector.shape_cast %249 : vector<1x128xf32> to vector<128xf32>
    %251 = vector.shape_cast %250 : vector<128xf32> to vector<1x128xf32>
    %252 = vector.broadcast %251 : vector<1x128xf32> to vector<256x128xf32>
    %253 = arith.addf %248, %252 : vector<256x128xf32>
    %254 = arith.addf %207, %253 : vector<256x128xf32>
    %255 = vector.shape_cast %254 : vector<256x128xf32> to vector<2x128x128xf32>
    %c0_92 = arith.constant 0 : index
    %c0_93 = arith.constant 0 : index
    %c0_94 = arith.constant 0 : index
    %256 = vector.load %arg13[%c0_92, %c0_93, %c0_94] : memref<2x128x128xf32, #tpu.memory_space<vmem>>, vector<2x128x128xf32>
    tpu.vector_store %arg13[%c0_92, %c0_93, %c0_94], %255 {strides = array<i32>} : memref<2x128x128xf32, #tpu.memory_space<vmem>>, vector<2x128x128xf32>,
    return
  }
  func.func @transform_0(%arg0: i32) -> (i32, i32, i32) {
    %c0_i32 = arith.constant 0 : i32
    %c0_i32_0 = arith.constant 0 : i32
    %c0_i32_1 = arith.constant 0 : i32
    return %arg0, %c0_i32, %c0_i32_0 : i32, i32, i32
  }
  func.func @transform_1(%arg0: i32) -> (i32, i32) {
    %c0_i32 = arith.constant 0 : i32
    %c0_i32_0 = arith.constant 0 : i32
    %c0_i32_1 = arith.constant 0 : i32
    return %c0_i32, %c0_i32_0 : i32, i32
  }
  func.func @transform_2(%arg0: i32) -> (i32, i32) {
    %c0_i32 = arith.constant 0 : i32
    %c0_i32_0 = arith.constant 0 : i32
    %c0_i32_1 = arith.constant 0 : i32
    return %c0_i32, %c0_i32_0 : i32, i32
  }
  func.func @transform_3(%arg0: i32) -> (i32, i32) {
    %c0_i32 = arith.constant 0 : i32
    %c0_i32_0 = arith.constant 0 : i32
    %c0_i32_1 = arith.constant 0 : i32
    return %c0_i32, %c0_i32_0 : i32, i32
  }
  func.func @transform_4(%arg0: i32) -> (i32, i32) {
    %c0_i32 = arith.constant 0 : i32
    %c0_i32_0 = arith.constant 0 : i32
    %c0_i32_1 = arith.constant 0 : i32
    return %c0_i32, %c0_i32_0 : i32, i32
  }
  func.func @transform_5(%arg0: i32) -> (i32, i32) {
    %c0_i32 = arith.constant 0 : i32
    %c0_i32_0 = arith.constant 0 : i32
    %c0_i32_1 = arith.constant 0 : i32
    return %c0_i32, %c0_i32_0 : i32, i32
  }
  func.func @transform_6(%arg0: i32) -> (i32, i32) {
    %c0_i32 = arith.constant 0 : i32
    %c0_i32_0 = arith.constant 0 : i32
    %c0_i32_1 = arith.constant 0 : i32
    return %c0_i32, %c0_i32_0 : i32, i32
  }
  func.func @transform_7(%arg0: i32) -> (i32, i32) {
    %c0_i32 = arith.constant 0 : i32
    %c0_i32_0 = arith.constant 0 : i32
    %c0_i32_1 = arith.constant 0 : i32
    return %c0_i32, %c0_i32_0 : i32, i32
  }
  func.func @transform_8(%arg0: i32) -> (i32, i32) {
    %c0_i32 = arith.constant 0 : i32
    %c0_i32_0 = arith.constant 0 : i32
    %c0_i32_1 = arith.constant 0 : i32
    return %c0_i32, %c0_i32_0 : i32, i32
  }
  func.func @transform_9(%arg0: i32) -> (i32, i32) {
    %c0_i32 = arith.constant 0 : i32
    %c0_i32_0 = arith.constant 0 : i32
    %c0_i32_1 = arith.constant 0 : i32
    return %c0_i32, %c0_i32_0 : i32, i32
  }
  func.func @transform_10(%arg0: i32) -> (i32, i32) {
    %c0_i32 = arith.constant 0 : i32
    %c0_i32_0 = arith.constant 0 : i32
    %c0_i32_1 = arith.constant 0 : i32
    return %c0_i32, %c0_i32_0 : i32, i32
  }
  func.func @transform_11(%arg0: i32) -> (i32, i32) {
    %c0_i32 = arith.constant 0 : i32
    %c0_i32_0 = arith.constant 0 : i32
    %c0_i32_1 = arith.constant 0 : i32
    return %c0_i32, %c0_i32_0 : i32, i32
  }
  func.func @transform_12(%arg0: i32) -> (i32, i32, i32) {
    %c0_i32 = arith.constant 0 : i32
    %c0_i32_0 = arith.constant 0 : i32
    %c0_i32_1 = arith.constant 0 : i32
    return %arg0, %c0_i32, %c0_i32_0 : i32, i32, i32
  }
}

</mosaic_0001>

<llo_original>
// kernel: transformer_block.1
$region0: #{transformer_block.1}
  #allocation0 [shape = 'u32[]', space=smem, size = 0x4, offset = 0x4, fixed_abs, tag = 'smem constant byte address 0x4 - core index']
  #allocation1 [shape = 'u32[144,128]{1,0:T(1,128)}', space=vmem, size = 0x12000, scoped, tag = 'internal scratch']
  #allocation2 [shape = 'bf16[256,128]{1,0:T(8,128)(2,1)}', space=vmem, size = 0x10000, scoped, tag = 'scratch operand']
  %s0 = inlined_call_operand.vmem [shape: f32[2,128,128], index: 0, kind: input, shape index: {}]
  %s1 = inlined_call_operand.vmem [shape: f32[1,128], index: 1, kind: input, shape index: {}]
  %s2 = inlined_call_operand.vmem [shape: f32[1,128], index: 2, kind: input, shape index: {}]
  %s3 = inlined_call_operand.vmem [shape: bf16[128,384], index: 3, kind: input, shape index: {}]
  %s4 = inlined_call_operand.vmem [shape: bf16[128,128], index: 4, kind: input, shape index: {}]
  %s5 = inlined_call_operand.vmem [shape: f32[1,128], index: 5, kind: input, shape index: {}]
  %s6 = inlined_call_operand.vmem [shape: f32[1,128], index: 6, kind: input, shape index: {}]
  %s7 = inlined_call_operand.vmem [shape: f32[1,128], index: 7, kind: input, shape index: {}]
  %s8 = inlined_call_operand.vmem [shape: bf16[128,512], index: 8, kind: input, shape index: {}]
  %s9 = inlined_call_operand.vmem [shape: f32[1,512], index: 9, kind: input, shape index: {}]
  %s10 = inlined_call_operand.vmem [shape: bf16[512,128], index: 10, kind: input, shape index: {}]
  %s11 = inlined_call_operand.vmem [shape: f32[1,128], index: 11, kind: input, shape index: {}]
  %s12 = inlined_call_operand.hbm [shape: f32[2,128,128], index: 12, kind: output, shape index: {}]
  %s13 = sld [smem:[#allocation0]]
  $region58: #{transformer_block.1} parent=0
    _
  %s15 = ssub.s32 1, %s13
  %s16 = scalar_select 0, %s15, %s13
  $region1: #{transformer_block.1} parent=0
    #allocation3 [shape = 'u8[131072]{0}', space=vmem, size = 0x20000, scoped, tag = 'output window, operand 0, single buffered']
    #allocation4 [shape = 's32[1]{0}', space=sflag, size = 0x4, scoped, tag = 'scoped memory for transformer_block.1']
    %17 = vsyncpa [#allocation4], 0
    // Predicated region
    $region2: #{transformer_block.1} parent=1 // pred_check
      _
    $region3: #{transformer_block.1} parent=1 // pred_check_branch
      %19 = sbr.rel (0) target = $region5
    $region4: #{transformer_block.1} parent=1 // pred_region
      _
    $region5: #{transformer_block.1} parent=1 // pred_fallthru
      _
    // Predicated region
    $region6: #{transformer_block.1} parent=1 // pred_check
      _
    $region7: #{transformer_block.1} parent=1 // pred_check_branch
      %21 = sbr.rel (0) target = $region9
    $region8: #{transformer_block.1} parent=1 // pred_region
      _
    $region9: #{transformer_block.1} parent=1 // pred_fallthru
      _
    // Predicated region
    $region10: #{transformer_block.1} parent=1 // pred_check
      _
    $region11: #{transformer_block.1} parent=1 // pred_check_branch
      %23 = sbr.rel (0) target = $region13
    $region12: #{transformer_block.1} parent=1 // pred_region
      _
    $region13: #{transformer_block.1} parent=1 // pred_fallthru
      _
    // Predicated region
    $region14: #{transformer_block.1} parent=1 // pred_check
      _
    $region15: #{transformer_block.1} parent=1 // pred_check_branch
      %25 = sbr.rel (0) target = $region17
    $region16: #{transformer_block.1} parent=1 // pred_region
      _
    $region17: #{transformer_block.1} parent=1 // pred_fallthru
      _
    // Predicated region
    $region18: #{transformer_block.1} parent=1 // pred_check
      _
    $region19: #{transformer_block.1} parent=1 // pred_check_branch
      %27 = sbr.rel (0) target = $region21
    $region20: #{transformer_block.1} parent=1 // pred_region
      _
    $region21: #{transformer_block.1} parent=1 // pred_fallthru
      _
    // Predicated region
    $region22: #{transformer_block.1} parent=1 // pred_check
      _
    $region23: #{transformer_block.1} parent=1 // pred_check_branch
      %29 = sbr.rel (0) target = $region25
    $region24: #{transformer_block.1} parent=1 // pred_region
      _
    $region25: #{transformer_block.1} parent=1 // pred_fallthru
      _
    // Predicated region
    $region26: #{transformer_block.1} parent=1 // pred_check
      _
    $region27: #{transformer_block.1} parent=1 // pred_check_branch
      %31 = sbr.rel (0) target = $region29
    $region28: #{transformer_block.1} parent=1 // pred_region
      _
    $region29: #{transformer_block.1} parent=1 // pred_fallthru
      _
    // Predicated region
    $region30: #{transformer_block.1} parent=1 // pred_check
      _
    $region31: #{transformer_block.1} parent=1 // pred_check_branch
      %33 = sbr.rel (0) target = $region33
    $region32: #{transformer_block.1} parent=1 // pred_region
      _
    $region33: #{transformer_block.1} parent=1 // pred_fallthru
      _
    // Predicated region
    $region34: #{transformer_block.1} parent=1 // pred_check
      _
    $region35: #{transformer_block.1} parent=1 // pred_check_branch
      %35 = sbr.rel (0) target = $region37
    $region36: #{transformer_block.1} parent=1 // pred_region
      _
    $region37: #{transformer_block.1} parent=1 // pred_fallthru
      _
    // Predicated region
    $region38: #{transformer_block.1} parent=1 // pred_check
      _
    $region39: #{transformer_block.1} parent=1 // pred_check_branch
      %37 = sbr.rel (0) target = $region41
    $region40: #{transformer_block.1} parent=1 // pred_region
      _
    $region41: #{transformer_block.1} parent=1 // pred_fallthru
      _
    // Predicated region
    $region42: #{transformer_block.1} parent=1 // pred_check
      _
    $region43: #{transformer_block.1} parent=1 // pred_check_branch
      %39 = sbr.rel (0) target = $region45
    $region44: #{transformer_block.1} parent=1 // pred_region
      _
    $region45: #{transformer_block.1} parent=1 // pred_fallthru
      _
    // Predicated region
    $region46: #{transformer_block.1} parent=1 // pred_check
      _
    $region47: #{transformer_block.1} parent=1 // pred_check_branch
      %41 = sbr.rel (0) target = $region49
    $region48: #{transformer_block.1} parent=1 // pred_region
      _
    $region49: #{transformer_block.1} parent=1 // pred_fallthru
      _
    %v43 = vld [vmem:[%s0] sm:$0xff]
    %v44 = vld [vmem:[%s0 + $0x8] sm:$0xff]
    %v45 = vld [vmem:[%s0 + $0x10] sm:$0xff]
    %v46 = vld [vmem:[%s0 + $0x18] sm:$0xff]
    %v47 = vld [vmem:[%s0 + $0x20] sm:$0xff]
    %v48 = vld [vmem:[%s0 + $0x28] sm:$0xff]
    %v49 = vld [vmem:[%s0 + $0x30] sm:$0xff]
    %v50 = vld [vmem:[%s0 + $0x38] sm:$0xff]
    %v51 = vld [vmem:[%s0 + $0x40] sm:$0xff]
    %v52 = vld [vmem:[%s0 + $0x48] sm:$0xff]
    %v53 = vld [vmem:[%s0 + $0x50] sm:$0xff]
    %v54 = vld [vmem:[%s0 + $0x58] sm:$0xff]
    %v55 = vld [vmem:[%s0 + $0x60] sm:$0xff]
    %v56 = vld [vmem:[%s0 + $0x68] sm:$0xff]
    %v57 = vld [vmem:[%s0 + $0x70] sm:$0xff]
    %v58 = vld [vmem:[%s0 + $0x78] sm:$0xff]
    %v59 = vld [vmem:[%s0 + $0x80] sm:$0xff]
    %v60 = vld [vmem:[%s0 + $0x88] sm:$0xff]
    %v61 = vld [vmem:[%s0 + $0x90] sm:$0xff]
    %v62 = vld [vmem:[%s0 + $0x98] sm:$0xff]
    %v63 = vld [vmem:[%s0 + $0xa0] sm:$0xff]
    %v64 = vld [vmem:[%s0 + $0xa8] sm:$0xff]
    %v65 = vld [vmem:[%s0 + $0xb0] sm:$0xff]
    %v66 = vld [vmem:[%s0 + $0xb8] sm:$0xff]
    %v67 = vld [vmem:[%s0 + $0xc0] sm:$0xff]
    %v68 = vld [vmem:[%s0 + $0xc8] sm:$0xff]
    %v69 = vld [vmem:[%s0 + $0xd0] sm:$0xff]
    %v70 = vld [vmem:[%s0 + $0xd8] sm:$0xff]
    %v71 = vld [vmem:[%s0 + $0xe0] sm:$0xff]
    %v72 = vld [vmem:[%s0 + $0xe8] sm:$0xff]
    %v73 = vld [vmem:[%s0 + $0xf0] sm:$0xff]
    %v74 = vld [vmem:[%s0 + $0xf8] sm:$0xff]
    %v75 = vld [vmem:[%s1] sm:$0x1]
    %v76 = vld [vmem:[%s2] sm:$0x1]
    %77 = vadd.xlane.f32.xlu0 %v43
    %v78 = vpop.xlane.xlu0 %77
    %79 = vadd.xlane.f32.xlu0 %v44
    %v80 = vpop.xlane.xlu0 %79
    %81 = vadd.xlane.f32.xlu0 %v45
    %v82 = vpop.xlane.xlu0 %81
    %83 = vadd.xlane.f32.xlu0 %v46
    %v84 = vpop.xlane.xlu0 %83
    %85 = vadd.xlane.f32.xlu0 %v47
    %v86 = vpop.xlane.xlu0 %85
    %87 = vadd.xlane.f32.xlu0 %v48
    %v88 = vpop.xlane.xlu0 %87
    %89 = vadd.xlane.f32.xlu0 %v49
    %v90 = vpop.xlane.xlu0 %89
    %91 = vadd.xlane.f32.xlu0 %v50
    %v92 = vpop.xlane.xlu0 %91
    %93 = vadd.xlane.f32.xlu0 %v51
    %v94 = vpop.xlane.xlu0 %93
    %95 = vadd.xlane.f32.xlu0 %v52
    %v96 = vpop.xlane.xlu0 %95
    %97 = vadd.xlane.f32.xlu0 %v53
    %v98 = vpop.xlane.xlu0 %97
    %99 = vadd.xlane.f32.xlu0 %v54
    %v100 = vpop.xlane.xlu0 %99
    %101 = vadd.xlane.f32.xlu0 %v55
    %v102 = vpop.xlane.xlu0 %101
    %103 = vadd.xlane.f32.xlu0 %v56
    %v104 = vpop.xlane.xlu0 %103
    %105 = vadd.xlane.f32.xlu0 %v57
    %v106 = vpop.xlane.xlu0 %105
    %107 = vadd.xlane.f32.xlu0 %v58
    %v108 = vpop.xlane.xlu0 %107
    %109 = vadd.xlane.f32.xlu0 %v59
    %v110 = vpop.xlane.xlu0 %109
    %111 = vadd.xlane.f32.xlu0 %v60
    %v112 = vpop.xlane.xlu0 %111
    %113 = vadd.xlane.f32.xlu0 %v61
    %v114 = vpop.xlane.xlu0 %113
    %115 = vadd.xlane.f32.xlu0 %v62
    %v116 = vpop.xlane.xlu0 %115
    %117 = vadd.xlane.f32.xlu0 %v63
    %v118 = vpop.xlane.xlu0 %117
    %119 = vadd.xlane.f32.xlu0 %v64
    %v120 = vpop.xlane.xlu0 %119
    %121 = vadd.xlane.f32.xlu0 %v65
    %v122 = vpop.xlane.xlu0 %121
    %123 = vadd.xlane.f32.xlu0 %v66
    %v124 = vpop.xlane.xlu0 %123
    %125 = vadd.xlane.f32.xlu0 %v67
    %v126 = vpop.xlane.xlu0 %125
    %127 = vadd.xlane.f32.xlu0 %v68
    %v128 = vpop.xlane.xlu0 %127
    %129 = vadd.xlane.f32.xlu0 %v69
    %v130 = vpop.xlane.xlu0 %129
    %131 = vadd.xlane.f32.xlu0 %v70
    %v132 = vpop.xlane.xlu0 %131
    %133 = vadd.xlane.f32.xlu0 %v71
    %v134 = vpop.xlane.xlu0 %133
    %135 = vadd.xlane.f32.xlu0 %v72
    %v136 = vpop.xlane.xlu0 %135
    %137 = vadd.xlane.f32.xlu0 %v73
    %v138 = vpop.xlane.xlu0 %137
    %139 = vadd.xlane.f32.xlu0 %v74
    %v140 = vpop.xlane.xlu0 %139
    %v141 = vrcp.pop 128.0
    %v142 = vmul.f32 %v78, %v141
    %v143 = vmul.f32 %v80, %v141
    %v144 = vmul.f32 %v82, %v141
    %v145 = vmul.f32 %v84, %v141
    %v146 = vmul.f32 %v86, %v141
    %v147 = vmul.f32 %v88, %v141
    %v148 = vmul.f32 %v90, %v141
    %v149 = vmul.f32 %v92, %v141
    %v150 = vmul.f32 %v94, %v141
    %v151 = vmul.f32 %v96, %v141
    %v152 = vmul.f32 %v98, %v141
    %v153 = vmul.f32 %v100, %v141
    %v154 = vmul.f32 %v102, %v141
    %v155 = vmul.f32 %v104, %v141
    %v156 = vmul.f32 %v106, %v141
    %v157 = vmul.f32 %v108, %v141
    %v158 = vmul.f32 %v110, %v141
    %v159 = vmul.f32 %v112, %v141
    %v160 = vmul.f32 %v114, %v141
    %v161 = vmul.f32 %v116, %v141
    %v162 = vmul.f32 %v118, %v141
    %v163 = vmul.f32 %v120, %v141
    %v164 = vmul.f32 %v122, %v141
    %v165 = vmul.f32 %v124, %v141
    %v166 = vmul.f32 %v126, %v141
    %v167 = vmul.f32 %v128, %v141
    %v168 = vmul.f32 %v130, %v141
    %v169 = vmul.f32 %v132, %v141
    %v170 = vmul.f32 %v134, %v141
    %v171 = vmul.f32 %v136, %v141
    %v172 = vmul.f32 %v138, %v141
    %v173 = vmul.f32 %v140, %v141
    %v174 = vsub.f32 %v43, %v142
    %v175 = vsub.f32 %v44, %v143
    %v176 = vsub.f32 %v45, %v144
    %v177 = vsub.f32 %v46, %v145
    %v178 = vsub.f32 %v47, %v146
    %v179 = vsub.f32 %v48, %v147
    %v180 = vsub.f32 %v49, %v148
    %v181 = vsub.f32 %v50, %v149
    %v182 = vsub.f32 %v51, %v150
    %v183 = vsub.f32 %v52, %v151
    %v184 = vsub.f32 %v53, %v152
    %v185 = vsub.f32 %v54, %v153
    %v186 = vsub.f32 %v55, %v154
    %v187 = vsub.f32 %v56, %v155
    %v188 = vsub.f32 %v57, %v156
    %v189 = vsub.f32 %v58, %v157
    %v190 = vsub.f32 %v59, %v158
    %v191 = vsub.f32 %v60, %v159
    %v192 = vsub.f32 %v61, %v160
    %v193 = vsub.f32 %v62, %v161
    %v194 = vsub.f32 %v63, %v162
    %v195 = vsub.f32 %v64, %v163
    %v196 = vsub.f32 %v65, %v164
    %v197 = vsub.f32 %v66, %v165
    %v198 = vsub.f32 %v67, %v166
    %v199 = vsub.f32 %v68, %v167
    %v200 = vsub.f32 %v69, %v168
    %v201 = vsub.f32 %v70, %v169
    %v202 = vsub.f32 %v71, %v170
    %v203 = vsub.f32 %v72, %v171
    %v204 = vsub.f32 %v73, %v172
    %v205 = vsub.f32 %v74, %v173
    %v206 = vmul.f32 %v174, %v174
    %v207 = vmul.f32 %v175, %v175
    %v208 = vmul.f32 %v176, %v176
    %v209 = vmul.f32 %v177, %v177
    %v210 = vmul.f32 %v178, %v178
    %v211 = vmul.f32 %v179, %v179
    %v212 = vmul.f32 %v180, %v180
    %v213 = vmul.f32 %v181, %v181
    %v214 = vmul.f32 %v182, %v182
    %v215 = vmul.f32 %v183, %v183
    %v216 = vmul.f32 %v184, %v184
    %v217 = vmul.f32 %v185, %v185
    %v218 = vmul.f32 %v186, %v186
    %v219 = vmul.f32 %v187, %v187
    %v220 = vmul.f32 %v188, %v188
    %v221 = vmul.f32 %v189, %v189
    %v222 = vmul.f32 %v190, %v190
    %v223 = vmul.f32 %v191, %v191
    %v224 = vmul.f32 %v192, %v192
    %v225 = vmul.f32 %v193, %v193
    %v226 = vmul.f32 %v194, %v194
    %v227 = vmul.f32 %v195, %v195
    %v228 = vmul.f32 %v196, %v196
    %v229 = vmul.f32 %v197, %v197
    %v230 = vmul.f32 %v198, %v198
    %v231 = vmul.f32 %v199, %v199
    %v232 = vmul.f32 %v200, %v200
    %v233 = vmul.f32 %v201, %v201
    %v234 = vmul.f32 %v202, %v202
    %v235 = vmul.f32 %v203, %v203
    %v236 = vmul.f32 %v204, %v204
    %v237 = vmul.f32 %v205, %v205
    %238 = vadd.xlane.f32.xlu0 %v206
    %v239 = vpop.xlane.xlu0 %238
    %240 = vadd.xlane.f32.xlu0 %v207
    %v241 = vpop.xlane.xlu0 %240
    %242 = vadd.xlane.f32.xlu0 %v208
    %v243 = vpop.xlane.xlu0 %242
    %244 = vadd.xlane.f32.xlu0 %v209
    %v245 = vpop.xlane.xlu0 %244
    %246 = vadd.xlane.f32.xlu0 %v210
    %v247 = vpop.xlane.xlu0 %246
    %248 = vadd.xlane.f32.xlu0 %v211
    %v249 = vpop.xlane.xlu0 %248
    %250 = vadd.xlane.f32.xlu0 %v212
    %v251 = vpop.xlane.xlu0 %250
    %252 = vadd.xlane.f32.xlu0 %v213
    %v253 = vpop.xlane.xlu0 %252
    %254 = vadd.xlane.f32.xlu0 %v214
    %v255 = vpop.xlane.xlu0 %254
    %256 = vadd.xlane.f32.xlu0 %v215
    %v257 = vpop.xlane.xlu0 %256
    %258 = vadd.xlane.f32.xlu0 %v216
    %v259 = vpop.xlane.xlu0 %258
    %260 = vadd.xlane.f32.xlu0 %v217
    %v261 = vpop.xlane.xlu0 %260
    %262 = vadd.xlane.f32.xlu0 %v218
    %v263 = vpop.xlane.xlu0 %262
    %264 = vadd.xlane.f32.xlu0 %v219
    %v265 = vpop.xlane.xlu0 %264
    %266 = vadd.xlane.f32.xlu0 %v220
    %v267 = vpop.xlane.xlu0 %266
    %268 = vadd.xlane.f32.xlu0 %v221
    %v269 = vpop.xlane.xlu0 %268
    %270 = vadd.xlane.f32.xlu0 %v222
    %v271 = vpop.xlane.xlu0 %270
    %272 = vadd.xlane.f32.xlu0 %v223
    %v273 = vpop.xlane.xlu0 %272
    %274 = vadd.xlane.f32.xlu0 %v224
    %v275 = vpop.xlane.xlu0 %274
    %276 = vadd.xlane.f32.xlu0 %v225
    %v277 = vpop.xlane.xlu0 %276
    %278 = vadd.xlane.f32.xlu0 %v226
    %v279 = vpop.xlane.xlu0 %278
    %280 = vadd.xlane.f32.xlu0 %v227
    %v281 = vpop.xlane.xlu0 %280
    %282 = vadd.xlane.f32.xlu0 %v228
    %v283 = vpop.xlane.xlu0 %282
    %284 = vadd.xlane.f32.xlu0 %v229
    %v285 = vpop.xlane.xlu0 %284
    %286 = vadd.xlane.f32.xlu0 %v230
    %v287 = vpop.xlane.xlu0 %286
    %288 = vadd.xlane.f32.xlu0 %v231
    %v289 = vpop.xlane.xlu0 %288
    %290 = vadd.xlane.f32.xlu0 %v232
    %v291 = vpop.xlane.xlu0 %290
    %292 = vadd.xlane.f32.xlu0 %v233
    %v293 = vpop.xlane.xlu0 %292
    %294 = vadd.xlane.f32.xlu0 %v234
    %v295 = vpop.xlane.xlu0 %294
    %296 = vadd.xlane.f32.xlu0 %v235
    %v297 = vpop.xlane.xlu0 %296
    %298 = vadd.xlane.f32.xlu0 %v236
    %v299 = vpop.xlane.xlu0 %298
    %300 = vadd.xlane.f32.xlu0 %v237
    %v301 = vpop.xlane.xlu0 %300
    %v302 = vmul.f32 %v239, %v141
    %v303 = vmul.f32 %v241, %v141
    %v304 = vmul.f32 %v243, %v141
    %v305 = vmul.f32 %v245, %v141
    %v306 = vmul.f32 %v247, %v141
    %v307 = vmul.f32 %v249, %v141
    %v308 = vmul.f32 %v251, %v141
    %v309 = vmul.f32 %v253, %v141
    %v310 = vmul.f32 %v255, %v141
    %v311 = vmul.f32 %v257, %v141
    %v312 = vmul.f32 %v259, %v141
    %v313 = vmul.f32 %v261, %v141
    %v314 = vmul.f32 %v263, %v141
    %v315 = vmul.f32 %v265, %v141
    %v316 = vmul.f32 %v267, %v141
    %v317 = vmul.f32 %v269, %v141
    %v318 = vmul.f32 %v271, %v141
    %v319 = vmul.f32 %v273, %v141
    %v320 = vmul.f32 %v275, %v141
    %v321 = vmul.f32 %v277, %v141
    %v322 = vmul.f32 %v279, %v141
    %v323 = vmul.f32 %v281, %v141
    %v324 = vmul.f32 %v283, %v141
    %v325 = vmul.f32 %v285, %v141
    %v326 = vmul.f32 %v287, %v141
    %v327 = vmul.f32 %v289, %v141
    %v328 = vmul.f32 %v291, %v141
    %v329 = vmul.f32 %v293, %v141
    %v330 = vmul.f32 %v295, %v141
    %v331 = vmul.f32 %v297, %v141
    %v332 = vmul.f32 %v299, %v141
    %v333 = vmul.f32 %v301, %v141
    %v334 = vadd.f32 %v302, 1e-05
    %v335 = vadd.f32 %v303, 1e-05
    %v336 = vadd.f32 %v304, 1e-05
    %v337 = vadd.f32 %v305, 1e-05
    %v338 = vadd.f32 %v306, 1e-05
    %v339 = vadd.f32 %v307, 1e-05
    %v340 = vadd.f32 %v308, 1e-05
    %v341 = vadd.f32 %v309, 1e-05
    %v342 = vadd.f32 %v310, 1e-05
    %v343 = vadd.f32 %v311, 1e-05
    %v344 = vadd.f32 %v312, 1e-05
    %v345 = vadd.f32 %v313, 1e-05
    %v346 = vadd.f32 %v314, 1e-05
    %v347 = vadd.f32 %v315, 1e-05
    %v348 = vadd.f32 %v316, 1e-05
    %v349 = vadd.f32 %v317, 1e-05
    %v350 = vadd.f32 %v318, 1e-05
    %v351 = vadd.f32 %v319, 1e-05
    %v352 = vadd.f32 %v320, 1e-05
    %v353 = vadd.f32 %v321, 1e-05
    %v354 = vadd.f32 %v322, 1e-05
    %v355 = vadd.f32 %v323, 1e-05
    %v356 = vadd.f32 %v324, 1e-05
    %v357 = vadd.f32 %v325, 1e-05
    %v358 = vadd.f32 %v326, 1e-05
    %v359 = vadd.f32 %v327, 1e-05
    %v360 = vadd.f32 %v328, 1e-05
    %v361 = vadd.f32 %v329, 1e-05
    %v362 = vadd.f32 %v330, 1e-05
    %v363 = vadd.f32 %v331, 1e-05
    %v364 = vadd.f32 %v332, 1e-05
    %v365 = vadd.f32 %v333, 1e-05
    %v366 = vrsqrt.pop %v334
    %v367 = vrsqrt.pop %v335
    %v368 = vrsqrt.pop %v336
    %v369 = vrsqrt.pop %v337
    %v370 = vrsqrt.pop %v338
    %v371 = vrsqrt.pop %v339
    %v372 = vrsqrt.pop %v340
    %v373 = vrsqrt.pop %v341
    %v374 = vrsqrt.pop %v342
    %v375 = vrsqrt.pop %v343
    %v376 = vrsqrt.pop %v344
    %v377 = vrsqrt.pop %v345
    %v378 = vrsqrt.pop %v346
    %v379 = vrsqrt.pop %v347
    %v380 = vrsqrt.pop %v348
    %v381 = vrsqrt.pop %v349
    %v382 = vrsqrt.pop %v350
    %v383 = vrsqrt.pop %v351
    %v384 = vrsqrt.pop %v352
    %v385 = vrsqrt.pop %v353
    %v386 = vrsqrt.pop %v354
    %v387 = vrsqrt.pop %v355
    %v388 = vrsqrt.pop %v356
    %v389 = vrsqrt.pop %v357
    %v390 = vrsqrt.pop %v358
    %v391 = vrsqrt.pop %v359
    %v392 = vrsqrt.pop %v360
    %v393 = vrsqrt.pop %v361
    %v394 = vrsqrt.pop %v362
    %v395 = vrsqrt.pop %v363
    %v396 = vrsqrt.pop %v364
    %v397 = vrsqrt.pop %v365
    %v398 = vmul.f32 %v174, %v366
    %v399 = vmul.f32 %v175, %v367
    %v400 = vmul.f32 %v176, %v368
    %v401 = vmul.f32 %v177, %v369
    %v402 = vmul.f32 %v178, %v370
    %v403 = vmul.f32 %v179, %v371
    %v404 = vmul.f32 %v180, %v372
    %v405 = vmul.f32 %v181, %v373
    %v406 = vmul.f32 %v182, %v374
    %v407 = vmul.f32 %v183, %v375
    %v408 = vmul.f32 %v184, %v376
    %v409 = vmul.f32 %v185, %v377
    %v410 = vmul.f32 %v186, %v378
    %v411 = vmul.f32 %v187, %v379
    %v412 = vmul.f32 %v188, %v380
    %v413 = vmul.f32 %v189, %v381
    %v414 = vmul.f32 %v190, %v382
    %v415 = vmul.f32 %v191, %v383
    %v416 = vmul.f32 %v192, %v384
    %v417 = vmul.f32 %v193, %v385
    %v418 = vmul.f32 %v194, %v386
    %v419 = vmul.f32 %v195, %v387
    %v420 = vmul.f32 %v196, %v388
    %v421 = vmul.f32 %v197, %v389
    %v422 = vmul.f32 %v198, %v390
    %v423 = vmul.f32 %v199, %v391
    %v424 = vmul.f32 %v200, %v392
    %v425 = vmul.f32 %v201, %v393
    %v426 = vmul.f32 %v202, %v394
    %v427 = vmul.f32 %v203, %v395
    %v428 = vmul.f32 %v204, %v396
    %v429 = vmul.f32 %v205, %v397
    %v431 = vlaneseq
    %v432 = vshrl.u32 %v431, 7
    %v433 = vsub.s32 0, %v432
    %v434 = vrot.slane %v75, %v433
    %v436 = vmul.f32 %v398, %v434
    %v437 = vmul.f32 %v399, %v434
    %v438 = vmul.f32 %v400, %v434
    %v439 = vmul.f32 %v401, %v434
    %v440 = vmul.f32 %v402, %v434
    %v441 = vmul.f32 %v403, %v434
    %v442 = vmul.f32 %v404, %v434
    %v443 = vmul.f32 %v405, %v434
    %v444 = vmul.f32 %v406, %v434
    %v445 = vmul.f32 %v407, %v434
    %v446 = vmul.f32 %v408, %v434
    %v447 = vmul.f32 %v409, %v434
    %v448 = vmul.f32 %v410, %v434
    %v449 = vmul.f32 %v411, %v434
    %v450 = vmul.f32 %v412, %v434
    %v451 = vmul.f32 %v413, %v434
    %v452 = vmul.f32 %v414, %v434
    %v453 = vmul.f32 %v415, %v434
    %v454 = vmul.f32 %v416, %v434
    %v455 = vmul.f32 %v417, %v434
    %v456 = vmul.f32 %v418, %v434
    %v457 = vmul.f32 %v419, %v434
    %v458 = vmul.f32 %v420, %v434
    %v459 = vmul.f32 %v421, %v434
    %v460 = vmul.f32 %v422, %v434
    %v461 = vmul.f32 %v423, %v434
    %v462 = vmul.f32 %v424, %v434
    %v463 = vmul.f32 %v425, %v434
    %v464 = vmul.f32 %v426, %v434
    %v465 = vmul.f32 %v427, %v434
    %v466 = vmul.f32 %v428, %v434
    %v467 = vmul.f32 %v429, %v434
    %v469 = vlaneseq
    %v470 = vshrl.u32 %v469, 7
    %v471 = vsub.s32 0, %v470
    %v472 = vrot.slane %v76, %v471
    %v474 = vadd.f32 %v436, %v472
    %v475 = vadd.f32 %v437, %v472
    %v476 = vadd.f32 %v438, %v472
    %v477 = vadd.f32 %v439, %v472
    %v478 = vadd.f32 %v440, %v472
    %v479 = vadd.f32 %v441, %v472
    %v480 = vadd.f32 %v442, %v472
    %v481 = vadd.f32 %v443, %v472
    %v482 = vadd.f32 %v444, %v472
    %v483 = vadd.f32 %v445, %v472
    %v484 = vadd.f32 %v446, %v472
    %v485 = vadd.f32 %v447, %v472
    %v486 = vadd.f32 %v448, %v472
    %v487 = vadd.f32 %v449, %v472
    %v488 = vadd.f32 %v450, %v472
    %v489 = vadd.f32 %v451, %v472
    %v490 = vadd.f32 %v452, %v472
    %v491 = vadd.f32 %v453, %v472
    %v492 = vadd.f32 %v454, %v472
    %v493 = vadd.f32 %v455, %v472
    %v494 = vadd.f32 %v456, %v472
    %v495 = vadd.f32 %v457, %v472
    %v496 = vadd.f32 %v458, %v472
    %v497 = vadd.f32 %v459, %v472
    %v498 = vadd.f32 %v460, %v472
    %v499 = vadd.f32 %v461, %v472
    %v500 = vadd.f32 %v462, %v472
    %v501 = vadd.f32 %v463, %v472
    %v502 = vadd.f32 %v464, %v472
    %v503 = vadd.f32 %v465, %v472
    %v504 = vadd.f32 %v466, %v472
    %v505 = vadd.f32 %v467, %v472
    %v506 = vpack.c.bf16 %v475, %v474
    %v507 = vpack.c.bf16 %v477, %v476
    %v508 = vpack.c.bf16 %v479, %v478
    %v509 = vpack.c.bf16 %v481, %v480
    %v510 = vpack.c.bf16 %v483, %v482
    %v511 = vpack.c.bf16 %v485, %v484
    %v512 = vpack.c.bf16 %v487, %v486
    %v513 = vpack.c.bf16 %v489, %v488
    %v514 = vpack.c.bf16 %v491, %v490
    %v515 = vpack.c.bf16 %v493, %v492
    %v516 = vpack.c.bf16 %v495, %v494
    %v517 = vpack.c.bf16 %v497, %v496
    %v518 = vpack.c.bf16 %v499, %v498
    %v519 = vpack.c.bf16 %v501, %v500
    %v520 = vpack.c.bf16 %v503, %v502
    %v521 = vpack.c.bf16 %v505, %v504
    %v522 = vld [vmem:[%s3] sm:$0xff]
    %v523 = vld [vmem:[%s3 + $0x8] sm:$0xf]
    %v524 = vld [vmem:[%s3 + $0xc] sm:$0xff]
    %v525 = vld [vmem:[%s3 + $0x14] sm:$0xf]
    %v526 = vld [vmem:[%s3 + $0x18] sm:$0xff]
    %v527 = vld [vmem:[%s3 + $0x20] sm:$0xf]
    %v528 = vld [vmem:[%s3 + $0x24] sm:$0xff]
    %v529 = vld [vmem:[%s3 + $0x2c] sm:$0xf]
    %v530 = vld [vmem:[%s3 + $0x30] sm:$0xff]
    %v531 = vld [vmem:[%s3 + $0x38] sm:$0xf]
    %v532 = vld [vmem:[%s3 + $0x3c] sm:$0xff]
    %v533 = vld [vmem:[%s3 + $0x44] sm:$0xf]
    %v534 = vld [vmem:[%s3 + $0x48] sm:$0xff]
    %v535 = vld [vmem:[%s3 + $0x50] sm:$0xf]
    %v536 = vld [vmem:[%s3 + $0x54] sm:$0xff]
    %v537 = vld [vmem:[%s3 + $0x5c] sm:$0xf]
    %v538 = vld [vmem:[%s3 + $0x60] sm:$0xff]
    %v539 = vld [vmem:[%s3 + $0x68] sm:$0xf]
    %v540 = vld [vmem:[%s3 + $0x6c] sm:$0xff]
    %v541 = vld [vmem:[%s3 + $0x74] sm:$0xf]
    %v542 = vld [vmem:[%s3 + $0x78] sm:$0xff]
    %v543 = vld [vmem:[%s3 + $0x80] sm:$0xf]
    %v544 = vld [vmem:[%s3 + $0x84] sm:$0xff]
    %v545 = vld [vmem:[%s3 + $0x8c] sm:$0xf]
    %v546 = vld [vmem:[%s3 + $0x90] sm:$0xff]
    %v547 = vld [vmem:[%s3 + $0x98] sm:$0xf]
    %v548 = vld [vmem:[%s3 + $0x9c] sm:$0xff]
    %v549 = vld [vmem:[%s3 + $0xa4] sm:$0xf]
    %v550 = vld [vmem:[%s3 + $0xa8] sm:$0xff]
    %v551 = vld [vmem:[%s3 + $0xb0] sm:$0xf]
    %v552 = vld [vmem:[%s3 + $0xb4] sm:$0xff]
    %v553 = vld [vmem:[%s3 + $0xbc] sm:$0xf]
    %v586 = vunpack.c.l.b16 %v522
    %v587 = vunpack.c.h.b16 %v522
    %v588 = vunpack.c.l.b16 %v523
    %v589 = vunpack.c.l.b16 %v524
    %v590 = vunpack.c.h.b16 %v524
    %v591 = vunpack.c.l.b16 %v525
    %v592 = vunpack.c.l.b16 %v526
    %v593 = vunpack.c.h.b16 %v526
    %v594 = vunpack.c.l.b16 %v527
    %v595 = vunpack.c.l.b16 %v528
    %v596 = vunpack.c.h.b16 %v528
    %v597 = vunpack.c.l.b16 %v529
    %v598 = vunpack.c.l.b16 %v530
    %v599 = vunpack.c.h.b16 %v530
    %v600 = vunpack.c.l.b16 %v531
    %v601 = vunpack.c.l.b16 %v532
    %v602 = vunpack.c.h.b16 %v532
    %v603 = vunpack.c.l.b16 %v533
    %v604 = vunpack.c.l.b16 %v534
    %v605 = vunpack.c.h.b16 %v534
    %v606 = vunpack.c.l.b16 %v535
    %v607 = vunpack.c.l.b16 %v536
    %v608 = vunpack.c.h.b16 %v536
    %v609 = vunpack.c.l.b16 %v537
    %v610 = vunpack.c.l.b16 %v538
    %v611 = vunpack.c.h.b16 %v538
    %v612 = vunpack.c.l.b16 %v539
    %v613 = vunpack.c.l.b16 %v540
    %v614 = vunpack.c.h.b16 %v540
    %v615 = vunpack.c.l.b16 %v541
    %v616 = vunpack.c.l.b16 %v542
    %v617 = vunpack.c.h.b16 %v542
    %v618 = vunpack.c.l.b16 %v543
    %v619 = vunpack.c.l.b16 %v544
    %v620 = vunpack.c.h.b16 %v544
    %v621 = vunpack.c.l.b16 %v545
    %v622 = vunpack.c.l.b16 %v546
    %v623 = vunpack.c.h.b16 %v546
    %v624 = vunpack.c.l.b16 %v547
    %v625 = vunpack.c.l.b16 %v548
    %v626 = vunpack.c.h.b16 %v548
    %v627 = vunpack.c.l.b16 %v549
    %v628 = vunpack.c.l.b16 %v550
    %v629 = vunpack.c.h.b16 %v550
    %v630 = vunpack.c.l.b16 %v551
    %v631 = vunpack.c.l.b16 %v552
    %v632 = vunpack.c.h.b16 %v552
    %v633 = vunpack.c.l.b16 %v553
    %v634 = vpack.c.b16 %v589, %v586
    %v635 = vpack.c.b16 %v590, %v587
    %v636 = vpack.c.b16 %v591, %v588
    %v637 = vpack.c.b16 %v595, %v592
    %v638 = vpack.c.b16 %v596, %v593
    %v639 = vpack.c.b16 %v597, %v594
    %v640 = vpack.c.b16 %v601, %v598
    %v641 = vpack.c.b16 %v602, %v599
    %v642 = vpack.c.b16 %v603, %v600
    %v643 = vpack.c.b16 %v607, %v604
    %v644 = vpack.c.b16 %v608, %v605
    %v645 = vpack.c.b16 %v609, %v606
    %v646 = vpack.c.b16 %v613, %v610
    %v647 = vpack.c.b16 %v614, %v611
    %v648 = vpack.c.b16 %v615, %v612
    %v649 = vpack.c.b16 %v619, %v616
    %v650 = vpack.c.b16 %v620, %v617
    %v651 = vpack.c.b16 %v621, %v618
    %v652 = vpack.c.b16 %v625, %v622
    %v653 = vpack.c.b16 %v626, %v623
    %v654 = vpack.c.b16 %v627, %v624
    %v655 = vpack.c.b16 %v631, %v628
    %v656 = vpack.c.b16 %v632, %v629
    %v657 = vpack.c.b16 %v633, %v630
    %682 = vmatprep.subr.bf16.mxu0 %v656
    %683 = vmatpush1.bf16.msra.mxu0 %v655
    %684 = vmatprep.subr.bf16.mxu0 %v653
    %685 = vmatpush1.bf16.msra.mxu0 %v652
    %686 = vmatprep.subr.bf16.mxu0 %v650
    %687 = vmatpush1.bf16.msra.mxu0 %v649
    %688 = vmatprep.subr.bf16.mxu0 %v647
    %689 = vmatpush1.bf16.msra.mxu0 %v646
    %690 = vmatprep.subr.bf16.mxu0 %v644
    %691 = vmatpush1.bf16.msra.mxu0 %v643
    %692 = vmatprep.subr.bf16.mxu0 %v641
    %693 = vmatpush1.bf16.msra.mxu0 %v640
    %694 = vmatprep.subr.bf16.mxu0 %v638
    %695 = vmatpush1.bf16.msra.mxu0 %v637
    %696 = vmatprep.subr.bf16.mxu0 %v635
    %697 = vmatpush1.bf16.msra.mxu0 %v634
    %698 = vmatprep.subr.bf16.mxu0 0
    %699 = vmatpush2.bf16.msra.mxu0 0
    %700 = vmatprep.subr.bf16.mxu0 0
    %701 = vmatpush2.bf16.msra.mxu0 0
    %702 = vmatprep.subr.bf16.mxu0 0
    %703 = vmatpush2.bf16.msra.mxu0 0
    %704 = vmatprep.subr.bf16.mxu0 0
    %705 = vmatpush2.bf16.msra.mxu0 0
    %706 = vmatprep.subr.bf16.mxu0 0
    %707 = vmatpush2.bf16.msra.mxu0 0
    %708 = vmatprep.subr.bf16.mxu0 0
    %709 = vmatpush2.bf16.msra.mxu0 0
    %710 = vmatprep.subr.bf16.mxu0 0
    %711 = vmatpush2.bf16.msra.mxu0 0
    %712 = vmatprep.subr.bf16.mxu0 0
    %713 = vmatpush2.bf16.msra.mxu0 0
    %714 = vmatprep.mubr.bf16.mxu0 0
    %715 = vmatmul.mubr.bf16.gmra.mxu0 %v506
    %v716 = vpop.f32.mrf.mxu0
    %v717 = vadd.f32 0.0, %v716
    %v718 = vpop.f32.mrf.mxu0
    %v719 = vadd.f32 0.0, %v718
    %v720 = vpop.f32.mrf.mxu0
    %v721 = vadd.f32 0.0, %v720
    %v722 = vpop.f32.mrf.mxu0
    %v723 = vadd.f32 0.0, %v722
    %724 = vmatprep.mubr.bf16.mxu0 0
    %725 = vmatmul.mubr.bf16.gmra.mxu0 %v507
    %v726 = vpop.f32.mrf.mxu0
    %v727 = vadd.f32 0.0, %v726
    %v728 = vpop.f32.mrf.mxu0
    %v729 = vadd.f32 0.0, %v728
    %v730 = vpop.f32.mrf.mxu0
    %v731 = vadd.f32 0.0, %v730
    %v732 = vpop.f32.mrf.mxu0
    %v733 = vadd.f32 0.0, %v732
    %734 = vmatprep.mubr.bf16.mxu0 0
    %735 = vmatmul.mubr.bf16.gmra.mxu0 %v508
    %v736 = vpop.f32.mrf.mxu0
    %v737 = vadd.f32 0.0, %v736
    %v738 = vpop.f32.mrf.mxu0
    %v739 = vadd.f32 0.0, %v738
    %v740 = vpop.f32.mrf.mxu0
    %v741 = vadd.f32 0.0, %v740
    %v742 = vpop.f32.mrf.mxu0
    %v743 = vadd.f32 0.0, %v742
    %744 = vmatprep.mubr.bf16.mxu0 0
    %745 = vmatmul.mubr.bf16.gmra.mxu0 %v509
    %v746 = vpop.f32.mrf.mxu0
    %v747 = vadd.f32 0.0, %v746
    %v748 = vpop.f32.mrf.mxu0
    %v749 = vadd.f32 0.0, %v748
    %v750 = vpop.f32.mrf.mxu0
    %v751 = vadd.f32 0.0, %v750
    %v752 = vpop.f32.mrf.mxu0
    %v753 = vadd.f32 0.0, %v752
    %754 = vmatprep.mubr.bf16.mxu0 0
    %755 = vmatmul.mubr.bf16.gmra.mxu0 %v510
    %v756 = vpop.f32.mrf.mxu0
    %v757 = vadd.f32 0.0, %v756
    %v758 = vpop.f32.mrf.mxu0
    %v759 = vadd.f32 0.0, %v758
    %v760 = vpop.f32.mrf.mxu0
    %v761 = vadd.f32 0.0, %v760
    %v762 = vpop.f32.mrf.mxu0
    %v763 = vadd.f32 0.0, %v762
    %764 = vmatprep.mubr.bf16.mxu0 0
    %765 = vmatmul.mubr.bf16.gmra.mxu0 %v511
    %v766 = vpop.f32.mrf.mxu0
    %v767 = vadd.f32 0.0, %v766
    %v768 = vpop.f32.mrf.mxu0
    %v769 = vadd.f32 0.0, %v768
    %v770 = vpop.f32.mrf.mxu0
    %v771 = vadd.f32 0.0, %v770
    %v772 = vpop.f32.mrf.mxu0
    %v773 = vadd.f32 0.0, %v772
    %774 = vmatprep.mubr.bf16.mxu0 0
    %775 = vmatmul.mubr.bf16.gmra.mxu0 %v512
    %v776 = vpop.f32.mrf.mxu0
    %v777 = vadd.f32 0.0, %v776
    %v778 = vpop.f32.mrf.mxu0
    %v779 = vadd.f32 0.0, %v778
    %v780 = vpop.f32.mrf.mxu0
    %v781 = vadd.f32 0.0, %v780
    %v782 = vpop.f32.mrf.mxu0
    %v783 = vadd.f32 0.0, %v782
    %784 = vmatprep.mubr.bf16.mxu0 0
    %785 = vmatmul.mubr.bf16.gmra.mxu0 %v513
    %v786 = vpop.f32.mrf.mxu0
    %v787 = vadd.f32 0.0, %v786
    %v788 = vpop.f32.mrf.mxu0
    %v789 = vadd.f32 0.0, %v788
    %v790 = vpop.f32.mrf.mxu0
    %v791 = vadd.f32 0.0, %v790
    %v792 = vpop.f32.mrf.mxu0
    %v793 = vadd.f32 0.0, %v792
    %794 = vmatprep.mubr.bf16.mxu0 0
    %795 = vmatmul.mubr.bf16.gmra.mxu0 %v514
    %v796 = vpop.f32.mrf.mxu0
    %v797 = vadd.f32 0.0, %v796
    %v798 = vpop.f32.mrf.mxu0
    %v799 = vadd.f32 0.0, %v798
    %v800 = vpop.f32.mrf.mxu0
    %v801 = vadd.f32 0.0, %v800
    %v802 = vpop.f32.mrf.mxu0
    %v803 = vadd.f32 0.0, %v802
    %804 = vmatprep.mubr.bf16.mxu0 0
    %805 = vmatmul.mubr.bf16.gmra.mxu0 %v515
    %v806 = vpop.f32.mrf.mxu0
    %v807 = vadd.f32 0.0, %v806
    %v808 = vpop.f32.mrf.mxu0
    %v809 = vadd.f32 0.0, %v808
    %v810 = vpop.f32.mrf.mxu0
    %v811 = vadd.f32 0.0, %v810
    %v812 = vpop.f32.mrf.mxu0
    %v813 = vadd.f32 0.0, %v812
    %814 = vmatprep.mubr.bf16.mxu0 0
    %815 = vmatmul.mubr.bf16.gmra.mxu0 %v516
    %v816 = vpop.f32.mrf.mxu0
    %v817 = vadd.f32 0.0, %v816
    %v818 = vpop.f32.mrf.mxu0
    %v819 = vadd.f32 0.0, %v818
    %v820 = vpop.f32.mrf.mxu0
    %v821 = vadd.f32 0.0, %v820
    %v822 = vpop.f32.mrf.mxu0
    %v823 = vadd.f32 0.0, %v822
    %824 = vmatprep.mubr.bf16.mxu0 0
    %825 = vmatmul.mubr.bf16.gmra.mxu0 %v517
    %v826 = vpop.f32.mrf.mxu0
    %v827 = vadd.f32 0.0, %v826
    %v828 = vpop.f32.mrf.mxu0
    %v829 = vadd.f32 0.0, %v828
    %v830 = vpop.f32.mrf.mxu0
    %v831 = vadd.f32 0.0, %v830
    %v832 = vpop.f32.mrf.mxu0
    %v833 = vadd.f32 0.0, %v832
    %834 = vmatprep.mubr.bf16.mxu0 0
    %835 = vmatmul.mubr.bf16.gmra.mxu0 %v518
    %v836 = vpop.f32.mrf.mxu0
    %v837 = vadd.f32 0.0, %v836
    %v838 = vpop.f32.mrf.mxu0
    %v839 = vadd.f32 0.0, %v838
    %v840 = vpop.f32.mrf.mxu0
    %v841 = vadd.f32 0.0, %v840
    %v842 = vpop.f32.mrf.mxu0
    %v843 = vadd.f32 0.0, %v842
    %844 = vmatprep.mubr.bf16.mxu0 0
    %845 = vmatmul.mubr.bf16.gmra.mxu0 %v519
    %v846 = vpop.f32.mrf.mxu0
    %v847 = vadd.f32 0.0, %v846
    %v848 = vpop.f32.mrf.mxu0
    %v849 = vadd.f32 0.0, %v848
    %v850 = vpop.f32.mrf.mxu0
    %v851 = vadd.f32 0.0, %v850
    %v852 = vpop.f32.mrf.mxu0
    %v853 = vadd.f32 0.0, %v852
    %854 = vmatprep.mubr.bf16.mxu0 0
    %855 = vmatmul.mubr.bf16.gmra.mxu0 %v520
    %v856 = vpop.f32.mrf.mxu0
    %v857 = vadd.f32 0.0, %v856
    %v858 = vpop.f32.mrf.mxu0
    %v859 = vadd.f32 0.0, %v858
    %v860 = vpop.f32.mrf.mxu0
    %v861 = vadd.f32 0.0, %v860
    %v862 = vpop.f32.mrf.mxu0
    %v863 = vadd.f32 0.0, %v862
    %864 = vmatprep.mubr.bf16.mxu0 0
    %865 = vmatmul.mubr.bf16.gmra.mxu0 %v521
    %v866 = vpop.f32.mrf.mxu0
    %v867 = vadd.f32 0.0, %v866
    %v868 = vpop.f32.mrf.mxu0
    %v869 = vadd.f32 0.0, %v868
    %v870 = vpop.f32.mrf.mxu0
    %v871 = vadd.f32 0.0, %v870
    %v872 = vpop.f32.mrf.mxu0
    %v873 = vadd.f32 0.0, %v872
    %874 = vdwg.mxu0
    %875 = vmatprep.subr.bf16.mxu0 0
    %876 = vmatpush1.bf16.msra.mxu0 %v657
    %877 = vmatprep.subr.bf16.mxu0 0
    %878 = vmatpush1.bf16.msra.mxu0 %v654
    %879 = vmatprep.subr.bf16.mxu0 0
    %880 = vmatpush1.bf16.msra.mxu0 %v651
    %881 = vmatprep.subr.bf16.mxu0 0
    %882 = vmatpush1.bf16.msra.mxu0 %v648
    %883 = vmatprep.subr.bf16.mxu0 0
    %884 = vmatpush1.bf16.msra.mxu0 %v645
    %885 = vmatprep.subr.bf16.mxu0 0
    %886 = vmatpush1.bf16.msra.mxu0 %v642
    %887 = vmatprep.subr.bf16.mxu0 0
    %888 = vmatpush1.bf16.msra.mxu0 %v639
    %889 = vmatprep.subr.bf16.mxu0 0
    %890 = vmatpush1.bf16.msra.mxu0 %v636
    %891 = vmatprep.subr.bf16.mxu0 0
    %892 = vmatpush2.bf16.msra.mxu0 0
    %893 = vmatprep.subr.bf16.mxu0 0
    %894 = vmatpush2.bf16.msra.mxu0 0
    %895 = vmatprep.subr.bf16.mxu0 0
    %896 = vmatpush2.bf16.msra.mxu0 0
    %897 = vmatprep.subr.bf16.mxu0 0
    %898 = vmatpush2.bf16.msra.mxu0 0
    %899 = vmatprep.subr.bf16.mxu0 0
    %900 = vmatpush2.bf16.msra.mxu0 0
    %901 = vmatprep.subr.bf16.mxu0 0
    %902 = vmatpush2.bf16.msra.mxu0 0
    %903 = vmatprep.subr.bf16.mxu0 0
    %904 = vmatpush2.bf16.msra.mxu0 0
    %905 = vmatprep.subr.bf16.mxu0 0
    %906 = vmatpush2.bf16.msra.mxu0 0
    %907 = vmatprep.mubr.bf16.mxu0 0
    %908 = vmatmul.mubr.bf16.gmra.mxu0 %v506
    %v909 = vpop.f32.mrf.mxu0
    %v910 = vadd.f32 0.0, %v909
    %v911 = vpop.f32.mrf.mxu0
    %v912 = vpop.f32.mrf.mxu0
    %v913 = vadd.f32 0.0, %v912
    %v914 = vpop.f32.mrf.mxu0
    %915 = vmatprep.mubr.bf16.mxu0 0
    %916 = vmatmul.mubr.bf16.gmra.mxu0 %v507
    %v917 = vpop.f32.mrf.mxu0
    %v918 = vadd.f32 0.0, %v917
    %v919 = vpop.f32.mrf.mxu0
    %v920 = vpop.f32.mrf.mxu0
    %v921 = vadd.f32 0.0, %v920
    %v922 = vpop.f32.mrf.mxu0
    %923 = vmatprep.mubr.bf16.mxu0 0
    %924 = vmatmul.mubr.bf16.gmra.mxu0 %v508
    %v925 = vpop.f32.mrf.mxu0
    %v926 = vadd.f32 0.0, %v925
    %v927 = vpop.f32.mrf.mxu0
    %v928 = vpop.f32.mrf.mxu0
    %v929 = vadd.f32 0.0, %v928
    %v930 = vpop.f32.mrf.mxu0
    %931 = vmatprep.mubr.bf16.mxu0 0
    %932 = vmatmul.mubr.bf16.gmra.mxu0 %v509
    %v933 = vpop.f32.mrf.mxu0
    %v934 = vadd.f32 0.0, %v933
    %v935 = vpop.f32.mrf.mxu0
    %v936 = vpop.f32.mrf.mxu0
    %v937 = vadd.f32 0.0, %v936
    %v938 = vpop.f32.mrf.mxu0
    %939 = vmatprep.mubr.bf16.mxu0 0
    %940 = vmatmul.mubr.bf16.gmra.mxu0 %v510
    %v941 = vpop.f32.mrf.mxu0
    %v942 = vadd.f32 0.0, %v941
    %v943 = vpop.f32.mrf.mxu0
    %v944 = vpop.f32.mrf.mxu0
    %v945 = vadd.f32 0.0, %v944
    %v946 = vpop.f32.mrf.mxu0
    %947 = vmatprep.mubr.bf16.mxu0 0
    %948 = vmatmul.mubr.bf16.gmra.mxu0 %v511
    %v949 = vpop.f32.mrf.mxu0
    %v950 = vadd.f32 0.0, %v949
    %v951 = vpop.f32.mrf.mxu0
    %v952 = vpop.f32.mrf.mxu0
    %v953 = vadd.f32 0.0, %v952
    %v954 = vpop.f32.mrf.mxu0
    %955 = vmatprep.mubr.bf16.mxu0 0
    %956 = vmatmul.mubr.bf16.gmra.mxu0 %v512
    %v957 = vpop.f32.mrf.mxu0
    %v958 = vadd.f32 0.0, %v957
    %v959 = vpop.f32.mrf.mxu0
    %v960 = vpop.f32.mrf.mxu0
    %v961 = vadd.f32 0.0, %v960
    %v962 = vpop.f32.mrf.mxu0
    %963 = vmatprep.mubr.bf16.mxu0 0
    %964 = vmatmul.mubr.bf16.gmra.mxu0 %v513
    %v965 = vpop.f32.mrf.mxu0
    %v966 = vadd.f32 0.0, %v965
    %v967 = vpop.f32.mrf.mxu0
    %v968 = vpop.f32.mrf.mxu0
    %v969 = vadd.f32 0.0, %v968
    %v970 = vpop.f32.mrf.mxu0
    %971 = vmatprep.mubr.bf16.mxu0 0
    %972 = vmatmul.mubr.bf16.gmra.mxu0 %v514
    %v973 = vpop.f32.mrf.mxu0
    %v974 = vadd.f32 0.0, %v973
    %v975 = vpop.f32.mrf.mxu0
    %v976 = vpop.f32.mrf.mxu0
    %v977 = vadd.f32 0.0, %v976
    %v978 = vpop.f32.mrf.mxu0
    %979 = vmatprep.mubr.bf16.mxu0 0
    %980 = vmatmul.mubr.bf16.gmra.mxu0 %v515
    %v981 = vpop.f32.mrf.mxu0
    %v982 = vadd.f32 0.0, %v981
    %v983 = vpop.f32.mrf.mxu0
    %v984 = vpop.f32.mrf.mxu0
    %v985 = vadd.f32 0.0, %v984
    %v986 = vpop.f32.mrf.mxu0
    %987 = vmatprep.mubr.bf16.mxu0 0
    %988 = vmatmul.mubr.bf16.gmra.mxu0 %v516
    %v989 = vpop.f32.mrf.mxu0
    %v990 = vadd.f32 0.0, %v989
    %v991 = vpop.f32.mrf.mxu0
    %v992 = vpop.f32.mrf.mxu0
    %v993 = vadd.f32 0.0, %v992
    %v994 = vpop.f32.mrf.mxu0
    %995 = vmatprep.mubr.bf16.mxu0 0
    %996 = vmatmul.mubr.bf16.gmra.mxu0 %v517
    %v997 = vpop.f32.mrf.mxu0
    %v998 = vadd.f32 0.0, %v997
    %v999 = vpop.f32.mrf.mxu0
    %v1000 = vpop.f32.mrf.mxu0
    %v1001 = vadd.f32 0.0, %v1000
    %v1002 = vpop.f32.mrf.mxu0
    %1003 = vmatprep.mubr.bf16.mxu0 0
    %1004 = vmatmul.mubr.bf16.gmra.mxu0 %v518
    %v1005 = vpop.f32.mrf.mxu0
    %v1006 = vadd.f32 0.0, %v1005
    %v1007 = vpop.f32.mrf.mxu0
    %v1008 = vpop.f32.mrf.mxu0
    %v1009 = vadd.f32 0.0, %v1008
    %v1010 = vpop.f32.mrf.mxu0
    %1011 = vmatprep.mubr.bf16.mxu0 0
    %1012 = vmatmul.mubr.bf16.gmra.mxu0 %v519
    %v1013 = vpop.f32.mrf.mxu0
    %v1014 = vadd.f32 0.0, %v1013
    %v1015 = vpop.f32.mrf.mxu0
    %v1016 = vpop.f32.mrf.mxu0
    %v1017 = vadd.f32 0.0, %v1016
    %v1018 = vpop.f32.mrf.mxu0
    %1019 = vmatprep.mubr.bf16.mxu0 0
    %1020 = vmatmul.mubr.bf16.gmra.mxu0 %v520
    %v1021 = vpop.f32.mrf.mxu0
    %v1022 = vadd.f32 0.0, %v1021
    %v1023 = vpop.f32.mrf.mxu0
    %v1024 = vpop.f32.mrf.mxu0
    %v1025 = vadd.f32 0.0, %v1024
    %v1026 = vpop.f32.mrf.mxu0
    %1027 = vmatprep.mubr.bf16.mxu0 0
    %1028 = vmatmul.mubr.bf16.gmra.mxu0 %v521
    %v1029 = vpop.f32.mrf.mxu0
    %v1030 = vadd.f32 0.0, %v1029
    %v1031 = vpop.f32.mrf.mxu0
    %v1032 = vpop.f32.mrf.mxu0
    %v1033 = vadd.f32 0.0, %v1032
    %v1034 = vpop.f32.mrf.mxu0
    %1035 = vdwg.mxu0
    %v1036 = vpack.c.bf16 %v721, %v717
    %v1037 = vpack.c.bf16 %v723, %v719
    %v1038 = vpack.c.bf16 %v913, %v910
    %v1039 = vpack.c.bf16 %v731, %v727
    %v1040 = vpack.c.bf16 %v733, %v729
    %v1041 = vpack.c.bf16 %v921, %v918
    %v1042 = vpack.c.bf16 %v741, %v737
    %v1043 = vpack.c.bf16 %v743, %v739
    %v1044 = vpack.c.bf16 %v929, %v926
    %v1045 = vpack.c.bf16 %v751, %v747
    %v1046 = vpack.c.bf16 %v753, %v749
    %v1047 = vpack.c.bf16 %v937, %v934
    %v1048 = vpack.c.bf16 %v761, %v757
    %v1049 = vpack.c.bf16 %v763, %v759
    %v1050 = vpack.c.bf16 %v945, %v942
    %v1051 = vpack.c.bf16 %v771, %v767
    %v1052 = vpack.c.bf16 %v773, %v769
    %v1053 = vpack.c.bf16 %v953, %v950
    %v1054 = vpack.c.bf16 %v781, %v777
    %v1055 = vpack.c.bf16 %v783, %v779
    %v1056 = vpack.c.bf16 %v961, %v958
    %v1057 = vpack.c.bf16 %v791, %v787
    %v1058 = vpack.c.bf16 %v793, %v789
    %v1059 = vpack.c.bf16 %v969, %v966
    %v1060 = vpack.c.bf16 %v801, %v797
    %v1061 = vpack.c.bf16 %v803, %v799
    %v1062 = vpack.c.bf16 %v977, %v974
    %v1063 = vpack.c.bf16 %v811, %v807
    %v1064 = vpack.c.bf16 %v813, %v809
    %v1065 = vpack.c.bf16 %v985, %v982
    %v1066 = vpack.c.bf16 %v821, %v817
    %v1067 = vpack.c.bf16 %v823, %v819
    %v1068 = vpack.c.bf16 %v993, %v990
    %v1069 = vpack.c.bf16 %v831, %v827
    %v1070 = vpack.c.bf16 %v833, %v829
    %v1071 = vpack.c.bf16 %v1001, %v998
    %v1072 = vpack.c.bf16 %v841, %v837
    %v1073 = vpack.c.bf16 %v843, %v839
    %v1074 = vpack.c.bf16 %v1009, %v1006
    %v1075 = vpack.c.bf16 %v851, %v847
    %v1076 = vpack.c.bf16 %v853, %v849
    %v1077 = vpack.c.bf16 %v1017, %v1014
    %v1078 = vpack.c.bf16 %v861, %v857
    %v1079 = vpack.c.bf16 %v863, %v859
    %v1080 = vpack.c.bf16 %v1025, %v1022
    %v1081 = vpack.c.bf16 %v871, %v867
    %v1082 = vpack.c.bf16 %v873, %v869
    %v1083 = vpack.c.bf16 %v1033, %v1030
    %v1084 = vlaneseq
    %v1085 = vshrl.u32 %v1084, 7
    %v1086 = vadd.s32 %v1085, 8
    %v1087 = vadd.s32 %v1085, 16
    %v1088 = vadd.s32 %v1085, 24
    %v1089 = vadd.s32 %v1085, 32
    %v1090 = vadd.s32 %v1085, 40
    %v1091 = vadd.s32 %v1085, 48
    %v1092 = vadd.s32 %v1085, 56
    %v1093 = vadd.s32 %v1085, 64
    %v1094 = vadd.s32 %v1085, 72
    %v1095 = vadd.s32 %v1085, 80
    %v1096 = vadd.s32 %v1085, 88
    %v1097 = vadd.s32 %v1085, 96
    %v1098 = vadd.s32 %v1085, 104
    %v1099 = vadd.s32 %v1085, 112
    %v1100 = vadd.s32 %v1085, 120
    %v1101 = vlaneseq
    %v1102 = vand.u32 %v1101, 127
    %vm1103 = vcmp.ge.s32.totalorder %v1085, %v1102
    %vm1104 = vcmp.ge.s32.totalorder %v1086, %v1102
    %vm1105 = vcmp.ge.s32.totalorder %v1087, %v1102
    %vm1106 = vcmp.ge.s32.totalorder %v1088, %v1102
    %vm1107 = vcmp.ge.s32.totalorder %v1089, %v1102
    %vm1108 = vcmp.ge.s32.totalorder %v1090, %v1102
    %vm1109 = vcmp.ge.s32.totalorder %v1091, %v1102
    %vm1110 = vcmp.ge.s32.totalorder %v1092, %v1102
    %vm1111 = vcmp.ge.s32.totalorder %v1093, %v1102
    %vm1112 = vcmp.ge.s32.totalorder %v1094, %v1102
    %vm1113 = vcmp.ge.s32.totalorder %v1095, %v1102
    %vm1114 = vcmp.ge.s32.totalorder %v1096, %v1102
    %vm1115 = vcmp.ge.s32.totalorder %v1097, %v1102
    %vm1116 = vcmp.ge.s32.totalorder %v1098, %v1102
    %vm1117 = vcmp.ge.s32.totalorder %v1099, %v1102
    %vm1118 = vcmp.ge.s32.totalorder %v1100, %v1102
    %vm1119 = vcmask 261120
    %v1121 = vsel %vm1119, %v1036, 0
    %v1124 = vsel %vm1119, %v1039, 0
    %v1127 = vsel %vm1119, %v1042, 0
    %v1130 = vsel %vm1119, %v1045, 0
    %v1133 = vsel %vm1119, %v1048, 0
    %v1136 = vsel %vm1119, %v1051, 0
    %v1139 = vsel %vm1119, %v1054, 0
    %v1142 = vsel %vm1119, %v1057, 0
    %v1145 = vsel %vm1119, %v1037, 0
    %v1148 = vsel %vm1119, %v1040, 0
    %v1151 = vsel %vm1119, %v1043, 0
    %v1154 = vsel %vm1119, %v1046, 0
    %v1157 = vsel %vm1119, %v1049, 0
    %v1160 = vsel %vm1119, %v1052, 0
    %v1163 = vsel %vm1119, %v1055, 0
    %v1166 = vsel %vm1119, %v1058, 0
    %1168 = vmatprep.subr.bf16.mxu0 0
    %1169 = vmatpush1.bf16.xpose.msra.mxu0 %v1166
    %1170 = vmatprep.subr.bf16.mxu0 0
    %1171 = vmatpush1.bf16.xpose.msra.mxu0 %v1163
    %1172 = vmatprep.subr.bf16.mxu0 0
    %1173 = vmatpush1.bf16.xpose.msra.mxu0 %v1160
    %1174 = vmatprep.subr.bf16.mxu0 0
    %1175 = vmatpush1.bf16.xpose.msra.mxu0 %v1157
    %1176 = vmatprep.subr.bf16.mxu0 0
    %1177 = vmatpush1.bf16.xpose.msra.mxu0 %v1154
    %1178 = vmatprep.subr.bf16.mxu0 0
    %1179 = vmatpush1.bf16.xpose.msra.mxu0 %v1151
    %1180 = vmatprep.subr.bf16.mxu0 0
    %1181 = vmatpush1.bf16.xpose.msra.mxu0 %v1148
    %1182 = vmatprep.subr.bf16.mxu0 0
    %1183 = vmatpush1.bf16.xpose.msra.mxu0 %v1145
    %1184 = vmatprep.subr.bf16.mxu0 0
    %1185 = vmatpush2.bf16.xpose.msra.mxu0 0
    %1186 = vmatprep.subr.bf16.mxu0 0
    %1187 = vmatpush2.bf16.xpose.msra.mxu0 0
    %1188 = vmatprep.subr.bf16.mxu0 0
    %1189 = vmatpush2.bf16.xpose.msra.mxu0 0
    %1190 = vmatprep.subr.bf16.mxu0 0
    %1191 = vmatpush2.bf16.xpose.msra.mxu0 0
    %1192 = vmatprep.subr.bf16.mxu0 0
    %1193 = vmatpush2.bf16.xpose.msra.mxu0 0
    %1194 = vmatprep.subr.bf16.mxu0 0
    %1195 = vmatpush2.bf16.xpose.msra.mxu0 0
    %1196 = vmatprep.subr.bf16.mxu0 0
    %1197 = vmatpush2.bf16.xpose.msra.mxu0 0
    %1198 = vmatprep.subr.bf16.mxu0 0
    %1199 = vmatpush2.bf16.xpose.msra.mxu0 0
    %1200 = vmatprep.mubr.bf16.mxu0 0
    %1201 = vmatmul.mubr.bf16.gmra.mxu0 %v1121
    %v1202 = vpop.f32.mrf.mxu0
    %v1203 = vadd.f32 0.0, %v1202
    %v1204 = vpop.f32.mrf.mxu0
    %v1205 = vpop.f32.mrf.mxu0
    %v1206 = vadd.f32 0.0, %v1205
    %v1207 = vpop.f32.mrf.mxu0
    %1208 = vmatprep.mubr.bf16.mxu0 0
    %1209 = vmatmul.mubr.bf16.gmra.mxu0 %v1124
    %v1210 = vpop.f32.mrf.mxu0
    %v1211 = vadd.f32 0.0, %v1210
    %v1212 = vpop.f32.mrf.mxu0
    %v1213 = vpop.f32.mrf.mxu0
    %v1214 = vadd.f32 0.0, %v1213
    %v1215 = vpop.f32.mrf.mxu0
    %1216 = vmatprep.mubr.bf16.mxu0 0
    %1217 = vmatmul.mubr.bf16.gmra.mxu0 %v1127
    %v1218 = vpop.f32.mrf.mxu0
    %v1219 = vadd.f32 0.0, %v1218
    %v1220 = vpop.f32.mrf.mxu0
    %v1221 = vpop.f32.mrf.mxu0
    %v1222 = vadd.f32 0.0, %v1221
    %v1223 = vpop.f32.mrf.mxu0
    %1224 = vmatprep.mubr.bf16.mxu0 0
    %1225 = vmatmul.mubr.bf16.gmra.mxu0 %v1130
    %v1226 = vpop.f32.mrf.mxu0
    %v1227 = vadd.f32 0.0, %v1226
    %v1228 = vpop.f32.mrf.mxu0
    %v1229 = vpop.f32.mrf.mxu0
    %v1230 = vadd.f32 0.0, %v1229
    %v1231 = vpop.f32.mrf.mxu0
    %1232 = vmatprep.mubr.bf16.mxu0 0
    %1233 = vmatmul.mubr.bf16.gmra.mxu0 %v1133
    %v1234 = vpop.f32.mrf.mxu0
    %v1235 = vadd.f32 0.0, %v1234
    %v1236 = vpop.f32.mrf.mxu0
    %v1237 = vpop.f32.mrf.mxu0
    %v1238 = vadd.f32 0.0, %v1237
    %v1239 = vpop.f32.mrf.mxu0
    %1240 = vmatprep.mubr.bf16.mxu0 0
    %1241 = vmatmul.mubr.bf16.gmra.mxu0 %v1136
    %v1242 = vpop.f32.mrf.mxu0
    %v1243 = vadd.f32 0.0, %v1242
    %v1244 = vpop.f32.mrf.mxu0
    %v1245 = vpop.f32.mrf.mxu0
    %v1246 = vadd.f32 0.0, %v1245
    %v1247 = vpop.f32.mrf.mxu0
    %1248 = vmatprep.mubr.bf16.mxu0 0
    %1249 = vmatmul.mubr.bf16.gmra.mxu0 %v1139
    %v1250 = vpop.f32.mrf.mxu0
    %v1251 = vadd.f32 0.0, %v1250
    %v1252 = vpop.f32.mrf.mxu0
    %v1253 = vpop.f32.mrf.mxu0
    %v1254 = vadd.f32 0.0, %v1253
    %v1255 = vpop.f32.mrf.mxu0
    %1256 = vmatprep.mubr.bf16.mxu0 0
    %1257 = vmatmul.mubr.bf16.gmra.mxu0 %v1142
    %v1258 = vpop.f32.mrf.mxu0
    %v1259 = vadd.f32 0.0, %v1258
    %v1260 = vpop.f32.mrf.mxu0
    %v1261 = vpop.f32.mrf.mxu0
    %v1262 = vadd.f32 0.0, %v1261
    %v1263 = vpop.f32.mrf.mxu0
    %1264 = vdwg.mxu0
    %v1265 = vsel %vm1103, %v1203, -1e+30
    %v1266 = vsel %vm1104, %v1206, -1e+30
    %v1267 = vsel %vm1105, %v1211, -1e+30
    %v1268 = vsel %vm1106, %v1214, -1e+30
    %v1269 = vsel %vm1107, %v1219, -1e+30
    %v1270 = vsel %vm1108, %v1222, -1e+30
    %v1271 = vsel %vm1109, %v1227, -1e+30
    %v1272 = vsel %vm1110, %v1230, -1e+30
    %v1273 = vsel %vm1111, %v1235, -1e+30
    %v1274 = vsel %vm1112, %v1238, -1e+30
    %v1275 = vsel %vm1113, %v1243, -1e+30
    %v1276 = vsel %vm1114, %v1246, -1e+30
    %v1277 = vsel %vm1115, %v1251, -1e+30
    %v1278 = vsel %vm1116, %v1254, -1e+30
    %v1279 = vsel %vm1117, %v1259, -1e+30
    %v1280 = vsel %vm1118, %v1262, -1e+30
    %1281 = vmax.xlane.f32.xlu0 %v1265
    %v1282 = vpop.xlane.xlu0 %1281
    %1283 = vmax.xlane.f32.xlu0 %v1266
    %v1284 = vpop.xlane.xlu0 %1283
    %1285 = vmax.xlane.f32.xlu0 %v1267
    %v1286 = vpop.xlane.xlu0 %1285
    %1287 = vmax.xlane.f32.xlu0 %v1268
    %v1288 = vpop.xlane.xlu0 %1287
    %1289 = vmax.xlane.f32.xlu0 %v1269
    %v1290 = vpop.xlane.xlu0 %1289
    %1291 = vmax.xlane.f32.xlu0 %v1270
    %v1292 = vpop.xlane.xlu0 %1291
    %1293 = vmax.xlane.f32.xlu0 %v1271
    %v1294 = vpop.xlane.xlu0 %1293
    %1295 = vmax.xlane.f32.xlu0 %v1272
    %v1296 = vpop.xlane.xlu0 %1295
    %1297 = vmax.xlane.f32.xlu0 %v1273
    %v1298 = vpop.xlane.xlu0 %1297
    %1299 = vmax.xlane.f32.xlu0 %v1274
    %v1300 = vpop.xlane.xlu0 %1299
    %1301 = vmax.xlane.f32.xlu0 %v1275
    %v1302 = vpop.xlane.xlu0 %1301
    %1303 = vmax.xlane.f32.xlu0 %v1276
    %v1304 = vpop.xlane.xlu0 %1303
    %1305 = vmax.xlane.f32.xlu0 %v1277
    %v1306 = vpop.xlane.xlu0 %1305
    %1307 = vmax.xlane.f32.xlu0 %v1278
    %v1308 = vpop.xlane.xlu0 %1307
    %1309 = vmax.xlane.f32.xlu0 %v1279
    %v1310 = vpop.xlane.xlu0 %1309
    %1311 = vmax.xlane.f32.xlu0 %v1280
    %v1312 = vpop.xlane.xlu0 %1311
    %v1313 = vsub.f32 %v1265, %v1282
    %v1314 = vsub.f32 %v1266, %v1284
    %v1315 = vsub.f32 %v1267, %v1286
    %v1316 = vsub.f32 %v1268, %v1288
    %v1317 = vsub.f32 %v1269, %v1290
    %v1318 = vsub.f32 %v1270, %v1292
    %v1319 = vsub.f32 %v1271, %v1294
    %v1320 = vsub.f32 %v1272, %v1296
    %v1321 = vsub.f32 %v1273, %v1298
    %v1322 = vsub.f32 %v1274, %v1300
    %v1323 = vsub.f32 %v1275, %v1302
    %v1324 = vsub.f32 %v1276, %v1304
    %v1325 = vsub.f32 %v1277, %v1306
    %v1326 = vsub.f32 %v1278, %v1308
    %v1327 = vsub.f32 %v1279, %v1310
    %v1328 = vsub.f32 %v1280, %v1312
    %v1329 = vmul.f32 %v1313, 1.442695
    %v1330 = vpow.pop %v1329
    %v1331 = vmul.f32 %v1314, 1.442695
    %v1332 = vpow.pop %v1331
    %v1333 = vmul.f32 %v1315, 1.442695
    %v1334 = vpow.pop %v1333
    %v1335 = vmul.f32 %v1316, 1.442695
    %v1336 = vpow.pop %v1335
    %v1337 = vmul.f32 %v1317, 1.442695
    %v1338 = vpow.pop %v1337
    %v1339 = vmul.f32 %v1318, 1.442695
    %v1340 = vpow.pop %v1339
    %v1341 = vmul.f32 %v1319, 1.442695
    %v1342 = vpow.pop %v1341
    %v1343 = vmul.f32 %v1320, 1.442695
    %v1344 = vpow.pop %v1343
    %v1345 = vmul.f32 %v1321, 1.442695
    %v1346 = vpow.pop %v1345
    %v1347 = vmul.f32 %v1322, 1.442695
    %v1348 = vpow.pop %v1347
    %v1349 = vmul.f32 %v1323, 1.442695
    %v1350 = vpow.pop %v1349
    %v1351 = vmul.f32 %v1324, 1.442695
    %v1352 = vpow.pop %v1351
    %v1353 = vmul.f32 %v1325, 1.442695
    %v1354 = vpow.pop %v1353
    %v1355 = vmul.f32 %v1326, 1.442695
    %v1356 = vpow.pop %v1355
    %v1357 = vmul.f32 %v1327, 1.442695
    %v1358 = vpow.pop %v1357
    %v1359 = vmul.f32 %v1328, 1.442695
    %v1360 = vpow.pop %v1359
    %1361 = vadd.xlane.f32.xlu0 %v1330
    %v1362 = vpop.xlane.xlu0 %1361
    %1363 = vadd.xlane.f32.xlu0 %v1332
    %v1364 = vpop.xlane.xlu0 %1363
    %1365 = vadd.xlane.f32.xlu0 %v1334
    %v1366 = vpop.xlane.xlu0 %1365
    %1367 = vadd.xlane.f32.xlu0 %v1336
    %v1368 = vpop.xlane.xlu0 %1367
    %1369 = vadd.xlane.f32.xlu0 %v1338
    %v1370 = vpop.xlane.xlu0 %1369
    %1371 = vadd.xlane.f32.xlu0 %v1340
    %v1372 = vpop.xlane.xlu0 %1371
    %1373 = vadd.xlane.f32.xlu0 %v1342
    %v1374 = vpop.xlane.xlu0 %1373
    %1375 = vadd.xlane.f32.xlu0 %v1344
    %v1376 = vpop.xlane.xlu0 %1375
    %1377 = vadd.xlane.f32.xlu0 %v1346
    %v1378 = vpop.xlane.xlu0 %1377
    %1379 = vadd.xlane.f32.xlu0 %v1348
    %v1380 = vpop.xlane.xlu0 %1379
    %1381 = vadd.xlane.f32.xlu0 %v1350
    %v1382 = vpop.xlane.xlu0 %1381
    %1383 = vadd.xlane.f32.xlu0 %v1352
    %v1384 = vpop.xlane.xlu0 %1383
    %1385 = vadd.xlane.f32.xlu0 %v1354
    %v1386 = vpop.xlane.xlu0 %1385
    %1387 = vadd.xlane.f32.xlu0 %v1356
    %v1388 = vpop.xlane.xlu0 %1387
    %1389 = vadd.xlane.f32.xlu0 %v1358
    %v1390 = vpop.xlane.xlu0 %1389
    %1391 = vadd.xlane.f32.xlu0 %v1360
    %v1392 = vpop.xlane.xlu0 %1391
    %v1393 = vpack.c.bf16 %v1332, %v1330
    %v1394 = vpack.c.bf16 %v1336, %v1334
    %v1395 = vpack.c.bf16 %v1340, %v1338
    %v1396 = vpack.c.bf16 %v1344, %v1342
    %v1397 = vpack.c.bf16 %v1348, %v1346
    %v1398 = vpack.c.bf16 %v1352, %v1350
    %v1399 = vpack.c.bf16 %v1356, %v1354
    %v1400 = vpack.c.bf16 %v1360, %v1358
    %1401 = vmatprep.subr.bf16.mxu0 0
    %1402 = vmatpush1.bf16.msra.mxu0 %v1059
    %1403 = vmatprep.subr.bf16.mxu0 0
    %1404 = vmatpush1.bf16.msra.mxu0 %v1056
    %1405 = vmatprep.subr.bf16.mxu0 0
    %1406 = vmatpush1.bf16.msra.mxu0 %v1053
    %1407 = vmatprep.subr.bf16.mxu0 0
    %1408 = vmatpush1.bf16.msra.mxu0 %v1050
    %1409 = vmatprep.subr.bf16.mxu0 0
    %1410 = vmatpush1.bf16.msra.mxu0 %v1047
    %1411 = vmatprep.subr.bf16.mxu0 0
    %1412 = vmatpush1.bf16.msra.mxu0 %v1044
    %1413 = vmatprep.subr.bf16.mxu0 0
    %1414 = vmatpush1.bf16.msra.mxu0 %v1041
    %1415 = vmatprep.subr.bf16.mxu0 0
    %1416 = vmatpush1.bf16.msra.mxu0 %v1038
    %1417 = vmatprep.subr.bf16.mxu0 0
    %1418 = vmatpush2.bf16.msra.mxu0 0
    %1419 = vmatprep.subr.bf16.mxu0 0
    %1420 = vmatpush2.bf16.msra.mxu0 0
    %1421 = vmatprep.subr.bf16.mxu0 0
    %1422 = vmatpush2.bf16.msra.mxu0 0
    %1423 = vmatprep.subr.bf16.mxu0 0
    %1424 = vmatpush2.bf16.msra.mxu0 0
    %1425 = vmatprep.subr.bf16.mxu0 0
    %1426 = vmatpush2.bf16.msra.mxu0 0
    %1427 = vmatprep.subr.bf16.mxu0 0
    %1428 = vmatpush2.bf16.msra.mxu0 0
    %1429 = vmatprep.subr.bf16.mxu0 0
    %1430 = vmatpush2.bf16.msra.mxu0 0
    %1431 = vmatprep.subr.bf16.mxu0 0
    %1432 = vmatpush2.bf16.msra.mxu0 0
    %1433 = vmatprep.mubr.bf16.mxu0 0
    %1434 = vmatmul.mubr.bf16.gmra.mxu0 %v1393
    %v1435 = vpop.f32.mrf.mxu0
    %v1436 = vadd.f32 0.0, %v1435
    %v1437 = vpop.f32.mrf.mxu0
    %v1438 = vpop.f32.mrf.mxu0
    %v1439 = vadd.f32 0.0, %v1438
    %v1440 = vpop.f32.mrf.mxu0
    %1441 = vmatprep.mubr.bf16.mxu0 0
    %1442 = vmatmul.mubr.bf16.gmra.mxu0 %v1394
    %v1443 = vpop.f32.mrf.mxu0
    %v1444 = vadd.f32 0.0, %v1443
    %v1445 = vpop.f32.mrf.mxu0
    %v1446 = vpop.f32.mrf.mxu0
    %v1447 = vadd.f32 0.0, %v1446
    %v1448 = vpop.f32.mrf.mxu0
    %1449 = vmatprep.mubr.bf16.mxu0 0
    %1450 = vmatmul.mubr.bf16.gmra.mxu0 %v1395
    %v1451 = vpop.f32.mrf.mxu0
    %v1452 = vadd.f32 0.0, %v1451
    %v1453 = vpop.f32.mrf.mxu0
    %v1454 = vpop.f32.mrf.mxu0
    %v1455 = vadd.f32 0.0, %v1454
    %v1456 = vpop.f32.mrf.mxu0
    %1457 = vmatprep.mubr.bf16.mxu0 0
    %1458 = vmatmul.mubr.bf16.gmra.mxu0 %v1396
    %v1459 = vpop.f32.mrf.mxu0
    %v1460 = vadd.f32 0.0, %v1459
    %v1461 = vpop.f32.mrf.mxu0
    %v1462 = vpop.f32.mrf.mxu0
    %v1463 = vadd.f32 0.0, %v1462
    %v1464 = vpop.f32.mrf.mxu0
    %1465 = vmatprep.mubr.bf16.mxu0 0
    %1466 = vmatmul.mubr.bf16.gmra.mxu0 %v1397
    %v1467 = vpop.f32.mrf.mxu0
    %v1468 = vadd.f32 0.0, %v1467
    %v1469 = vpop.f32.mrf.mxu0
    %v1470 = vpop.f32.mrf.mxu0
    %v1471 = vadd.f32 0.0, %v1470
    %v1472 = vpop.f32.mrf.mxu0
    %1473 = vmatprep.mubr.bf16.mxu0 0
    %1474 = vmatmul.mubr.bf16.gmra.mxu0 %v1398
    %v1475 = vpop.f32.mrf.mxu0
    %v1476 = vadd.f32 0.0, %v1475
    %v1477 = vpop.f32.mrf.mxu0
    %v1478 = vpop.f32.mrf.mxu0
    %v1479 = vadd.f32 0.0, %v1478
    %v1480 = vpop.f32.mrf.mxu0
    %1481 = vmatprep.mubr.bf16.mxu0 0
    %1482 = vmatmul.mubr.bf16.gmra.mxu0 %v1399
    %v1483 = vpop.f32.mrf.mxu0
    %v1484 = vadd.f32 0.0, %v1483
    %v1485 = vpop.f32.mrf.mxu0
    %v1486 = vpop.f32.mrf.mxu0
    %v1487 = vadd.f32 0.0, %v1486
    %v1488 = vpop.f32.mrf.mxu0
    %1489 = vmatprep.mubr.bf16.mxu0 0
    %1490 = vmatmul.mubr.bf16.gmra.mxu0 %v1400
    %v1491 = vpop.f32.mrf.mxu0
    %v1492 = vadd.f32 0.0, %v1491
    %v1493 = vpop.f32.mrf.mxu0
    %v1494 = vpop.f32.mrf.mxu0
    %v1495 = vadd.f32 0.0, %v1494
    %v1496 = vpop.f32.mrf.mxu0
    %1497 = vdwg.mxu0
    %v1498 = vrcp.pop %v1362
    %v1499 = vrcp.pop %v1364
    %v1500 = vrcp.pop %v1366
    %v1501 = vrcp.pop %v1368
    %v1502 = vrcp.pop %v1370
    %v1503 = vrcp.pop %v1372
    %v1504 = vrcp.pop %v1374
    %v1505 = vrcp.pop %v1376
    %v1506 = vrcp.pop %v1378
    %v1507 = vrcp.pop %v1380
    %v1508 = vrcp.pop %v1382
    %v1509 = vrcp.pop %v1384
    %v1510 = vrcp.pop %v1386
    %v1511 = vrcp.pop %v1388
    %v1512 = vrcp.pop %v1390
    %v1513 = vrcp.pop %v1392
    %v1514 = vmul.f32 %v1436, %v1498
    %v1515 = vmul.f32 %v1439, %v1499
    %v1516 = vmul.f32 %v1444, %v1500
    %v1517 = vmul.f32 %v1447, %v1501
    %v1518 = vmul.f32 %v1452, %v1502
    %v1519 = vmul.f32 %v1455, %v1503
    %v1520 = vmul.f32 %v1460, %v1504
    %v1521 = vmul.f32 %v1463, %v1505
    %v1522 = vmul.f32 %v1468, %v1506
    %v1523 = vmul.f32 %v1471, %v1507
    %v1524 = vmul.f32 %v1476, %v1508
    %v1525 = vmul.f32 %v1479, %v1509
    %v1526 = vmul.f32 %v1484, %v1510
    %v1527 = vmul.f32 %v1487, %v1511
    %v1528 = vmul.f32 %v1492, %v1512
    %v1529 = vmul.f32 %v1495, %v1513
    %v1530 = vpack.c.bf16 %v1515, %v1514
    %v1531 = vpack.c.bf16 %v1517, %v1516
    %v1532 = vpack.c.bf16 %v1519, %v1518
    %v1533 = vpack.c.bf16 %v1521, %v1520
    %v1534 = vpack.c.bf16 %v1523, %v1522
    %v1535 = vpack.c.bf16 %v1525, %v1524
    %v1536 = vpack.c.bf16 %v1527, %v1526
    %v1537 = vpack.c.bf16 %v1529, %v1528
    %v1546 = vunpack.c.l.b16 %v1530
    %v1547 = vunpack.c.h.b16 %v1530
    %v1548 = vunpack.c.l.b16 %v1531
    %v1549 = vunpack.c.h.b16 %v1531
    %v1550 = vunpack.c.l.b16 %v1532
    %v1551 = vunpack.c.h.b16 %v1532
    %v1552 = vunpack.c.l.b16 %v1533
    %v1553 = vunpack.c.h.b16 %v1533
    %v1554 = vunpack.c.l.b16 %v1534
    %v1555 = vunpack.c.h.b16 %v1534
    %v1556 = vunpack.c.l.b16 %v1535
    %v1557 = vunpack.c.h.b16 %v1535
    %v1558 = vunpack.c.l.b16 %v1536
    %v1559 = vunpack.c.h.b16 %v1536
    %v1560 = vunpack.c.l.b16 %v1537
    %v1561 = vunpack.c.h.b16 %v1537
    %v1562 = vpack.c.b16 %v1546, %v1546
    %v1563 = vpack.c.b16 %v1547, %v1547
    %v1564 = vpack.c.b16 %v1548, %v1548
    %v1565 = vpack.c.b16 %v1549, %v1549
    %v1566 = vpack.c.b16 %v1550, %v1550
    %v1567 = vpack.c.b16 %v1551, %v1551
    %v1568 = vpack.c.b16 %v1552, %v1552
    %v1569 = vpack.c.b16 %v1553, %v1553
    %v1570 = vpack.c.b16 %v1554, %v1554
    %v1571 = vpack.c.b16 %v1555, %v1555
    %v1572 = vpack.c.b16 %v1556, %v1556
    %v1573 = vpack.c.b16 %v1557, %v1557
    %v1574 = vpack.c.b16 %v1558, %v1558
    %v1575 = vpack.c.b16 %v1559, %v1559
    %v1576 = vpack.c.b16 %v1560, %v1560
    %v1577 = vpack.c.b16 %v1561, %v1561
    %vm1594 = vcmask 257024
    %1595 = vst.msk [vmem:[#allocation2] sm:$0xf] %vm1594, %v1562
    %1596 = vst.msk [vmem:[#allocation2 + $0x4] sm:$0xf] %vm1594, %v1563
    %1597 = vst.msk [vmem:[#allocation2 + $0x8] sm:$0xf] %vm1594, %v1564
    %1598 = vst.msk [vmem:[#allocation2 + $0xc] sm:$0xf] %vm1594, %v1565
    %1599 = vst.msk [vmem:[#allocation2 + $0x10] sm:$0xf] %vm1594, %v1566
    %1600 = vst.msk [vmem:[#allocation2 + $0x14] sm:$0xf] %vm1594, %v1567
    %1601 = vst.msk [vmem:[#allocation2 + $0x18] sm:$0xf] %vm1594, %v1568
    %1602 = vst.msk [vmem:[#allocation2 + $0x1c] sm:$0xf] %vm1594, %v1569
    %1603 = vst.msk [vmem:[#allocation2 + $0x20] sm:$0xf] %vm1594, %v1570
    %1604 = vst.msk [vmem:[#allocation2 + $0x24] sm:$0xf] %vm1594, %v1571
    %1605 = vst.msk [vmem:[#allocation2 + $0x28] sm:$0xf] %vm1594, %v1572
    %1606 = vst.msk [vmem:[#allocation2 + $0x2c] sm:$0xf] %vm1594, %v1573
    %1607 = vst.msk [vmem:[#allocation2 + $0x30] sm:$0xf] %vm1594, %v1574
    %1608 = vst.msk [vmem:[#allocation2 + $0x34] sm:$0xf] %vm1594, %v1575
    %1609 = vst.msk [vmem:[#allocation2 + $0x38] sm:$0xf] %vm1594, %v1576
    %1610 = vst.msk [vmem:[#allocation2 + $0x3c] sm:$0xf] %vm1594, %v1577
    %1619 = vrot.lane.b32.xlu0 %v1036, 96
    %v1620 = vpop.permute.xlu0 %1619
    %1621 = vrot.lane.b32.xlu0 %v1039, 96
    %v1622 = vpop.permute.xlu0 %1621
    %1623 = vrot.lane.b32.xlu0 %v1042, 96
    %v1624 = vpop.permute.xlu0 %1623
    %1625 = vrot.lane.b32.xlu0 %v1045, 96
    %v1626 = vpop.permute.xlu0 %1625
    %1627 = vrot.lane.b32.xlu0 %v1048, 96
    %v1628 = vpop.permute.xlu0 %1627
    %1629 = vrot.lane.b32.xlu0 %v1051, 96
    %v1630 = vpop.permute.xlu0 %1629
    %1631 = vrot.lane.b32.xlu0 %v1054, 96
    %v1632 = vpop.permute.xlu0 %1631
    %1633 = vrot.lane.b32.xlu0 %v1057, 96
    %v1634 = vpop.permute.xlu0 %1633
    %1643 = vrot.lane.b32.xlu0 %v1037, 96
    %v1644 = vpop.permute.xlu0 %1643
    %1645 = vrot.lane.b32.xlu0 %v1040, 96
    %v1646 = vpop.permute.xlu0 %1645
    %1647 = vrot.lane.b32.xlu0 %v1043, 96
    %v1648 = vpop.permute.xlu0 %1647
    %1649 = vrot.lane.b32.xlu0 %v1046, 96
    %v1650 = vpop.permute.xlu0 %1649
    %1651 = vrot.lane.b32.xlu0 %v1049, 96
    %v1652 = vpop.permute.xlu0 %1651
    %1653 = vrot.lane.b32.xlu0 %v1052, 96
    %v1654 = vpop.permute.xlu0 %1653
    %1655 = vrot.lane.b32.xlu0 %v1055, 96
    %v1656 = vpop.permute.xlu0 %1655
    %1657 = vrot.lane.b32.xlu0 %v1058, 96
    %v1658 = vpop.permute.xlu0 %1657
    %v1660 = vsel %vm1119, %v1620, 0
    %v1663 = vsel %vm1119, %v1622, 0
    %v1666 = vsel %vm1119, %v1624, 0
    %v1669 = vsel %vm1119, %v1626, 0
    %v1672 = vsel %vm1119, %v1628, 0
    %v1675 = vsel %vm1119, %v1630, 0
    %v1678 = vsel %vm1119, %v1632, 0
    %v1681 = vsel %vm1119, %v1634, 0
    %v1684 = vsel %vm1119, %v1644, 0
    %v1687 = vsel %vm1119, %v1646, 0
    %v1690 = vsel %vm1119, %v1648, 0
    %v1693 = vsel %vm1119, %v1650, 0
    %v1696 = vsel %vm1119, %v1652, 0
    %v1699 = vsel %vm1119, %v1654, 0
    %v1702 = vsel %vm1119, %v1656, 0
    %v1705 = vsel %vm1119, %v1658, 0
    %1707 = vmatprep.subr.bf16.mxu0 0
    %1708 = vmatpush1.bf16.xpose.msra.mxu0 %v1705
    %1709 = vmatprep.subr.bf16.mxu0 0
    %1710 = vmatpush1.bf16.xpose.msra.mxu0 %v1702
    %1711 = vmatprep.subr.bf16.mxu0 0
    %1712 = vmatpush1.bf16.xpose.msra.mxu0 %v1699
    %1713 = vmatprep.subr.bf16.mxu0 0
    %1714 = vmatpush1.bf16.xpose.msra.mxu0 %v1696
    %1715 = vmatprep.subr.bf16.mxu0 0
    %1716 = vmatpush1.bf16.xpose.msra.mxu0 %v1693
    %1717 = vmatprep.subr.bf16.mxu0 0
    %1718 = vmatpush1.bf16.xpose.msra.mxu0 %v1690
    %1719 = vmatprep.subr.bf16.mxu0 0
    %1720 = vmatpush1.bf16.xpose.msra.mxu0 %v1687
    %1721 = vmatprep.subr.bf16.mxu0 0
    %1722 = vmatpush1.bf16.xpose.msra.mxu0 %v1684
    %1723 = vmatprep.subr.bf16.mxu0 0
    %1724 = vmatpush2.bf16.xpose.msra.mxu0 0
    %1725 = vmatprep.subr.bf16.mxu0 0
    %1726 = vmatpush2.bf16.xpose.msra.mxu0 0
    %1727 = vmatprep.subr.bf16.mxu0 0
    %1728 = vmatpush2.bf16.xpose.msra.mxu0 0
    %1729 = vmatprep.subr.bf16.mxu0 0
    %1730 = vmatpush2.bf16.xpose.msra.mxu0 0
    %1731 = vmatprep.subr.bf16.mxu0 0
    %1732 = vmatpush2.bf16.xpose.msra.mxu0 0
    %1733 = vmatprep.subr.bf16.mxu0 0
    %1734 = vmatpush2.bf16.xpose.msra.mxu0 0
    %1735 = vmatprep.subr.bf16.mxu0 0
    %1736 = vmatpush2.bf16.xpose.msra.mxu0 0
    %1737 = vmatprep.subr.bf16.mxu0 0
    %1738 = vmatpush2.bf16.xpose.msra.mxu0 0
    %1739 = vmatprep.mubr.bf16.mxu0 0
    %1740 = vmatmul.mubr.bf16.gmra.mxu0 %v1660
    %v1741 = vpop.f32.mrf.mxu0
    %v1742 = vadd.f32 0.0, %v1741
    %v1743 = vpop.f32.mrf.mxu0
    %v1744 = vpop.f32.mrf.mxu0
    %v1745 = vadd.f32 0.0, %v1744
    %v1746 = vpop.f32.mrf.mxu0
    %1747 = vmatprep.mubr.bf16.mxu0 0
    %1748 = vmatmul.mubr.bf16.gmra.mxu0 %v1663
    %v1749 = vpop.f32.mrf.mxu0
    %v1750 = vadd.f32 0.0, %v1749
    %v1751 = vpop.f32.mrf.mxu0
    %v1752 = vpop.f32.mrf.mxu0
    %v1753 = vadd.f32 0.0, %v1752
    %v1754 = vpop.f32.mrf.mxu0
    %1755 = vmatprep.mubr.bf16.mxu0 0
    %1756 = vmatmul.mubr.bf16.gmra.mxu0 %v1666
    %v1757 = vpop.f32.mrf.mxu0
    %v1758 = vadd.f32 0.0, %v1757
    %v1759 = vpop.f32.mrf.mxu0
    %v1760 = vpop.f32.mrf.mxu0
    %v1761 = vadd.f32 0.0, %v1760
    %v1762 = vpop.f32.mrf.mxu0
    %1763 = vmatprep.mubr.bf16.mxu0 0
    %1764 = vmatmul.mubr.bf16.gmra.mxu0 %v1669
    %v1765 = vpop.f32.mrf.mxu0
    %v1766 = vadd.f32 0.0, %v1765
    %v1767 = vpop.f32.mrf.mxu0
    %v1768 = vpop.f32.mrf.mxu0
    %v1769 = vadd.f32 0.0, %v1768
    %v1770 = vpop.f32.mrf.mxu0
    %1771 = vmatprep.mubr.bf16.mxu0 0
    %1772 = vmatmul.mubr.bf16.gmra.mxu0 %v1672
    %v1773 = vpop.f32.mrf.mxu0
    %v1774 = vadd.f32 0.0, %v1773
    %v1775 = vpop.f32.mrf.mxu0
    %v1776 = vpop.f32.mrf.mxu0
    %v1777 = vadd.f32 0.0, %v1776
    %v1778 = vpop.f32.mrf.mxu0
    %1779 = vmatprep.mubr.bf16.mxu0 0
    %1780 = vmatmul.mubr.bf16.gmra.mxu0 %v1675
    %v1781 = vpop.f32.mrf.mxu0
    %v1782 = vadd.f32 0.0, %v1781
    %v1783 = vpop.f32.mrf.mxu0
    %v1784 = vpop.f32.mrf.mxu0
    %v1785 = vadd.f32 0.0, %v1784
    %v1786 = vpop.f32.mrf.mxu0
    %1787 = vmatprep.mubr.bf16.mxu0 0
    %1788 = vmatmul.mubr.bf16.gmra.mxu0 %v1678
    %v1789 = vpop.f32.mrf.mxu0
    %v1790 = vadd.f32 0.0, %v1789
    %v1791 = vpop.f32.mrf.mxu0
    %v1792 = vpop.f32.mrf.mxu0
    %v1793 = vadd.f32 0.0, %v1792
    %v1794 = vpop.f32.mrf.mxu0
    %1795 = vmatprep.mubr.bf16.mxu0 0
    %1796 = vmatmul.mubr.bf16.gmra.mxu0 %v1681
    %v1797 = vpop.f32.mrf.mxu0
    %v1798 = vadd.f32 0.0, %v1797
    %v1799 = vpop.f32.mrf.mxu0
    %v1800 = vpop.f32.mrf.mxu0
    %v1801 = vadd.f32 0.0, %v1800
    %v1802 = vpop.f32.mrf.mxu0
    %1803 = vdwg.mxu0
    %v1804 = vsel %vm1103, %v1742, -1e+30
    %v1805 = vsel %vm1104, %v1745, -1e+30
    %v1806 = vsel %vm1105, %v1750, -1e+30
    %v1807 = vsel %vm1106, %v1753, -1e+30
    %v1808 = vsel %vm1107, %v1758, -1e+30
    %v1809 = vsel %vm1108, %v1761, -1e+30
    %v1810 = vsel %vm1109, %v1766, -1e+30
    %v1811 = vsel %vm1110, %v1769, -1e+30
    %v1812 = vsel %vm1111, %v1774, -1e+30
    %v1813 = vsel %vm1112, %v1777, -1e+30
    %v1814 = vsel %vm1113, %v1782, -1e+30
    %v1815 = vsel %vm1114, %v1785, -1e+30
    %v1816 = vsel %vm1115, %v1790, -1e+30
    %v1817 = vsel %vm1116, %v1793, -1e+30
    %v1818 = vsel %vm1117, %v1798, -1e+30
    %v1819 = vsel %vm1118, %v1801, -1e+30
    %1820 = vmax.xlane.f32.xlu0 %v1804
    %v1821 = vpop.xlane.xlu0 %1820
    %1822 = vmax.xlane.f32.xlu0 %v1805
    %v1823 = vpop.xlane.xlu0 %1822
    %1824 = vmax.xlane.f32.xlu0 %v1806
    %v1825 = vpop.xlane.xlu0 %1824
    %1826 = vmax.xlane.f32.xlu0 %v1807
    %v1827 = vpop.xlane.xlu0 %1826
    %1828 = vmax.xlane.f32.xlu0 %v1808
    %v1829 = vpop.xlane.xlu0 %1828
    %1830 = vmax.xlane.f32.xlu0 %v1809
    %v1831 = vpop.xlane.xlu0 %1830
    %1832 = vmax.xlane.f32.xlu0 %v1810
    %v1833 = vpop.xlane.xlu0 %1832
    %1834 = vmax.xlane.f32.xlu0 %v1811
    %v1835 = vpop.xlane.xlu0 %1834
    %1836 = vmax.xlane.f32.xlu0 %v1812
    %v1837 = vpop.xlane.xlu0 %1836
    %1838 = vmax.xlane.f32.xlu0 %v1813
    %v1839 = vpop.xlane.xlu0 %1838
    %1840 = vmax.xlane.f32.xlu0 %v1814
    %v1841 = vpop.xlane.xlu0 %1840
    %1842 = vmax.xlane.f32.xlu0 %v1815
    %v1843 = vpop.xlane.xlu0 %1842
    %1844 = vmax.xlane.f32.xlu0 %v1816
    %v1845 = vpop.xlane.xlu0 %1844
    %1846 = vmax.xlane.f32.xlu0 %v1817
    %v1847 = vpop.xlane.xlu0 %1846
    %1848 = vmax.xlane.f32.xlu0 %v1818
    %v1849 = vpop.xlane.xlu0 %1848
    %1850 = vmax.xlane.f32.xlu0 %v1819
    %v1851 = vpop.xlane.xlu0 %1850
    %v1852 = vsub.f32 %v1804, %v1821
    %v1853 = vsub.f32 %v1805, %v1823
    %v1854 = vsub.f32 %v1806, %v1825
    %v1855 = vsub.f32 %v1807, %v1827
    %v1856 = vsub.f32 %v1808, %v1829
    %v1857 = vsub.f32 %v1809, %v1831
    %v1858 = vsub.f32 %v1810, %v1833
    %v1859 = vsub.f32 %v1811, %v1835
    %v1860 = vsub.f32 %v1812, %v1837
    %v1861 = vsub.f32 %v1813, %v1839
    %v1862 = vsub.f32 %v1814, %v1841
    %v1863 = vsub.f32 %v1815, %v1843
    %v1864 = vsub.f32 %v1816, %v1845
    %v1865 = vsub.f32 %v1817, %v1847
    %v1866 = vsub.f32 %v1818, %v1849
    %v1867 = vsub.f32 %v1819, %v1851
    %v1868 = vmul.f32 %v1852, 1.442695
    %v1869 = vpow.pop %v1868
    %v1870 = vmul.f32 %v1853, 1.442695
    %v1871 = vpow.pop %v1870
    %v1872 = vmul.f32 %v1854, 1.442695
    %v1873 = vpow.pop %v1872
    %v1874 = vmul.f32 %v1855, 1.442695
    %v1875 = vpow.pop %v1874
    %v1876 = vmul.f32 %v1856, 1.442695
    %v1877 = vpow.pop %v1876
    %v1878 = vmul.f32 %v1857, 1.442695
    %v1879 = vpow.pop %v1878
    %v1880 = vmul.f32 %v1858, 1.442695
    %v1881 = vpow.pop %v1880
    %v1882 = vmul.f32 %v1859, 1.442695
    %v1883 = vpow.pop %v1882
    %v1884 = vmul.f32 %v1860, 1.442695
    %v1885 = vpow.pop %v1884
    %v1886 = vmul.f32 %v1861, 1.442695
    %v1887 = vpow.pop %v1886
    %v1888 = vmul.f32 %v1862, 1.442695
    %v1889 = vpow.pop %v1888
    %v1890 = vmul.f32 %v1863, 1.442695
    %v1891 = vpow.pop %v1890
    %v1892 = vmul.f32 %v1864, 1.442695
    %v1893 = vpow.pop %v1892
    %v1894 = vmul.f32 %v1865, 1.442695
    %v1895 = vpow.pop %v1894
    %v1896 = vmul.f32 %v1866, 1.442695
    %v1897 = vpow.pop %v1896
    %v1898 = vmul.f32 %v1867, 1.442695
    %v1899 = vpow.pop %v1898
    %1900 = vadd.xlane.f32.xlu0 %v1869
    %v1901 = vpop.xlane.xlu0 %1900
    %1902 = vadd.xlane.f32.xlu0 %v1871
    %v1903 = vpop.xlane.xlu0 %1902
    %1904 = vadd.xlane.f32.xlu0 %v1873
    %v1905 = vpop.xlane.xlu0 %1904
    %1906 = vadd.xlane.f32.xlu0 %v1875
    %v1907 = vpop.xlane.xlu0 %1906
    %1908 = vadd.xlane.f32.xlu0 %v1877
    %v1909 = vpop.xlane.xlu0 %1908
    %1910 = vadd.xlane.f32.xlu0 %v1879
    %v1911 = vpop.xlane.xlu0 %1910
    %1912 = vadd.xlane.f32.xlu0 %v1881
    %v1913 = vpop.xlane.xlu0 %1912
    %1914 = vadd.xlane.f32.xlu0 %v1883
    %v1915 = vpop.xlane.xlu0 %1914
    %1916 = vadd.xlane.f32.xlu0 %v1885
    %v1917 = vpop.xlane.xlu0 %1916
    %1918 = vadd.xlane.f32.xlu0 %v1887
    %v1919 = vpop.xlane.xlu0 %1918
    %1920 = vadd.xlane.f32.xlu0 %v1889
    %v1921 = vpop.xlane.xlu0 %1920
    %1922 = vadd.xlane.f32.xlu0 %v1891
    %v1923 = vpop.xlane.xlu0 %1922
    %1924 = vadd.xlane.f32.xlu0 %v1893
    %v1925 = vpop.xlane.xlu0 %1924
    %1926 = vadd.xlane.f32.xlu0 %v1895
    %v1927 = vpop.xlane.xlu0 %1926
    %1928 = vadd.xlane.f32.xlu0 %v1897
    %v1929 = vpop.xlane.xlu0 %1928
    %1930 = vadd.xlane.f32.xlu0 %v1899
    %v1931 = vpop.xlane.xlu0 %1930
    %v1932 = vpack.c.bf16 %v1871, %v1869
    %v1933 = vpack.c.bf16 %v1875, %v1873
    %v1934 = vpack.c.bf16 %v1879, %v1877
    %v1935 = vpack.c.bf16 %v1883, %v1881
    %v1936 = vpack.c.bf16 %v1887, %v1885
    %v1937 = vpack.c.bf16 %v1891, %v1889
    %v1938 = vpack.c.bf16 %v1895, %v1893
    %v1939 = vpack.c.bf16 %v1899, %v1897
    %1948 = vrot.lane.b32.xlu0 %v1038, 96
    %v1949 = vpop.permute.xlu0 %1948
    %1950 = vrot.lane.b32.xlu0 %v1041, 96
    %v1951 = vpop.permute.xlu0 %1950
    %1952 = vrot.lane.b32.xlu0 %v1044, 96
    %v1953 = vpop.permute.xlu0 %1952
    %1954 = vrot.lane.b32.xlu0 %v1047, 96
    %v1955 = vpop.permute.xlu0 %1954
    %1956 = vrot.lane.b32.xlu0 %v1050, 96
    %v1957 = vpop.permute.xlu0 %1956
    %1958 = vrot.lane.b32.xlu0 %v1053, 96
    %v1959 = vpop.permute.xlu0 %1958
    %1960 = vrot.lane.b32.xlu0 %v1056, 96
    %v1961 = vpop.permute.xlu0 %1960
    %1962 = vrot.lane.b32.xlu0 %v1059, 96
    %v1963 = vpop.permute.xlu0 %1962
    %1972 = vmatprep.subr.bf16.mxu0 0
    %1973 = vmatpush1.bf16.msra.mxu0 %v1963
    %1974 = vmatprep.subr.bf16.mxu0 0
    %1975 = vmatpush1.bf16.msra.mxu0 %v1961
    %1976 = vmatprep.subr.bf16.mxu0 0
    %1977 = vmatpush1.bf16.msra.mxu0 %v1959
    %1978 = vmatprep.subr.bf16.mxu0 0
    %1979 = vmatpush1.bf16.msra.mxu0 %v1957
    %1980 = vmatprep.subr.bf16.mxu0 0
    %1981 = vmatpush1.bf16.msra.mxu0 %v1955
    %1982 = vmatprep.subr.bf16.mxu0 0
    %1983 = vmatpush1.bf16.msra.mxu0 %v1953
    %1984 = vmatprep.subr.bf16.mxu0 0
    %1985 = vmatpush1.bf16.msra.mxu0 %v1951
    %1986 = vmatprep.subr.bf16.mxu0 0
    %1987 = vmatpush1.bf16.msra.mxu0 %v1949
    %1988 = vmatprep.subr.bf16.mxu0 0
    %1989 = vmatpush2.bf16.msra.mxu0 0
    %1990 = vmatprep.subr.bf16.mxu0 0
    %1991 = vmatpush2.bf16.msra.mxu0 0
    %1992 = vmatprep.subr.bf16.mxu0 0
    %1993 = vmatpush2.bf16.msra.mxu0 0
    %1994 = vmatprep.subr.bf16.mxu0 0
    %1995 = vmatpush2.bf16.msra.mxu0 0
    %1996 = vmatprep.subr.bf16.mxu0 0
    %1997 = vmatpush2.bf16.msra.mxu0 0
    %1998 = vmatprep.subr.bf16.mxu0 0
    %1999 = vmatpush2.bf16.msra.mxu0 0
    %2000 = vmatprep.subr.bf16.mxu0 0
    %2001 = vmatpush2.bf16.msra.mxu0 0
    %2002 = vmatprep.subr.bf16.mxu0 0
    %2003 = vmatpush2.bf16.msra.mxu0 0
    %2004 = vmatprep.mubr.bf16.mxu0 0
    %2005 = vmatmul.mubr.bf16.gmra.mxu0 %v1932
    %v2006 = vpop.f32.mrf.mxu0
    %v2007 = vadd.f32 0.0, %v2006
    %v2008 = vpop.f32.mrf.mxu0
    %v2009 = vpop.f32.mrf.mxu0
    %v2010 = vadd.f32 0.0, %v2009
    %v2011 = vpop.f32.mrf.mxu0
    %2012 = vmatprep.mubr.bf16.mxu0 0
    %2013 = vmatmul.mubr.bf16.gmra.mxu0 %v1933
    %v2014 = vpop.f32.mrf.mxu0
    %v2015 = vadd.f32 0.0, %v2014
    %v2016 = vpop.f32.mrf.mxu0
    %v2017 = vpop.f32.mrf.mxu0
    %v2018 = vadd.f32 0.0, %v2017
    %v2019 = vpop.f32.mrf.mxu0
    %2020 = vmatprep.mubr.bf16.mxu0 0
    %2021 = vmatmul.mubr.bf16.gmra.mxu0 %v1934
    %v2022 = vpop.f32.mrf.mxu0
    %v2023 = vadd.f32 0.0, %v2022
    %v2024 = vpop.f32.mrf.mxu0
    %v2025 = vpop.f32.mrf.mxu0
    %v2026 = vadd.f32 0.0, %v2025
    %v2027 = vpop.f32.mrf.mxu0
    %2028 = vmatprep.mubr.bf16.mxu0 0
    %2029 = vmatmul.mubr.bf16.gmra.mxu0 %v1935
    %v2030 = vpop.f32.mrf.mxu0
    %v2031 = vadd.f32 0.0, %v2030
    %v2032 = vpop.f32.mrf.mxu0
    %v2033 = vpop.f32.mrf.mxu0
    %v2034 = vadd.f32 0.0, %v2033
    %v2035 = vpop.f32.mrf.mxu0
    %2036 = vmatprep.mubr.bf16.mxu0 0
    %2037 = vmatmul.mubr.bf16.gmra.mxu0 %v1936
    %v2038 = vpop.f32.mrf.mxu0
    %v2039 = vadd.f32 0.0, %v2038
    %v2040 = vpop.f32.mrf.mxu0
    %v2041 = vpop.f32.mrf.mxu0
    %v2042 = vadd.f32 0.0, %v2041
    %v2043 = vpop.f32.mrf.mxu0
    %2044 = vmatprep.mubr.bf16.mxu0 0
    %2045 = vmatmul.mubr.bf16.gmra.mxu0 %v1937
    %v2046 = vpop.f32.mrf.mxu0
    %v2047 = vadd.f32 0.0, %v2046
    %v2048 = vpop.f32.mrf.mxu0
    %v2049 = vpop.f32.mrf.mxu0
    %v2050 = vadd.f32 0.0, %v2049
    %v2051 = vpop.f32.mrf.mxu0
    %2052 = vmatprep.mubr.bf16.mxu0 0
    %2053 = vmatmul.mubr.bf16.gmra.mxu0 %v1938
    %v2054 = vpop.f32.mrf.mxu0
    %v2055 = vadd.f32 0.0, %v2054
    %v2056 = vpop.f32.mrf.mxu0
    %v2057 = vpop.f32.mrf.mxu0
    %v2058 = vadd.f32 0.0, %v2057
    %v2059 = vpop.f32.mrf.mxu0
    %2060 = vmatprep.mubr.bf16.mxu0 0
    %2061 = vmatmul.mubr.bf16.gmra.mxu0 %v1939
    %v2062 = vpop.f32.mrf.mxu0
    %v2063 = vadd.f32 0.0, %v2062
    %v2064 = vpop.f32.mrf.mxu0
    %v2065 = vpop.f32.mrf.mxu0
    %v2066 = vadd.f32 0.0, %v2065
    %v2067 = vpop.f32.mrf.mxu0
    %2068 = vdwg.mxu0
    %v2069 = vrcp.pop %v1901
    %v2070 = vrcp.pop %v1903
    %v2071 = vrcp.pop %v1905
    %v2072 = vrcp.pop %v1907
    %v2073 = vrcp.pop %v1909
    %v2074 = vrcp.pop %v1911
    %v2075 = vrcp.pop %v1913
    %v2076 = vrcp.pop %v1915
    %v2077 = vrcp.pop %v1917
    %v2078 = vrcp.pop %v1919
    %v2079 = vrcp.pop %v1921
    %v2080 = vrcp.pop %v1923
    %v2081 = vrcp.pop %v1925
    %v2082 = vrcp.pop %v1927
    %v2083 = vrcp.pop %v1929
    %v2084 = vrcp.pop %v1931
    %v2085 = vmul.f32 %v2007, %v2069
    %v2086 = vmul.f32 %v2010, %v2070
    %v2087 = vmul.f32 %v2015, %v2071
    %v2088 = vmul.f32 %v2018, %v2072
    %v2089 = vmul.f32 %v2023, %v2073
    %v2090 = vmul.f32 %v2026, %v2074
    %v2091 = vmul.f32 %v2031, %v2075
    %v2092 = vmul.f32 %v2034, %v2076
    %v2093 = vmul.f32 %v2039, %v2077
    %v2094 = vmul.f32 %v2042, %v2078
    %v2095 = vmul.f32 %v2047, %v2079
    %v2096 = vmul.f32 %v2050, %v2080
    %v2097 = vmul.f32 %v2055, %v2081
    %v2098 = vmul.f32 %v2058, %v2082
    %v2099 = vmul.f32 %v2063, %v2083
    %v2100 = vmul.f32 %v2066, %v2084
    %v2101 = vpack.c.bf16 %v2086, %v2085
    %v2102 = vpack.c.bf16 %v2088, %v2087
    %v2103 = vpack.c.bf16 %v2090, %v2089
    %v2104 = vpack.c.bf16 %v2092, %v2091
    %v2105 = vpack.c.bf16 %v2094, %v2093
    %v2106 = vpack.c.bf16 %v2096, %v2095
    %v2107 = vpack.c.bf16 %v2098, %v2097
    %v2108 = vpack.c.bf16 %v2100, %v2099
    %v2117 = vunpack.c.l.b16 %v2101
    %v2118 = vunpack.c.h.b16 %v2101
    %v2119 = vunpack.c.l.b16 %v2102
    %v2120 = vunpack.c.h.b16 %v2102
    %v2121 = vunpack.c.l.b16 %v2103
    %v2122 = vunpack.c.h.b16 %v2103
    %v2123 = vunpack.c.l.b16 %v2104
    %v2124 = vunpack.c.h.b16 %v2104
    %v2125 = vunpack.c.l.b16 %v2105
    %v2126 = vunpack.c.h.b16 %v2105
    %v2127 = vunpack.c.l.b16 %v2106
    %v2128 = vunpack.c.h.b16 %v2106
    %v2129 = vunpack.c.l.b16 %v2107
    %v2130 = vunpack.c.h.b16 %v2107
    %v2131 = vunpack.c.l.b16 %v2108
    %v2132 = vunpack.c.h.b16 %v2108
    %v2133 = vpack.c.b16 %v2117, %v2117
    %v2134 = vpack.c.b16 %v2118, %v2118
    %v2135 = vpack.c.b16 %v2119, %v2119
    %v2136 = vpack.c.b16 %v2120, %v2120
    %v2137 = vpack.c.b16 %v2121, %v2121
    %v2138 = vpack.c.b16 %v2122, %v2122
    %v2139 = vpack.c.b16 %v2123, %v2123
    %v2140 = vpack.c.b16 %v2124, %v2124
    %v2141 = vpack.c.b16 %v2125, %v2125
    %v2142 = vpack.c.b16 %v2126, %v2126
    %v2143 = vpack.c.b16 %v2127, %v2127
    %v2144 = vpack.c.b16 %v2128, %v2128
    %v2145 = vpack.c.b16 %v2129, %v2129
    %v2146 = vpack.c.b16 %v2130, %v2130
    %v2147 = vpack.c.b16 %v2131, %v2131
    %v2148 = vpack.c.b16 %v2132, %v2132
    %2149 = vrot.lane.b32.xlu0 %v2133, 32
    %v2150 = vpop.permute.xlu0 %2149
    %2151 = vrot.lane.b32.xlu0 %v2134, 32
    %v2152 = vpop.permute.xlu0 %2151
    %2153 = vrot.lane.b32.xlu0 %v2135, 32
    %v2154 = vpop.permute.xlu0 %2153
    %2155 = vrot.lane.b32.xlu0 %v2136, 32
    %v2156 = vpop.permute.xlu0 %2155
    %2157 = vrot.lane.b32.xlu0 %v2137, 32
    %v2158 = vpop.permute.xlu0 %2157
    %2159 = vrot.lane.b32.xlu0 %v2138, 32
    %v2160 = vpop.permute.xlu0 %2159
    %2161 = vrot.lane.b32.xlu0 %v2139, 32
    %v2162 = vpop.permute.xlu0 %2161
    %2163 = vrot.lane.b32.xlu0 %v2140, 32
    %v2164 = vpop.permute.xlu0 %2163
    %2165 = vrot.lane.b32.xlu0 %v2141, 32
    %v2166 = vpop.permute.xlu0 %2165
    %2167 = vrot.lane.b32.xlu0 %v2142, 32
    %v2168 = vpop.permute.xlu0 %2167
    %2169 = vrot.lane.b32.xlu0 %v2143, 32
    %v2170 = vpop.permute.xlu0 %2169
    %2171 = vrot.lane.b32.xlu0 %v2144, 32
    %v2172 = vpop.permute.xlu0 %2171
    %2173 = vrot.lane.b32.xlu0 %v2145, 32
    %v2174 = vpop.permute.xlu0 %2173
    %2175 = vrot.lane.b32.xlu0 %v2146, 32
    %v2176 = vpop.permute.xlu0 %2175
    %2177 = vrot.lane.b32.xlu0 %v2147, 32
    %v2178 = vpop.permute.xlu0 %2177
    %2179 = vrot.lane.b32.xlu0 %v2148, 32
    %v2180 = vpop.permute.xlu0 %2179
    %vm2197 = vcmask 519424
    %2198 = vst.msk [vmem:[#allocation2] sm:$0xf] %vm2197, %v2150
    %2199 = vst.msk [vmem:[#allocation2 + $0x4] sm:$0xf] %vm2197, %v2152
    %2200 = vst.msk [vmem:[#allocation2 + $0x8] sm:$0xf] %vm2197, %v2154
    %2201 = vst.msk [vmem:[#allocation2 + $0xc] sm:$0xf] %vm2197, %v2156
    %2202 = vst.msk [vmem:[#allocation2 + $0x10] sm:$0xf] %vm2197, %v2158
    %2203 = vst.msk [vmem:[#allocation2 + $0x14] sm:$0xf] %vm2197, %v2160
    %2204 = vst.msk [vmem:[#allocation2 + $0x18] sm:$0xf] %vm2197, %v2162
    %2205 = vst.msk [vmem:[#allocation2 + $0x1c] sm:$0xf] %vm2197, %v2164
    %2206 = vst.msk [vmem:[#allocation2 + $0x20] sm:$0xf] %vm2197, %v2166
    %2207 = vst.msk [vmem:[#allocation2 + $0x24] sm:$0xf] %vm2197, %v2168
    %2208 = vst.msk [vmem:[#allocation2 + $0x28] sm:$0xf] %vm2197, %v2170
    %2209 = vst.msk [vmem:[#allocation2 + $0x2c] sm:$0xf] %vm2197, %v2172
    %2210 = vst.msk [vmem:[#allocation2 + $0x30] sm:$0xf] %vm2197, %v2174
    %2211 = vst.msk [vmem:[#allocation2 + $0x34] sm:$0xf] %vm2197, %v2176
    %2212 = vst.msk [vmem:[#allocation2 + $0x38] sm:$0xf] %vm2197, %v2178
    %2213 = vst.msk [vmem:[#allocation2 + $0x3c] sm:$0xf] %vm2197, %v2180
    %2214 = vrot.lane.b32.xlu0 %v1036, 64
    %v2215 = vpop.permute.xlu0 %2214
    %2216 = vrot.lane.b32.xlu0 %v1039, 64
    %v2217 = vpop.permute.xlu0 %2216
    %2218 = vrot.lane.b32.xlu0 %v1042, 64
    %v2219 = vpop.permute.xlu0 %2218
    %2220 = vrot.lane.b32.xlu0 %v1045, 64
    %v2221 = vpop.permute.xlu0 %2220
    %2222 = vrot.lane.b32.xlu0 %v1048, 64
    %v2223 = vpop.permute.xlu0 %2222
    %2224 = vrot.lane.b32.xlu0 %v1051, 64
    %v2225 = vpop.permute.xlu0 %2224
    %2226 = vrot.lane.b32.xlu0 %v1054, 64
    %v2227 = vpop.permute.xlu0 %2226
    %2228 = vrot.lane.b32.xlu0 %v1057, 64
    %v2229 = vpop.permute.xlu0 %2228
    %2230 = vrot.lane.b32.xlu0 %v1037, 64
    %v2231 = vpop.permute.xlu0 %2230
    %2232 = vrot.lane.b32.xlu0 %v1040, 64
    %v2233 = vpop.permute.xlu0 %2232
    %2234 = vrot.lane.b32.xlu0 %v1043, 64
    %v2235 = vpop.permute.xlu0 %2234
    %2236 = vrot.lane.b32.xlu0 %v1046, 64
    %v2237 = vpop.permute.xlu0 %2236
    %2238 = vrot.lane.b32.xlu0 %v1049, 64
    %v2239 = vpop.permute.xlu0 %2238
    %2240 = vrot.lane.b32.xlu0 %v1052, 64
    %v2241 = vpop.permute.xlu0 %2240
    %2242 = vrot.lane.b32.xlu0 %v1055, 64
    %v2243 = vpop.permute.xlu0 %2242
    %2244 = vrot.lane.b32.xlu0 %v1058, 64
    %v2245 = vpop.permute.xlu0 %2244
    %v2247 = vsel %vm1119, %v2215, 0
    %v2250 = vsel %vm1119, %v2217, 0
    %v2253 = vsel %vm1119, %v2219, 0
    %v2256 = vsel %vm1119, %v2221, 0
    %v2259 = vsel %vm1119, %v2223, 0
    %v2262 = vsel %vm1119, %v2225, 0
    %v2265 = vsel %vm1119, %v2227, 0
    %v2268 = vsel %vm1119, %v2229, 0
    %v2271 = vsel %vm1119, %v2231, 0
    %v2274 = vsel %vm1119, %v2233, 0
    %v2277 = vsel %vm1119, %v2235, 0
    %v2280 = vsel %vm1119, %v2237, 0
    %v2283 = vsel %vm1119, %v2239, 0
    %v2286 = vsel %vm1119, %v2241, 0
    %v2289 = vsel %vm1119, %v2243, 0
    %v2292 = vsel %vm1119, %v2245, 0
    %2294 = vmatprep.subr.bf16.mxu0 0
    %2295 = vmatpush1.bf16.xpose.msra.mxu0 %v2292
    %2296 = vmatprep.subr.bf16.mxu0 0
    %2297 = vmatpush1.bf16.xpose.msra.mxu0 %v2289
    %2298 = vmatprep.subr.bf16.mxu0 0
    %2299 = vmatpush1.bf16.xpose.msra.mxu0 %v2286
    %2300 = vmatprep.subr.bf16.mxu0 0
    %2301 = vmatpush1.bf16.xpose.msra.mxu0 %v2283
    %2302 = vmatprep.subr.bf16.mxu0 0
    %2303 = vmatpush1.bf16.xpose.msra.mxu0 %v2280
    %2304 = vmatprep.subr.bf16.mxu0 0
    %2305 = vmatpush1.bf16.xpose.msra.mxu0 %v2277
    %2306 = vmatprep.subr.bf16.mxu0 0
    %2307 = vmatpush1.bf16.xpose.msra.mxu0 %v2274
    %2308 = vmatprep.subr.bf16.mxu0 0
    %2309 = vmatpush1.bf16.xpose.msra.mxu0 %v2271
    %2310 = vmatprep.subr.bf16.mxu0 0
    %2311 = vmatpush2.bf16.xpose.msra.mxu0 0
    %2312 = vmatprep.subr.bf16.mxu0 0
    %2313 = vmatpush2.bf16.xpose.msra.mxu0 0
    %2314 = vmatprep.subr.bf16.mxu0 0
    %2315 = vmatpush2.bf16.xpose.msra.mxu0 0
    %2316 = vmatprep.subr.bf16.mxu0 0
    %2317 = vmatpush2.bf16.xpose.msra.mxu0 0
    %2318 = vmatprep.subr.bf16.mxu0 0
    %2319 = vmatpush2.bf16.xpose.msra.mxu0 0
    %2320 = vmatprep.subr.bf16.mxu0 0
    %2321 = vmatpush2.bf16.xpose.msra.mxu0 0
    %2322 = vmatprep.subr.bf16.mxu0 0
    %2323 = vmatpush2.bf16.xpose.msra.mxu0 0
    %2324 = vmatprep.subr.bf16.mxu0 0
    %2325 = vmatpush2.bf16.xpose.msra.mxu0 0
    %2326 = vmatprep.mubr.bf16.mxu0 0
    %2327 = vmatmul.mubr.bf16.gmra.mxu0 %v2247
    %v2328 = vpop.f32.mrf.mxu0
    %v2329 = vadd.f32 0.0, %v2328
    %v2330 = vpop.f32.mrf.mxu0
    %v2331 = vpop.f32.mrf.mxu0
    %v2332 = vadd.f32 0.0, %v2331
    %v2333 = vpop.f32.mrf.mxu0
    %2334 = vmatprep.mubr.bf16.mxu0 0
    %2335 = vmatmul.mubr.bf16.gmra.mxu0 %v2250
    %v2336 = vpop.f32.mrf.mxu0
    %v2337 = vadd.f32 0.0, %v2336
    %v2338 = vpop.f32.mrf.mxu0
    %v2339 = vpop.f32.mrf.mxu0
    %v2340 = vadd.f32 0.0, %v2339
    %v2341 = vpop.f32.mrf.mxu0
    %2342 = vmatprep.mubr.bf16.mxu0 0
    %2343 = vmatmul.mubr.bf16.gmra.mxu0 %v2253
    %v2344 = vpop.f32.mrf.mxu0
    %v2345 = vadd.f32 0.0, %v2344
    %v2346 = vpop.f32.mrf.mxu0
    %v2347 = vpop.f32.mrf.mxu0
    %v2348 = vadd.f32 0.0, %v2347
    %v2349 = vpop.f32.mrf.mxu0
    %2350 = vmatprep.mubr.bf16.mxu0 0
    %2351 = vmatmul.mubr.bf16.gmra.mxu0 %v2256
    %v2352 = vpop.f32.mrf.mxu0
    %v2353 = vadd.f32 0.0, %v2352
    %v2354 = vpop.f32.mrf.mxu0
    %v2355 = vpop.f32.mrf.mxu0
    %v2356 = vadd.f32 0.0, %v2355
    %v2357 = vpop.f32.mrf.mxu0
    %2358 = vmatprep.mubr.bf16.mxu0 0
    %2359 = vmatmul.mubr.bf16.gmra.mxu0 %v2259
    %v2360 = vpop.f32.mrf.mxu0
    %v2361 = vadd.f32 0.0, %v2360
    %v2362 = vpop.f32.mrf.mxu0
    %v2363 = vpop.f32.mrf.mxu0
    %v2364 = vadd.f32 0.0, %v2363
    %v2365 = vpop.f32.mrf.mxu0
    %2366 = vmatprep.mubr.bf16.mxu0 0
    %2367 = vmatmul.mubr.bf16.gmra.mxu0 %v2262
    %v2368 = vpop.f32.mrf.mxu0
    %v2369 = vadd.f32 0.0, %v2368
    %v2370 = vpop.f32.mrf.mxu0
    %v2371 = vpop.f32.mrf.mxu0
    %v2372 = vadd.f32 0.0, %v2371
    %v2373 = vpop.f32.mrf.mxu0
    %2374 = vmatprep.mubr.bf16.mxu0 0
    %2375 = vmatmul.mubr.bf16.gmra.mxu0 %v2265
    %v2376 = vpop.f32.mrf.mxu0
    %v2377 = vadd.f32 0.0, %v2376
    %v2378 = vpop.f32.mrf.mxu0
    %v2379 = vpop.f32.mrf.mxu0
    %v2380 = vadd.f32 0.0, %v2379
    %v2381 = vpop.f32.mrf.mxu0
    %2382 = vmatprep.mubr.bf16.mxu0 0
    %2383 = vmatmul.mubr.bf16.gmra.mxu0 %v2268
    %v2384 = vpop.f32.mrf.mxu0
    %v2385 = vadd.f32 0.0, %v2384
    %v2386 = vpop.f32.mrf.mxu0
    %v2387 = vpop.f32.mrf.mxu0
    %v2388 = vadd.f32 0.0, %v2387
    %v2389 = vpop.f32.mrf.mxu0
    %2390 = vdwg.mxu0
    %v2391 = vsel %vm1103, %v2329, -1e+30
    %v2392 = vsel %vm1104, %v2332, -1e+30
    %v2393 = vsel %vm1105, %v2337, -1e+30
    %v2394 = vsel %vm1106, %v2340, -1e+30
    %v2395 = vsel %vm1107, %v2345, -1e+30
    %v2396 = vsel %vm1108, %v2348, -1e+30
    %v2397 = vsel %vm1109, %v2353, -1e+30
    %v2398 = vsel %vm1110, %v2356, -1e+30
    %v2399 = vsel %vm1111, %v2361, -1e+30
    %v2400 = vsel %vm1112, %v2364, -1e+30
    %v2401 = vsel %vm1113, %v2369, -1e+30
    %v2402 = vsel %vm1114, %v2372, -1e+30
    %v2403 = vsel %vm1115, %v2377, -1e+30
    %v2404 = vsel %vm1116, %v2380, -1e+30
    %v2405 = vsel %vm1117, %v2385, -1e+30
    %v2406 = vsel %vm1118, %v2388, -1e+30
    %2407 = vmax.xlane.f32.xlu0 %v2391
    %v2408 = vpop.xlane.xlu0 %2407
    %2409 = vmax.xlane.f32.xlu0 %v2392
    %v2410 = vpop.xlane.xlu0 %2409
    %2411 = vmax.xlane.f32.xlu0 %v2393
    %v2412 = vpop.xlane.xlu0 %2411
    %2413 = vmax.xlane.f32.xlu0 %v2394
    %v2414 = vpop.xlane.xlu0 %2413
    %2415 = vmax.xlane.f32.xlu0 %v2395
    %v2416 = vpop.xlane.xlu0 %2415
    %2417 = vmax.xlane.f32.xlu0 %v2396
    %v2418 = vpop.xlane.xlu0 %2417
    %2419 = vmax.xlane.f32.xlu0 %v2397
    %v2420 = vpop.xlane.xlu0 %2419
    %2421 = vmax.xlane.f32.xlu0 %v2398
    %v2422 = vpop.xlane.xlu0 %2421
    %2423 = vmax.xlane.f32.xlu0 %v2399
    %v2424 = vpop.xlane.xlu0 %2423
    %2425 = vmax.xlane.f32.xlu0 %v2400
    %v2426 = vpop.xlane.xlu0 %2425
    %2427 = vmax.xlane.f32.xlu0 %v2401
    %v2428 = vpop.xlane.xlu0 %2427
    %2429 = vmax.xlane.f32.xlu0 %v2402
    %v2430 = vpop.xlane.xlu0 %2429
    %2431 = vmax.xlane.f32.xlu0 %v2403
    %v2432 = vpop.xlane.xlu0 %2431
    %2433 = vmax.xlane.f32.xlu0 %v2404
    %v2434 = vpop.xlane.xlu0 %2433
    %2435 = vmax.xlane.f32.xlu0 %v2405
    %v2436 = vpop.xlane.xlu0 %2435
    %2437 = vmax.xlane.f32.xlu0 %v2406
    %v2438 = vpop.xlane.xlu0 %2437
    %v2439 = vsub.f32 %v2391, %v2408
    %v2440 = vsub.f32 %v2392, %v2410
    %v2441 = vsub.f32 %v2393, %v2412
    %v2442 = vsub.f32 %v2394, %v2414
    %v2443 = vsub.f32 %v2395, %v2416
    %v2444 = vsub.f32 %v2396, %v2418
    %v2445 = vsub.f32 %v2397, %v2420
    %v2446 = vsub.f32 %v2398, %v2422
    %v2447 = vsub.f32 %v2399, %v2424
    %v2448 = vsub.f32 %v2400, %v2426
    %v2449 = vsub.f32 %v2401, %v2428
    %v2450 = vsub.f32 %v2402, %v2430
    %v2451 = vsub.f32 %v2403, %v2432
    %v2452 = vsub.f32 %v2404, %v2434
    %v2453 = vsub.f32 %v2405, %v2436
    %v2454 = vsub.f32 %v2406, %v2438
    %v2455 = vmul.f32 %v2439, 1.442695
    %v2456 = vpow.pop %v2455
    %v2457 = vmul.f32 %v2440, 1.442695
    %v2458 = vpow.pop %v2457
    %v2459 = vmul.f32 %v2441, 1.442695
    %v2460 = vpow.pop %v2459
    %v2461 = vmul.f32 %v2442, 1.442695
    %v2462 = vpow.pop %v2461
    %v2463 = vmul.f32 %v2443, 1.442695
    %v2464 = vpow.pop %v2463
    %v2465 = vmul.f32 %v2444, 1.442695
    %v2466 = vpow.pop %v2465
    %v2467 = vmul.f32 %v2445, 1.442695
    %v2468 = vpow.pop %v2467
    %v2469 = vmul.f32 %v2446, 1.442695
    %v2470 = vpow.pop %v2469
    %v2471 = vmul.f32 %v2447, 1.442695
    %v2472 = vpow.pop %v2471
    %v2473 = vmul.f32 %v2448, 1.442695
    %v2474 = vpow.pop %v2473
    %v2475 = vmul.f32 %v2449, 1.442695
    %v2476 = vpow.pop %v2475
    %v2477 = vmul.f32 %v2450, 1.442695
    %v2478 = vpow.pop %v2477
    %v2479 = vmul.f32 %v2451, 1.442695
    %v2480 = vpow.pop %v2479
    %v2481 = vmul.f32 %v2452, 1.442695
    %v2482 = vpow.pop %v2481
    %v2483 = vmul.f32 %v2453, 1.442695
    %v2484 = vpow.pop %v2483
    %v2485 = vmul.f32 %v2454, 1.442695
    %v2486 = vpow.pop %v2485
    %2487 = vadd.xlane.f32.xlu0 %v2456
    %v2488 = vpop.xlane.xlu0 %2487
    %2489 = vadd.xlane.f32.xlu0 %v2458
    %v2490 = vpop.xlane.xlu0 %2489
    %2491 = vadd.xlane.f32.xlu0 %v2460
    %v2492 = vpop.xlane.xlu0 %2491
    %2493 = vadd.xlane.f32.xlu0 %v2462
    %v2494 = vpop.xlane.xlu0 %2493
    %2495 = vadd.xlane.f32.xlu0 %v2464
    %v2496 = vpop.xlane.xlu0 %2495
    %2497 = vadd.xlane.f32.xlu0 %v2466
    %v2498 = vpop.xlane.xlu0 %2497
    %2499 = vadd.xlane.f32.xlu0 %v2468
    %v2500 = vpop.xlane.xlu0 %2499
    %2501 = vadd.xlane.f32.xlu0 %v2470
    %v2502 = vpop.xlane.xlu0 %2501
    %2503 = vadd.xlane.f32.xlu0 %v2472
    %v2504 = vpop.xlane.xlu0 %2503
    %2505 = vadd.xlane.f32.xlu0 %v2474
    %v2506 = vpop.xlane.xlu0 %2505
    %2507 = vadd.xlane.f32.xlu0 %v2476
    %v2508 = vpop.xlane.xlu0 %2507
    %2509 = vadd.xlane.f32.xlu0 %v2478
    %v2510 = vpop.xlane.xlu0 %2509
    %2511 = vadd.xlane.f32.xlu0 %v2480
    %v2512 = vpop.xlane.xlu0 %2511
    %2513 = vadd.xlane.f32.xlu0 %v2482
    %v2514 = vpop.xlane.xlu0 %2513
    %2515 = vadd.xlane.f32.xlu0 %v2484
    %v2516 = vpop.xlane.xlu0 %2515
    %2517 = vadd.xlane.f32.xlu0 %v2486
    %v2518 = vpop.xlane.xlu0 %2517
    %v2519 = vpack.c.bf16 %v2458, %v2456
    %v2520 = vpack.c.bf16 %v2462, %v2460
    %v2521 = vpack.c.bf16 %v2466, %v2464
    %v2522 = vpack.c.bf16 %v2470, %v2468
    %v2523 = vpack.c.bf16 %v2474, %v2472
    %v2524 = vpack.c.bf16 %v2478, %v2476
    %v2525 = vpack.c.bf16 %v2482, %v2480
    %v2526 = vpack.c.bf16 %v2486, %v2484
    %2527 = vrot.lane.b32.xlu0 %v1038, 64
    %v2528 = vpop.permute.xlu0 %2527
    %2529 = vrot.lane.b32.xlu0 %v1041, 64
    %v2530 = vpop.permute.xlu0 %2529
    %2531 = vrot.lane.b32.xlu0 %v1044, 64
    %v2532 = vpop.permute.xlu0 %2531
    %2533 = vrot.lane.b32.xlu0 %v1047, 64
    %v2534 = vpop.permute.xlu0 %2533
    %2535 = vrot.lane.b32.xlu0 %v1050, 64
    %v2536 = vpop.permute.xlu0 %2535
    %2537 = vrot.lane.b32.xlu0 %v1053, 64
    %v2538 = vpop.permute.xlu0 %2537
    %2539 = vrot.lane.b32.xlu0 %v1056, 64
    %v2540 = vpop.permute.xlu0 %2539
    %2541 = vrot.lane.b32.xlu0 %v1059, 64
    %v2542 = vpop.permute.xlu0 %2541
    %2551 = vmatprep.subr.bf16.mxu0 0
    %2552 = vmatpush1.bf16.msra.mxu0 %v2542
    %2553 = vmatprep.subr.bf16.mxu0 0
    %2554 = vmatpush1.bf16.msra.mxu0 %v2540
    %2555 = vmatprep.subr.bf16.mxu0 0
    %2556 = vmatpush1.bf16.msra.mxu0 %v2538
    %2557 = vmatprep.subr.bf16.mxu0 0
    %2558 = vmatpush1.bf16.msra.mxu0 %v2536
    %2559 = vmatprep.subr.bf16.mxu0 0
    %2560 = vmatpush1.bf16.msra.mxu0 %v2534
    %2561 = vmatprep.subr.bf16.mxu0 0
    %2562 = vmatpush1.bf16.msra.mxu0 %v2532
    %2563 = vmatprep.subr.bf16.mxu0 0
    %2564 = vmatpush1.bf16.msra.mxu0 %v2530
    %2565 = vmatprep.subr.bf16.mxu0 0
    %2566 = vmatpush1.bf16.msra.mxu0 %v2528
    %2567 = vmatprep.subr.bf16.mxu0 0
    %2568 = vmatpush2.bf16.msra.mxu0 0
    %2569 = vmatprep.subr.bf16.mxu0 0
    %2570 = vmatpush2.bf16.msra.mxu0 0
    %2571 = vmatprep.subr.bf16.mxu0 0
    %2572 = vmatpush2.bf16.msra.mxu0 0
    %2573 = vmatprep.subr.bf16.mxu0 0
    %2574 = vmatpush2.bf16.msra.mxu0 0
    %2575 = vmatprep.subr.bf16.mxu0 0
    %2576 = vmatpush2.bf16.msra.mxu0 0
    %2577 = vmatprep.subr.bf16.mxu0 0
    %2578 = vmatpush2.bf16.msra.mxu0 0
    %2579 = vmatprep.subr.bf16.mxu0 0
    %2580 = vmatpush2.bf16.msra.mxu0 0
    %2581 = vmatprep.subr.bf16.mxu0 0
    %2582 = vmatpush2.bf16.msra.mxu0 0
    %2583 = vmatprep.mubr.bf16.mxu0 0
    %2584 = vmatmul.mubr.bf16.gmra.mxu0 %v2519
    %v2585 = vpop.f32.mrf.mxu0
    %v2586 = vadd.f32 0.0, %v2585
    %v2587 = vpop.f32.mrf.mxu0
    %v2588 = vpop.f32.mrf.mxu0
    %v2589 = vadd.f32 0.0, %v2588
    %v2590 = vpop.f32.mrf.mxu0
    %2591 = vmatprep.mubr.bf16.mxu0 0
    %2592 = vmatmul.mubr.bf16.gmra.mxu0 %v2520
    %v2593 = vpop.f32.mrf.mxu0
    %v2594 = vadd.f32 0.0, %v2593
    %v2595 = vpop.f32.mrf.mxu0
    %v2596 = vpop.f32.mrf.mxu0
    %v2597 = vadd.f32 0.0, %v2596
    %v2598 = vpop.f32.mrf.mxu0
    %2599 = vmatprep.mubr.bf16.mxu0 0
    %2600 = vmatmul.mubr.bf16.gmra.mxu0 %v2521
    %v2601 = vpop.f32.mrf.mxu0
    %v2602 = vadd.f32 0.0, %v2601
    %v2603 = vpop.f32.mrf.mxu0
    %v2604 = vpop.f32.mrf.mxu0
    %v2605 = vadd.f32 0.0, %v2604
    %v2606 = vpop.f32.mrf.mxu0
    %2607 = vmatprep.mubr.bf16.mxu0 0
    %2608 = vmatmul.mubr.bf16.gmra.mxu0 %v2522
    %v2609 = vpop.f32.mrf.mxu0
    %v2610 = vadd.f32 0.0, %v2609
    %v2611 = vpop.f32.mrf.mxu0
    %v2612 = vpop.f32.mrf.mxu0
    %v2613 = vadd.f32 0.0, %v2612
    %v2614 = vpop.f32.mrf.mxu0
    %2615 = vmatprep.mubr.bf16.mxu0 0
    %2616 = vmatmul.mubr.bf16.gmra.mxu0 %v2523
    %v2617 = vpop.f32.mrf.mxu0
    %v2618 = vadd.f32 0.0, %v2617
    %v2619 = vpop.f32.mrf.mxu0
    %v2620 = vpop.f32.mrf.mxu0
    %v2621 = vadd.f32 0.0, %v2620
    %v2622 = vpop.f32.mrf.mxu0
    %2623 = vmatprep.mubr.bf16.mxu0 0
    %2624 = vmatmul.mubr.bf16.gmra.mxu0 %v2524
    %v2625 = vpop.f32.mrf.mxu0
    %v2626 = vadd.f32 0.0, %v2625
    %v2627 = vpop.f32.mrf.mxu0
    %v2628 = vpop.f32.mrf.mxu0
    %v2629 = vadd.f32 0.0, %v2628
    %v2630 = vpop.f32.mrf.mxu0
    %2631 = vmatprep.mubr.bf16.mxu0 0
    %2632 = vmatmul.mubr.bf16.gmra.mxu0 %v2525
    %v2633 = vpop.f32.mrf.mxu0
    %v2634 = vadd.f32 0.0, %v2633
    %v2635 = vpop.f32.mrf.mxu0
    %v2636 = vpop.f32.mrf.mxu0
    %v2637 = vadd.f32 0.0, %v2636
    %v2638 = vpop.f32.mrf.mxu0
    %2639 = vmatprep.mubr.bf16.mxu0 0
    %2640 = vmatmul.mubr.bf16.gmra.mxu0 %v2526
    %v2641 = vpop.f32.mrf.mxu0
    %v2642 = vadd.f32 0.0, %v2641
    %v2643 = vpop.f32.mrf.mxu0
    %v2644 = vpop.f32.mrf.mxu0
    %v2645 = vadd.f32 0.0, %v2644
    %v2646 = vpop.f32.mrf.mxu0
    %2647 = vdwg.mxu0
    %v2648 = vrcp.pop %v2488
    %v2649 = vrcp.pop %v2490
    %v2650 = vrcp.pop %v2492
    %v2651 = vrcp.pop %v2494
    %v2652 = vrcp.pop %v2496
    %v2653 = vrcp.pop %v2498
    %v2654 = vrcp.pop %v2500
    %v2655 = vrcp.pop %v2502
    %v2656 = vrcp.pop %v2504
    %v2657 = vrcp.pop %v2506
    %v2658 = vrcp.pop %v2508
    %v2659 = vrcp.pop %v2510
    %v2660 = vrcp.pop %v2512
    %v2661 = vrcp.pop %v2514
    %v2662 = vrcp.pop %v2516
    %v2663 = vrcp.pop %v2518
    %v2664 = vmul.f32 %v2586, %v2648
    %v2665 = vmul.f32 %v2589, %v2649
    %v2666 = vmul.f32 %v2594, %v2650
    %v2667 = vmul.f32 %v2597, %v2651
    %v2668 = vmul.f32 %v2602, %v2652
    %v2669 = vmul.f32 %v2605, %v2653
    %v2670 = vmul.f32 %v2610, %v2654
    %v2671 = vmul.f32 %v2613, %v2655
    %v2672 = vmul.f32 %v2618, %v2656
    %v2673 = vmul.f32 %v2621, %v2657
    %v2674 = vmul.f32 %v2626, %v2658
    %v2675 = vmul.f32 %v2629, %v2659
    %v2676 = vmul.f32 %v2634, %v2660
    %v2677 = vmul.f32 %v2637, %v2661
    %v2678 = vmul.f32 %v2642, %v2662
    %v2679 = vmul.f32 %v2645, %v2663
    %v2680 = vpack.c.bf16 %v2665, %v2664
    %v2681 = vpack.c.bf16 %v2667, %v2666
    %v2682 = vpack.c.bf16 %v2669, %v2668
    %v2683 = vpack.c.bf16 %v2671, %v2670
    %v2684 = vpack.c.bf16 %v2673, %v2672
    %v2685 = vpack.c.bf16 %v2675, %v2674
    %v2686 = vpack.c.bf16 %v2677, %v2676
    %v2687 = vpack.c.bf16 %v2679, %v2678
    %v2696 = vunpack.c.l.b16 %v2680
    %v2697 = vunpack.c.h.b16 %v2680
    %v2698 = vunpack.c.l.b16 %v2681
    %v2699 = vunpack.c.h.b16 %v2681
    %v2700 = vunpack.c.l.b16 %v2682
    %v2701 = vunpack.c.h.b16 %v2682
    %v2702 = vunpack.c.l.b16 %v2683
    %v2703 = vunpack.c.h.b16 %v2683
    %v2704 = vunpack.c.l.b16 %v2684
    %v2705 = vunpack.c.h.b16 %v2684
    %v2706 = vunpack.c.l.b16 %v2685
    %v2707 = vunpack.c.h.b16 %v2685
    %v2708 = vunpack.c.l.b16 %v2686
    %v2709 = vunpack.c.h.b16 %v2686
    %v2710 = vunpack.c.l.b16 %v2687
    %v2711 = vunpack.c.h.b16 %v2687
    %v2712 = vpack.c.b16 %v2696, %v2696
    %v2713 = vpack.c.b16 %v2697, %v2697
    %v2714 = vpack.c.b16 %v2698, %v2698
    %v2715 = vpack.c.b16 %v2699, %v2699
    %v2716 = vpack.c.b16 %v2700, %v2700
    %v2717 = vpack.c.b16 %v2701, %v2701
    %v2718 = vpack.c.b16 %v2702, %v2702
    %v2719 = vpack.c.b16 %v2703, %v2703
    %v2720 = vpack.c.b16 %v2704, %v2704
    %v2721 = vpack.c.b16 %v2705, %v2705
    %v2722 = vpack.c.b16 %v2706, %v2706
    %v2723 = vpack.c.b16 %v2707, %v2707
    %v2724 = vpack.c.b16 %v2708, %v2708
    %v2725 = vpack.c.b16 %v2709, %v2709
    %v2726 = vpack.c.b16 %v2710, %v2710
    %v2727 = vpack.c.b16 %v2711, %v2711
    %2728 = vrot.lane.b32.xlu0 %v2712, 64
    %v2729 = vpop.permute.xlu0 %2728
    %2730 = vrot.lane.b32.xlu0 %v2713, 64
    %v2731 = vpop.permute.xlu0 %2730
    %2732 = vrot.lane.b32.xlu0 %v2714, 64
    %v2733 = vpop.permute.xlu0 %2732
    %2734 = vrot.lane.b32.xlu0 %v2715, 64
    %v2735 = vpop.permute.xlu0 %2734
    %2736 = vrot.lane.b32.xlu0 %v2716, 64
    %v2737 = vpop.permute.xlu0 %2736
    %2738 = vrot.lane.b32.xlu0 %v2717, 64
    %v2739 = vpop.permute.xlu0 %2738
    %2740 = vrot.lane.b32.xlu0 %v2718, 64
    %v2741 = vpop.permute.xlu0 %2740
    %2742 = vrot.lane.b32.xlu0 %v2719, 64
    %v2743 = vpop.permute.xlu0 %2742
    %2744 = vrot.lane.b32.xlu0 %v2720, 64
    %v2745 = vpop.permute.xlu0 %2744
    %2746 = vrot.lane.b32.xlu0 %v2721, 64
    %v2747 = vpop.permute.xlu0 %2746
    %2748 = vrot.lane.b32.xlu0 %v2722, 64
    %v2749 = vpop.permute.xlu0 %2748
    %2750 = vrot.lane.b32.xlu0 %v2723, 64
    %v2751 = vpop.permute.xlu0 %2750
    %2752 = vrot.lane.b32.xlu0 %v2724, 64
    %v2753 = vpop.permute.xlu0 %2752
    %2754 = vrot.lane.b32.xlu0 %v2725, 64
    %v2755 = vpop.permute.xlu0 %2754
    %2756 = vrot.lane.b32.xlu0 %v2726, 64
    %v2757 = vpop.permute.xlu0 %2756
    %2758 = vrot.lane.b32.xlu0 %v2727, 64
    %v2759 = vpop.permute.xlu0 %2758
    %vm2776 = vcmask 781824
    %2777 = vst.msk [vmem:[#allocation2] sm:$0xf] %vm2776, %v2729
    %2778 = vst.msk [vmem:[#allocation2 + $0x4] sm:$0xf] %vm2776, %v2731
    %2779 = vst.msk [vmem:[#allocation2 + $0x8] sm:$0xf] %vm2776, %v2733
    %2780 = vst.msk [vmem:[#allocation2 + $0xc] sm:$0xf] %vm2776, %v2735
    %2781 = vst.msk [vmem:[#allocation2 + $0x10] sm:$0xf] %vm2776, %v2737
    %2782 = vst.msk [vmem:[#allocation2 + $0x14] sm:$0xf] %vm2776, %v2739
    %2783 = vst.msk [vmem:[#allocation2 + $0x18] sm:$0xf] %vm2776, %v2741
    %2784 = vst.msk [vmem:[#allocation2 + $0x1c] sm:$0xf] %vm2776, %v2743
    %2785 = vst.msk [vmem:[#allocation2 + $0x20] sm:$0xf] %vm2776, %v2745
    %2786 = vst.msk [vmem:[#allocation2 + $0x24] sm:$0xf] %vm2776, %v2747
    %2787 = vst.msk [vmem:[#allocation2 + $0x28] sm:$0xf] %vm2776, %v2749
    %2788 = vst.msk [vmem:[#allocation2 + $0x2c] sm:$0xf] %vm2776, %v2751
    %2789 = vst.msk [vmem:[#allocation2 + $0x30] sm:$0xf] %vm2776, %v2753
    %2790 = vst.msk [vmem:[#allocation2 + $0x34] sm:$0xf] %vm2776, %v2755
    %2791 = vst.msk [vmem:[#allocation2 + $0x38] sm:$0xf] %vm2776, %v2757
    %2792 = vst.msk [vmem:[#allocation2 + $0x3c] sm:$0xf] %vm2776, %v2759
    %2793 = vrot.lane.b32.xlu0 %v1036, 32
    %v2794 = vpop.permute.xlu0 %2793
    %2795 = vrot.lane.b32.xlu0 %v1039, 32
    %v2796 = vpop.permute.xlu0 %2795
    %2797 = vrot.lane.b32.xlu0 %v1042, 32
    %v2798 = vpop.permute.xlu0 %2797
    %2799 = vrot.lane.b32.xlu0 %v1045, 32
    %v2800 = vpop.permute.xlu0 %2799
    %2801 = vrot.lane.b32.xlu0 %v1048, 32
    %v2802 = vpop.permute.xlu0 %2801
    %2803 = vrot.lane.b32.xlu0 %v1051, 32
    %v2804 = vpop.permute.xlu0 %2803
    %2805 = vrot.lane.b32.xlu0 %v1054, 32
    %v2806 = vpop.permute.xlu0 %2805
    %2807 = vrot.lane.b32.xlu0 %v1057, 32
    %v2808 = vpop.permute.xlu0 %2807
    %2809 = vrot.lane.b32.xlu0 %v1037, 32
    %v2810 = vpop.permute.xlu0 %2809
    %2811 = vrot.lane.b32.xlu0 %v1040, 32
    %v2812 = vpop.permute.xlu0 %2811
    %2813 = vrot.lane.b32.xlu0 %v1043, 32
    %v2814 = vpop.permute.xlu0 %2813
    %2815 = vrot.lane.b32.xlu0 %v1046, 32
    %v2816 = vpop.permute.xlu0 %2815
    %2817 = vrot.lane.b32.xlu0 %v1049, 32
    %v2818 = vpop.permute.xlu0 %2817
    %2819 = vrot.lane.b32.xlu0 %v1052, 32
    %v2820 = vpop.permute.xlu0 %2819
    %2821 = vrot.lane.b32.xlu0 %v1055, 32
    %v2822 = vpop.permute.xlu0 %2821
    %2823 = vrot.lane.b32.xlu0 %v1058, 32
    %v2824 = vpop.permute.xlu0 %2823
    %v2826 = vsel %vm1119, %v2794, 0
    %v2829 = vsel %vm1119, %v2796, 0
    %v2832 = vsel %vm1119, %v2798, 0
    %v2835 = vsel %vm1119, %v2800, 0
    %v2838 = vsel %vm1119, %v2802, 0
    %v2841 = vsel %vm1119, %v2804, 0
    %v2844 = vsel %vm1119, %v2806, 0
    %v2847 = vsel %vm1119, %v2808, 0
    %v2850 = vsel %vm1119, %v2810, 0
    %v2853 = vsel %vm1119, %v2812, 0
    %v2856 = vsel %vm1119, %v2814, 0
    %v2859 = vsel %vm1119, %v2816, 0
    %v2862 = vsel %vm1119, %v2818, 0
    %v2865 = vsel %vm1119, %v2820, 0
    %v2868 = vsel %vm1119, %v2822, 0
    %v2871 = vsel %vm1119, %v2824, 0
    %2873 = vmatprep.subr.bf16.mxu0 0
    %2874 = vmatpush1.bf16.xpose.msra.mxu0 %v2871
    %2875 = vmatprep.subr.bf16.mxu0 0
    %2876 = vmatpush1.bf16.xpose.msra.mxu0 %v2868
    %2877 = vmatprep.subr.bf16.mxu0 0
    %2878 = vmatpush1.bf16.xpose.msra.mxu0 %v2865
    %2879 = vmatprep.subr.bf16.mxu0 0
    %2880 = vmatpush1.bf16.xpose.msra.mxu0 %v2862
    %2881 = vmatprep.subr.bf16.mxu0 0
    %2882 = vmatpush1.bf16.xpose.msra.mxu0 %v2859
    %2883 = vmatprep.subr.bf16.mxu0 0
    %2884 = vmatpush1.bf16.xpose.msra.mxu0 %v2856
    %2885 = vmatprep.subr.bf16.mxu0 0
    %2886 = vmatpush1.bf16.xpose.msra.mxu0 %v2853
    %2887 = vmatprep.subr.bf16.mxu0 0
    %2888 = vmatpush1.bf16.xpose.msra.mxu0 %v2850
    %2889 = vmatprep.subr.bf16.mxu0 0
    %2890 = vmatpush2.bf16.xpose.msra.mxu0 0
    %2891 = vmatprep.subr.bf16.mxu0 0
    %2892 = vmatpush2.bf16.xpose.msra.mxu0 0
    %2893 = vmatprep.subr.bf16.mxu0 0
    %2894 = vmatpush2.bf16.xpose.msra.mxu0 0
    %2895 = vmatprep.subr.bf16.mxu0 0
    %2896 = vmatpush2.bf16.xpose.msra.mxu0 0
    %2897 = vmatprep.subr.bf16.mxu0 0
    %2898 = vmatpush2.bf16.xpose.msra.mxu0 0
    %2899 = vmatprep.subr.bf16.mxu0 0
    %2900 = vmatpush2.bf16.xpose.msra.mxu0 0
    %2901 = vmatprep.subr.bf16.mxu0 0
    %2902 = vmatpush2.bf16.xpose.msra.mxu0 0
    %2903 = vmatprep.subr.bf16.mxu0 0
    %2904 = vmatpush2.bf16.xpose.msra.mxu0 0
    %2905 = vmatprep.mubr.bf16.mxu0 0
    %2906 = vmatmul.mubr.bf16.gmra.mxu0 %v2826
    %v2907 = vpop.f32.mrf.mxu0
    %v2908 = vadd.f32 0.0, %v2907
    %v2909 = vpop.f32.mrf.mxu0
    %v2910 = vpop.f32.mrf.mxu0
    %v2911 = vadd.f32 0.0, %v2910
    %v2912 = vpop.f32.mrf.mxu0
    %2913 = vmatprep.mubr.bf16.mxu0 0
    %2914 = vmatmul.mubr.bf16.gmra.mxu0 %v2829
    %v2915 = vpop.f32.mrf.mxu0
    %v2916 = vadd.f32 0.0, %v2915
    %v2917 = vpop.f32.mrf.mxu0
    %v2918 = vpop.f32.mrf.mxu0
    %v2919 = vadd.f32 0.0, %v2918
    %v2920 = vpop.f32.mrf.mxu0
    %2921 = vmatprep.mubr.bf16.mxu0 0
    %2922 = vmatmul.mubr.bf16.gmra.mxu0 %v2832
    %v2923 = vpop.f32.mrf.mxu0
    %v2924 = vadd.f32 0.0, %v2923
    %v2925 = vpop.f32.mrf.mxu0
    %v2926 = vpop.f32.mrf.mxu0
    %v2927 = vadd.f32 0.0, %v2926
    %v2928 = vpop.f32.mrf.mxu0
    %2929 = vmatprep.mubr.bf16.mxu0 0
    %2930 = vmatmul.mubr.bf16.gmra.mxu0 %v2835
    %v2931 = vpop.f32.mrf.mxu0
    %v2932 = vadd.f32 0.0, %v2931
    %v2933 = vpop.f32.mrf.mxu0
    %v2934 = vpop.f32.mrf.mxu0
    %v2935 = vadd.f32 0.0, %v2934
    %v2936 = vpop.f32.mrf.mxu0
    %2937 = vmatprep.mubr.bf16.mxu0 0
    %2938 = vmatmul.mubr.bf16.gmra.mxu0 %v2838
    %v2939 = vpop.f32.mrf.mxu0
    %v2940 = vadd.f32 0.0, %v2939
    %v2941 = vpop.f32.mrf.mxu0
    %v2942 = vpop.f32.mrf.mxu0
    %v2943 = vadd.f32 0.0, %v2942
    %v2944 = vpop.f32.mrf.mxu0
    %2945 = vmatprep.mubr.bf16.mxu0 0
    %2946 = vmatmul.mubr.bf16.gmra.mxu0 %v2841
    %v2947 = vpop.f32.mrf.mxu0
    %v2948 = vadd.f32 0.0, %v2947
    %v2949 = vpop.f32.mrf.mxu0
    %v2950 = vpop.f32.mrf.mxu0
    %v2951 = vadd.f32 0.0, %v2950
    %v2952 = vpop.f32.mrf.mxu0
    %2953 = vmatprep.mubr.bf16.mxu0 0
    %2954 = vmatmul.mubr.bf16.gmra.mxu0 %v2844
    %v2955 = vpop.f32.mrf.mxu0
    %v2956 = vadd.f32 0.0, %v2955
    %v2957 = vpop.f32.mrf.mxu0
    %v2958 = vpop.f32.mrf.mxu0
    %v2959 = vadd.f32 0.0, %v2958
    %v2960 = vpop.f32.mrf.mxu0
    %2961 = vmatprep.mubr.bf16.mxu0 0
    %2962 = vmatmul.mubr.bf16.gmra.mxu0 %v2847
    %v2963 = vpop.f32.mrf.mxu0
    %v2964 = vadd.f32 0.0, %v2963
    %v2965 = vpop.f32.mrf.mxu0
    %v2966 = vpop.f32.mrf.mxu0
    %v2967 = vadd.f32 0.0, %v2966
    %v2968 = vpop.f32.mrf.mxu0
    %2969 = vdwg.mxu0
    %v2970 = vsel %vm1103, %v2908, -1e+30
    %v2971 = vsel %vm1104, %v2911, -1e+30
    %v2972 = vsel %vm1105, %v2916, -1e+30
    %v2973 = vsel %vm1106, %v2919, -1e+30
    %v2974 = vsel %vm1107, %v2924, -1e+30
    %v2975 = vsel %vm1108, %v2927, -1e+30
    %v2976 = vsel %vm1109, %v2932, -1e+30
    %v2977 = vsel %vm1110, %v2935, -1e+30
    %v2978 = vsel %vm1111, %v2940, -1e+30
    %v2979 = vsel %vm1112, %v2943, -1e+30
    %v2980 = vsel %vm1113, %v2948, -1e+30
    %v2981 = vsel %vm1114, %v2951, -1e+30
    %v2982 = vsel %vm1115, %v2956, -1e+30
    %v2983 = vsel %vm1116, %v2959, -1e+30
    %v2984 = vsel %vm1117, %v2964, -1e+30
    %v2985 = vsel %vm1118, %v2967, -1e+30
    %2986 = vmax.xlane.f32.xlu0 %v2970
    %v2987 = vpop.xlane.xlu0 %2986
    %2988 = vmax.xlane.f32.xlu0 %v2971
    %v2989 = vpop.xlane.xlu0 %2988
    %2990 = vmax.xlane.f32.xlu0 %v2972
    %v2991 = vpop.xlane.xlu0 %2990
    %2992 = vmax.xlane.f32.xlu0 %v2973
    %v2993 = vpop.xlane.xlu0 %2992
    %2994 = vmax.xlane.f32.xlu0 %v2974
    %v2995 = vpop.xlane.xlu0 %2994
    %2996 = vmax.xlane.f32.xlu0 %v2975
    %v2997 = vpop.xlane.xlu0 %2996
    %2998 = vmax.xlane.f32.xlu0 %v2976
    %v2999 = vpop.xlane.xlu0 %2998
    %3000 = vmax.xlane.f32.xlu0 %v2977
    %v3001 = vpop.xlane.xlu0 %3000
    %3002 = vmax.xlane.f32.xlu0 %v2978
    %v3003 = vpop.xlane.xlu0 %3002
    %3004 = vmax.xlane.f32.xlu0 %v2979
    %v3005 = vpop.xlane.xlu0 %3004
    %3006 = vmax.xlane.f32.xlu0 %v2980
    %v3007 = vpop.xlane.xlu0 %3006
    %3008 = vmax.xlane.f32.xlu0 %v2981
    %v3009 = vpop.xlane.xlu0 %3008
    %3010 = vmax.xlane.f32.xlu0 %v2982
    %v3011 = vpop.xlane.xlu0 %3010
    %3012 = vmax.xlane.f32.xlu0 %v2983
    %v3013 = vpop.xlane.xlu0 %3012
    %3014 = vmax.xlane.f32.xlu0 %v2984
    %v3015 = vpop.xlane.xlu0 %3014
    %3016 = vmax.xlane.f32.xlu0 %v2985
    %v3017 = vpop.xlane.xlu0 %3016
    %v3018 = vsub.f32 %v2970, %v2987
    %v3019 = vsub.f32 %v2971, %v2989
    %v3020 = vsub.f32 %v2972, %v2991
    %v3021 = vsub.f32 %v2973, %v2993
    %v3022 = vsub.f32 %v2974, %v2995
    %v3023 = vsub.f32 %v2975, %v2997
    %v3024 = vsub.f32 %v2976, %v2999
    %v3025 = vsub.f32 %v2977, %v3001
    %v3026 = vsub.f32 %v2978, %v3003
    %v3027 = vsub.f32 %v2979, %v3005
    %v3028 = vsub.f32 %v2980, %v3007
    %v3029 = vsub.f32 %v2981, %v3009
    %v3030 = vsub.f32 %v2982, %v3011
    %v3031 = vsub.f32 %v2983, %v3013
    %v3032 = vsub.f32 %v2984, %v3015
    %v3033 = vsub.f32 %v2985, %v3017
    %v3034 = vmul.f32 %v3018, 1.442695
    %v3035 = vpow.pop %v3034
    %v3036 = vmul.f32 %v3019, 1.442695
    %v3037 = vpow.pop %v3036
    %v3038 = vmul.f32 %v3020, 1.442695
    %v3039 = vpow.pop %v3038
    %v3040 = vmul.f32 %v3021, 1.442695
    %v3041 = vpow.pop %v3040
    %v3042 = vmul.f32 %v3022, 1.442695
    %v3043 = vpow.pop %v3042
    %v3044 = vmul.f32 %v3023, 1.442695
    %v3045 = vpow.pop %v3044
    %v3046 = vmul.f32 %v3024, 1.442695
    %v3047 = vpow.pop %v3046
    %v3048 = vmul.f32 %v3025, 1.442695
    %v3049 = vpow.pop %v3048
    %v3050 = vmul.f32 %v3026, 1.442695
    %v3051 = vpow.pop %v3050
    %v3052 = vmul.f32 %v3027, 1.442695
    %v3053 = vpow.pop %v3052
    %v3054 = vmul.f32 %v3028, 1.442695
    %v3055 = vpow.pop %v3054
    %v3056 = vmul.f32 %v3029, 1.442695
    %v3057 = vpow.pop %v3056
    %v3058 = vmul.f32 %v3030, 1.442695
    %v3059 = vpow.pop %v3058
    %v3060 = vmul.f32 %v3031, 1.442695
    %v3061 = vpow.pop %v3060
    %v3062 = vmul.f32 %v3032, 1.442695
    %v3063 = vpow.pop %v3062
    %v3064 = vmul.f32 %v3033, 1.442695
    %v3065 = vpow.pop %v3064
    %3066 = vadd.xlane.f32.xlu0 %v3035
    %v3067 = vpop.xlane.xlu0 %3066
    %3068 = vadd.xlane.f32.xlu0 %v3037
    %v3069 = vpop.xlane.xlu0 %3068
    %3070 = vadd.xlane.f32.xlu0 %v3039
    %v3071 = vpop.xlane.xlu0 %3070
    %3072 = vadd.xlane.f32.xlu0 %v3041
    %v3073 = vpop.xlane.xlu0 %3072
    %3074 = vadd.xlane.f32.xlu0 %v3043
    %v3075 = vpop.xlane.xlu0 %3074
    %3076 = vadd.xlane.f32.xlu0 %v3045
    %v3077 = vpop.xlane.xlu0 %3076
    %3078 = vadd.xlane.f32.xlu0 %v3047
    %v3079 = vpop.xlane.xlu0 %3078
    %3080 = vadd.xlane.f32.xlu0 %v3049
    %v3081 = vpop.xlane.xlu0 %3080
    %3082 = vadd.xlane.f32.xlu0 %v3051
    %v3083 = vpop.xlane.xlu0 %3082
    %3084 = vadd.xlane.f32.xlu0 %v3053
    %v3085 = vpop.xlane.xlu0 %3084
    %3086 = vadd.xlane.f32.xlu0 %v3055
    %v3087 = vpop.xlane.xlu0 %3086
    %3088 = vadd.xlane.f32.xlu0 %v3057
    %v3089 = vpop.xlane.xlu0 %3088
    %3090 = vadd.xlane.f32.xlu0 %v3059
    %v3091 = vpop.xlane.xlu0 %3090
    %3092 = vadd.xlane.f32.xlu0 %v3061
    %v3093 = vpop.xlane.xlu0 %3092
    %3094 = vadd.xlane.f32.xlu0 %v3063
    %v3095 = vpop.xlane.xlu0 %3094
    %3096 = vadd.xlane.f32.xlu0 %v3065
    %v3097 = vpop.xlane.xlu0 %3096
    %v3098 = vpack.c.bf16 %v3037, %v3035
    %v3099 = vpack.c.bf16 %v3041, %v3039
    %v3100 = vpack.c.bf16 %v3045, %v3043
    %v3101 = vpack.c.bf16 %v3049, %v3047
    %v3102 = vpack.c.bf16 %v3053, %v3051
    %v3103 = vpack.c.bf16 %v3057, %v3055
    %v3104 = vpack.c.bf16 %v3061, %v3059
    %v3105 = vpack.c.bf16 %v3065, %v3063
    %3106 = vrot.lane.b32.xlu0 %v1038, 32
    %v3107 = vpop.permute.xlu0 %3106
    %3108 = vrot.lane.b32.xlu0 %v1041, 32
    %v3109 = vpop.permute.xlu0 %3108
    %3110 = vrot.lane.b32.xlu0 %v1044, 32
    %v3111 = vpop.permute.xlu0 %3110
    %3112 = vrot.lane.b32.xlu0 %v1047, 32
    %v3113 = vpop.permute.xlu0 %3112
    %3114 = vrot.lane.b32.xlu0 %v1050, 32
    %v3115 = vpop.permute.xlu0 %3114
    %3116 = vrot.lane.b32.xlu0 %v1053, 32
    %v3117 = vpop.permute.xlu0 %3116
    %3118 = vrot.lane.b32.xlu0 %v1056, 32
    %v3119 = vpop.permute.xlu0 %3118
    %3120 = vrot.lane.b32.xlu0 %v1059, 32
    %v3121 = vpop.permute.xlu0 %3120
    %3130 = vmatprep.subr.bf16.mxu0 0
    %3131 = vmatpush1.bf16.msra.mxu0 %v3121
    %3132 = vmatprep.subr.bf16.mxu0 0
    %3133 = vmatpush1.bf16.msra.mxu0 %v3119
    %3134 = vmatprep.subr.bf16.mxu0 0
    %3135 = vmatpush1.bf16.msra.mxu0 %v3117
    %3136 = vmatprep.subr.bf16.mxu0 0
    %3137 = vmatpush1.bf16.msra.mxu0 %v3115
    %3138 = vmatprep.subr.bf16.mxu0 0
    %3139 = vmatpush1.bf16.msra.mxu0 %v3113
    %3140 = vmatprep.subr.bf16.mxu0 0
    %3141 = vmatpush1.bf16.msra.mxu0 %v3111
    %3142 = vmatprep.subr.bf16.mxu0 0
    %3143 = vmatpush1.bf16.msra.mxu0 %v3109
    %3144 = vmatprep.subr.bf16.mxu0 0
    %3145 = vmatpush1.bf16.msra.mxu0 %v3107
    %3146 = vmatprep.subr.bf16.mxu0 0
    %3147 = vmatpush2.bf16.msra.mxu0 0
    %3148 = vmatprep.subr.bf16.mxu0 0
    %3149 = vmatpush2.bf16.msra.mxu0 0
    %3150 = vmatprep.subr.bf16.mxu0 0
    %3151 = vmatpush2.bf16.msra.mxu0 0
    %3152 = vmatprep.subr.bf16.mxu0 0
    %3153 = vmatpush2.bf16.msra.mxu0 0
    %3154 = vmatprep.subr.bf16.mxu0 0
    %3155 = vmatpush2.bf16.msra.mxu0 0
    %3156 = vmatprep.subr.bf16.mxu0 0
    %3157 = vmatpush2.bf16.msra.mxu0 0
    %3158 = vmatprep.subr.bf16.mxu0 0
    %3159 = vmatpush2.bf16.msra.mxu0 0
    %3160 = vmatprep.subr.bf16.mxu0 0
    %3161 = vmatpush2.bf16.msra.mxu0 0
    %3162 = vmatprep.mubr.bf16.mxu0 0
    %3163 = vmatmul.mubr.bf16.gmra.mxu0 %v3098
    %v3164 = vpop.f32.mrf.mxu0
    %v3165 = vadd.f32 0.0, %v3164
    %v3166 = vpop.f32.mrf.mxu0
    %v3167 = vpop.f32.mrf.mxu0
    %v3168 = vadd.f32 0.0, %v3167
    %v3169 = vpop.f32.mrf.mxu0
    %3170 = vmatprep.mubr.bf16.mxu0 0
    %3171 = vmatmul.mubr.bf16.gmra.mxu0 %v3099
    %v3172 = vpop.f32.mrf.mxu0
    %v3173 = vadd.f32 0.0, %v3172
    %v3174 = vpop.f32.mrf.mxu0
    %v3175 = vpop.f32.mrf.mxu0
    %v3176 = vadd.f32 0.0, %v3175
    %v3177 = vpop.f32.mrf.mxu0
    %3178 = vmatprep.mubr.bf16.mxu0 0
    %3179 = vmatmul.mubr.bf16.gmra.mxu0 %v3100
    %v3180 = vpop.f32.mrf.mxu0
    %v3181 = vadd.f32 0.0, %v3180
    %v3182 = vpop.f32.mrf.mxu0
    %v3183 = vpop.f32.mrf.mxu0
    %v3184 = vadd.f32 0.0, %v3183
    %v3185 = vpop.f32.mrf.mxu0
    %3186 = vmatprep.mubr.bf16.mxu0 0
    %3187 = vmatmul.mubr.bf16.gmra.mxu0 %v3101
    %v3188 = vpop.f32.mrf.mxu0
    %v3189 = vadd.f32 0.0, %v3188
    %v3190 = vpop.f32.mrf.mxu0
    %v3191 = vpop.f32.mrf.mxu0
    %v3192 = vadd.f32 0.0, %v3191
    %v3193 = vpop.f32.mrf.mxu0
    %3194 = vmatprep.mubr.bf16.mxu0 0
    %3195 = vmatmul.mubr.bf16.gmra.mxu0 %v3102
    %v3196 = vpop.f32.mrf.mxu0
    %v3197 = vadd.f32 0.0, %v3196
    %v3198 = vpop.f32.mrf.mxu0
    %v3199 = vpop.f32.mrf.mxu0
    %v3200 = vadd.f32 0.0, %v3199
    %v3201 = vpop.f32.mrf.mxu0
    %3202 = vmatprep.mubr.bf16.mxu0 0
    %3203 = vmatmul.mubr.bf16.gmra.mxu0 %v3103
    %v3204 = vpop.f32.mrf.mxu0
    %v3205 = vadd.f32 0.0, %v3204
    %v3206 = vpop.f32.mrf.mxu0
    %v3207 = vpop.f32.mrf.mxu0
    %v3208 = vadd.f32 0.0, %v3207
    %v3209 = vpop.f32.mrf.mxu0
    %3210 = vmatprep.mubr.bf16.mxu0 0
    %3211 = vmatmul.mubr.bf16.gmra.mxu0 %v3104
    %v3212 = vpop.f32.mrf.mxu0
    %v3213 = vadd.f32 0.0, %v3212
    %v3214 = vpop.f32.mrf.mxu0
    %v3215 = vpop.f32.mrf.mxu0
    %v3216 = vadd.f32 0.0, %v3215
    %v3217 = vpop.f32.mrf.mxu0
    %3218 = vmatprep.mubr.bf16.mxu0 0
    %3219 = vmatmul.mubr.bf16.gmra.mxu0 %v3105
    %v3220 = vpop.f32.mrf.mxu0
    %v3221 = vadd.f32 0.0, %v3220
    %v3222 = vpop.f32.mrf.mxu0
    %v3223 = vpop.f32.mrf.mxu0
    %v3224 = vadd.f32 0.0, %v3223
    %v3225 = vpop.f32.mrf.mxu0
    %3226 = vdwg.mxu0
    %v3227 = vrcp.pop %v3067
    %v3228 = vrcp.pop %v3069
    %v3229 = vrcp.pop %v3071
    %v3230 = vrcp.pop %v3073
    %v3231 = vrcp.pop %v3075
    %v3232 = vrcp.pop %v3077
    %v3233 = vrcp.pop %v3079
    %v3234 = vrcp.pop %v3081
    %v3235 = vrcp.pop %v3083
    %v3236 = vrcp.pop %v3085
    %v3237 = vrcp.pop %v3087
    %v3238 = vrcp.pop %v3089
    %v3239 = vrcp.pop %v3091
    %v3240 = vrcp.pop %v3093
    %v3241 = vrcp.pop %v3095
    %v3242 = vrcp.pop %v3097
    %v3243 = vmul.f32 %v3165, %v3227
    %v3244 = vmul.f32 %v3168, %v3228
    %v3245 = vmul.f32 %v3173, %v3229
    %v3246 = vmul.f32 %v3176, %v3230
    %v3247 = vmul.f32 %v3181, %v3231
    %v3248 = vmul.f32 %v3184, %v3232
    %v3249 = vmul.f32 %v3189, %v3233
    %v3250 = vmul.f32 %v3192, %v3234
    %v3251 = vmul.f32 %v3197, %v3235
    %v3252 = vmul.f32 %v3200, %v3236
    %v3253 = vmul.f32 %v3205, %v3237
    %v3254 = vmul.f32 %v3208, %v3238
    %v3255 = vmul.f32 %v3213, %v3239
    %v3256 = vmul.f32 %v3216, %v3240
    %v3257 = vmul.f32 %v3221, %v3241
    %v3258 = vmul.f32 %v3224, %v3242
    %v3259 = vpack.c.bf16 %v3244, %v3243
    %v3260 = vpack.c.bf16 %v3246, %v3245
    %v3261 = vpack.c.bf16 %v3248, %v3247
    %v3262 = vpack.c.bf16 %v3250, %v3249
    %v3263 = vpack.c.bf16 %v3252, %v3251
    %v3264 = vpack.c.bf16 %v3254, %v3253
    %v3265 = vpack.c.bf16 %v3256, %v3255
    %v3266 = vpack.c.bf16 %v3258, %v3257
    %v3275 = vunpack.c.l.b16 %v3259
    %v3276 = vunpack.c.h.b16 %v3259
    %v3277 = vunpack.c.l.b16 %v3260
    %v3278 = vunpack.c.h.b16 %v3260
    %v3279 = vunpack.c.l.b16 %v3261
    %v3280 = vunpack.c.h.b16 %v3261
    %v3281 = vunpack.c.l.b16 %v3262
    %v3282 = vunpack.c.h.b16 %v3262
    %v3283 = vunpack.c.l.b16 %v3263
    %v3284 = vunpack.c.h.b16 %v3263
    %v3285 = vunpack.c.l.b16 %v3264
    %v3286 = vunpack.c.h.b16 %v3264
    %v3287 = vunpack.c.l.b16 %v3265
    %v3288 = vunpack.c.h.b16 %v3265
    %v3289 = vunpack.c.l.b16 %v3266
    %v3290 = vunpack.c.h.b16 %v3266
    %v3291 = vpack.c.b16 %v3275, %v3275
    %v3292 = vpack.c.b16 %v3276, %v3276
    %v3293 = vpack.c.b16 %v3277, %v3277
    %v3294 = vpack.c.b16 %v3278, %v3278
    %v3295 = vpack.c.b16 %v3279, %v3279
    %v3296 = vpack.c.b16 %v3280, %v3280
    %v3297 = vpack.c.b16 %v3281, %v3281
    %v3298 = vpack.c.b16 %v3282, %v3282
    %v3299 = vpack.c.b16 %v3283, %v3283
    %v3300 = vpack.c.b16 %v3284, %v3284
    %v3301 = vpack.c.b16 %v3285, %v3285
    %v3302 = vpack.c.b16 %v3286, %v3286
    %v3303 = vpack.c.b16 %v3287, %v3287
    %v3304 = vpack.c.b16 %v3288, %v3288
    %v3305 = vpack.c.b16 %v3289, %v3289
    %v3306 = vpack.c.b16 %v3290, %v3290
    %3307 = vrot.lane.b32.xlu0 %v3291, 96
    %v3308 = vpop.permute.xlu0 %3307
    %3309 = vrot.lane.b32.xlu0 %v3292, 96
    %v3310 = vpop.permute.xlu0 %3309
    %3311 = vrot.lane.b32.xlu0 %v3293, 96
    %v3312 = vpop.permute.xlu0 %3311
    %3313 = vrot.lane.b32.xlu0 %v3294, 96
    %v3314 = vpop.permute.xlu0 %3313
    %3315 = vrot.lane.b32.xlu0 %v3295, 96
    %v3316 = vpop.permute.xlu0 %3315
    %3317 = vrot.lane.b32.xlu0 %v3296, 96
    %v3318 = vpop.permute.xlu0 %3317
    %3319 = vrot.lane.b32.xlu0 %v3297, 96
    %v3320 = vpop.permute.xlu0 %3319
    %3321 = vrot.lane.b32.xlu0 %v3298, 96
    %v3322 = vpop.permute.xlu0 %3321
    %3323 = vrot.lane.b32.xlu0 %v3299, 96
    %v3324 = vpop.permute.xlu0 %3323
    %3325 = vrot.lane.b32.xlu0 %v3300, 96
    %v3326 = vpop.permute.xlu0 %3325
    %3327 = vrot.lane.b32.xlu0 %v3301, 96
    %v3328 = vpop.permute.xlu0 %3327
    %3329 = vrot.lane.b32.xlu0 %v3302, 96
    %v3330 = vpop.permute.xlu0 %3329
    %3331 = vrot.lane.b32.xlu0 %v3303, 96
    %v3332 = vpop.permute.xlu0 %3331
    %3333 = vrot.lane.b32.xlu0 %v3304, 96
    %v3334 = vpop.permute.xlu0 %3333
    %3335 = vrot.lane.b32.xlu0 %v3305, 96
    %v3336 = vpop.permute.xlu0 %3335
    %3337 = vrot.lane.b32.xlu0 %v3306, 96
    %v3338 = vpop.permute.xlu0 %3337
    %vm3355 = vcmask 1044224
    %3356 = vst.msk [vmem:[#allocation2] sm:$0xf] %vm3355, %v3308
    %3357 = vst.msk [vmem:[#allocation2 + $0x4] sm:$0xf] %vm3355, %v3310
    %3358 = vst.msk [vmem:[#allocation2 + $0x8] sm:$0xf] %vm3355, %v3312
    %3359 = vst.msk [vmem:[#allocation2 + $0xc] sm:$0xf] %vm3355, %v3314
    %3360 = vst.msk [vmem:[#allocation2 + $0x10] sm:$0xf] %vm3355, %v3316
    %3361 = vst.msk [vmem:[#allocation2 + $0x14] sm:$0xf] %vm3355, %v3318
    %3362 = vst.msk [vmem:[#allocation2 + $0x18] sm:$0xf] %vm3355, %v3320
    %3363 = vst.msk [vmem:[#allocation2 + $0x1c] sm:$0xf] %vm3355, %v3322
    %3364 = vst.msk [vmem:[#allocation2 + $0x20] sm:$0xf] %vm3355, %v3324
    %3365 = vst.msk [vmem:[#allocation2 + $0x24] sm:$0xf] %vm3355, %v3326
    %3366 = vst.msk [vmem:[#allocation2 + $0x28] sm:$0xf] %vm3355, %v3328
    %3367 = vst.msk [vmem:[#allocation2 + $0x2c] sm:$0xf] %vm3355, %v3330
    %3368 = vst.msk [vmem:[#allocation2 + $0x30] sm:$0xf] %vm3355, %v3332
    %3369 = vst.msk [vmem:[#allocation2 + $0x34] sm:$0xf] %vm3355, %v3334
    %3370 = vst.msk [vmem:[#allocation2 + $0x38] sm:$0xf] %vm3355, %v3336
    %3371 = vst.msk [vmem:[#allocation2 + $0x3c] sm:$0xf] %vm3355, %v3338
    %v3373 = vsel %vm1119, %v1060, 0
    %v3376 = vsel %vm1119, %v1063, 0
    %v3379 = vsel %vm1119, %v1066, 0
    %v3382 = vsel %vm1119, %v1069, 0
    %v3385 = vsel %vm1119, %v1072, 0
    %v3388 = vsel %vm1119, %v1075, 0
    %v3391 = vsel %vm1119, %v1078, 0
    %v3394 = vsel %vm1119, %v1081, 0
    %v3397 = vsel %vm1119, %v1061, 0
    %v3400 = vsel %vm1119, %v1064, 0
    %v3403 = vsel %vm1119, %v1067, 0
    %v3406 = vsel %vm1119, %v1070, 0
    %v3409 = vsel %vm1119, %v1073, 0
    %v3412 = vsel %vm1119, %v1076, 0
    %v3415 = vsel %vm1119, %v1079, 0
    %v3418 = vsel %vm1119, %v1082, 0
    %3420 = vmatprep.subr.bf16.mxu0 0
    %3421 = vmatpush1.bf16.xpose.msra.mxu0 %v3418
    %3422 = vmatprep.subr.bf16.mxu0 0
    %3423 = vmatpush1.bf16.xpose.msra.mxu0 %v3415
    %3424 = vmatprep.subr.bf16.mxu0 0
    %3425 = vmatpush1.bf16.xpose.msra.mxu0 %v3412
    %3426 = vmatprep.subr.bf16.mxu0 0
    %3427 = vmatpush1.bf16.xpose.msra.mxu0 %v3409
    %3428 = vmatprep.subr.bf16.mxu0 0
    %3429 = vmatpush1.bf16.xpose.msra.mxu0 %v3406
    %3430 = vmatprep.subr.bf16.mxu0 0
    %3431 = vmatpush1.bf16.xpose.msra.mxu0 %v3403
    %3432 = vmatprep.subr.bf16.mxu0 0
    %3433 = vmatpush1.bf16.xpose.msra.mxu0 %v3400
    %3434 = vmatprep.subr.bf16.mxu0 0
    %3435 = vmatpush1.bf16.xpose.msra.mxu0 %v3397
    %3436 = vmatprep.subr.bf16.mxu0 0
    %3437 = vmatpush2.bf16.xpose.msra.mxu0 0
    %3438 = vmatprep.subr.bf16.mxu0 0
    %3439 = vmatpush2.bf16.xpose.msra.mxu0 0
    %3440 = vmatprep.subr.bf16.mxu0 0
    %3441 = vmatpush2.bf16.xpose.msra.mxu0 0
    %3442 = vmatprep.subr.bf16.mxu0 0
    %3443 = vmatpush2.bf16.xpose.msra.mxu0 0
    %3444 = vmatprep.subr.bf16.mxu0 0
    %3445 = vmatpush2.bf16.xpose.msra.mxu0 0
    %3446 = vmatprep.subr.bf16.mxu0 0
    %3447 = vmatpush2.bf16.xpose.msra.mxu0 0
    %3448 = vmatprep.subr.bf16.mxu0 0
    %3449 = vmatpush2.bf16.xpose.msra.mxu0 0
    %3450 = vmatprep.subr.bf16.mxu0 0
    %3451 = vmatpush2.bf16.xpose.msra.mxu0 0
    %3452 = vmatprep.mubr.bf16.mxu0 0
    %3453 = vmatmul.mubr.bf16.gmra.mxu0 %v3373
    %v3454 = vpop.f32.mrf.mxu0
    %v3455 = vadd.f32 0.0, %v3454
    %v3456 = vpop.f32.mrf.mxu0
    %v3457 = vpop.f32.mrf.mxu0
    %v3458 = vadd.f32 0.0, %v3457
    %v3459 = vpop.f32.mrf.mxu0
    %3460 = vmatprep.mubr.bf16.mxu0 0
    %3461 = vmatmul.mubr.bf16.gmra.mxu0 %v3376
    %v3462 = vpop.f32.mrf.mxu0
    %v3463 = vadd.f32 0.0, %v3462
    %v3464 = vpop.f32.mrf.mxu0
    %v3465 = vpop.f32.mrf.mxu0
    %v3466 = vadd.f32 0.0, %v3465
    %v3467 = vpop.f32.mrf.mxu0
    %3468 = vmatprep.mubr.bf16.mxu0 0
    %3469 = vmatmul.mubr.bf16.gmra.mxu0 %v3379
    %v3470 = vpop.f32.mrf.mxu0
    %v3471 = vadd.f32 0.0, %v3470
    %v3472 = vpop.f32.mrf.mxu0
    %v3473 = vpop.f32.mrf.mxu0
    %v3474 = vadd.f32 0.0, %v3473
    %v3475 = vpop.f32.mrf.mxu0
    %3476 = vmatprep.mubr.bf16.mxu0 0
    %3477 = vmatmul.mubr.bf16.gmra.mxu0 %v3382
    %v3478 = vpop.f32.mrf.mxu0
    %v3479 = vadd.f32 0.0, %v3478
    %v3480 = vpop.f32.mrf.mxu0
    %v3481 = vpop.f32.mrf.mxu0
    %v3482 = vadd.f32 0.0, %v3481
    %v3483 = vpop.f32.mrf.mxu0
    %3484 = vmatprep.mubr.bf16.mxu0 0
    %3485 = vmatmul.mubr.bf16.gmra.mxu0 %v3385
    %v3486 = vpop.f32.mrf.mxu0
    %v3487 = vadd.f32 0.0, %v3486
    %v3488 = vpop.f32.mrf.mxu0
    %v3489 = vpop.f32.mrf.mxu0
    %v3490 = vadd.f32 0.0, %v3489
    %v3491 = vpop.f32.mrf.mxu0
    %3492 = vmatprep.mubr.bf16.mxu0 0
    %3493 = vmatmul.mubr.bf16.gmra.mxu0 %v3388
    %v3494 = vpop.f32.mrf.mxu0
    %v3495 = vadd.f32 0.0, %v3494
    %v3496 = vpop.f32.mrf.mxu0
    %v3497 = vpop.f32.mrf.mxu0
    %v3498 = vadd.f32 0.0, %v3497
    %v3499 = vpop.f32.mrf.mxu0
    %3500 = vmatprep.mubr.bf16.mxu0 0
    %3501 = vmatmul.mubr.bf16.gmra.mxu0 %v3391
    %v3502 = vpop.f32.mrf.mxu0
    %v3503 = vadd.f32 0.0, %v3502
    %v3504 = vpop.f32.mrf.mxu0
    %v3505 = vpop.f32.mrf.mxu0
    %v3506 = vadd.f32 0.0, %v3505
    %v3507 = vpop.f32.mrf.mxu0
    %3508 = vmatprep.mubr.bf16.mxu0 0
    %3509 = vmatmul.mubr.bf16.gmra.mxu0 %v3394
    %v3510 = vpop.f32.mrf.mxu0
    %v3511 = vadd.f32 0.0, %v3510
    %v3512 = vpop.f32.mrf.mxu0
    %v3513 = vpop.f32.mrf.mxu0
    %v3514 = vadd.f32 0.0, %v3513
    %v3515 = vpop.f32.mrf.mxu0
    %3516 = vdwg.mxu0
    %v3517 = vsel %vm1103, %v3455, -1e+30
    %v3518 = vsel %vm1104, %v3458, -1e+30
    %v3519 = vsel %vm1105, %v3463, -1e+30
    %v3520 = vsel %vm1106, %v3466, -1e+30
    %v3521 = vsel %vm1107, %v3471, -1e+30
    %v3522 = vsel %vm1108, %v3474, -1e+30
    %v3523 = vsel %vm1109, %v3479, -1e+30
    %v3524 = vsel %vm1110, %v3482, -1e+30
    %v3525 = vsel %vm1111, %v3487, -1e+30
    %v3526 = vsel %vm1112, %v3490, -1e+30
    %v3527 = vsel %vm1113, %v3495, -1e+30
    %v3528 = vsel %vm1114, %v3498, -1e+30
    %v3529 = vsel %vm1115, %v3503, -1e+30
    %v3530 = vsel %vm1116, %v3506, -1e+30
    %v3531 = vsel %vm1117, %v3511, -1e+30
    %v3532 = vsel %vm1118, %v3514, -1e+30
    %3533 = vmax.xlane.f32.xlu0 %v3517
    %v3534 = vpop.xlane.xlu0 %3533
    %3535 = vmax.xlane.f32.xlu0 %v3518
    %v3536 = vpop.xlane.xlu0 %3535
    %3537 = vmax.xlane.f32.xlu0 %v3519
    %v3538 = vpop.xlane.xlu0 %3537
    %3539 = vmax.xlane.f32.xlu0 %v3520
    %v3540 = vpop.xlane.xlu0 %3539
    %3541 = vmax.xlane.f32.xlu0 %v3521
    %v3542 = vpop.xlane.xlu0 %3541
    %3543 = vmax.xlane.f32.xlu0 %v3522
    %v3544 = vpop.xlane.xlu0 %3543
    %3545 = vmax.xlane.f32.xlu0 %v3523
    %v3546 = vpop.xlane.xlu0 %3545
    %3547 = vmax.xlane.f32.xlu0 %v3524
    %v3548 = vpop.xlane.xlu0 %3547
    %3549 = vmax.xlane.f32.xlu0 %v3525
    %v3550 = vpop.xlane.xlu0 %3549
    %3551 = vmax.xlane.f32.xlu0 %v3526
    %v3552 = vpop.xlane.xlu0 %3551
    %3553 = vmax.xlane.f32.xlu0 %v3527
    %v3554 = vpop.xlane.xlu0 %3553
    %3555 = vmax.xlane.f32.xlu0 %v3528
    %v3556 = vpop.xlane.xlu0 %3555
    %3557 = vmax.xlane.f32.xlu0 %v3529
    %v3558 = vpop.xlane.xlu0 %3557
    %3559 = vmax.xlane.f32.xlu0 %v3530
    %v3560 = vpop.xlane.xlu0 %3559
    %3561 = vmax.xlane.f32.xlu0 %v3531
    %v3562 = vpop.xlane.xlu0 %3561
    %3563 = vmax.xlane.f32.xlu0 %v3532
    %v3564 = vpop.xlane.xlu0 %3563
    %v3565 = vsub.f32 %v3517, %v3534
    %v3566 = vsub.f32 %v3518, %v3536
    %v3567 = vsub.f32 %v3519, %v3538
    %v3568 = vsub.f32 %v3520, %v3540
    %v3569 = vsub.f32 %v3521, %v3542
    %v3570 = vsub.f32 %v3522, %v3544
    %v3571 = vsub.f32 %v3523, %v3546
    %v3572 = vsub.f32 %v3524, %v3548
    %v3573 = vsub.f32 %v3525, %v3550
    %v3574 = vsub.f32 %v3526, %v3552
    %v3575 = vsub.f32 %v3527, %v3554
    %v3576 = vsub.f32 %v3528, %v3556
    %v3577 = vsub.f32 %v3529, %v3558
    %v3578 = vsub.f32 %v3530, %v3560
    %v3579 = vsub.f32 %v3531, %v3562
    %v3580 = vsub.f32 %v3532, %v3564
    %v3581 = vmul.f32 %v3565, 1.442695
    %v3582 = vpow.pop %v3581
    %v3583 = vmul.f32 %v3566, 1.442695
    %v3584 = vpow.pop %v3583
    %v3585 = vmul.f32 %v3567, 1.442695
    %v3586 = vpow.pop %v3585
    %v3587 = vmul.f32 %v3568, 1.442695
    %v3588 = vpow.pop %v3587
    %v3589 = vmul.f32 %v3569, 1.442695
    %v3590 = vpow.pop %v3589
    %v3591 = vmul.f32 %v3570, 1.442695
    %v3592 = vpow.pop %v3591
    %v3593 = vmul.f32 %v3571, 1.442695
    %v3594 = vpow.pop %v3593
    %v3595 = vmul.f32 %v3572, 1.442695
    %v3596 = vpow.pop %v3595
    %v3597 = vmul.f32 %v3573, 1.442695
    %v3598 = vpow.pop %v3597
    %v3599 = vmul.f32 %v3574, 1.442695
    %v3600 = vpow.pop %v3599
    %v3601 = vmul.f32 %v3575, 1.442695
    %v3602 = vpow.pop %v3601
    %v3603 = vmul.f32 %v3576, 1.442695
    %v3604 = vpow.pop %v3603
    %v3605 = vmul.f32 %v3577, 1.442695
    %v3606 = vpow.pop %v3605
    %v3607 = vmul.f32 %v3578, 1.442695
    %v3608 = vpow.pop %v3607
    %v3609 = vmul.f32 %v3579, 1.442695
    %v3610 = vpow.pop %v3609
    %v3611 = vmul.f32 %v3580, 1.442695
    %v3612 = vpow.pop %v3611
    %3613 = vadd.xlane.f32.xlu0 %v3582
    %v3614 = vpop.xlane.xlu0 %3613
    %3615 = vadd.xlane.f32.xlu0 %v3584
    %v3616 = vpop.xlane.xlu0 %3615
    %3617 = vadd.xlane.f32.xlu0 %v3586
    %v3618 = vpop.xlane.xlu0 %3617
    %3619 = vadd.xlane.f32.xlu0 %v3588
    %v3620 = vpop.xlane.xlu0 %3619
    %3621 = vadd.xlane.f32.xlu0 %v3590
    %v3622 = vpop.xlane.xlu0 %3621
    %3623 = vadd.xlane.f32.xlu0 %v3592
    %v3624 = vpop.xlane.xlu0 %3623
    %3625 = vadd.xlane.f32.xlu0 %v3594
    %v3626 = vpop.xlane.xlu0 %3625
    %3627 = vadd.xlane.f32.xlu0 %v3596
    %v3628 = vpop.xlane.xlu0 %3627
    %3629 = vadd.xlane.f32.xlu0 %v3598
    %v3630 = vpop.xlane.xlu0 %3629
    %3631 = vadd.xlane.f32.xlu0 %v3600
    %v3632 = vpop.xlane.xlu0 %3631
    %3633 = vadd.xlane.f32.xlu0 %v3602
    %v3634 = vpop.xlane.xlu0 %3633
    %3635 = vadd.xlane.f32.xlu0 %v3604
    %v3636 = vpop.xlane.xlu0 %3635
    %3637 = vadd.xlane.f32.xlu0 %v3606
    %v3638 = vpop.xlane.xlu0 %3637
    %3639 = vadd.xlane.f32.xlu0 %v3608
    %v3640 = vpop.xlane.xlu0 %3639
    %3641 = vadd.xlane.f32.xlu0 %v3610
    %v3642 = vpop.xlane.xlu0 %3641
    %3643 = vadd.xlane.f32.xlu0 %v3612
    %v3644 = vpop.xlane.xlu0 %3643
    %v3645 = vpack.c.bf16 %v3584, %v3582
    %v3646 = vpack.c.bf16 %v3588, %v3586
    %v3647 = vpack.c.bf16 %v3592, %v3590
    %v3648 = vpack.c.bf16 %v3596, %v3594
    %v3649 = vpack.c.bf16 %v3600, %v3598
    %v3650 = vpack.c.bf16 %v3604, %v3602
    %v3651 = vpack.c.bf16 %v3608, %v3606
    %v3652 = vpack.c.bf16 %v3612, %v3610
    %3653 = vmatprep.subr.bf16.mxu0 0
    %3654 = vmatpush1.bf16.msra.mxu0 %v1083
    %3655 = vmatprep.subr.bf16.mxu0 0
    %3656 = vmatpush1.bf16.msra.mxu0 %v1080
    %3657 = vmatprep.subr.bf16.mxu0 0
    %3658 = vmatpush1.bf16.msra.mxu0 %v1077
    %3659 = vmatprep.subr.bf16.mxu0 0
    %3660 = vmatpush1.bf16.msra.mxu0 %v1074
    %3661 = vmatprep.subr.bf16.mxu0 0
    %3662 = vmatpush1.bf16.msra.mxu0 %v1071
    %3663 = vmatprep.subr.bf16.mxu0 0
    %3664 = vmatpush1.bf16.msra.mxu0 %v1068
    %3665 = vmatprep.subr.bf16.mxu0 0
    %3666 = vmatpush1.bf16.msra.mxu0 %v1065
    %3667 = vmatprep.subr.bf16.mxu0 0
    %3668 = vmatpush1.bf16.msra.mxu0 %v1062
    %3669 = vmatprep.subr.bf16.mxu0 0
    %3670 = vmatpush2.bf16.msra.mxu0 0
    %3671 = vmatprep.subr.bf16.mxu0 0
    %3672 = vmatpush2.bf16.msra.mxu0 0
    %3673 = vmatprep.subr.bf16.mxu0 0
    %3674 = vmatpush2.bf16.msra.mxu0 0
    %3675 = vmatprep.subr.bf16.mxu0 0
    %3676 = vmatpush2.bf16.msra.mxu0 0
    %3677 = vmatprep.subr.bf16.mxu0 0
    %3678 = vmatpush2.bf16.msra.mxu0 0
    %3679 = vmatprep.subr.bf16.mxu0 0
    %3680 = vmatpush2.bf16.msra.mxu0 0
    %3681 = vmatprep.subr.bf16.mxu0 0
    %3682 = vmatpush2.bf16.msra.mxu0 0
    %3683 = vmatprep.subr.bf16.mxu0 0
    %3684 = vmatpush2.bf16.msra.mxu0 0
    %3685 = vmatprep.mubr.bf16.mxu0 0
    %3686 = vmatmul.mubr.bf16.gmra.mxu0 %v3645
    %v3687 = vpop.f32.mrf.mxu0
    %v3688 = vadd.f32 0.0, %v3687
    %v3689 = vpop.f32.mrf.mxu0
    %v3690 = vpop.f32.mrf.mxu0
    %v3691 = vadd.f32 0.0, %v3690
    %v3692 = vpop.f32.mrf.mxu0
    %3693 = vmatprep.mubr.bf16.mxu0 0
    %3694 = vmatmul.mubr.bf16.gmra.mxu0 %v3646
    %v3695 = vpop.f32.mrf.mxu0
    %v3696 = vadd.f32 0.0, %v3695
    %v3697 = vpop.f32.mrf.mxu0
    %v3698 = vpop.f32.mrf.mxu0
    %v3699 = vadd.f32 0.0, %v3698
    %v3700 = vpop.f32.mrf.mxu0
    %3701 = vmatprep.mubr.bf16.mxu0 0
    %3702 = vmatmul.mubr.bf16.gmra.mxu0 %v3647
    %v3703 = vpop.f32.mrf.mxu0
    %v3704 = vadd.f32 0.0, %v3703
    %v3705 = vpop.f32.mrf.mxu0
    %v3706 = vpop.f32.mrf.mxu0
    %v3707 = vadd.f32 0.0, %v3706
    %v3708 = vpop.f32.mrf.mxu0
    %3709 = vmatprep.mubr.bf16.mxu0 0
    %3710 = vmatmul.mubr.bf16.gmra.mxu0 %v3648
    %v3711 = vpop.f32.mrf.mxu0
    %v3712 = vadd.f32 0.0, %v3711
    %v3713 = vpop.f32.mrf.mxu0
    %v3714 = vpop.f32.mrf.mxu0
    %v3715 = vadd.f32 0.0, %v3714
    %v3716 = vpop.f32.mrf.mxu0
    %3717 = vmatprep.mubr.bf16.mxu0 0
    %3718 = vmatmul.mubr.bf16.gmra.mxu0 %v3649
    %v3719 = vpop.f32.mrf.mxu0
    %v3720 = vadd.f32 0.0, %v3719
    %v3721 = vpop.f32.mrf.mxu0
    %v3722 = vpop.f32.mrf.mxu0
    %v3723 = vadd.f32 0.0, %v3722
    %v3724 = vpop.f32.mrf.mxu0
    %3725 = vmatprep.mubr.bf16.mxu0 0
    %3726 = vmatmul.mubr.bf16.gmra.mxu0 %v3650
    %v3727 = vpop.f32.mrf.mxu0
    %v3728 = vadd.f32 0.0, %v3727
    %v3729 = vpop.f32.mrf.mxu0
    %v3730 = vpop.f32.mrf.mxu0
    %v3731 = vadd.f32 0.0, %v3730
    %v3732 = vpop.f32.mrf.mxu0
    %3733 = vmatprep.mubr.bf16.mxu0 0
    %3734 = vmatmul.mubr.bf16.gmra.mxu0 %v3651
    %v3735 = vpop.f32.mrf.mxu0
    %v3736 = vadd.f32 0.0, %v3735
    %v3737 = vpop.f32.mrf.mxu0
    %v3738 = vpop.f32.mrf.mxu0
    %v3739 = vadd.f32 0.0, %v3738
    %v3740 = vpop.f32.mrf.mxu0
    %3741 = vmatprep.mubr.bf16.mxu0 0
    %3742 = vmatmul.mubr.bf16.gmra.mxu0 %v3652
    %v3743 = vpop.f32.mrf.mxu0
    %v3744 = vadd.f32 0.0, %v3743
    %v3745 = vpop.f32.mrf.mxu0
    %v3746 = vpop.f32.mrf.mxu0
    %v3747 = vadd.f32 0.0, %v3746
    %v3748 = vpop.f32.mrf.mxu0
    %3749 = vdwg.mxu0
    %v3750 = vrcp.pop %v3614
    %v3751 = vrcp.pop %v3616
    %v3752 = vrcp.pop %v3618
    %v3753 = vrcp.pop %v3620
    %v3754 = vrcp.pop %v3622
    %v3755 = vrcp.pop %v3624
    %v3756 = vrcp.pop %v3626
    %v3757 = vrcp.pop %v3628
    %v3758 = vrcp.pop %v3630
    %v3759 = vrcp.pop %v3632
    %v3760 = vrcp.pop %v3634
    %v3761 = vrcp.pop %v3636
    %v3762 = vrcp.pop %v3638
    %v3763 = vrcp.pop %v3640
    %v3764 = vrcp.pop %v3642
    %v3765 = vrcp.pop %v3644
    %v3766 = vmul.f32 %v3688, %v3750
    %v3767 = vmul.f32 %v3691, %v3751
    %v3768 = vmul.f32 %v3696, %v3752
    %v3769 = vmul.f32 %v3699, %v3753
    %v3770 = vmul.f32 %v3704, %v3754
    %v3771 = vmul.f32 %v3707, %v3755
    %v3772 = vmul.f32 %v3712, %v3756
    %v3773 = vmul.f32 %v3715, %v3757
    %v3774 = vmul.f32 %v3720, %v3758
    %v3775 = vmul.f32 %v3723, %v3759
    %v3776 = vmul.f32 %v3728, %v3760
    %v3777 = vmul.f32 %v3731, %v3761
    %v3778 = vmul.f32 %v3736, %v3762
    %v3779 = vmul.f32 %v3739, %v3763
    %v3780 = vmul.f32 %v3744, %v3764
    %v3781 = vmul.f32 %v3747, %v3765
    %v3782 = vpack.c.bf16 %v3767, %v3766
    %v3783 = vpack.c.bf16 %v3769, %v3768
    %v3784 = vpack.c.bf16 %v3771, %v3770
    %v3785 = vpack.c.bf16 %v3773, %v3772
    %v3786 = vpack.c.bf16 %v3775, %v3774
    %v3787 = vpack.c.bf16 %v3777, %v3776
    %v3788 = vpack.c.bf16 %v3779, %v3778
    %v3789 = vpack.c.bf16 %v3781, %v3780
    %v3798 = vunpack.c.l.b16 %v3782
    %v3799 = vunpack.c.h.b16 %v3782
    %v3800 = vunpack.c.l.b16 %v3783
    %v3801 = vunpack.c.h.b16 %v3783
    %v3802 = vunpack.c.l.b16 %v3784
    %v3803 = vunpack.c.h.b16 %v3784
    %v3804 = vunpack.c.l.b16 %v3785
    %v3805 = vunpack.c.h.b16 %v3785
    %v3806 = vunpack.c.l.b16 %v3786
    %v3807 = vunpack.c.h.b16 %v3786
    %v3808 = vunpack.c.l.b16 %v3787
    %v3809 = vunpack.c.h.b16 %v3787
    %v3810 = vunpack.c.l.b16 %v3788
    %v3811 = vunpack.c.h.b16 %v3788
    %v3812 = vunpack.c.l.b16 %v3789
    %v3813 = vunpack.c.h.b16 %v3789
    %v3814 = vpack.c.b16 %v3798, %v3798
    %v3815 = vpack.c.b16 %v3799, %v3799
    %v3816 = vpack.c.b16 %v3800, %v3800
    %v3817 = vpack.c.b16 %v3801, %v3801
    %v3818 = vpack.c.b16 %v3802, %v3802
    %v3819 = vpack.c.b16 %v3803, %v3803
    %v3820 = vpack.c.b16 %v3804, %v3804
    %v3821 = vpack.c.b16 %v3805, %v3805
    %v3822 = vpack.c.b16 %v3806, %v3806
    %v3823 = vpack.c.b16 %v3807, %v3807
    %v3824 = vpack.c.b16 %v3808, %v3808
    %v3825 = vpack.c.b16 %v3809, %v3809
    %v3826 = vpack.c.b16 %v3810, %v3810
    %v3827 = vpack.c.b16 %v3811, %v3811
    %v3828 = vpack.c.b16 %v3812, %v3812
    %v3829 = vpack.c.b16 %v3813, %v3813
    %3846 = vst.msk [vmem:[#allocation2 + $0x40] sm:$0xf] %vm1594, %v3814
    %3847 = vst.msk [vmem:[#allocation2 + $0x44] sm:$0xf] %vm1594, %v3815
    %3848 = vst.msk [vmem:[#allocation2 + $0x48] sm:$0xf] %vm1594, %v3816
    %3849 = vst.msk [vmem:[#allocation2 + $0x4c] sm:$0xf] %vm1594, %v3817
    %3850 = vst.msk [vmem:[#allocation2 + $0x50] sm:$0xf] %vm1594, %v3818
    %3851 = vst.msk [vmem:[#allocation2 + $0x54] sm:$0xf] %vm1594, %v3819
    %3852 = vst.msk [vmem:[#allocation2 + $0x58] sm:$0xf] %vm1594, %v3820
    %3853 = vst.msk [vmem:[#allocation2 + $0x5c] sm:$0xf] %vm1594, %v3821
    %3854 = vst.msk [vmem:[#allocation2 + $0x60] sm:$0xf] %vm1594, %v3822
    %3855 = vst.msk [vmem:[#allocation2 + $0x64] sm:$0xf] %vm1594, %v3823
    %3856 = vst.msk [vmem:[#allocation2 + $0x68] sm:$0xf] %vm1594, %v3824
    %3857 = vst.msk [vmem:[#allocation2 + $0x6c] sm:$0xf] %vm1594, %v3825
    %3858 = vst.msk [vmem:[#allocation2 + $0x70] sm:$0xf] %vm1594, %v3826
    %3859 = vst.msk [vmem:[#allocation2 + $0x74] sm:$0xf] %vm1594, %v3827
    %3860 = vst.msk [vmem:[#allocation2 + $0x78] sm:$0xf] %vm1594, %v3828
    %3861 = vst.msk [vmem:[#allocation2 + $0x7c] sm:$0xf] %vm1594, %v3829
    %3870 = vrot.lane.b32.xlu0 %v1060, 96
    %v3871 = vpop.permute.xlu0 %3870
    %3872 = vrot.lane.b32.xlu0 %v1063, 96
    %v3873 = vpop.permute.xlu0 %3872
    %3874 = vrot.lane.b32.xlu0 %v1066, 96
    %v3875 = vpop.permute.xlu0 %3874
    %3876 = vrot.lane.b32.xlu0 %v1069, 96
    %v3877 = vpop.permute.xlu0 %3876
    %3878 = vrot.lane.b32.xlu0 %v1072, 96
    %v3879 = vpop.permute.xlu0 %3878
    %3880 = vrot.lane.b32.xlu0 %v1075, 96
    %v3881 = vpop.permute.xlu0 %3880
    %3882 = vrot.lane.b32.xlu0 %v1078, 96
    %v3883 = vpop.permute.xlu0 %3882
    %3884 = vrot.lane.b32.xlu0 %v1081, 96
    %v3885 = vpop.permute.xlu0 %3884
    %3894 = vrot.lane.b32.xlu0 %v1061, 96
    %v3895 = vpop.permute.xlu0 %3894
    %3896 = vrot.lane.b32.xlu0 %v1064, 96
    %v3897 = vpop.permute.xlu0 %3896
    %3898 = vrot.lane.b32.xlu0 %v1067, 96
    %v3899 = vpop.permute.xlu0 %3898
    %3900 = vrot.lane.b32.xlu0 %v1070, 96
    %v3901 = vpop.permute.xlu0 %3900
    %3902 = vrot.lane.b32.xlu0 %v1073, 96
    %v3903 = vpop.permute.xlu0 %3902
    %3904 = vrot.lane.b32.xlu0 %v1076, 96
    %v3905 = vpop.permute.xlu0 %3904
    %3906 = vrot.lane.b32.xlu0 %v1079, 96
    %v3907 = vpop.permute.xlu0 %3906
    %3908 = vrot.lane.b32.xlu0 %v1082, 96
    %v3909 = vpop.permute.xlu0 %3908
    %v3911 = vsel %vm1119, %v3871, 0
    %v3914 = vsel %vm1119, %v3873, 0
    %v3917 = vsel %vm1119, %v3875, 0
    %v3920 = vsel %vm1119, %v3877, 0
    %v3923 = vsel %vm1119, %v3879, 0
    %v3926 = vsel %vm1119, %v3881, 0
    %v3929 = vsel %vm1119, %v3883, 0
    %v3932 = vsel %vm1119, %v3885, 0
    %v3935 = vsel %vm1119, %v3895, 0
    %v3938 = vsel %vm1119, %v3897, 0
    %v3941 = vsel %vm1119, %v3899, 0
    %v3944 = vsel %vm1119, %v3901, 0
    %v3947 = vsel %vm1119, %v3903, 0
    %v3950 = vsel %vm1119, %v3905, 0
    %v3953 = vsel %vm1119, %v3907, 0
    %v3956 = vsel %vm1119, %v3909, 0
    %3958 = vmatprep.subr.bf16.mxu0 0
    %3959 = vmatpush1.bf16.xpose.msra.mxu0 %v3956
    %3960 = vmatprep.subr.bf16.mxu0 0
    %3961 = vmatpush1.bf16.xpose.msra.mxu0 %v3953
    %3962 = vmatprep.subr.bf16.mxu0 0
    %3963 = vmatpush1.bf16.xpose.msra.mxu0 %v3950
    %3964 = vmatprep.subr.bf16.mxu0 0
    %3965 = vmatpush1.bf16.xpose.msra.mxu0 %v3947
    %3966 = vmatprep.subr.bf16.mxu0 0
    %3967 = vmatpush1.bf16.xpose.msra.mxu0 %v3944
    %3968 = vmatprep.subr.bf16.mxu0 0
    %3969 = vmatpush1.bf16.xpose.msra.mxu0 %v3941
    %3970 = vmatprep.subr.bf16.mxu0 0
    %3971 = vmatpush1.bf16.xpose.msra.mxu0 %v3938
    %3972 = vmatprep.subr.bf16.mxu0 0
    %3973 = vmatpush1.bf16.xpose.msra.mxu0 %v3935
    %3974 = vmatprep.subr.bf16.mxu0 0
    %3975 = vmatpush2.bf16.xpose.msra.mxu0 0
    %3976 = vmatprep.subr.bf16.mxu0 0
    %3977 = vmatpush2.bf16.xpose.msra.mxu0 0
    %3978 = vmatprep.subr.bf16.mxu0 0
    %3979 = vmatpush2.bf16.xpose.msra.mxu0 0
    %3980 = vmatprep.subr.bf16.mxu0 0
    %3981 = vmatpush2.bf16.xpose.msra.mxu0 0
    %3982 = vmatprep.subr.bf16.mxu0 0
    %3983 = vmatpush2.bf16.xpose.msra.mxu0 0
    %3984 = vmatprep.subr.bf16.mxu0 0
    %3985 = vmatpush2.bf16.xpose.msra.mxu0 0
    %3986 = vmatprep.subr.bf16.mxu0 0
    %3987 = vmatpush2.bf16.xpose.msra.mxu0 0
    %3988 = vmatprep.subr.bf16.mxu0 0
    %3989 = vmatpush2.bf16.xpose.msra.mxu0 0
    %3990 = vmatprep.mubr.bf16.mxu0 0
    %3991 = vmatmul.mubr.bf16.gmra.mxu0 %v3911
    %v3992 = vpop.f32.mrf.mxu0
    %v3993 = vadd.f32 0.0, %v3992
    %v3994 = vpop.f32.mrf.mxu0
    %v3995 = vpop.f32.mrf.mxu0
    %v3996 = vadd.f32 0.0, %v3995
    %v3997 = vpop.f32.mrf.mxu0
    %3998 = vmatprep.mubr.bf16.mxu0 0
    %3999 = vmatmul.mubr.bf16.gmra.mxu0 %v3914
    %v4000 = vpop.f32.mrf.mxu0
    %v4001 = vadd.f32 0.0, %v4000
    %v4002 = vpop.f32.mrf.mxu0
    %v4003 = vpop.f32.mrf.mxu0
    %v4004 = vadd.f32 0.0, %v4003
    %v4005 = vpop.f32.mrf.mxu0
    %4006 = vmatprep.mubr.bf16.mxu0 0
    %4007 = vmatmul.mubr.bf16.gmra.mxu0 %v3917
    %v4008 = vpop.f32.mrf.mxu0
    %v4009 = vadd.f32 0.0, %v4008
    %v4010 = vpop.f32.mrf.mxu0
    %v4011 = vpop.f32.mrf.mxu0
    %v4012 = vadd.f32 0.0, %v4011
    %v4013 = vpop.f32.mrf.mxu0
    %4014 = vmatprep.mubr.bf16.mxu0 0
    %4015 = vmatmul.mubr.bf16.gmra.mxu0 %v3920
    %v4016 = vpop.f32.mrf.mxu0
    %v4017 = vadd.f32 0.0, %v4016
    %v4018 = vpop.f32.mrf.mxu0
    %v4019 = vpop.f32.mrf.mxu0
    %v4020 = vadd.f32 0.0, %v4019
    %v4021 = vpop.f32.mrf.mxu0
    %4022 = vmatprep.mubr.bf16.mxu0 0
    %4023 = vmatmul.mubr.bf16.gmra.mxu0 %v3923
    %v4024 = vpop.f32.mrf.mxu0
    %v4025 = vadd.f32 0.0, %v4024
    %v4026 = vpop.f32.mrf.mxu0
    %v4027 = vpop.f32.mrf.mxu0
    %v4028 = vadd.f32 0.0, %v4027
    %v4029 = vpop.f32.mrf.mxu0
    %4030 = vmatprep.mubr.bf16.mxu0 0
    %4031 = vmatmul.mubr.bf16.gmra.mxu0 %v3926
    %v4032 = vpop.f32.mrf.mxu0
    %v4033 = vadd.f32 0.0, %v4032
    %v4034 = vpop.f32.mrf.mxu0
    %v4035 = vpop.f32.mrf.mxu0
    %v4036 = vadd.f32 0.0, %v4035
    %v4037 = vpop.f32.mrf.mxu0
    %4038 = vmatprep.mubr.bf16.mxu0 0
    %4039 = vmatmul.mubr.bf16.gmra.mxu0 %v3929
    %v4040 = vpop.f32.mrf.mxu0
    %v4041 = vadd.f32 0.0, %v4040
    %v4042 = vpop.f32.mrf.mxu0
    %v4043 = vpop.f32.mrf.mxu0
    %v4044 = vadd.f32 0.0, %v4043
    %v4045 = vpop.f32.mrf.mxu0
    %4046 = vmatprep.mubr.bf16.mxu0 0
    %4047 = vmatmul.mubr.bf16.gmra.mxu0 %v3932
    %v4048 = vpop.f32.mrf.mxu0
    %v4049 = vadd.f32 0.0, %v4048
    %v4050 = vpop.f32.mrf.mxu0
    %v4051 = vpop.f32.mrf.mxu0
    %v4052 = vadd.f32 0.0, %v4051
    %v4053 = vpop.f32.mrf.mxu0
    %4054 = vdwg.mxu0
    %v4055 = vsel %vm1103, %v3993, -1e+30
    %v4056 = vsel %vm1104, %v3996, -1e+30
    %v4057 = vsel %vm1105, %v4001, -1e+30
    %v4058 = vsel %vm1106, %v4004, -1e+30
    %v4059 = vsel %vm1107, %v4009, -1e+30
    %v4060 = vsel %vm1108, %v4012, -1e+30
    %v4061 = vsel %vm1109, %v4017, -1e+30
    %v4062 = vsel %vm1110, %v4020, -1e+30
    %v4063 = vsel %vm1111, %v4025, -1e+30
    %v4064 = vsel %vm1112, %v4028, -1e+30
    %v4065 = vsel %vm1113, %v4033, -1e+30
    %v4066 = vsel %vm1114, %v4036, -1e+30
    %v4067 = vsel %vm1115, %v4041, -1e+30
    %v4068 = vsel %vm1116, %v4044, -1e+30
    %v4069 = vsel %vm1117, %v4049, -1e+30
    %v4070 = vsel %vm1118, %v4052, -1e+30
    %4071 = vmax.xlane.f32.xlu0 %v4055
    %v4072 = vpop.xlane.xlu0 %4071
    %4073 = vmax.xlane.f32.xlu0 %v4056
    %v4074 = vpop.xlane.xlu0 %4073
    %4075 = vmax.xlane.f32.xlu0 %v4057
    %v4076 = vpop.xlane.xlu0 %4075
    %4077 = vmax.xlane.f32.xlu0 %v4058
    %v4078 = vpop.xlane.xlu0 %4077
    %4079 = vmax.xlane.f32.xlu0 %v4059
    %v4080 = vpop.xlane.xlu0 %4079
    %4081 = vmax.xlane.f32.xlu0 %v4060
    %v4082 = vpop.xlane.xlu0 %4081
    %4083 = vmax.xlane.f32.xlu0 %v4061
    %v4084 = vpop.xlane.xlu0 %4083
    %4085 = vmax.xlane.f32.xlu0 %v4062
    %v4086 = vpop.xlane.xlu0 %4085
    %4087 = vmax.xlane.f32.xlu0 %v4063
    %v4088 = vpop.xlane.xlu0 %4087
    %4089 = vmax.xlane.f32.xlu0 %v4064
    %v4090 = vpop.xlane.xlu0 %4089
    %4091 = vmax.xlane.f32.xlu0 %v4065
    %v4092 = vpop.xlane.xlu0 %4091
    %4093 = vmax.xlane.f32.xlu0 %v4066
    %v4094 = vpop.xlane.xlu0 %4093
    %4095 = vmax.xlane.f32.xlu0 %v4067
    %v4096 = vpop.xlane.xlu0 %4095
    %4097 = vmax.xlane.f32.xlu0 %v4068
    %v4098 = vpop.xlane.xlu0 %4097
    %4099 = vmax.xlane.f32.xlu0 %v4069
    %v4100 = vpop.xlane.xlu0 %4099
    %4101 = vmax.xlane.f32.xlu0 %v4070
    %v4102 = vpop.xlane.xlu0 %4101
    %v4103 = vsub.f32 %v4055, %v4072
    %v4104 = vsub.f32 %v4056, %v4074
    %v4105 = vsub.f32 %v4057, %v4076
    %v4106 = vsub.f32 %v4058, %v4078
    %v4107 = vsub.f32 %v4059, %v4080
    %v4108 = vsub.f32 %v4060, %v4082
    %v4109 = vsub.f32 %v4061, %v4084
    %v4110 = vsub.f32 %v4062, %v4086
    %v4111 = vsub.f32 %v4063, %v4088
    %v4112 = vsub.f32 %v4064, %v4090
    %v4113 = vsub.f32 %v4065, %v4092
    %v4114 = vsub.f32 %v4066, %v4094
    %v4115 = vsub.f32 %v4067, %v4096
    %v4116 = vsub.f32 %v4068, %v4098
    %v4117 = vsub.f32 %v4069, %v4100
    %v4118 = vsub.f32 %v4070, %v4102
    %v4119 = vmul.f32 %v4103, 1.442695
    %v4120 = vpow.pop %v4119
    %v4121 = vmul.f32 %v4104, 1.442695
    %v4122 = vpow.pop %v4121
    %v4123 = vmul.f32 %v4105, 1.442695
    %v4124 = vpow.pop %v4123
    %v4125 = vmul.f32 %v4106, 1.442695
    %v4126 = vpow.pop %v4125
    %v4127 = vmul.f32 %v4107, 1.442695
    %v4128 = vpow.pop %v4127
    %v4129 = vmul.f32 %v4108, 1.442695
    %v4130 = vpow.pop %v4129
    %v4131 = vmul.f32 %v4109, 1.442695
    %v4132 = vpow.pop %v4131
    %v4133 = vmul.f32 %v4110, 1.442695
    %v4134 = vpow.pop %v4133
    %v4135 = vmul.f32 %v4111, 1.442695
    %v4136 = vpow.pop %v4135
    %v4137 = vmul.f32 %v4112, 1.442695
    %v4138 = vpow.pop %v4137
    %v4139 = vmul.f32 %v4113, 1.442695
    %v4140 = vpow.pop %v4139
    %v4141 = vmul.f32 %v4114, 1.442695
    %v4142 = vpow.pop %v4141
    %v4143 = vmul.f32 %v4115, 1.442695
    %v4144 = vpow.pop %v4143
    %v4145 = vmul.f32 %v4116, 1.442695
    %v4146 = vpow.pop %v4145
    %v4147 = vmul.f32 %v4117, 1.442695
    %v4148 = vpow.pop %v4147
    %v4149 = vmul.f32 %v4118, 1.442695
    %v4150 = vpow.pop %v4149
    %4151 = vadd.xlane.f32.xlu0 %v4120
    %v4152 = vpop.xlane.xlu0 %4151
    %4153 = vadd.xlane.f32.xlu0 %v4122
    %v4154 = vpop.xlane.xlu0 %4153
    %4155 = vadd.xlane.f32.xlu0 %v4124
    %v4156 = vpop.xlane.xlu0 %4155
    %4157 = vadd.xlane.f32.xlu0 %v4126
    %v4158 = vpop.xlane.xlu0 %4157
    %4159 = vadd.xlane.f32.xlu0 %v4128
    %v4160 = vpop.xlane.xlu0 %4159
    %4161 = vadd.xlane.f32.xlu0 %v4130
    %v4162 = vpop.xlane.xlu0 %4161
    %4163 = vadd.xlane.f32.xlu0 %v4132
    %v4164 = vpop.xlane.xlu0 %4163
    %4165 = vadd.xlane.f32.xlu0 %v4134
    %v4166 = vpop.xlane.xlu0 %4165
    %4167 = vadd.xlane.f32.xlu0 %v4136
    %v4168 = vpop.xlane.xlu0 %4167
    %4169 = vadd.xlane.f32.xlu0 %v4138
    %v4170 = vpop.xlane.xlu0 %4169
    %4171 = vadd.xlane.f32.xlu0 %v4140
    %v4172 = vpop.xlane.xlu0 %4171
    %4173 = vadd.xlane.f32.xlu0 %v4142
    %v4174 = vpop.xlane.xlu0 %4173
    %4175 = vadd.xlane.f32.xlu0 %v4144
    %v4176 = vpop.xlane.xlu0 %4175
    %4177 = vadd.xlane.f32.xlu0 %v4146
    %v4178 = vpop.xlane.xlu0 %4177
    %4179 = vadd.xlane.f32.xlu0 %v4148
    %v4180 = vpop.xlane.xlu0 %4179
    %4181 = vadd.xlane.f32.xlu0 %v4150
    %v4182 = vpop.xlane.xlu0 %4181
    %v4183 = vpack.c.bf16 %v4122, %v4120
    %v4184 = vpack.c.bf16 %v4126, %v4124
    %v4185 = vpack.c.bf16 %v4130, %v4128
    %v4186 = vpack.c.bf16 %v4134, %v4132
    %v4187 = vpack.c.bf16 %v4138, %v4136
    %v4188 = vpack.c.bf16 %v4142, %v4140
    %v4189 = vpack.c.bf16 %v4146, %v4144
    %v4190 = vpack.c.bf16 %v4150, %v4148
    %4199 = vrot.lane.b32.xlu0 %v1062, 96
    %v4200 = vpop.permute.xlu0 %4199
    %4201 = vrot.lane.b32.xlu0 %v1065, 96
    %v4202 = vpop.permute.xlu0 %4201
    %4203 = vrot.lane.b32.xlu0 %v1068, 96
    %v4204 = vpop.permute.xlu0 %4203
    %4205 = vrot.lane.b32.xlu0 %v1071, 96
    %v4206 = vpop.permute.xlu0 %4205
    %4207 = vrot.lane.b32.xlu0 %v1074, 96
    %v4208 = vpop.permute.xlu0 %4207
    %4209 = vrot.lane.b32.xlu0 %v1077, 96
    %v4210 = vpop.permute.xlu0 %4209
    %4211 = vrot.lane.b32.xlu0 %v1080, 96
    %v4212 = vpop.permute.xlu0 %4211
    %4213 = vrot.lane.b32.xlu0 %v1083, 96
    %v4214 = vpop.permute.xlu0 %4213
    %4223 = vmatprep.subr.bf16.mxu0 0
    %4224 = vmatpush1.bf16.msra.mxu0 %v4214
    %4225 = vmatprep.subr.bf16.mxu0 0
    %4226 = vmatpush1.bf16.msra.mxu0 %v4212
    %4227 = vmatprep.subr.bf16.mxu0 0
    %4228 = vmatpush1.bf16.msra.mxu0 %v4210
    %4229 = vmatprep.subr.bf16.mxu0 0
    %4230 = vmatpush1.bf16.msra.mxu0 %v4208
    %4231 = vmatprep.subr.bf16.mxu0 0
    %4232 = vmatpush1.bf16.msra.mxu0 %v4206
    %4233 = vmatprep.subr.bf16.mxu0 0
    %4234 = vmatpush1.bf16.msra.mxu0 %v4204
    %4235 = vmatprep.subr.bf16.mxu0 0
    %4236 = vmatpush1.bf16.msra.mxu0 %v4202
    %4237 = vmatprep.subr.bf16.mxu0 0
    %4238 = vmatpush1.bf16.msra.mxu0 %v4200
    %4239 = vmatprep.subr.bf16.mxu0 0
    %4240 = vmatpush2.bf16.msra.mxu0 0
    %4241 = vmatprep.subr.bf16.mxu0 0
    %4242 = vmatpush2.bf16.msra.mxu0 0
    %4243 = vmatprep.subr.bf16.mxu0 0
    %4244 = vmatpush2.bf16.msra.mxu0 0
    %4245 = vmatprep.subr.bf16.mxu0 0
    %4246 = vmatpush2.bf16.msra.mxu0 0
    %4247 = vmatprep.subr.bf16.mxu0 0
    %4248 = vmatpush2.bf16.msra.mxu0 0
    %4249 = vmatprep.subr.bf16.mxu0 0
    %4250 = vmatpush2.bf16.msra.mxu0 0
    %4251 = vmatprep.subr.bf16.mxu0 0
    %4252 = vmatpush2.bf16.msra.mxu0 0
    %4253 = vmatprep.subr.bf16.mxu0 0
    %4254 = vmatpush2.bf16.msra.mxu0 0
    %4255 = vmatprep.mubr.bf16.mxu0 0
    %4256 = vmatmul.mubr.bf16.gmra.mxu0 %v4183
    %v4257 = vpop.f32.mrf.mxu0
    %v4258 = vadd.f32 0.0, %v4257
    %v4259 = vpop.f32.mrf.mxu0
    %v4260 = vpop.f32.mrf.mxu0
    %v4261 = vadd.f32 0.0, %v4260
    %v4262 = vpop.f32.mrf.mxu0
    %4263 = vmatprep.mubr.bf16.mxu0 0
    %4264 = vmatmul.mubr.bf16.gmra.mxu0 %v4184
    %v4265 = vpop.f32.mrf.mxu0
    %v4266 = vadd.f32 0.0, %v4265
    %v4267 = vpop.f32.mrf.mxu0
    %v4268 = vpop.f32.mrf.mxu0
    %v4269 = vadd.f32 0.0, %v4268
    %v4270 = vpop.f32.mrf.mxu0
    %4271 = vmatprep.mubr.bf16.mxu0 0
    %4272 = vmatmul.mubr.bf16.gmra.mxu0 %v4185
    %v4273 = vpop.f32.mrf.mxu0
    %v4274 = vadd.f32 0.0, %v4273
    %v4275 = vpop.f32.mrf.mxu0
    %v4276 = vpop.f32.mrf.mxu0
    %v4277 = vadd.f32 0.0, %v4276
    %v4278 = vpop.f32.mrf.mxu0
    %4279 = vmatprep.mubr.bf16.mxu0 0
    %4280 = vmatmul.mubr.bf16.gmra.mxu0 %v4186
    %v4281 = vpop.f32.mrf.mxu0
    %v4282 = vadd.f32 0.0, %v4281
    %v4283 = vpop.f32.mrf.mxu0
    %v4284 = vpop.f32.mrf.mxu0
    %v4285 = vadd.f32 0.0, %v4284
    %v4286 = vpop.f32.mrf.mxu0
    %4287 = vmatprep.mubr.bf16.mxu0 0
    %4288 = vmatmul.mubr.bf16.gmra.mxu0 %v4187
    %v4289 = vpop.f32.mrf.mxu0
    %v4290 = vadd.f32 0.0, %v4289
    %v4291 = vpop.f32.mrf.mxu0
    %v4292 = vpop.f32.mrf.mxu0
    %v4293 = vadd.f32 0.0, %v4292
    %v4294 = vpop.f32.mrf.mxu0
    %4295 = vmatprep.mubr.bf16.mxu0 0
    %4296 = vmatmul.mubr.bf16.gmra.mxu0 %v4188
    %v4297 = vpop.f32.mrf.mxu0
    %v4298 = vadd.f32 0.0, %v4297
    %v4299 = vpop.f32.mrf.mxu0
    %v4300 = vpop.f32.mrf.mxu0
    %v4301 = vadd.f32 0.0, %v4300
    %v4302 = vpop.f32.mrf.mxu0
    %4303 = vmatprep.mubr.bf16.mxu0 0
    %4304 = vmatmul.mubr.bf16.gmra.mxu0 %v4189
    %v4305 = vpop.f32.mrf.mxu0
    %v4306 = vadd.f32 0.0, %v4305
    %v4307 = vpop.f32.mrf.mxu0
    %v4308 = vpop.f32.mrf.mxu0
    %v4309 = vadd.f32 0.0, %v4308
    %v4310 = vpop.f32.mrf.mxu0
    %4311 = vmatprep.mubr.bf16.mxu0 0
    %4312 = vmatmul.mubr.bf16.gmra.mxu0 %v4190
    %v4313 = vpop.f32.mrf.mxu0
    %v4314 = vadd.f32 0.0, %v4313
    %v4315 = vpop.f32.mrf.mxu0
    %v4316 = vpop.f32.mrf.mxu0
    %v4317 = vadd.f32 0.0, %v4316
    %v4318 = vpop.f32.mrf.mxu0
    %4319 = vdwg.mxu0
    %v4320 = vrcp.pop %v4152
    %v4321 = vrcp.pop %v4154
    %v4322 = vrcp.pop %v4156
    %v4323 = vrcp.pop %v4158
    %v4324 = vrcp.pop %v4160
    %v4325 = vrcp.pop %v4162
    %v4326 = vrcp.pop %v4164
    %v4327 = vrcp.pop %v4166
    %v4328 = vrcp.pop %v4168
    %v4329 = vrcp.pop %v4170
    %v4330 = vrcp.pop %v4172
    %v4331 = vrcp.pop %v4174
    %v4332 = vrcp.pop %v4176
    %v4333 = vrcp.pop %v4178
    %v4334 = vrcp.pop %v4180
    %v4335 = vrcp.pop %v4182
    %v4336 = vmul.f32 %v4258, %v4320
    %v4337 = vmul.f32 %v4261, %v4321
    %v4338 = vmul.f32 %v4266, %v4322
    %v4339 = vmul.f32 %v4269, %v4323
    %v4340 = vmul.f32 %v4274, %v4324
    %v4341 = vmul.f32 %v4277, %v4325
    %v4342 = vmul.f32 %v4282, %v4326
    %v4343 = vmul.f32 %v4285, %v4327
    %v4344 = vmul.f32 %v4290, %v4328
    %v4345 = vmul.f32 %v4293, %v4329
    %v4346 = vmul.f32 %v4298, %v4330
    %v4347 = vmul.f32 %v4301, %v4331
    %v4348 = vmul.f32 %v4306, %v4332
    %v4349 = vmul.f32 %v4309, %v4333
    %v4350 = vmul.f32 %v4314, %v4334
    %v4351 = vmul.f32 %v4317, %v4335
    %v4352 = vpack.c.bf16 %v4337, %v4336
    %v4353 = vpack.c.bf16 %v4339, %v4338
    %v4354 = vpack.c.bf16 %v4341, %v4340
    %v4355 = vpack.c.bf16 %v4343, %v4342
    %v4356 = vpack.c.bf16 %v4345, %v4344
    %v4357 = vpack.c.bf16 %v4347, %v4346
    %v4358 = vpack.c.bf16 %v4349, %v4348
    %v4359 = vpack.c.bf16 %v4351, %v4350
    %v4368 = vunpack.c.l.b16 %v4352
    %v4369 = vunpack.c.h.b16 %v4352
    %v4370 = vunpack.c.l.b16 %v4353
    %v4371 = vunpack.c.h.b16 %v4353
    %v4372 = vunpack.c.l.b16 %v4354
    %v4373 = vunpack.c.h.b16 %v4354
    %v4374 = vunpack.c.l.b16 %v4355
    %v4375 = vunpack.c.h.b16 %v4355
    %v4376 = vunpack.c.l.b16 %v4356
    %v4377 = vunpack.c.h.b16 %v4356
    %v4378 = vunpack.c.l.b16 %v4357
    %v4379 = vunpack.c.h.b16 %v4357
    %v4380 = vunpack.c.l.b16 %v4358
    %v4381 = vunpack.c.h.b16 %v4358
    %v4382 = vunpack.c.l.b16 %v4359
    %v4383 = vunpack.c.h.b16 %v4359
    %v4384 = vpack.c.b16 %v4368, %v4368
    %v4385 = vpack.c.b16 %v4369, %v4369
    %v4386 = vpack.c.b16 %v4370, %v4370
    %v4387 = vpack.c.b16 %v4371, %v4371
    %v4388 = vpack.c.b16 %v4372, %v4372
    %v4389 = vpack.c.b16 %v4373, %v4373
    %v4390 = vpack.c.b16 %v4374, %v4374
    %v4391 = vpack.c.b16 %v4375, %v4375
    %v4392 = vpack.c.b16 %v4376, %v4376
    %v4393 = vpack.c.b16 %v4377, %v4377
    %v4394 = vpack.c.b16 %v4378, %v4378
    %v4395 = vpack.c.b16 %v4379, %v4379
    %v4396 = vpack.c.b16 %v4380, %v4380
    %v4397 = vpack.c.b16 %v4381, %v4381
    %v4398 = vpack.c.b16 %v4382, %v4382
    %v4399 = vpack.c.b16 %v4383, %v4383
    %4400 = vrot.lane.b32.xlu0 %v4384, 32
    %v4401 = vpop.permute.xlu0 %4400
    %4402 = vrot.lane.b32.xlu0 %v4385, 32
    %v4403 = vpop.permute.xlu0 %4402
    %4404 = vrot.lane.b32.xlu0 %v4386, 32
    %v4405 = vpop.permute.xlu0 %4404
    %4406 = vrot.lane.b32.xlu0 %v4387, 32
    %v4407 = vpop.permute.xlu0 %4406
    %4408 = vrot.lane.b32.xlu0 %v4388, 32
    %v4409 = vpop.permute.xlu0 %4408
    %4410 = vrot.lane.b32.xlu0 %v4389, 32
    %v4411 = vpop.permute.xlu0 %4410
    %4412 = vrot.lane.b32.xlu0 %v4390, 32
    %v4413 = vpop.permute.xlu0 %4412
    %4414 = vrot.lane.b32.xlu0 %v4391, 32
    %v4415 = vpop.permute.xlu0 %4414
    %4416 = vrot.lane.b32.xlu0 %v4392, 32
    %v4417 = vpop.permute.xlu0 %4416
    %4418 = vrot.lane.b32.xlu0 %v4393, 32
    %v4419 = vpop.permute.xlu0 %4418
    %4420 = vrot.lane.b32.xlu0 %v4394, 32
    %v4421 = vpop.permute.xlu0 %4420
    %4422 = vrot.lane.b32.xlu0 %v4395, 32
    %v4423 = vpop.permute.xlu0 %4422
    %4424 = vrot.lane.b32.xlu0 %v4396, 32
    %v4425 = vpop.permute.xlu0 %4424
    %4426 = vrot.lane.b32.xlu0 %v4397, 32
    %v4427 = vpop.permute.xlu0 %4426
    %4428 = vrot.lane.b32.xlu0 %v4398, 32
    %v4429 = vpop.permute.xlu0 %4428
    %4430 = vrot.lane.b32.xlu0 %v4399, 32
    %v4431 = vpop.permute.xlu0 %4430
    %4448 = vst.msk [vmem:[#allocation2 + $0x40] sm:$0xf] %vm2197, %v4401
    %4449 = vst.msk [vmem:[#allocation2 + $0x44] sm:$0xf] %vm2197, %v4403
    %4450 = vst.msk [vmem:[#allocation2 + $0x48] sm:$0xf] %vm2197, %v4405
    %4451 = vst.msk [vmem:[#allocation2 + $0x4c] sm:$0xf] %vm2197, %v4407
    %4452 = vst.msk [vmem:[#allocation2 + $0x50] sm:$0xf] %vm2197, %v4409
    %4453 = vst.msk [vmem:[#allocation2 + $0x54] sm:$0xf] %vm2197, %v4411
    %4454 = vst.msk [vmem:[#allocation2 + $0x58] sm:$0xf] %vm2197, %v4413
    %4455 = vst.msk [vmem:[#allocation2 + $0x5c] sm:$0xf] %vm2197, %v4415
    %4456 = vst.msk [vmem:[#allocation2 + $0x60] sm:$0xf] %vm2197, %v4417
    %4457 = vst.msk [vmem:[#allocation2 + $0x64] sm:$0xf] %vm2197, %v4419
    %4458 = vst.msk [vmem:[#allocation2 + $0x68] sm:$0xf] %vm2197, %v4421
    %4459 = vst.msk [vmem:[#allocation2 + $0x6c] sm:$0xf] %vm2197, %v4423
    %4460 = vst.msk [vmem:[#allocation2 + $0x70] sm:$0xf] %vm2197, %v4425
    %4461 = vst.msk [vmem:[#allocation2 + $0x74] sm:$0xf] %vm2197, %v4427
    %4462 = vst.msk [vmem:[#allocation2 + $0x78] sm:$0xf] %vm2197, %v4429
    %4463 = vst.msk [vmem:[#allocation2 + $0x7c] sm:$0xf] %vm2197, %v4431
    %4464 = vrot.lane.b32.xlu0 %v1060, 64
    %v4465 = vpop.permute.xlu0 %4464
    %4466 = vrot.lane.b32.xlu0 %v1063, 64
    %v4467 = vpop.permute.xlu0 %4466
    %4468 = vrot.lane.b32.xlu0 %v1066, 64
    %v4469 = vpop.permute.xlu0 %4468
    %4470 = vrot.lane.b32.xlu0 %v1069, 64
    %v4471 = vpop.permute.xlu0 %4470
    %4472 = vrot.lane.b32.xlu0 %v1072, 64
    %v4473 = vpop.permute.xlu0 %4472
    %4474 = vrot.lane.b32.xlu0 %v1075, 64
    %v4475 = vpop.permute.xlu0 %4474
    %4476 = vrot.lane.b32.xlu0 %v1078, 64
    %v4477 = vpop.permute.xlu0 %4476
    %4478 = vrot.lane.b32.xlu0 %v1081, 64
    %v4479 = vpop.permute.xlu0 %4478
    %4480 = vrot.lane.b32.xlu0 %v1061, 64
    %v4481 = vpop.permute.xlu0 %4480
    %4482 = vrot.lane.b32.xlu0 %v1064, 64
    %v4483 = vpop.permute.xlu0 %4482
    %4484 = vrot.lane.b32.xlu0 %v1067, 64
    %v4485 = vpop.permute.xlu0 %4484
    %4486 = vrot.lane.b32.xlu0 %v1070, 64
    %v4487 = vpop.permute.xlu0 %4486
    %4488 = vrot.lane.b32.xlu0 %v1073, 64
    %v4489 = vpop.permute.xlu0 %4488
    %4490 = vrot.lane.b32.xlu0 %v1076, 64
    %v4491 = vpop.permute.xlu0 %4490
    %4492 = vrot.lane.b32.xlu0 %v1079, 64
    %v4493 = vpop.permute.xlu0 %4492
    %4494 = vrot.lane.b32.xlu0 %v1082, 64
    %v4495 = vpop.permute.xlu0 %4494
    %v4497 = vsel %vm1119, %v4465, 0
    %v4500 = vsel %vm1119, %v4467, 0
    %v4503 = vsel %vm1119, %v4469, 0
    %v4506 = vsel %vm1119, %v4471, 0
    %v4509 = vsel %vm1119, %v4473, 0
    %v4512 = vsel %vm1119, %v4475, 0
    %v4515 = vsel %vm1119, %v4477, 0
    %v4518 = vsel %vm1119, %v4479, 0
    %v4521 = vsel %vm1119, %v4481, 0
    %v4524 = vsel %vm1119, %v4483, 0
    %v4527 = vsel %vm1119, %v4485, 0
    %v4530 = vsel %vm1119, %v4487, 0
    %v4533 = vsel %vm1119, %v4489, 0
    %v4536 = vsel %vm1119, %v4491, 0
    %v4539 = vsel %vm1119, %v4493, 0
    %v4542 = vsel %vm1119, %v4495, 0
    %4544 = vmatprep.subr.bf16.mxu0 0
    %4545 = vmatpush1.bf16.xpose.msra.mxu0 %v4542
    %4546 = vmatprep.subr.bf16.mxu0 0
    %4547 = vmatpush1.bf16.xpose.msra.mxu0 %v4539
    %4548 = vmatprep.subr.bf16.mxu0 0
    %4549 = vmatpush1.bf16.xpose.msra.mxu0 %v4536
    %4550 = vmatprep.subr.bf16.mxu0 0
    %4551 = vmatpush1.bf16.xpose.msra.mxu0 %v4533
    %4552 = vmatprep.subr.bf16.mxu0 0
    %4553 = vmatpush1.bf16.xpose.msra.mxu0 %v4530
    %4554 = vmatprep.subr.bf16.mxu0 0
    %4555 = vmatpush1.bf16.xpose.msra.mxu0 %v4527
    %4556 = vmatprep.subr.bf16.mxu0 0
    %4557 = vmatpush1.bf16.xpose.msra.mxu0 %v4524
    %4558 = vmatprep.subr.bf16.mxu0 0
    %4559 = vmatpush1.bf16.xpose.msra.mxu0 %v4521
    %4560 = vmatprep.subr.bf16.mxu0 0
    %4561 = vmatpush2.bf16.xpose.msra.mxu0 0
    %4562 = vmatprep.subr.bf16.mxu0 0
    %4563 = vmatpush2.bf16.xpose.msra.mxu0 0
    %4564 = vmatprep.subr.bf16.mxu0 0
    %4565 = vmatpush2.bf16.xpose.msra.mxu0 0
    %4566 = vmatprep.subr.bf16.mxu0 0
    %4567 = vmatpush2.bf16.xpose.msra.mxu0 0
    %4568 = vmatprep.subr.bf16.mxu0 0
    %4569 = vmatpush2.bf16.xpose.msra.mxu0 0
    %4570 = vmatprep.subr.bf16.mxu0 0
    %4571 = vmatpush2.bf16.xpose.msra.mxu0 0
    %4572 = vmatprep.subr.bf16.mxu0 0
    %4573 = vmatpush2.bf16.xpose.msra.mxu0 0
    %4574 = vmatprep.subr.bf16.mxu0 0
    %4575 = vmatpush2.bf16.xpose.msra.mxu0 0
    %4576 = vmatprep.mubr.bf16.mxu0 0
    %4577 = vmatmul.mubr.bf16.gmra.mxu0 %v4497
    %v4578 = vpop.f32.mrf.mxu0
    %v4579 = vadd.f32 0.0, %v4578
    %v4580 = vpop.f32.mrf.mxu0
    %v4581 = vpop.f32.mrf.mxu0
    %v4582 = vadd.f32 0.0, %v4581
    %v4583 = vpop.f32.mrf.mxu0
    %4584 = vmatprep.mubr.bf16.mxu0 0
    %4585 = vmatmul.mubr.bf16.gmra.mxu0 %v4500
    %v4586 = vpop.f32.mrf.mxu0
    %v4587 = vadd.f32 0.0, %v4586
    %v4588 = vpop.f32.mrf.mxu0
    %v4589 = vpop.f32.mrf.mxu0
    %v4590 = vadd.f32 0.0, %v4589
    %v4591 = vpop.f32.mrf.mxu0
    %4592 = vmatprep.mubr.bf16.mxu0 0
    %4593 = vmatmul.mubr.bf16.gmra.mxu0 %v4503
    %v4594 = vpop.f32.mrf.mxu0
    %v4595 = vadd.f32 0.0, %v4594
    %v4596 = vpop.f32.mrf.mxu0
    %v4597 = vpop.f32.mrf.mxu0
    %v4598 = vadd.f32 0.0, %v4597
    %v4599 = vpop.f32.mrf.mxu0
    %4600 = vmatprep.mubr.bf16.mxu0 0
    %4601 = vmatmul.mubr.bf16.gmra.mxu0 %v4506
    %v4602 = vpop.f32.mrf.mxu0
    %v4603 = vadd.f32 0.0, %v4602
    %v4604 = vpop.f32.mrf.mxu0
    %v4605 = vpop.f32.mrf.mxu0
    %v4606 = vadd.f32 0.0, %v4605
    %v4607 = vpop.f32.mrf.mxu0
    %4608 = vmatprep.mubr.bf16.mxu0 0
    %4609 = vmatmul.mubr.bf16.gmra.mxu0 %v4509
    %v4610 = vpop.f32.mrf.mxu0
    %v4611 = vadd.f32 0.0, %v4610
    %v4612 = vpop.f32.mrf.mxu0
    %v4613 = vpop.f32.mrf.mxu0
    %v4614 = vadd.f32 0.0, %v4613
    %v4615 = vpop.f32.mrf.mxu0
    %4616 = vmatprep.mubr.bf16.mxu0 0
    %4617 = vmatmul.mubr.bf16.gmra.mxu0 %v4512
    %v4618 = vpop.f32.mrf.mxu0
    %v4619 = vadd.f32 0.0, %v4618
    %v4620 = vpop.f32.mrf.mxu0
    %v4621 = vpop.f32.mrf.mxu0
    %v4622 = vadd.f32 0.0, %v4621
    %v4623 = vpop.f32.mrf.mxu0
    %4624 = vmatprep.mubr.bf16.mxu0 0
    %4625 = vmatmul.mubr.bf16.gmra.mxu0 %v4515
    %v4626 = vpop.f32.mrf.mxu0
    %v4627 = vadd.f32 0.0, %v4626
    %v4628 = vpop.f32.mrf.mxu0
    %v4629 = vpop.f32.mrf.mxu0
    %v4630 = vadd.f32 0.0, %v4629
    %v4631 = vpop.f32.mrf.mxu0
    %4632 = vmatprep.mubr.bf16.mxu0 0
    %4633 = vmatmul.mubr.bf16.gmra.mxu0 %v4518
    %v4634 = vpop.f32.mrf.mxu0
    %v4635 = vadd.f32 0.0, %v4634
    %v4636 = vpop.f32.mrf.mxu0
    %v4637 = vpop.f32.mrf.mxu0
    %v4638 = vadd.f32 0.0, %v4637
    %v4639 = vpop.f32.mrf.mxu0
    %4640 = vdwg.mxu0
    %v4641 = vsel %vm1103, %v4579, -1e+30
    %v4642 = vsel %vm1104, %v4582, -1e+30
    %v4643 = vsel %vm1105, %v4587, -1e+30
    %v4644 = vsel %vm1106, %v4590, -1e+30
    %v4645 = vsel %vm1107, %v4595, -1e+30
    %v4646 = vsel %vm1108, %v4598, -1e+30
    %v4647 = vsel %vm1109, %v4603, -1e+30
    %v4648 = vsel %vm1110, %v4606, -1e+30
    %v4649 = vsel %vm1111, %v4611, -1e+30
    %v4650 = vsel %vm1112, %v4614, -1e+30
    %v4651 = vsel %vm1113, %v4619, -1e+30
    %v4652 = vsel %vm1114, %v4622, -1e+30
    %v4653 = vsel %vm1115, %v4627, -1e+30
    %v4654 = vsel %vm1116, %v4630, -1e+30
    %v4655 = vsel %vm1117, %v4635, -1e+30
    %v4656 = vsel %vm1118, %v4638, -1e+30
    %4657 = vmax.xlane.f32.xlu0 %v4641
    %v4658 = vpop.xlane.xlu0 %4657
    %4659 = vmax.xlane.f32.xlu0 %v4642
    %v4660 = vpop.xlane.xlu0 %4659
    %4661 = vmax.xlane.f32.xlu0 %v4643
    %v4662 = vpop.xlane.xlu0 %4661
    %4663 = vmax.xlane.f32.xlu0 %v4644
    %v4664 = vpop.xlane.xlu0 %4663
    %4665 = vmax.xlane.f32.xlu0 %v4645
    %v4666 = vpop.xlane.xlu0 %4665
    %4667 = vmax.xlane.f32.xlu0 %v4646
    %v4668 = vpop.xlane.xlu0 %4667
    %4669 = vmax.xlane.f32.xlu0 %v4647
    %v4670 = vpop.xlane.xlu0 %4669
    %4671 = vmax.xlane.f32.xlu0 %v4648
    %v4672 = vpop.xlane.xlu0 %4671
    %4673 = vmax.xlane.f32.xlu0 %v4649
    %v4674 = vpop.xlane.xlu0 %4673
    %4675 = vmax.xlane.f32.xlu0 %v4650
    %v4676 = vpop.xlane.xlu0 %4675
    %4677 = vmax.xlane.f32.xlu0 %v4651
    %v4678 = vpop.xlane.xlu0 %4677
    %4679 = vmax.xlane.f32.xlu0 %v4652
    %v4680 = vpop.xlane.xlu0 %4679
    %4681 = vmax.xlane.f32.xlu0 %v4653
    %v4682 = vpop.xlane.xlu0 %4681
    %4683 = vmax.xlane.f32.xlu0 %v4654
    %v4684 = vpop.xlane.xlu0 %4683
    %4685 = vmax.xlane.f32.xlu0 %v4655
    %v4686 = vpop.xlane.xlu0 %4685
    %4687 = vmax.xlane.f32.xlu0 %v4656
    %v4688 = vpop.xlane.xlu0 %4687
    %v4689 = vsub.f32 %v4641, %v4658
    %v4690 = vsub.f32 %v4642, %v4660
    %v4691 = vsub.f32 %v4643, %v4662
    %v4692 = vsub.f32 %v4644, %v4664
    %v4693 = vsub.f32 %v4645, %v4666
    %v4694 = vsub.f32 %v4646, %v4668
    %v4695 = vsub.f32 %v4647, %v4670
    %v4696 = vsub.f32 %v4648, %v4672
    %v4697 = vsub.f32 %v4649, %v4674
    %v4698 = vsub.f32 %v4650, %v4676
    %v4699 = vsub.f32 %v4651, %v4678
    %v4700 = vsub.f32 %v4652, %v4680
    %v4701 = vsub.f32 %v4653, %v4682
    %v4702 = vsub.f32 %v4654, %v4684
    %v4703 = vsub.f32 %v4655, %v4686
    %v4704 = vsub.f32 %v4656, %v4688
    %v4705 = vmul.f32 %v4689, 1.442695
    %v4706 = vpow.pop %v4705
    %v4707 = vmul.f32 %v4690, 1.442695
    %v4708 = vpow.pop %v4707
    %v4709 = vmul.f32 %v4691, 1.442695
    %v4710 = vpow.pop %v4709
    %v4711 = vmul.f32 %v4692, 1.442695
    %v4712 = vpow.pop %v4711
    %v4713 = vmul.f32 %v4693, 1.442695
    %v4714 = vpow.pop %v4713
    %v4715 = vmul.f32 %v4694, 1.442695
    %v4716 = vpow.pop %v4715
    %v4717 = vmul.f32 %v4695, 1.442695
    %v4718 = vpow.pop %v4717
    %v4719 = vmul.f32 %v4696, 1.442695
    %v4720 = vpow.pop %v4719
    %v4721 = vmul.f32 %v4697, 1.442695
    %v4722 = vpow.pop %v4721
    %v4723 = vmul.f32 %v4698, 1.442695
    %v4724 = vpow.pop %v4723
    %v4725 = vmul.f32 %v4699, 1.442695
    %v4726 = vpow.pop %v4725
    %v4727 = vmul.f32 %v4700, 1.442695
    %v4728 = vpow.pop %v4727
    %v4729 = vmul.f32 %v4701, 1.442695
    %v4730 = vpow.pop %v4729
    %v4731 = vmul.f32 %v4702, 1.442695
    %v4732 = vpow.pop %v4731
    %v4733 = vmul.f32 %v4703, 1.442695
    %v4734 = vpow.pop %v4733
    %v4735 = vmul.f32 %v4704, 1.442695
    %v4736 = vpow.pop %v4735
    %4737 = vadd.xlane.f32.xlu0 %v4706
    %v4738 = vpop.xlane.xlu0 %4737
    %4739 = vadd.xlane.f32.xlu0 %v4708
    %v4740 = vpop.xlane.xlu0 %4739
    %4741 = vadd.xlane.f32.xlu0 %v4710
    %v4742 = vpop.xlane.xlu0 %4741
    %4743 = vadd.xlane.f32.xlu0 %v4712
    %v4744 = vpop.xlane.xlu0 %4743
    %4745 = vadd.xlane.f32.xlu0 %v4714
    %v4746 = vpop.xlane.xlu0 %4745
    %4747 = vadd.xlane.f32.xlu0 %v4716
    %v4748 = vpop.xlane.xlu0 %4747
    %4749 = vadd.xlane.f32.xlu0 %v4718
    %v4750 = vpop.xlane.xlu0 %4749
    %4751 = vadd.xlane.f32.xlu0 %v4720
    %v4752 = vpop.xlane.xlu0 %4751
    %4753 = vadd.xlane.f32.xlu0 %v4722
    %v4754 = vpop.xlane.xlu0 %4753
    %4755 = vadd.xlane.f32.xlu0 %v4724
    %v4756 = vpop.xlane.xlu0 %4755
    %4757 = vadd.xlane.f32.xlu0 %v4726
    %v4758 = vpop.xlane.xlu0 %4757
    %4759 = vadd.xlane.f32.xlu0 %v4728
    %v4760 = vpop.xlane.xlu0 %4759
    %4761 = vadd.xlane.f32.xlu0 %v4730
    %v4762 = vpop.xlane.xlu0 %4761
    %4763 = vadd.xlane.f32.xlu0 %v4732
    %v4764 = vpop.xlane.xlu0 %4763
    %4765 = vadd.xlane.f32.xlu0 %v4734
    %v4766 = vpop.xlane.xlu0 %4765
    %4767 = vadd.xlane.f32.xlu0 %v4736
    %v4768 = vpop.xlane.xlu0 %4767
    %v4769 = vpack.c.bf16 %v4708, %v4706
    %v4770 = vpack.c.bf16 %v4712, %v4710
    %v4771 = vpack.c.bf16 %v4716, %v4714
    %v4772 = vpack.c.bf16 %v4720, %v4718
    %v4773 = vpack.c.bf16 %v4724, %v4722
    %v4774 = vpack.c.bf16 %v4728, %v4726
    %v4775 = vpack.c.bf16 %v4732, %v4730
    %v4776 = vpack.c.bf16 %v4736, %v4734
    %4777 = vrot.lane.b32.xlu0 %v1062, 64
    %v4778 = vpop.permute.xlu0 %4777
    %4779 = vrot.lane.b32.xlu0 %v1065, 64
    %v4780 = vpop.permute.xlu0 %4779
    %4781 = vrot.lane.b32.xlu0 %v1068, 64
    %v4782 = vpop.permute.xlu0 %4781
    %4783 = vrot.lane.b32.xlu0 %v1071, 64
    %v4784 = vpop.permute.xlu0 %4783
    %4785 = vrot.lane.b32.xlu0 %v1074, 64
    %v4786 = vpop.permute.xlu0 %4785
    %4787 = vrot.lane.b32.xlu0 %v1077, 64
    %v4788 = vpop.permute.xlu0 %4787
    %4789 = vrot.lane.b32.xlu0 %v1080, 64
    %v4790 = vpop.permute.xlu0 %4789
    %4791 = vrot.lane.b32.xlu0 %v1083, 64
    %v4792 = vpop.permute.xlu0 %4791
    %4801 = vmatprep.subr.bf16.mxu0 0
    %4802 = vmatpush1.bf16.msra.mxu0 %v4792
    %4803 = vmatprep.subr.bf16.mxu0 0
    %4804 = vmatpush1.bf16.msra.mxu0 %v4790
    %4805 = vmatprep.subr.bf16.mxu0 0
    %4806 = vmatpush1.bf16.msra.mxu0 %v4788
    %4807 = vmatprep.subr.bf16.mxu0 0
    %4808 = vmatpush1.bf16.msra.mxu0 %v4786
    %4809 = vmatprep.subr.bf16.mxu0 0
    %4810 = vmatpush1.bf16.msra.mxu0 %v4784
    %4811 = vmatprep.subr.bf16.mxu0 0
    %4812 = vmatpush1.bf16.msra.mxu0 %v4782
    %4813 = vmatprep.subr.bf16.mxu0 0
    %4814 = vmatpush1.bf16.msra.mxu0 %v4780
    %4815 = vmatprep.subr.bf16.mxu0 0
    %4816 = vmatpush1.bf16.msra.mxu0 %v4778
    %4817 = vmatprep.subr.bf16.mxu0 0
    %4818 = vmatpush2.bf16.msra.mxu0 0
    %4819 = vmatprep.subr.bf16.mxu0 0
    %4820 = vmatpush2.bf16.msra.mxu0 0
    %4821 = vmatprep.subr.bf16.mxu0 0
    %4822 = vmatpush2.bf16.msra.mxu0 0
    %4823 = vmatprep.subr.bf16.mxu0 0
    %4824 = vmatpush2.bf16.msra.mxu0 0
    %4825 = vmatprep.subr.bf16.mxu0 0
    %4826 = vmatpush2.bf16.msra.mxu0 0
    %4827 = vmatprep.subr.bf16.mxu0 0
    %4828 = vmatpush2.bf16.msra.mxu0 0
    %4829 = vmatprep.subr.bf16.mxu0 0
    %4830 = vmatpush2.bf16.msra.mxu0 0
    %4831 = vmatprep.subr.bf16.mxu0 0
    %4832 = vmatpush2.bf16.msra.mxu0 0
    %4833 = vmatprep.mubr.bf16.mxu0 0
    %4834 = vmatmul.mubr.bf16.gmra.mxu0 %v4769
    %v4835 = vpop.f32.mrf.mxu0
    %v4836 = vadd.f32 0.0, %v4835
    %v4837 = vpop.f32.mrf.mxu0
    %v4838 = vpop.f32.mrf.mxu0
    %v4839 = vadd.f32 0.0, %v4838
    %v4840 = vpop.f32.mrf.mxu0
    %4841 = vmatprep.mubr.bf16.mxu0 0
    %4842 = vmatmul.mubr.bf16.gmra.mxu0 %v4770
    %v4843 = vpop.f32.mrf.mxu0
    %v4844 = vadd.f32 0.0, %v4843
    %v4845 = vpop.f32.mrf.mxu0
    %v4846 = vpop.f32.mrf.mxu0
    %v4847 = vadd.f32 0.0, %v4846
    %v4848 = vpop.f32.mrf.mxu0
    %4849 = vmatprep.mubr.bf16.mxu0 0
    %4850 = vmatmul.mubr.bf16.gmra.mxu0 %v4771
    %v4851 = vpop.f32.mrf.mxu0
    %v4852 = vadd.f32 0.0, %v4851
    %v4853 = vpop.f32.mrf.mxu0
    %v4854 = vpop.f32.mrf.mxu0
    %v4855 = vadd.f32 0.0, %v4854
    %v4856 = vpop.f32.mrf.mxu0
    %4857 = vmatprep.mubr.bf16.mxu0 0
    %4858 = vmatmul.mubr.bf16.gmra.mxu0 %v4772
    %v4859 = vpop.f32.mrf.mxu0
    %v4860 = vadd.f32 0.0, %v4859
    %v4861 = vpop.f32.mrf.mxu0
    %v4862 = vpop.f32.mrf.mxu0
    %v4863 = vadd.f32 0.0, %v4862
    %v4864 = vpop.f32.mrf.mxu0
    %4865 = vmatprep.mubr.bf16.mxu0 0
    %4866 = vmatmul.mubr.bf16.gmra.mxu0 %v4773
    %v4867 = vpop.f32.mrf.mxu0
    %v4868 = vadd.f32 0.0, %v4867
    %v4869 = vpop.f32.mrf.mxu0
    %v4870 = vpop.f32.mrf.mxu0
    %v4871 = vadd.f32 0.0, %v4870
    %v4872 = vpop.f32.mrf.mxu0
    %4873 = vmatprep.mubr.bf16.mxu0 0
    %4874 = vmatmul.mubr.bf16.gmra.mxu0 %v4774
    %v4875 = vpop.f32.mrf.mxu0
    %v4876 = vadd.f32 0.0, %v4875
    %v4877 = vpop.f32.mrf.mxu0
    %v4878 = vpop.f32.mrf.mxu0
    %v4879 = vadd.f32 0.0, %v4878
    %v4880 = vpop.f32.mrf.mxu0
    %4881 = vmatprep.mubr.bf16.mxu0 0
    %4882 = vmatmul.mubr.bf16.gmra.mxu0 %v4775
    %v4883 = vpop.f32.mrf.mxu0
    %v4884 = vadd.f32 0.0, %v4883
    %v4885 = vpop.f32.mrf.mxu0
    %v4886 = vpop.f32.mrf.mxu0
    %v4887 = vadd.f32 0.0, %v4886
    %v4888 = vpop.f32.mrf.mxu0
    %4889 = vmatprep.mubr.bf16.mxu0 0
    %4890 = vmatmul.mubr.bf16.gmra.mxu0 %v4776
    %v4891 = vpop.f32.mrf.mxu0
    %v4892 = vadd.f32 0.0, %v4891
    %v4893 = vpop.f32.mrf.mxu0
    %v4894 = vpop.f32.mrf.mxu0
    %v4895 = vadd.f32 0.0, %v4894
    %v4896 = vpop.f32.mrf.mxu0
    %4897 = vdwg.mxu0
    %v4898 = vrcp.pop %v4738
    %v4899 = vrcp.pop %v4740
    %v4900 = vrcp.pop %v4742
    %v4901 = vrcp.pop %v4744
    %v4902 = vrcp.pop %v4746
    %v4903 = vrcp.pop %v4748
    %v4904 = vrcp.pop %v4750
    %v4905 = vrcp.pop %v4752
    %v4906 = vrcp.pop %v4754
    %v4907 = vrcp.pop %v4756
    %v4908 = vrcp.pop %v4758
    %v4909 = vrcp.pop %v4760
    %v4910 = vrcp.pop %v4762
    %v4911 = vrcp.pop %v4764
    %v4912 = vrcp.pop %v4766
    %v4913 = vrcp.pop %v4768
    %v4914 = vmul.f32 %v4836, %v4898
    %v4915 = vmul.f32 %v4839, %v4899
    %v4916 = vmul.f32 %v4844, %v4900
    %v4917 = vmul.f32 %v4847, %v4901
    %v4918 = vmul.f32 %v4852, %v4902
    %v4919 = vmul.f32 %v4855, %v4903
    %v4920 = vmul.f32 %v4860, %v4904
    %v4921 = vmul.f32 %v4863, %v4905
    %v4922 = vmul.f32 %v4868, %v4906
    %v4923 = vmul.f32 %v4871, %v4907
    %v4924 = vmul.f32 %v4876, %v4908
    %v4925 = vmul.f32 %v4879, %v4909
    %v4926 = vmul.f32 %v4884, %v4910
    %v4927 = vmul.f32 %v4887, %v4911
    %v4928 = vmul.f32 %v4892, %v4912
    %v4929 = vmul.f32 %v4895, %v4913
    %v4930 = vpack.c.bf16 %v4915, %v4914
    %v4931 = vpack.c.bf16 %v4917, %v4916
    %v4932 = vpack.c.bf16 %v4919, %v4918
    %v4933 = vpack.c.bf16 %v4921, %v4920
    %v4934 = vpack.c.bf16 %v4923, %v4922
    %v4935 = vpack.c.bf16 %v4925, %v4924
    %v4936 = vpack.c.bf16 %v4927, %v4926
    %v4937 = vpack.c.bf16 %v4929, %v4928
    %v4946 = vunpack.c.l.b16 %v4930
    %v4947 = vunpack.c.h.b16 %v4930
    %v4948 = vunpack.c.l.b16 %v4931
    %v4949 = vunpack.c.h.b16 %v4931
    %v4950 = vunpack.c.l.b16 %v4932
    %v4951 = vunpack.c.h.b16 %v4932
    %v4952 = vunpack.c.l.b16 %v4933
    %v4953 = vunpack.c.h.b16 %v4933
    %v4954 = vunpack.c.l.b16 %v4934
    %v4955 = vunpack.c.h.b16 %v4934
    %v4956 = vunpack.c.l.b16 %v4935
    %v4957 = vunpack.c.h.b16 %v4935
    %v4958 = vunpack.c.l.b16 %v4936
    %v4959 = vunpack.c.h.b16 %v4936
    %v4960 = vunpack.c.l.b16 %v4937
    %v4961 = vunpack.c.h.b16 %v4937
    %v4962 = vpack.c.b16 %v4946, %v4946
    %v4963 = vpack.c.b16 %v4947, %v4947
    %v4964 = vpack.c.b16 %v4948, %v4948
    %v4965 = vpack.c.b16 %v4949, %v4949
    %v4966 = vpack.c.b16 %v4950, %v4950
    %v4967 = vpack.c.b16 %v4951, %v4951
    %v4968 = vpack.c.b16 %v4952, %v4952
    %v4969 = vpack.c.b16 %v4953, %v4953
    %v4970 = vpack.c.b16 %v4954, %v4954
    %v4971 = vpack.c.b16 %v4955, %v4955
    %v4972 = vpack.c.b16 %v4956, %v4956
    %v4973 = vpack.c.b16 %v4957, %v4957
    %v4974 = vpack.c.b16 %v4958, %v4958
    %v4975 = vpack.c.b16 %v4959, %v4959
    %v4976 = vpack.c.b16 %v4960, %v4960
    %v4977 = vpack.c.b16 %v4961, %v4961
    %4978 = vrot.lane.b32.xlu0 %v4962, 64
    %v4979 = vpop.permute.xlu0 %4978
    %4980 = vrot.lane.b32.xlu0 %v4963, 64
    %v4981 = vpop.permute.xlu0 %4980
    %4982 = vrot.lane.b32.xlu0 %v4964, 64
    %v4983 = vpop.permute.xlu0 %4982
    %4984 = vrot.lane.b32.xlu0 %v4965, 64
    %v4985 = vpop.permute.xlu0 %4984
    %4986 = vrot.lane.b32.xlu0 %v4966, 64
    %v4987 = vpop.permute.xlu0 %4986
    %4988 = vrot.lane.b32.xlu0 %v4967, 64
    %v4989 = vpop.permute.xlu0 %4988
    %4990 = vrot.lane.b32.xlu0 %v4968, 64
    %v4991 = vpop.permute.xlu0 %4990
    %4992 = vrot.lane.b32.xlu0 %v4969, 64
    %v4993 = vpop.permute.xlu0 %4992
    %4994 = vrot.lane.b32.xlu0 %v4970, 64
    %v4995 = vpop.permute.xlu0 %4994
    %4996 = vrot.lane.b32.xlu0 %v4971, 64
    %v4997 = vpop.permute.xlu0 %4996
    %4998 = vrot.lane.b32.xlu0 %v4972, 64
    %v4999 = vpop.permute.xlu0 %4998
    %5000 = vrot.lane.b32.xlu0 %v4973, 64
    %v5001 = vpop.permute.xlu0 %5000
    %5002 = vrot.lane.b32.xlu0 %v4974, 64
    %v5003 = vpop.permute.xlu0 %5002
    %5004 = vrot.lane.b32.xlu0 %v4975, 64
    %v5005 = vpop.permute.xlu0 %5004
    %5006 = vrot.lane.b32.xlu0 %v4976, 64
    %v5007 = vpop.permute.xlu0 %5006
    %5008 = vrot.lane.b32.xlu0 %v4977, 64
    %v5009 = vpop.permute.xlu0 %5008
    %5026 = vst.msk [vmem:[#allocation2 + $0x40] sm:$0xf] %vm2776, %v4979
    %5027 = vst.msk [vmem:[#allocation2 + $0x44] sm:$0xf] %vm2776, %v4981
    %5028 = vst.msk [vmem:[#allocation2 + $0x48] sm:$0xf] %vm2776, %v4983
    %5029 = vst.msk [vmem:[#allocation2 + $0x4c] sm:$0xf] %vm2776, %v4985
    %5030 = vst.msk [vmem:[#allocation2 + $0x50] sm:$0xf] %vm2776, %v4987
    %5031 = vst.msk [vmem:[#allocation2 + $0x54] sm:$0xf] %vm2776, %v4989
    %5032 = vst.msk [vmem:[#allocation2 + $0x58] sm:$0xf] %vm2776, %v4991
    %5033 = vst.msk [vmem:[#allocation2 + $0x5c] sm:$0xf] %vm2776, %v4993
    %5034 = vst.msk [vmem:[#allocation2 + $0x60] sm:$0xf] %vm2776, %v4995
    %5035 = vst.msk [vmem:[#allocation2 + $0x64] sm:$0xf] %vm2776, %v4997
    %5036 = vst.msk [vmem:[#allocation2 + $0x68] sm:$0xf] %vm2776, %v4999
    %5037 = vst.msk [vmem:[#allocation2 + $0x6c] sm:$0xf] %vm2776, %v5001
    %5038 = vst.msk [vmem:[#allocation2 + $0x70] sm:$0xf] %vm2776, %v5003
    %5039 = vst.msk [vmem:[#allocation2 + $0x74] sm:$0xf] %vm2776, %v5005
    %5040 = vst.msk [vmem:[#allocation2 + $0x78] sm:$0xf] %vm2776, %v5007
    %5041 = vst.msk [vmem:[#allocation2 + $0x7c] sm:$0xf] %vm2776, %v5009
    %5042 = vrot.lane.b32.xlu0 %v1060, 32
    %v5043 = vpop.permute.xlu0 %5042
    %5044 = vrot.lane.b32.xlu0 %v1063, 32
    %v5045 = vpop.permute.xlu0 %5044
    %5046 = vrot.lane.b32.xlu0 %v1066, 32
    %v5047 = vpop.permute.xlu0 %5046
    %5048 = vrot.lane.b32.xlu0 %v1069, 32
    %v5049 = vpop.permute.xlu0 %5048
    %5050 = vrot.lane.b32.xlu0 %v1072, 32
    %v5051 = vpop.permute.xlu0 %5050
    %5052 = vrot.lane.b32.xlu0 %v1075, 32
    %v5053 = vpop.permute.xlu0 %5052
    %5054 = vrot.lane.b32.xlu0 %v1078, 32
    %v5055 = vpop.permute.xlu0 %5054
    %5056 = vrot.lane.b32.xlu0 %v1081, 32
    %v5057 = vpop.permute.xlu0 %5056
    %5058 = vrot.lane.b32.xlu0 %v1061, 32
    %v5059 = vpop.permute.xlu0 %5058
    %5060 = vrot.lane.b32.xlu0 %v1064, 32
    %v5061 = vpop.permute.xlu0 %5060
    %5062 = vrot.lane.b32.xlu0 %v1067, 32
    %v5063 = vpop.permute.xlu0 %5062
    %5064 = vrot.lane.b32.xlu0 %v1070, 32
    %v5065 = vpop.permute.xlu0 %5064
    %5066 = vrot.lane.b32.xlu0 %v1073, 32
    %v5067 = vpop.permute.xlu0 %5066
    %5068 = vrot.lane.b32.xlu0 %v1076, 32
    %v5069 = vpop.permute.xlu0 %5068
    %5070 = vrot.lane.b32.xlu0 %v1079, 32
    %v5071 = vpop.permute.xlu0 %5070
    %5072 = vrot.lane.b32.xlu0 %v1082, 32
    %v5073 = vpop.permute.xlu0 %5072
    %v5075 = vsel %vm1119, %v5043, 0
    %v5078 = vsel %vm1119, %v5045, 0
    %v5081 = vsel %vm1119, %v5047, 0
    %v5084 = vsel %vm1119, %v5049, 0
    %v5087 = vsel %vm1119, %v5051, 0
    %v5090 = vsel %vm1119, %v5053, 0
    %v5093 = vsel %vm1119, %v5055, 0
    %v5096 = vsel %vm1119, %v5057, 0
    %v5099 = vsel %vm1119, %v5059, 0
    %v5102 = vsel %vm1119, %v5061, 0
    %v5105 = vsel %vm1119, %v5063, 0
    %v5108 = vsel %vm1119, %v5065, 0
    %v5111 = vsel %vm1119, %v5067, 0
    %v5114 = vsel %vm1119, %v5069, 0
    %v5117 = vsel %vm1119, %v5071, 0
    %v5120 = vsel %vm1119, %v5073, 0
    %5122 = vmatprep.subr.bf16.mxu0 0
    %5123 = vmatpush1.bf16.xpose.msra.mxu0 %v5120
    %5124 = vmatprep.subr.bf16.mxu0 0
    %5125 = vmatpush1.bf16.xpose.msra.mxu0 %v5117
    %5126 = vmatprep.subr.bf16.mxu0 0
    %5127 = vmatpush1.bf16.xpose.msra.mxu0 %v5114
    %5128 = vmatprep.subr.bf16.mxu0 0
    %5129 = vmatpush1.bf16.xpose.msra.mxu0 %v5111
    %5130 = vmatprep.subr.bf16.mxu0 0
    %5131 = vmatpush1.bf16.xpose.msra.mxu0 %v5108
    %5132 = vmatprep.subr.bf16.mxu0 0
    %5133 = vmatpush1.bf16.xpose.msra.mxu0 %v5105
    %5134 = vmatprep.subr.bf16.mxu0 0
    %5135 = vmatpush1.bf16.xpose.msra.mxu0 %v5102
    %5136 = vmatprep.subr.bf16.mxu0 0
    %5137 = vmatpush1.bf16.xpose.msra.mxu0 %v5099
    %5138 = vmatprep.subr.bf16.mxu0 0
    %5139 = vmatpush2.bf16.xpose.msra.mxu0 0
    %5140 = vmatprep.subr.bf16.mxu0 0
    %5141 = vmatpush2.bf16.xpose.msra.mxu0 0
    %5142 = vmatprep.subr.bf16.mxu0 0
    %5143 = vmatpush2.bf16.xpose.msra.mxu0 0
    %5144 = vmatprep.subr.bf16.mxu0 0
    %5145 = vmatpush2.bf16.xpose.msra.mxu0 0
    %5146 = vmatprep.subr.bf16.mxu0 0
    %5147 = vmatpush2.bf16.xpose.msra.mxu0 0
    %5148 = vmatprep.subr.bf16.mxu0 0
    %5149 = vmatpush2.bf16.xpose.msra.mxu0 0
    %5150 = vmatprep.subr.bf16.mxu0 0
    %5151 = vmatpush2.bf16.xpose.msra.mxu0 0
    %5152 = vmatprep.subr.bf16.mxu0 0
    %5153 = vmatpush2.bf16.xpose.msra.mxu0 0
    %5154 = vmatprep.mubr.bf16.mxu0 0
    %5155 = vmatmul.mubr.bf16.gmra.mxu0 %v5075
    %v5156 = vpop.f32.mrf.mxu0
    %v5157 = vadd.f32 0.0, %v5156
    %v5158 = vpop.f32.mrf.mxu0
    %v5159 = vpop.f32.mrf.mxu0
    %v5160 = vadd.f32 0.0, %v5159
    %v5161 = vpop.f32.mrf.mxu0
    %5162 = vmatprep.mubr.bf16.mxu0 0
    %5163 = vmatmul.mubr.bf16.gmra.mxu0 %v5078
    %v5164 = vpop.f32.mrf.mxu0
    %v5165 = vadd.f32 0.0, %v5164
    %v5166 = vpop.f32.mrf.mxu0
    %v5167 = vpop.f32.mrf.mxu0
    %v5168 = vadd.f32 0.0, %v5167
    %v5169 = vpop.f32.mrf.mxu0
    %5170 = vmatprep.mubr.bf16.mxu0 0
    %5171 = vmatmul.mubr.bf16.gmra.mxu0 %v5081
    %v5172 = vpop.f32.mrf.mxu0
    %v5173 = vadd.f32 0.0, %v5172
    %v5174 = vpop.f32.mrf.mxu0
    %v5175 = vpop.f32.mrf.mxu0
    %v5176 = vadd.f32 0.0, %v5175
    %v5177 = vpop.f32.mrf.mxu0
    %5178 = vmatprep.mubr.bf16.mxu0 0
    %5179 = vmatmul.mubr.bf16.gmra.mxu0 %v5084
    %v5180 = vpop.f32.mrf.mxu0
    %v5181 = vadd.f32 0.0, %v5180
    %v5182 = vpop.f32.mrf.mxu0
    %v5183 = vpop.f32.mrf.mxu0
    %v5184 = vadd.f32 0.0, %v5183
    %v5185 = vpop.f32.mrf.mxu0
    %5186 = vmatprep.mubr.bf16.mxu0 0
    %5187 = vmatmul.mubr.bf16.gmra.mxu0 %v5087
    %v5188 = vpop.f32.mrf.mxu0
    %v5189 = vadd.f32 0.0, %v5188
    %v5190 = vpop.f32.mrf.mxu0
    %v5191 = vpop.f32.mrf.mxu0
    %v5192 = vadd.f32 0.0, %v5191
    %v5193 = vpop.f32.mrf.mxu0
    %5194 = vmatprep.mubr.bf16.mxu0 0
    %5195 = vmatmul.mubr.bf16.gmra.mxu0 %v5090
    %v5196 = vpop.f32.mrf.mxu0
    %v5197 = vadd.f32 0.0, %v5196
    %v5198 = vpop.f32.mrf.mxu0
    %v5199 = vpop.f32.mrf.mxu0
    %v5200 = vadd.f32 0.0, %v5199
    %v5201 = vpop.f32.mrf.mxu0
    %5202 = vmatprep.mubr.bf16.mxu0 0
    %5203 = vmatmul.mubr.bf16.gmra.mxu0 %v5093
    %v5204 = vpop.f32.mrf.mxu0
    %v5205 = vadd.f32 0.0, %v5204
    %v5206 = vpop.f32.mrf.mxu0
    %v5207 = vpop.f32.mrf.mxu0
    %v5208 = vadd.f32 0.0, %v5207
    %v5209 = vpop.f32.mrf.mxu0
    %5210 = vmatprep.mubr.bf16.mxu0 0
    %5211 = vmatmul.mubr.bf16.gmra.mxu0 %v5096
    %v5212 = vpop.f32.mrf.mxu0
    %v5213 = vadd.f32 0.0, %v5212
    %v5214 = vpop.f32.mrf.mxu0
    %v5215 = vpop.f32.mrf.mxu0
    %v5216 = vadd.f32 0.0, %v5215
    %v5217 = vpop.f32.mrf.mxu0
    %5218 = vdwg.mxu0
    %v5219 = vsel %vm1103, %v5157, -1e+30
    %v5220 = vsel %vm1104, %v5160, -1e+30
    %v5221 = vsel %vm1105, %v5165, -1e+30
    %v5222 = vsel %vm1106, %v5168, -1e+30
    %v5223 = vsel %vm1107, %v5173, -1e+30
    %v5224 = vsel %vm1108, %v5176, -1e+30
    %v5225 = vsel %vm1109, %v5181, -1e+30
    %v5226 = vsel %vm1110, %v5184, -1e+30
    %v5227 = vsel %vm1111, %v5189, -1e+30
    %v5228 = vsel %vm1112, %v5192, -1e+30
    %v5229 = vsel %vm1113, %v5197, -1e+30
    %v5230 = vsel %vm1114, %v5200, -1e+30
    %v5231 = vsel %vm1115, %v5205, -1e+30
    %v5232 = vsel %vm1116, %v5208, -1e+30
    %v5233 = vsel %vm1117, %v5213, -1e+30
    %v5234 = vsel %vm1118, %v5216, -1e+30
    %5235 = vmax.xlane.f32.xlu0 %v5219
    %v5236 = vpop.xlane.xlu0 %5235
    %5237 = vmax.xlane.f32.xlu0 %v5220
    %v5238 = vpop.xlane.xlu0 %5237
    %5239 = vmax.xlane.f32.xlu0 %v5221
    %v5240 = vpop.xlane.xlu0 %5239
    %5241 = vmax.xlane.f32.xlu0 %v5222
    %v5242 = vpop.xlane.xlu0 %5241
    %5243 = vmax.xlane.f32.xlu0 %v5223
    %v5244 = vpop.xlane.xlu0 %5243
    %5245 = vmax.xlane.f32.xlu0 %v5224
    %v5246 = vpop.xlane.xlu0 %5245
    %5247 = vmax.xlane.f32.xlu0 %v5225
    %v5248 = vpop.xlane.xlu0 %5247
    %5249 = vmax.xlane.f32.xlu0 %v5226
    %v5250 = vpop.xlane.xlu0 %5249
    %5251 = vmax.xlane.f32.xlu0 %v5227
    %v5252 = vpop.xlane.xlu0 %5251
    %5253 = vmax.xlane.f32.xlu0 %v5228
    %v5254 = vpop.xlane.xlu0 %5253
    %5255 = vmax.xlane.f32.xlu0 %v5229
    %v5256 = vpop.xlane.xlu0 %5255
    %5257 = vmax.xlane.f32.xlu0 %v5230
    %v5258 = vpop.xlane.xlu0 %5257
    %5259 = vmax.xlane.f32.xlu0 %v5231
    %v5260 = vpop.xlane.xlu0 %5259
    %5261 = vmax.xlane.f32.xlu0 %v5232
    %v5262 = vpop.xlane.xlu0 %5261
    %5263 = vmax.xlane.f32.xlu0 %v5233
    %v5264 = vpop.xlane.xlu0 %5263
    %5265 = vmax.xlane.f32.xlu0 %v5234
    %v5266 = vpop.xlane.xlu0 %5265
    %v5267 = vsub.f32 %v5219, %v5236
    %v5268 = vsub.f32 %v5220, %v5238
    %v5269 = vsub.f32 %v5221, %v5240
    %v5270 = vsub.f32 %v5222, %v5242
    %v5271 = vsub.f32 %v5223, %v5244
    %v5272 = vsub.f32 %v5224, %v5246
    %v5273 = vsub.f32 %v5225, %v5248
    %v5274 = vsub.f32 %v5226, %v5250
    %v5275 = vsub.f32 %v5227, %v5252
    %v5276 = vsub.f32 %v5228, %v5254
    %v5277 = vsub.f32 %v5229, %v5256
    %v5278 = vsub.f32 %v5230, %v5258
    %v5279 = vsub.f32 %v5231, %v5260
    %v5280 = vsub.f32 %v5232, %v5262
    %v5281 = vsub.f32 %v5233, %v5264
    %v5282 = vsub.f32 %v5234, %v5266
    %v5283 = vmul.f32 %v5267, 1.442695
    %v5284 = vpow.pop %v5283
    %v5285 = vmul.f32 %v5268, 1.442695
    %v5286 = vpow.pop %v5285
    %v5287 = vmul.f32 %v5269, 1.442695
    %v5288 = vpow.pop %v5287
    %v5289 = vmul.f32 %v5270, 1.442695
    %v5290 = vpow.pop %v5289
    %v5291 = vmul.f32 %v5271, 1.442695
    %v5292 = vpow.pop %v5291
    %v5293 = vmul.f32 %v5272, 1.442695
    %v5294 = vpow.pop %v5293
    %v5295 = vmul.f32 %v5273, 1.442695
    %v5296 = vpow.pop %v5295
    %v5297 = vmul.f32 %v5274, 1.442695
    %v5298 = vpow.pop %v5297
    %v5299 = vmul.f32 %v5275, 1.442695
    %v5300 = vpow.pop %v5299
    %v5301 = vmul.f32 %v5276, 1.442695
    %v5302 = vpow.pop %v5301
    %v5303 = vmul.f32 %v5277, 1.442695
    %v5304 = vpow.pop %v5303
    %v5305 = vmul.f32 %v5278, 1.442695
    %v5306 = vpow.pop %v5305
    %v5307 = vmul.f32 %v5279, 1.442695
    %v5308 = vpow.pop %v5307
    %v5309 = vmul.f32 %v5280, 1.442695
    %v5310 = vpow.pop %v5309
    %v5311 = vmul.f32 %v5281, 1.442695
    %v5312 = vpow.pop %v5311
    %v5313 = vmul.f32 %v5282, 1.442695
    %v5314 = vpow.pop %v5313
    %5315 = vadd.xlane.f32.xlu0 %v5284
    %v5316 = vpop.xlane.xlu0 %5315
    %5317 = vadd.xlane.f32.xlu0 %v5286
    %v5318 = vpop.xlane.xlu0 %5317
    %5319 = vadd.xlane.f32.xlu0 %v5288
    %v5320 = vpop.xlane.xlu0 %5319
    %5321 = vadd.xlane.f32.xlu0 %v5290
    %v5322 = vpop.xlane.xlu0 %5321
    %5323 = vadd.xlane.f32.xlu0 %v5292
    %v5324 = vpop.xlane.xlu0 %5323
    %5325 = vadd.xlane.f32.xlu0 %v5294
    %v5326 = vpop.xlane.xlu0 %5325
    %5327 = vadd.xlane.f32.xlu0 %v5296
    %v5328 = vpop.xlane.xlu0 %5327
    %5329 = vadd.xlane.f32.xlu0 %v5298
    %v5330 = vpop.xlane.xlu0 %5329
    %5331 = vadd.xlane.f32.xlu0 %v5300
    %v5332 = vpop.xlane.xlu0 %5331
    %5333 = vadd.xlane.f32.xlu0 %v5302
    %v5334 = vpop.xlane.xlu0 %5333
    %5335 = vadd.xlane.f32.xlu0 %v5304
    %v5336 = vpop.xlane.xlu0 %5335
    %5337 = vadd.xlane.f32.xlu0 %v5306
    %v5338 = vpop.xlane.xlu0 %5337
    %5339 = vadd.xlane.f32.xlu0 %v5308
    %v5340 = vpop.xlane.xlu0 %5339
    %5341 = vadd.xlane.f32.xlu0 %v5310
    %v5342 = vpop.xlane.xlu0 %5341
    %5343 = vadd.xlane.f32.xlu0 %v5312
    %v5344 = vpop.xlane.xlu0 %5343
    %5345 = vadd.xlane.f32.xlu0 %v5314
    %v5346 = vpop.xlane.xlu0 %5345
    %v5347 = vpack.c.bf16 %v5286, %v5284
    %v5348 = vpack.c.bf16 %v5290, %v5288
    %v5349 = vpack.c.bf16 %v5294, %v5292
    %v5350 = vpack.c.bf16 %v5298, %v5296
    %v5351 = vpack.c.bf16 %v5302, %v5300
    %v5352 = vpack.c.bf16 %v5306, %v5304
    %v5353 = vpack.c.bf16 %v5310, %v5308
    %v5354 = vpack.c.bf16 %v5314, %v5312
    %5355 = vrot.lane.b32.xlu0 %v1062, 32
    %v5356 = vpop.permute.xlu0 %5355
    %5357 = vrot.lane.b32.xlu0 %v1065, 32
    %v5358 = vpop.permute.xlu0 %5357
    %5359 = vrot.lane.b32.xlu0 %v1068, 32
    %v5360 = vpop.permute.xlu0 %5359
    %5361 = vrot.lane.b32.xlu0 %v1071, 32
    %v5362 = vpop.permute.xlu0 %5361
    %5363 = vrot.lane.b32.xlu0 %v1074, 32
    %v5364 = vpop.permute.xlu0 %5363
    %5365 = vrot.lane.b32.xlu0 %v1077, 32
    %v5366 = vpop.permute.xlu0 %5365
    %5367 = vrot.lane.b32.xlu0 %v1080, 32
    %v5368 = vpop.permute.xlu0 %5367
    %5369 = vrot.lane.b32.xlu0 %v1083, 32
    %v5370 = vpop.permute.xlu0 %5369
    %5379 = vmatprep.subr.bf16.mxu0 0
    %5380 = vmatpush1.bf16.msra.mxu0 %v5370
    %5381 = vmatprep.subr.bf16.mxu0 0
    %5382 = vmatpush1.bf16.msra.mxu0 %v5368
    %5383 = vmatprep.subr.bf16.mxu0 0
    %5384 = vmatpush1.bf16.msra.mxu0 %v5366
    %5385 = vmatprep.subr.bf16.mxu0 0
    %5386 = vmatpush1.bf16.msra.mxu0 %v5364
    %5387 = vmatprep.subr.bf16.mxu0 0
    %5388 = vmatpush1.bf16.msra.mxu0 %v5362
    %5389 = vmatprep.subr.bf16.mxu0 0
    %5390 = vmatpush1.bf16.msra.mxu0 %v5360
    %5391 = vmatprep.subr.bf16.mxu0 0
    %5392 = vmatpush1.bf16.msra.mxu0 %v5358
    %5393 = vmatprep.subr.bf16.mxu0 0
    %5394 = vmatpush1.bf16.msra.mxu0 %v5356
    %5395 = vmatprep.subr.bf16.mxu0 0
    %5396 = vmatpush2.bf16.msra.mxu0 0
    %5397 = vmatprep.subr.bf16.mxu0 0
    %5398 = vmatpush2.bf16.msra.mxu0 0
    %5399 = vmatprep.subr.bf16.mxu0 0
    %5400 = vmatpush2.bf16.msra.mxu0 0
    %5401 = vmatprep.subr.bf16.mxu0 0
    %5402 = vmatpush2.bf16.msra.mxu0 0
    %5403 = vmatprep.subr.bf16.mxu0 0
    %5404 = vmatpush2.bf16.msra.mxu0 0
    %5405 = vmatprep.subr.bf16.mxu0 0
    %5406 = vmatpush2.bf16.msra.mxu0 0
    %5407 = vmatprep.subr.bf16.mxu0 0
    %5408 = vmatpush2.bf16.msra.mxu0 0
    %5409 = vmatprep.subr.bf16.mxu0 0
    %5410 = vmatpush2.bf16.msra.mxu0 0
    %5411 = vmatprep.mubr.bf16.mxu0 0
    %5412 = vmatmul.mubr.bf16.gmra.mxu0 %v5347
    %v5413 = vpop.f32.mrf.mxu0
    %v5414 = vadd.f32 0.0, %v5413
    %v5415 = vpop.f32.mrf.mxu0
    %v5416 = vpop.f32.mrf.mxu0
    %v5417 = vadd.f32 0.0, %v5416
    %v5418 = vpop.f32.mrf.mxu0
    %5419 = vmatprep.mubr.bf16.mxu0 0
    %5420 = vmatmul.mubr.bf16.gmra.mxu0 %v5348
    %v5421 = vpop.f32.mrf.mxu0
    %v5422 = vadd.f32 0.0, %v5421
    %v5423 = vpop.f32.mrf.mxu0
    %v5424 = vpop.f32.mrf.mxu0
    %v5425 = vadd.f32 0.0, %v5424
    %v5426 = vpop.f32.mrf.mxu0
    %5427 = vmatprep.mubr.bf16.mxu0 0
    %5428 = vmatmul.mubr.bf16.gmra.mxu0 %v5349
    %v5429 = vpop.f32.mrf.mxu0
    %v5430 = vadd.f32 0.0, %v5429
    %v5431 = vpop.f32.mrf.mxu0
    %v5432 = vpop.f32.mrf.mxu0
    %v5433 = vadd.f32 0.0, %v5432
    %v5434 = vpop.f32.mrf.mxu0
    %5435 = vmatprep.mubr.bf16.mxu0 0
    %5436 = vmatmul.mubr.bf16.gmra.mxu0 %v5350
    %v5437 = vpop.f32.mrf.mxu0
    %v5438 = vadd.f32 0.0, %v5437
    %v5439 = vpop.f32.mrf.mxu0
    %v5440 = vpop.f32.mrf.mxu0
    %v5441 = vadd.f32 0.0, %v5440
    %v5442 = vpop.f32.mrf.mxu0
    %5443 = vmatprep.mubr.bf16.mxu0 0
    %5444 = vmatmul.mubr.bf16.gmra.mxu0 %v5351
    %v5445 = vpop.f32.mrf.mxu0
    %v5446 = vadd.f32 0.0, %v5445
    %v5447 = vpop.f32.mrf.mxu0
    %v5448 = vpop.f32.mrf.mxu0
    %v5449 = vadd.f32 0.0, %v5448
    %v5450 = vpop.f32.mrf.mxu0
    %5451 = vmatprep.mubr.bf16.mxu0 0
    %5452 = vmatmul.mubr.bf16.gmra.mxu0 %v5352
    %v5453 = vpop.f32.mrf.mxu0
    %v5454 = vadd.f32 0.0, %v5453
    %v5455 = vpop.f32.mrf.mxu0
    %v5456 = vpop.f32.mrf.mxu0
    %v5457 = vadd.f32 0.0, %v5456
    %v5458 = vpop.f32.mrf.mxu0
    %5459 = vmatprep.mubr.bf16.mxu0 0
    %5460 = vmatmul.mubr.bf16.gmra.mxu0 %v5353
    %v5461 = vpop.f32.mrf.mxu0
    %v5462 = vadd.f32 0.0, %v5461
    %v5463 = vpop.f32.mrf.mxu0
    %v5464 = vpop.f32.mrf.mxu0
    %v5465 = vadd.f32 0.0, %v5464
    %v5466 = vpop.f32.mrf.mxu0
    %5467 = vmatprep.mubr.bf16.mxu0 0
    %5468 = vmatmul.mubr.bf16.gmra.mxu0 %v5354
    %v5469 = vpop.f32.mrf.mxu0
    %v5470 = vadd.f32 0.0, %v5469
    %v5471 = vpop.f32.mrf.mxu0
    %v5472 = vpop.f32.mrf.mxu0
    %v5473 = vadd.f32 0.0, %v5472
    %v5474 = vpop.f32.mrf.mxu0
    %5475 = vdwg.mxu0
    %v5476 = vrcp.pop %v5316
    %v5477 = vrcp.pop %v5318
    %v5478 = vrcp.pop %v5320
    %v5479 = vrcp.pop %v5322
    %v5480 = vrcp.pop %v5324
    %v5481 = vrcp.pop %v5326
    %v5482 = vrcp.pop %v5328
    %v5483 = vrcp.pop %v5330
    %v5484 = vrcp.pop %v5332
    %v5485 = vrcp.pop %v5334
    %v5486 = vrcp.pop %v5336
    %v5487 = vrcp.pop %v5338
    %v5488 = vrcp.pop %v5340
    %v5489 = vrcp.pop %v5342
    %v5490 = vrcp.pop %v5344
    %v5491 = vrcp.pop %v5346
    %v5492 = vmul.f32 %v5414, %v5476
    %v5493 = vmul.f32 %v5417, %v5477
    %v5494 = vmul.f32 %v5422, %v5478
    %v5495 = vmul.f32 %v5425, %v5479
    %v5496 = vmul.f32 %v5430, %v5480
    %v5497 = vmul.f32 %v5433, %v5481
    %v5498 = vmul.f32 %v5438, %v5482
    %v5499 = vmul.f32 %v5441, %v5483
    %v5500 = vmul.f32 %v5446, %v5484
    %v5501 = vmul.f32 %v5449, %v5485
    %v5502 = vmul.f32 %v5454, %v5486
    %v5503 = vmul.f32 %v5457, %v5487
    %v5504 = vmul.f32 %v5462, %v5488
    %v5505 = vmul.f32 %v5465, %v5489
    %v5506 = vmul.f32 %v5470, %v5490
    %v5507 = vmul.f32 %v5473, %v5491
    %v5508 = vpack.c.bf16 %v5493, %v5492
    %v5509 = vpack.c.bf16 %v5495, %v5494
    %v5510 = vpack.c.bf16 %v5497, %v5496
    %v5511 = vpack.c.bf16 %v5499, %v5498
    %v5512 = vpack.c.bf16 %v5501, %v5500
    %v5513 = vpack.c.bf16 %v5503, %v5502
    %v5514 = vpack.c.bf16 %v5505, %v5504
    %v5515 = vpack.c.bf16 %v5507, %v5506
    %v5524 = vunpack.c.l.b16 %v5508
    %v5525 = vunpack.c.h.b16 %v5508
    %v5526 = vunpack.c.l.b16 %v5509
    %v5527 = vunpack.c.h.b16 %v5509
    %v5528 = vunpack.c.l.b16 %v5510
    %v5529 = vunpack.c.h.b16 %v5510
    %v5530 = vunpack.c.l.b16 %v5511
    %v5531 = vunpack.c.h.b16 %v5511
    %v5532 = vunpack.c.l.b16 %v5512
    %v5533 = vunpack.c.h.b16 %v5512
    %v5534 = vunpack.c.l.b16 %v5513
    %v5535 = vunpack.c.h.b16 %v5513
    %v5536 = vunpack.c.l.b16 %v5514
    %v5537 = vunpack.c.h.b16 %v5514
    %v5538 = vunpack.c.l.b16 %v5515
    %v5539 = vunpack.c.h.b16 %v5515
    %v5540 = vpack.c.b16 %v5524, %v5524
    %v5541 = vpack.c.b16 %v5525, %v5525
    %v5542 = vpack.c.b16 %v5526, %v5526
    %v5543 = vpack.c.b16 %v5527, %v5527
    %v5544 = vpack.c.b16 %v5528, %v5528
    %v5545 = vpack.c.b16 %v5529, %v5529
    %v5546 = vpack.c.b16 %v5530, %v5530
    %v5547 = vpack.c.b16 %v5531, %v5531
    %v5548 = vpack.c.b16 %v5532, %v5532
    %v5549 = vpack.c.b16 %v5533, %v5533
    %v5550 = vpack.c.b16 %v5534, %v5534
    %v5551 = vpack.c.b16 %v5535, %v5535
    %v5552 = vpack.c.b16 %v5536, %v5536
    %v5553 = vpack.c.b16 %v5537, %v5537
    %v5554 = vpack.c.b16 %v5538, %v5538
    %v5555 = vpack.c.b16 %v5539, %v5539
    %5556 = vrot.lane.b32.xlu0 %v5540, 96
    %v5557 = vpop.permute.xlu0 %5556
    %5558 = vrot.lane.b32.xlu0 %v5541, 96
    %v5559 = vpop.permute.xlu0 %5558
    %5560 = vrot.lane.b32.xlu0 %v5542, 96
    %v5561 = vpop.permute.xlu0 %5560
    %5562 = vrot.lane.b32.xlu0 %v5543, 96
    %v5563 = vpop.permute.xlu0 %5562
    %5564 = vrot.lane.b32.xlu0 %v5544, 96
    %v5565 = vpop.permute.xlu0 %5564
    %5566 = vrot.lane.b32.xlu0 %v5545, 96
    %v5567 = vpop.permute.xlu0 %5566
    %5568 = vrot.lane.b32.xlu0 %v5546, 96
    %v5569 = vpop.permute.xlu0 %5568
    %5570 = vrot.lane.b32.xlu0 %v5547, 96
    %v5571 = vpop.permute.xlu0 %5570
    %5572 = vrot.lane.b32.xlu0 %v5548, 96
    %v5573 = vpop.permute.xlu0 %5572
    %5574 = vrot.lane.b32.xlu0 %v5549, 96
    %v5575 = vpop.permute.xlu0 %5574
    %5576 = vrot.lane.b32.xlu0 %v5550, 96
    %v5577 = vpop.permute.xlu0 %5576
    %5578 = vrot.lane.b32.xlu0 %v5551, 96
    %v5579 = vpop.permute.xlu0 %5578
    %5580 = vrot.lane.b32.xlu0 %v5552, 96
    %v5581 = vpop.permute.xlu0 %5580
    %5582 = vrot.lane.b32.xlu0 %v5553, 96
    %v5583 = vpop.permute.xlu0 %5582
    %5584 = vrot.lane.b32.xlu0 %v5554, 96
    %v5585 = vpop.permute.xlu0 %5584
    %5586 = vrot.lane.b32.xlu0 %v5555, 96
    %v5587 = vpop.permute.xlu0 %5586
    %5604 = vst.msk [vmem:[#allocation2 + $0x40] sm:$0xf] %vm3355, %v5557
    %5605 = vst.msk [vmem:[#allocation2 + $0x44] sm:$0xf] %vm3355, %v5559
    %5606 = vst.msk [vmem:[#allocation2 + $0x48] sm:$0xf] %vm3355, %v5561
    %5607 = vst.msk [vmem:[#allocation2 + $0x4c] sm:$0xf] %vm3355, %v5563
    %5608 = vst.msk [vmem:[#allocation2 + $0x50] sm:$0xf] %vm3355, %v5565
    %5609 = vst.msk [vmem:[#allocation2 + $0x54] sm:$0xf] %vm3355, %v5567
    %5610 = vst.msk [vmem:[#allocation2 + $0x58] sm:$0xf] %vm3355, %v5569
    %5611 = vst.msk [vmem:[#allocation2 + $0x5c] sm:$0xf] %vm3355, %v5571
    %5612 = vst.msk [vmem:[#allocation2 + $0x60] sm:$0xf] %vm3355, %v5573
    %5613 = vst.msk [vmem:[#allocation2 + $0x64] sm:$0xf] %vm3355, %v5575
    %5614 = vst.msk [vmem:[#allocation2 + $0x68] sm:$0xf] %vm3355, %v5577
    %5615 = vst.msk [vmem:[#allocation2 + $0x6c] sm:$0xf] %vm3355, %v5579
    %5616 = vst.msk [vmem:[#allocation2 + $0x70] sm:$0xf] %vm3355, %v5581
    %5617 = vst.msk [vmem:[#allocation2 + $0x74] sm:$0xf] %vm3355, %v5583
    %5618 = vst.msk [vmem:[#allocation2 + $0x78] sm:$0xf] %vm3355, %v5585
    %5619 = vst.msk [vmem:[#allocation2 + $0x7c] sm:$0xf] %vm3355, %v5587
    %v5620 = vld [vmem:[#allocation2] sm:$0xf]
    %v5621 = vld [vmem:[#allocation2 + $0x4] sm:$0xf]
    %v5622 = vld [vmem:[#allocation2 + $0x8] sm:$0xf]
    %v5623 = vld [vmem:[#allocation2 + $0xc] sm:$0xf]
    %v5624 = vld [vmem:[#allocation2 + $0x10] sm:$0xf]
    %v5625 = vld [vmem:[#allocation2 + $0x14] sm:$0xf]
    %v5626 = vld [vmem:[#allocation2 + $0x18] sm:$0xf]
    %v5627 = vld [vmem:[#allocation2 + $0x1c] sm:$0xf]
    %v5628 = vld [vmem:[#allocation2 + $0x20] sm:$0xf]
    %v5629 = vld [vmem:[#allocation2 + $0x24] sm:$0xf]
    %v5630 = vld [vmem:[#allocation2 + $0x28] sm:$0xf]
    %v5631 = vld [vmem:[#allocation2 + $0x2c] sm:$0xf]
    %v5632 = vld [vmem:[#allocation2 + $0x30] sm:$0xf]
    %v5633 = vld [vmem:[#allocation2 + $0x34] sm:$0xf]
    %v5634 = vld [vmem:[#allocation2 + $0x38] sm:$0xf]
    %v5635 = vld [vmem:[#allocation2 + $0x3c] sm:$0xf]
    %v5636 = vld [vmem:[#allocation2 + $0x40] sm:$0xf]
    %v5637 = vld [vmem:[#allocation2 + $0x44] sm:$0xf]
    %v5638 = vld [vmem:[#allocation2 + $0x48] sm:$0xf]
    %v5639 = vld [vmem:[#allocation2 + $0x4c] sm:$0xf]
    %v5640 = vld [vmem:[#allocation2 + $0x50] sm:$0xf]
    %v5641 = vld [vmem:[#allocation2 + $0x54] sm:$0xf]
    %v5642 = vld [vmem:[#allocation2 + $0x58] sm:$0xf]
    %v5643 = vld [vmem:[#allocation2 + $0x5c] sm:$0xf]
    %v5644 = vld [vmem:[#allocation2 + $0x60] sm:$0xf]
    %v5645 = vld [vmem:[#allocation2 + $0x64] sm:$0xf]
    %v5646 = vld [vmem:[#allocation2 + $0x68] sm:$0xf]
    %v5647 = vld [vmem:[#allocation2 + $0x6c] sm:$0xf]
    %v5648 = vld [vmem:[#allocation2 + $0x70] sm:$0xf]
    %v5649 = vld [vmem:[#allocation2 + $0x74] sm:$0xf]
    %v5650 = vld [vmem:[#allocation2 + $0x78] sm:$0xf]
    %v5651 = vld [vmem:[#allocation2 + $0x7c] sm:$0xf]
    %v5652 = vld [vmem:[%s4] sm:$0xf]
    %v5653 = vld [vmem:[%s4 + $0x4] sm:$0xf]
    %v5654 = vld [vmem:[%s4 + $0x8] sm:$0xf]
    %v5655 = vld [vmem:[%s4 + $0xc] sm:$0xf]
    %v5656 = vld [vmem:[%s4 + $0x10] sm:$0xf]
    %v5657 = vld [vmem:[%s4 + $0x14] sm:$0xf]
    %v5658 = vld [vmem:[%s4 + $0x18] sm:$0xf]
    %v5659 = vld [vmem:[%s4 + $0x1c] sm:$0xf]
    %v5660 = vld [vmem:[%s4 + $0x20] sm:$0xf]
    %v5661 = vld [vmem:[%s4 + $0x24] sm:$0xf]
    %v5662 = vld [vmem:[%s4 + $0x28] sm:$0xf]
    %v5663 = vld [vmem:[%s4 + $0x2c] sm:$0xf]
    %v5664 = vld [vmem:[%s4 + $0x30] sm:$0xf]
    %v5665 = vld [vmem:[%s4 + $0x34] sm:$0xf]
    %v5666 = vld [vmem:[%s4 + $0x38] sm:$0xf]
    %v5667 = vld [vmem:[%s4 + $0x3c] sm:$0xf]
    %v5700 = vunpack.c.l.b16 %v5620
    %v5701 = vunpack.c.l.b16 %v5621
    %v5702 = vunpack.c.l.b16 %v5622
    %v5703 = vunpack.c.l.b16 %v5623
    %v5704 = vunpack.c.l.b16 %v5624
    %v5705 = vunpack.c.l.b16 %v5625
    %v5706 = vunpack.c.l.b16 %v5626
    %v5707 = vunpack.c.l.b16 %v5627
    %v5708 = vunpack.c.l.b16 %v5628
    %v5709 = vunpack.c.l.b16 %v5629
    %v5710 = vunpack.c.l.b16 %v5630
    %v5711 = vunpack.c.l.b16 %v5631
    %v5712 = vunpack.c.l.b16 %v5632
    %v5713 = vunpack.c.l.b16 %v5633
    %v5714 = vunpack.c.l.b16 %v5634
    %v5715 = vunpack.c.l.b16 %v5635
    %v5716 = vunpack.c.l.b16 %v5636
    %v5717 = vunpack.c.l.b16 %v5637
    %v5718 = vunpack.c.l.b16 %v5638
    %v5719 = vunpack.c.l.b16 %v5639
    %v5720 = vunpack.c.l.b16 %v5640
    %v5721 = vunpack.c.l.b16 %v5641
    %v5722 = vunpack.c.l.b16 %v5642
    %v5723 = vunpack.c.l.b16 %v5643
    %v5724 = vunpack.c.l.b16 %v5644
    %v5725 = vunpack.c.l.b16 %v5645
    %v5726 = vunpack.c.l.b16 %v5646
    %v5727 = vunpack.c.l.b16 %v5647
    %v5728 = vunpack.c.l.b16 %v5648
    %v5729 = vunpack.c.l.b16 %v5649
    %v5730 = vunpack.c.l.b16 %v5650
    %v5731 = vunpack.c.l.b16 %v5651
    %v5732 = vpack.c.b16 %v5701, %v5700
    %v5733 = vpack.c.b16 %v5703, %v5702
    %v5734 = vpack.c.b16 %v5705, %v5704
    %v5735 = vpack.c.b16 %v5707, %v5706
    %v5736 = vpack.c.b16 %v5709, %v5708
    %v5737 = vpack.c.b16 %v5711, %v5710
    %v5738 = vpack.c.b16 %v5713, %v5712
    %v5739 = vpack.c.b16 %v5715, %v5714
    %v5740 = vpack.c.b16 %v5717, %v5716
    %v5741 = vpack.c.b16 %v5719, %v5718
    %v5742 = vpack.c.b16 %v5721, %v5720
    %v5743 = vpack.c.b16 %v5723, %v5722
    %v5744 = vpack.c.b16 %v5725, %v5724
    %v5745 = vpack.c.b16 %v5727, %v5726
    %v5746 = vpack.c.b16 %v5729, %v5728
    %v5747 = vpack.c.b16 %v5731, %v5730
    %v5780 = vunpack.c.l.b16 %v5652
    %v5781 = vunpack.c.l.b16 %v5653
    %v5782 = vunpack.c.l.b16 %v5654
    %v5783 = vunpack.c.l.b16 %v5655
    %v5784 = vunpack.c.l.b16 %v5656
    %v5785 = vunpack.c.l.b16 %v5657
    %v5786 = vunpack.c.l.b16 %v5658
    %v5787 = vunpack.c.l.b16 %v5659
    %v5788 = vunpack.c.l.b16 %v5660
    %v5789 = vunpack.c.l.b16 %v5661
    %v5790 = vunpack.c.l.b16 %v5662
    %v5791 = vunpack.c.l.b16 %v5663
    %v5792 = vunpack.c.l.b16 %v5664
    %v5793 = vunpack.c.l.b16 %v5665
    %v5794 = vunpack.c.l.b16 %v5666
    %v5795 = vunpack.c.l.b16 %v5667
    %v5796 = vpack.c.b16 %v5781, %v5780
    %v5797 = vpack.c.b16 %v5783, %v5782
    %v5798 = vpack.c.b16 %v5785, %v5784
    %v5799 = vpack.c.b16 %v5787, %v5786
    %v5800 = vpack.c.b16 %v5789, %v5788
    %v5801 = vpack.c.b16 %v5791, %v5790
    %v5802 = vpack.c.b16 %v5793, %v5792
    %v5803 = vpack.c.b16 %v5795, %v5794
    %5812 = vmatprep.subr.bf16.mxu0 0
    %5813 = vmatpush1.bf16.msra.mxu0 %v5803
    %5814 = vmatprep.subr.bf16.mxu0 0
    %5815 = vmatpush1.bf16.msra.mxu0 %v5802
    %5816 = vmatprep.subr.bf16.mxu0 0
    %5817 = vmatpush1.bf16.msra.mxu0 %v5801
    %5818 = vmatprep.subr.bf16.mxu0 0
    %5819 = vmatpush1.bf16.msra.mxu0 %v5800
    %5820 = vmatprep.subr.bf16.mxu0 0
    %5821 = vmatpush1.bf16.msra.mxu0 %v5799
    %5822 = vmatprep.subr.bf16.mxu0 0
    %5823 = vmatpush1.bf16.msra.mxu0 %v5798
    %5824 = vmatprep.subr.bf16.mxu0 0
    %5825 = vmatpush1.bf16.msra.mxu0 %v5797
    %5826 = vmatprep.subr.bf16.mxu0 0
    %5827 = vmatpush1.bf16.msra.mxu0 %v5796
    %5828 = vmatprep.subr.bf16.mxu0 0
    %5829 = vmatpush2.bf16.msra.mxu0 0
    %5830 = vmatprep.subr.bf16.mxu0 0
    %5831 = vmatpush2.bf16.msra.mxu0 0
    %5832 = vmatprep.subr.bf16.mxu0 0
    %5833 = vmatpush2.bf16.msra.mxu0 0
    %5834 = vmatprep.subr.bf16.mxu0 0
    %5835 = vmatpush2.bf16.msra.mxu0 0
    %5836 = vmatprep.subr.bf16.mxu0 0
    %5837 = vmatpush2.bf16.msra.mxu0 0
    %5838 = vmatprep.subr.bf16.mxu0 0
    %5839 = vmatpush2.bf16.msra.mxu0 0
    %5840 = vmatprep.subr.bf16.mxu0 0
    %5841 = vmatpush2.bf16.msra.mxu0 0
    %5842 = vmatprep.subr.bf16.mxu0 0
    %5843 = vmatpush2.bf16.msra.mxu0 0
    %5844 = vmatprep.mubr.bf16.mxu0 0
    %5845 = vmatmul.mubr.bf16.gmra.mxu0 %v5732
    %v5846 = vpop.f32.mrf.mxu0
    %v5847 = vadd.f32 0.0, %v5846
    %v5848 = vpop.f32.mrf.mxu0
    %v5849 = vpop.f32.mrf.mxu0
    %v5850 = vadd.f32 0.0, %v5849
    %v5851 = vpop.f32.mrf.mxu0
    %5852 = vmatprep.mubr.bf16.mxu0 0
    %5853 = vmatmul.mubr.bf16.gmra.mxu0 %v5733
    %v5854 = vpop.f32.mrf.mxu0
    %v5855 = vadd.f32 0.0, %v5854
    %v5856 = vpop.f32.mrf.mxu0
    %v5857 = vpop.f32.mrf.mxu0
    %v5858 = vadd.f32 0.0, %v5857
    %v5859 = vpop.f32.mrf.mxu0
    %5860 = vmatprep.mubr.bf16.mxu0 0
    %5861 = vmatmul.mubr.bf16.gmra.mxu0 %v5734
    %v5862 = vpop.f32.mrf.mxu0
    %v5863 = vadd.f32 0.0, %v5862
    %v5864 = vpop.f32.mrf.mxu0
    %v5865 = vpop.f32.mrf.mxu0
    %v5866 = vadd.f32 0.0, %v5865
    %v5867 = vpop.f32.mrf.mxu0
    %5868 = vmatprep.mubr.bf16.mxu0 0
    %5869 = vmatmul.mubr.bf16.gmra.mxu0 %v5735
    %v5870 = vpop.f32.mrf.mxu0
    %v5871 = vadd.f32 0.0, %v5870
    %v5872 = vpop.f32.mrf.mxu0
    %v5873 = vpop.f32.mrf.mxu0
    %v5874 = vadd.f32 0.0, %v5873
    %v5875 = vpop.f32.mrf.mxu0
    %5876 = vmatprep.mubr.bf16.mxu0 0
    %5877 = vmatmul.mubr.bf16.gmra.mxu0 %v5736
    %v5878 = vpop.f32.mrf.mxu0
    %v5879 = vadd.f32 0.0, %v5878
    %v5880 = vpop.f32.mrf.mxu0
    %v5881 = vpop.f32.mrf.mxu0
    %v5882 = vadd.f32 0.0, %v5881
    %v5883 = vpop.f32.mrf.mxu0
    %5884 = vmatprep.mubr.bf16.mxu0 0
    %5885 = vmatmul.mubr.bf16.gmra.mxu0 %v5737
    %v5886 = vpop.f32.mrf.mxu0
    %v5887 = vadd.f32 0.0, %v5886
    %v5888 = vpop.f32.mrf.mxu0
    %v5889 = vpop.f32.mrf.mxu0
    %v5890 = vadd.f32 0.0, %v5889
    %v5891 = vpop.f32.mrf.mxu0
    %5892 = vmatprep.mubr.bf16.mxu0 0
    %5893 = vmatmul.mubr.bf16.gmra.mxu0 %v5738
    %v5894 = vpop.f32.mrf.mxu0
    %v5895 = vadd.f32 0.0, %v5894
    %v5896 = vpop.f32.mrf.mxu0
    %v5897 = vpop.f32.mrf.mxu0
    %v5898 = vadd.f32 0.0, %v5897
    %v5899 = vpop.f32.mrf.mxu0
    %5900 = vmatprep.mubr.bf16.mxu0 0
    %5901 = vmatmul.mubr.bf16.gmra.mxu0 %v5739
    %v5902 = vpop.f32.mrf.mxu0
    %v5903 = vadd.f32 0.0, %v5902
    %v5904 = vpop.f32.mrf.mxu0
    %v5905 = vpop.f32.mrf.mxu0
    %v5906 = vadd.f32 0.0, %v5905
    %v5907 = vpop.f32.mrf.mxu0
    %5908 = vmatprep.mubr.bf16.mxu0 0
    %5909 = vmatmul.mubr.bf16.gmra.mxu0 %v5740
    %v5910 = vpop.f32.mrf.mxu0
    %v5911 = vadd.f32 0.0, %v5910
    %v5912 = vpop.f32.mrf.mxu0
    %v5913 = vpop.f32.mrf.mxu0
    %v5914 = vadd.f32 0.0, %v5913
    %v5915 = vpop.f32.mrf.mxu0
    %5916 = vmatprep.mubr.bf16.mxu0 0
    %5917 = vmatmul.mubr.bf16.gmra.mxu0 %v5741
    %v5918 = vpop.f32.mrf.mxu0
    %v5919 = vadd.f32 0.0, %v5918
    %v5920 = vpop.f32.mrf.mxu0
    %v5921 = vpop.f32.mrf.mxu0
    %v5922 = vadd.f32 0.0, %v5921
    %v5923 = vpop.f32.mrf.mxu0
    %5924 = vmatprep.mubr.bf16.mxu0 0
    %5925 = vmatmul.mubr.bf16.gmra.mxu0 %v5742
    %v5926 = vpop.f32.mrf.mxu0
    %v5927 = vadd.f32 0.0, %v5926
    %v5928 = vpop.f32.mrf.mxu0
    %v5929 = vpop.f32.mrf.mxu0
    %v5930 = vadd.f32 0.0, %v5929
    %v5931 = vpop.f32.mrf.mxu0
    %5932 = vmatprep.mubr.bf16.mxu0 0
    %5933 = vmatmul.mubr.bf16.gmra.mxu0 %v5743
    %v5934 = vpop.f32.mrf.mxu0
    %v5935 = vadd.f32 0.0, %v5934
    %v5936 = vpop.f32.mrf.mxu0
    %v5937 = vpop.f32.mrf.mxu0
    %v5938 = vadd.f32 0.0, %v5937
    %v5939 = vpop.f32.mrf.mxu0
    %5940 = vmatprep.mubr.bf16.mxu0 0
    %5941 = vmatmul.mubr.bf16.gmra.mxu0 %v5744
    %v5942 = vpop.f32.mrf.mxu0
    %v5943 = vadd.f32 0.0, %v5942
    %v5944 = vpop.f32.mrf.mxu0
    %v5945 = vpop.f32.mrf.mxu0
    %v5946 = vadd.f32 0.0, %v5945
    %v5947 = vpop.f32.mrf.mxu0
    %5948 = vmatprep.mubr.bf16.mxu0 0
    %5949 = vmatmul.mubr.bf16.gmra.mxu0 %v5745
    %v5950 = vpop.f32.mrf.mxu0
    %v5951 = vadd.f32 0.0, %v5950
    %v5952 = vpop.f32.mrf.mxu0
    %v5953 = vpop.f32.mrf.mxu0
    %v5954 = vadd.f32 0.0, %v5953
    %v5955 = vpop.f32.mrf.mxu0
    %5956 = vmatprep.mubr.bf16.mxu0 0
    %5957 = vmatmul.mubr.bf16.gmra.mxu0 %v5746
    %v5958 = vpop.f32.mrf.mxu0
    %v5959 = vadd.f32 0.0, %v5958
    %v5960 = vpop.f32.mrf.mxu0
    %v5961 = vpop.f32.mrf.mxu0
    %v5962 = vadd.f32 0.0, %v5961
    %v5963 = vpop.f32.mrf.mxu0
    %5964 = vmatprep.mubr.bf16.mxu0 0
    %5965 = vmatmul.mubr.bf16.gmra.mxu0 %v5747
    %v5966 = vpop.f32.mrf.mxu0
    %v5967 = vadd.f32 0.0, %v5966
    %v5968 = vpop.f32.mrf.mxu0
    %v5969 = vpop.f32.mrf.mxu0
    %v5970 = vadd.f32 0.0, %v5969
    %v5971 = vpop.f32.mrf.mxu0
    %5972 = vdwg.mxu0
    %v5973 = vadd.f32 %v43, %v5847
    %v5974 = vadd.f32 %v44, %v5850
    %v5975 = vadd.f32 %v45, %v5855
    %v5976 = vadd.f32 %v46, %v5858
    %v5977 = vadd.f32 %v47, %v5863
    %v5978 = vadd.f32 %v48, %v5866
    %v5979 = vadd.f32 %v49, %v5871
    %v5980 = vadd.f32 %v50, %v5874
    %v5981 = vadd.f32 %v51, %v5879
    %v5982 = vadd.f32 %v52, %v5882
    %v5983 = vadd.f32 %v53, %v5887
    %v5984 = vadd.f32 %v54, %v5890
    %v5985 = vadd.f32 %v55, %v5895
    %v5986 = vadd.f32 %v56, %v5898
    %v5987 = vadd.f32 %v57, %v5903
    %v5988 = vadd.f32 %v58, %v5906
    %v5989 = vadd.f32 %v59, %v5911
    %v5990 = vadd.f32 %v60, %v5914
    %v5991 = vadd.f32 %v61, %v5919
    %v5992 = vadd.f32 %v62, %v5922
    %v5993 = vadd.f32 %v63, %v5927
    %v5994 = vadd.f32 %v64, %v5930
    %v5995 = vadd.f32 %v65, %v5935
    %v5996 = vadd.f32 %v66, %v5938
    %v5997 = vadd.f32 %v67, %v5943
    %v5998 = vadd.f32 %v68, %v5946
    %v5999 = vadd.f32 %v69, %v5951
    %v6000 = vadd.f32 %v70, %v5954
    %v6001 = vadd.f32 %v71, %v5959
    %v6002 = vadd.f32 %v72, %v5962
    %v6003 = vadd.f32 %v73, %v5967
    %v6004 = vadd.f32 %v74, %v5970
    %v6005 = vld [vmem:[%s5] sm:$0x1]
    %v6007 = vlaneseq
    %v6008 = vshrl.u32 %v6007, 7
    %v6009 = vsub.s32 0, %v6008
    %v6010 = vrot.slane %v6005, %v6009
    %v6012 = vadd.f32 %v5973, %v6010
    %v6013 = vadd.f32 %v5974, %v6010
    %v6014 = vadd.f32 %v5975, %v6010
    %v6015 = vadd.f32 %v5976, %v6010
    %v6016 = vadd.f32 %v5977, %v6010
    %v6017 = vadd.f32 %v5978, %v6010
    %v6018 = vadd.f32 %v5979, %v6010
    %v6019 = vadd.f32 %v5980, %v6010
    %v6020 = vadd.f32 %v5981, %v6010
    %v6021 = vadd.f32 %v5982, %v6010
    %v6022 = vadd.f32 %v5983, %v6010
    %v6023 = vadd.f32 %v5984, %v6010
    %v6024 = vadd.f32 %v5985, %v6010
    %v6025 = vadd.f32 %v5986, %v6010
    %v6026 = vadd.f32 %v5987, %v6010
    %v6027 = vadd.f32 %v5988, %v6010
    %v6028 = vadd.f32 %v5989, %v6010
    %v6029 = vadd.f32 %v5990, %v6010
    %v6030 = vadd.f32 %v5991, %v6010
    %v6031 = vadd.f32 %v5992, %v6010
    %v6032 = vadd.f32 %v5993, %v6010
    %v6033 = vadd.f32 %v5994, %v6010
    %v6034 = vadd.f32 %v5995, %v6010
    %v6035 = vadd.f32 %v5996, %v6010
    %v6036 = vadd.f32 %v5997, %v6010
    %v6037 = vadd.f32 %v5998, %v6010
    %v6038 = vadd.f32 %v5999, %v6010
    %v6039 = vadd.f32 %v6000, %v6010
    %v6040 = vadd.f32 %v6001, %v6010
    %v6041 = vadd.f32 %v6002, %v6010
    %v6042 = vadd.f32 %v6003, %v6010
    %v6043 = vadd.f32 %v6004, %v6010
    %v6044 = vld [vmem:[%s6] sm:$0x1]
    %v6045 = vld [vmem:[%s7] sm:$0x1]
    %6046 = vadd.xlane.f32.xlu0 %v6012
    %v6047 = vpop.xlane.xlu0 %6046
    %6048 = vadd.xlane.f32.xlu0 %v6013
    %v6049 = vpop.xlane.xlu0 %6048
    %6050 = vadd.xlane.f32.xlu0 %v6014
    %v6051 = vpop.xlane.xlu0 %6050
    %6052 = vadd.xlane.f32.xlu0 %v6015
    %v6053 = vpop.xlane.xlu0 %6052
    %6054 = vadd.xlane.f32.xlu0 %v6016
    %v6055 = vpop.xlane.xlu0 %6054
    %6056 = vadd.xlane.f32.xlu0 %v6017
    %v6057 = vpop.xlane.xlu0 %6056
    %6058 = vadd.xlane.f32.xlu0 %v6018
    %v6059 = vpop.xlane.xlu0 %6058
    %6060 = vadd.xlane.f32.xlu0 %v6019
    %v6061 = vpop.xlane.xlu0 %6060
    %6062 = vadd.xlane.f32.xlu0 %v6020
    %v6063 = vpop.xlane.xlu0 %6062
    %6064 = vadd.xlane.f32.xlu0 %v6021
    %v6065 = vpop.xlane.xlu0 %6064
    %6066 = vadd.xlane.f32.xlu0 %v6022
    %v6067 = vpop.xlane.xlu0 %6066
    %6068 = vadd.xlane.f32.xlu0 %v6023
    %v6069 = vpop.xlane.xlu0 %6068
    %6070 = vadd.xlane.f32.xlu0 %v6024
    %v6071 = vpop.xlane.xlu0 %6070
    %6072 = vadd.xlane.f32.xlu0 %v6025
    %v6073 = vpop.xlane.xlu0 %6072
    %6074 = vadd.xlane.f32.xlu0 %v6026
    %v6075 = vpop.xlane.xlu0 %6074
    %6076 = vadd.xlane.f32.xlu0 %v6027
    %v6077 = vpop.xlane.xlu0 %6076
    %6078 = vadd.xlane.f32.xlu0 %v6028
    %v6079 = vpop.xlane.xlu0 %6078
    %6080 = vadd.xlane.f32.xlu0 %v6029
    %v6081 = vpop.xlane.xlu0 %6080
    %6082 = vadd.xlane.f32.xlu0 %v6030
    %v6083 = vpop.xlane.xlu0 %6082
    %6084 = vadd.xlane.f32.xlu0 %v6031
    %v6085 = vpop.xlane.xlu0 %6084
    %6086 = vadd.xlane.f32.xlu0 %v6032
    %v6087 = vpop.xlane.xlu0 %6086
    %6088 = vadd.xlane.f32.xlu0 %v6033
    %v6089 = vpop.xlane.xlu0 %6088
    %6090 = vadd.xlane.f32.xlu0 %v6034
    %v6091 = vpop.xlane.xlu0 %6090
    %6092 = vadd.xlane.f32.xlu0 %v6035
    %v6093 = vpop.xlane.xlu0 %6092
    %6094 = vadd.xlane.f32.xlu0 %v6036
    %v6095 = vpop.xlane.xlu0 %6094
    %6096 = vadd.xlane.f32.xlu0 %v6037
    %v6097 = vpop.xlane.xlu0 %6096
    %6098 = vadd.xlane.f32.xlu0 %v6038
    %v6099 = vpop.xlane.xlu0 %6098
    %6100 = vadd.xlane.f32.xlu0 %v6039
    %v6101 = vpop.xlane.xlu0 %6100
    %6102 = vadd.xlane.f32.xlu0 %v6040
    %v6103 = vpop.xlane.xlu0 %6102
    %6104 = vadd.xlane.f32.xlu0 %v6041
    %v6105 = vpop.xlane.xlu0 %6104
    %6106 = vadd.xlane.f32.xlu0 %v6042
    %v6107 = vpop.xlane.xlu0 %6106
    %6108 = vadd.xlane.f32.xlu0 %v6043
    %v6109 = vpop.xlane.xlu0 %6108
    %v6110 = vmul.f32 %v6047, %v141
    %v6111 = vmul.f32 %v6049, %v141
    %v6112 = vmul.f32 %v6051, %v141
    %v6113 = vmul.f32 %v6053, %v141
    %v6114 = vmul.f32 %v6055, %v141
    %v6115 = vmul.f32 %v6057, %v141
    %v6116 = vmul.f32 %v6059, %v141
    %v6117 = vmul.f32 %v6061, %v141
    %v6118 = vmul.f32 %v6063, %v141
    %v6119 = vmul.f32 %v6065, %v141
    %v6120 = vmul.f32 %v6067, %v141
    %v6121 = vmul.f32 %v6069, %v141
    %v6122 = vmul.f32 %v6071, %v141
    %v6123 = vmul.f32 %v6073, %v141
    %v6124 = vmul.f32 %v6075, %v141
    %v6125 = vmul.f32 %v6077, %v141
    %v6126 = vmul.f32 %v6079, %v141
    %v6127 = vmul.f32 %v6081, %v141
    %v6128 = vmul.f32 %v6083, %v141
    %v6129 = vmul.f32 %v6085, %v141
    %v6130 = vmul.f32 %v6087, %v141
    %v6131 = vmul.f32 %v6089, %v141
    %v6132 = vmul.f32 %v6091, %v141
    %v6133 = vmul.f32 %v6093, %v141
    %v6134 = vmul.f32 %v6095, %v141
    %v6135 = vmul.f32 %v6097, %v141
    %v6136 = vmul.f32 %v6099, %v141
    %v6137 = vmul.f32 %v6101, %v141
    %v6138 = vmul.f32 %v6103, %v141
    %v6139 = vmul.f32 %v6105, %v141
    %v6140 = vmul.f32 %v6107, %v141
    %v6141 = vmul.f32 %v6109, %v141
    %v6142 = vsub.f32 %v6012, %v6110
    %v6143 = vsub.f32 %v6013, %v6111
    %v6144 = vsub.f32 %v6014, %v6112
    %v6145 = vsub.f32 %v6015, %v6113
    %v6146 = vsub.f32 %v6016, %v6114
    %v6147 = vsub.f32 %v6017, %v6115
    %v6148 = vsub.f32 %v6018, %v6116
    %v6149 = vsub.f32 %v6019, %v6117
    %v6150 = vsub.f32 %v6020, %v6118
    %v6151 = vsub.f32 %v6021, %v6119
    %v6152 = vsub.f32 %v6022, %v6120
    %v6153 = vsub.f32 %v6023, %v6121
    %v6154 = vsub.f32 %v6024, %v6122
    %v6155 = vsub.f32 %v6025, %v6123
    %v6156 = vsub.f32 %v6026, %v6124
    %v6157 = vsub.f32 %v6027, %v6125
    %v6158 = vsub.f32 %v6028, %v6126
    %v6159 = vsub.f32 %v6029, %v6127
    %v6160 = vsub.f32 %v6030, %v6128
    %v6161 = vsub.f32 %v6031, %v6129
    %v6162 = vsub.f32 %v6032, %v6130
    %v6163 = vsub.f32 %v6033, %v6131
    %v6164 = vsub.f32 %v6034, %v6132
    %v6165 = vsub.f32 %v6035, %v6133
    %v6166 = vsub.f32 %v6036, %v6134
    %v6167 = vsub.f32 %v6037, %v6135
    %v6168 = vsub.f32 %v6038, %v6136
    %v6169 = vsub.f32 %v6039, %v6137
    %v6170 = vsub.f32 %v6040, %v6138
    %v6171 = vsub.f32 %v6041, %v6139
    %v6172 = vsub.f32 %v6042, %v6140
    %v6173 = vsub.f32 %v6043, %v6141
    %v6174 = vmul.f32 %v6142, %v6142
    %v6175 = vmul.f32 %v6143, %v6143
    %v6176 = vmul.f32 %v6144, %v6144
    %v6177 = vmul.f32 %v6145, %v6145
    %v6178 = vmul.f32 %v6146, %v6146
    %v6179 = vmul.f32 %v6147, %v6147
    %v6180 = vmul.f32 %v6148, %v6148
    %v6181 = vmul.f32 %v6149, %v6149
    %v6182 = vmul.f32 %v6150, %v6150
    %v6183 = vmul.f32 %v6151, %v6151
    %v6184 = vmul.f32 %v6152, %v6152
    %v6185 = vmul.f32 %v6153, %v6153
    %v6186 = vmul.f32 %v6154, %v6154
    %v6187 = vmul.f32 %v6155, %v6155
    %v6188 = vmul.f32 %v6156, %v6156
    %v6189 = vmul.f32 %v6157, %v6157
    %v6190 = vmul.f32 %v6158, %v6158
    %v6191 = vmul.f32 %v6159, %v6159
    %v6192 = vmul.f32 %v6160, %v6160
    %v6193 = vmul.f32 %v6161, %v6161
    %v6194 = vmul.f32 %v6162, %v6162
    %v6195 = vmul.f32 %v6163, %v6163
    %v6196 = vmul.f32 %v6164, %v6164
    %v6197 = vmul.f32 %v6165, %v6165
    %v6198 = vmul.f32 %v6166, %v6166
    %v6199 = vmul.f32 %v6167, %v6167
    %v6200 = vmul.f32 %v6168, %v6168
    %v6201 = vmul.f32 %v6169, %v6169
    %v6202 = vmul.f32 %v6170, %v6170
    %v6203 = vmul.f32 %v6171, %v6171
    %v6204 = vmul.f32 %v6172, %v6172
    %v6205 = vmul.f32 %v6173, %v6173
    %6206 = vadd.xlane.f32.xlu0 %v6174
    %v6207 = vpop.xlane.xlu0 %6206
    %6208 = vadd.xlane.f32.xlu0 %v6175
    %v6209 = vpop.xlane.xlu0 %6208
    %6210 = vadd.xlane.f32.xlu0 %v6176
    %v6211 = vpop.xlane.xlu0 %6210
    %6212 = vadd.xlane.f32.xlu0 %v6177
    %v6213 = vpop.xlane.xlu0 %6212
    %6214 = vadd.xlane.f32.xlu0 %v6178
    %v6215 = vpop.xlane.xlu0 %6214
    %6216 = vadd.xlane.f32.xlu0 %v6179
    %v6217 = vpop.xlane.xlu0 %6216
    %6218 = vadd.xlane.f32.xlu0 %v6180
    %v6219 = vpop.xlane.xlu0 %6218
    %6220 = vadd.xlane.f32.xlu0 %v6181
    %v6221 = vpop.xlane.xlu0 %6220
    %6222 = vadd.xlane.f32.xlu0 %v6182
    %v6223 = vpop.xlane.xlu0 %6222
    %6224 = vadd.xlane.f32.xlu0 %v6183
    %v6225 = vpop.xlane.xlu0 %6224
    %6226 = vadd.xlane.f32.xlu0 %v6184
    %v6227 = vpop.xlane.xlu0 %6226
    %6228 = vadd.xlane.f32.xlu0 %v6185
    %v6229 = vpop.xlane.xlu0 %6228
    %6230 = vadd.xlane.f32.xlu0 %v6186
    %v6231 = vpop.xlane.xlu0 %6230
    %6232 = vadd.xlane.f32.xlu0 %v6187
    %v6233 = vpop.xlane.xlu0 %6232
    %6234 = vadd.xlane.f32.xlu0 %v6188
    %v6235 = vpop.xlane.xlu0 %6234
    %6236 = vadd.xlane.f32.xlu0 %v6189
    %v6237 = vpop.xlane.xlu0 %6236
    %6238 = vadd.xlane.f32.xlu0 %v6190
    %v6239 = vpop.xlane.xlu0 %6238
    %6240 = vadd.xlane.f32.xlu0 %v6191
    %v6241 = vpop.xlane.xlu0 %6240
    %6242 = vadd.xlane.f32.xlu0 %v6192
    %v6243 = vpop.xlane.xlu0 %6242
    %6244 = vadd.xlane.f32.xlu0 %v6193
    %v6245 = vpop.xlane.xlu0 %6244
    %6246 = vadd.xlane.f32.xlu0 %v6194
    %v6247 = vpop.xlane.xlu0 %6246
    %6248 = vadd.xlane.f32.xlu0 %v6195
    %v6249 = vpop.xlane.xlu0 %6248
    %6250 = vadd.xlane.f32.xlu0 %v6196
    %v6251 = vpop.xlane.xlu0 %6250
    %6252 = vadd.xlane.f32.xlu0 %v6197
    %v6253 = vpop.xlane.xlu0 %6252
    %6254 = vadd.xlane.f32.xlu0 %v6198
    %v6255 = vpop.xlane.xlu0 %6254
    %6256 = vadd.xlane.f32.xlu0 %v6199
    %v6257 = vpop.xlane.xlu0 %6256
    %6258 = vadd.xlane.f32.xlu0 %v6200
    %v6259 = vpop.xlane.xlu0 %6258
    %6260 = vadd.xlane.f32.xlu0 %v6201
    %v6261 = vpop.xlane.xlu0 %6260
    %6262 = vadd.xlane.f32.xlu0 %v6202
    %v6263 = vpop.xlane.xlu0 %6262
    %6264 = vadd.xlane.f32.xlu0 %v6203
    %v6265 = vpop.xlane.xlu0 %6264
    %6266 = vadd.xlane.f32.xlu0 %v6204
    %v6267 = vpop.xlane.xlu0 %6266
    %6268 = vadd.xlane.f32.xlu0 %v6205
    %v6269 = vpop.xlane.xlu0 %6268
    %v6270 = vmul.f32 %v6207, %v141
    %v6271 = vmul.f32 %v6209, %v141
    %v6272 = vmul.f32 %v6211, %v141
    %v6273 = vmul.f32 %v6213, %v141
    %v6274 = vmul.f32 %v6215, %v141
    %v6275 = vmul.f32 %v6217, %v141
    %v6276 = vmul.f32 %v6219, %v141
    %v6277 = vmul.f32 %v6221, %v141
    %v6278 = vmul.f32 %v6223, %v141
    %v6279 = vmul.f32 %v6225, %v141
    %v6280 = vmul.f32 %v6227, %v141
    %v6281 = vmul.f32 %v6229, %v141
    %v6282 = vmul.f32 %v6231, %v141
    %v6283 = vmul.f32 %v6233, %v141
    %v6284 = vmul.f32 %v6235, %v141
    %v6285 = vmul.f32 %v6237, %v141
    %v6286 = vmul.f32 %v6239, %v141
    %v6287 = vmul.f32 %v6241, %v141
    %v6288 = vmul.f32 %v6243, %v141
    %v6289 = vmul.f32 %v6245, %v141
    %v6290 = vmul.f32 %v6247, %v141
    %v6291 = vmul.f32 %v6249, %v141
    %v6292 = vmul.f32 %v6251, %v141
    %v6293 = vmul.f32 %v6253, %v141
    %v6294 = vmul.f32 %v6255, %v141
    %v6295 = vmul.f32 %v6257, %v141
    %v6296 = vmul.f32 %v6259, %v141
    %v6297 = vmul.f32 %v6261, %v141
    %v6298 = vmul.f32 %v6263, %v141
    %v6299 = vmul.f32 %v6265, %v141
    %v6300 = vmul.f32 %v6267, %v141
    %v6301 = vmul.f32 %v6269, %v141
    %v6302 = vadd.f32 %v6270, 1e-05
    %v6303 = vadd.f32 %v6271, 1e-05
    %v6304 = vadd.f32 %v6272, 1e-05
    %v6305 = vadd.f32 %v6273, 1e-05
    %v6306 = vadd.f32 %v6274, 1e-05
    %v6307 = vadd.f32 %v6275, 1e-05
    %v6308 = vadd.f32 %v6276, 1e-05
    %v6309 = vadd.f32 %v6277, 1e-05
    %v6310 = vadd.f32 %v6278, 1e-05
    %v6311 = vadd.f32 %v6279, 1e-05
    %v6312 = vadd.f32 %v6280, 1e-05
    %v6313 = vadd.f32 %v6281, 1e-05
    %v6314 = vadd.f32 %v6282, 1e-05
    %v6315 = vadd.f32 %v6283, 1e-05
    %v6316 = vadd.f32 %v6284, 1e-05
    %v6317 = vadd.f32 %v6285, 1e-05
    %v6318 = vadd.f32 %v6286, 1e-05
    %v6319 = vadd.f32 %v6287, 1e-05
    %v6320 = vadd.f32 %v6288, 1e-05
    %v6321 = vadd.f32 %v6289, 1e-05
    %v6322 = vadd.f32 %v6290, 1e-05
    %v6323 = vadd.f32 %v6291, 1e-05
    %v6324 = vadd.f32 %v6292, 1e-05
    %v6325 = vadd.f32 %v6293, 1e-05
    %v6326 = vadd.f32 %v6294, 1e-05
    %v6327 = vadd.f32 %v6295, 1e-05
    %v6328 = vadd.f32 %v6296, 1e-05
    %v6329 = vadd.f32 %v6297, 1e-05
    %v6330 = vadd.f32 %v6298, 1e-05
    %v6331 = vadd.f32 %v6299, 1e-05
    %v6332 = vadd.f32 %v6300, 1e-05
    %v6333 = vadd.f32 %v6301, 1e-05
    %v6334 = vrsqrt.pop %v6302
    %v6335 = vrsqrt.pop %v6303
    %v6336 = vrsqrt.pop %v6304
    %v6337 = vrsqrt.pop %v6305
    %v6338 = vrsqrt.pop %v6306
    %v6339 = vrsqrt.pop %v6307
    %v6340 = vrsqrt.pop %v6308
    %v6341 = vrsqrt.pop %v6309
    %v6342 = vrsqrt.pop %v6310
    %v6343 = vrsqrt.pop %v6311
    %v6344 = vrsqrt.pop %v6312
    %v6345 = vrsqrt.pop %v6313
    %v6346 = vrsqrt.pop %v6314
    %v6347 = vrsqrt.pop %v6315
    %v6348 = vrsqrt.pop %v6316
    %v6349 = vrsqrt.pop %v6317
    %v6350 = vrsqrt.pop %v6318
    %v6351 = vrsqrt.pop %v6319
    %v6352 = vrsqrt.pop %v6320
    %v6353 = vrsqrt.pop %v6321
    %v6354 = vrsqrt.pop %v6322
    %v6355 = vrsqrt.pop %v6323
    %v6356 = vrsqrt.pop %v6324
    %v6357 = vrsqrt.pop %v6325
    %v6358 = vrsqrt.pop %v6326
    %v6359 = vrsqrt.pop %v6327
    %v6360 = vrsqrt.pop %v6328
    %v6361 = vrsqrt.pop %v6329
    %v6362 = vrsqrt.pop %v6330
    %v6363 = vrsqrt.pop %v6331
    %v6364 = vrsqrt.pop %v6332
    %v6365 = vrsqrt.pop %v6333
    %v6366 = vmul.f32 %v6142, %v6334
    %v6367 = vmul.f32 %v6143, %v6335
    %v6368 = vmul.f32 %v6144, %v6336
    %v6369 = vmul.f32 %v6145, %v6337
    %v6370 = vmul.f32 %v6146, %v6338
    %v6371 = vmul.f32 %v6147, %v6339
    %v6372 = vmul.f32 %v6148, %v6340
    %v6373 = vmul.f32 %v6149, %v6341
    %v6374 = vmul.f32 %v6150, %v6342
    %v6375 = vmul.f32 %v6151, %v6343
    %v6376 = vmul.f32 %v6152, %v6344
    %v6377 = vmul.f32 %v6153, %v6345
    %v6378 = vmul.f32 %v6154, %v6346
    %v6379 = vmul.f32 %v6155, %v6347
    %v6380 = vmul.f32 %v6156, %v6348
    %v6381 = vmul.f32 %v6157, %v6349
    %v6382 = vmul.f32 %v6158, %v6350
    %v6383 = vmul.f32 %v6159, %v6351
    %v6384 = vmul.f32 %v6160, %v6352
    %v6385 = vmul.f32 %v6161, %v6353
    %v6386 = vmul.f32 %v6162, %v6354
    %v6387 = vmul.f32 %v6163, %v6355
    %v6388 = vmul.f32 %v6164, %v6356
    %v6389 = vmul.f32 %v6165, %v6357
    %v6390 = vmul.f32 %v6166, %v6358
    %v6391 = vmul.f32 %v6167, %v6359
    %v6392 = vmul.f32 %v6168, %v6360
    %v6393 = vmul.f32 %v6169, %v6361
    %v6394 = vmul.f32 %v6170, %v6362
    %v6395 = vmul.f32 %v6171, %v6363
    %v6396 = vmul.f32 %v6172, %v6364
    %v6397 = vmul.f32 %v6173, %v6365
    %v6399 = vlaneseq
    %v6400 = vshrl.u32 %v6399, 7
    %v6401 = vsub.s32 0, %v6400
    %v6402 = vrot.slane %v6044, %v6401
    %v6404 = vmul.f32 %v6366, %v6402
    %v6405 = vmul.f32 %v6367, %v6402
    %v6406 = vmul.f32 %v6368, %v6402
    %v6407 = vmul.f32 %v6369, %v6402
    %v6408 = vmul.f32 %v6370, %v6402
    %v6409 = vmul.f32 %v6371, %v6402
    %v6410 = vmul.f32 %v6372, %v6402
    %v6411 = vmul.f32 %v6373, %v6402
    %v6412 = vmul.f32 %v6374, %v6402
    %v6413 = vmul.f32 %v6375, %v6402
    %v6414 = vmul.f32 %v6376, %v6402
    %v6415 = vmul.f32 %v6377, %v6402
    %v6416 = vmul.f32 %v6378, %v6402
    %v6417 = vmul.f32 %v6379, %v6402
    %v6418 = vmul.f32 %v6380, %v6402
    %v6419 = vmul.f32 %v6381, %v6402
    %v6420 = vmul.f32 %v6382, %v6402
    %v6421 = vmul.f32 %v6383, %v6402
    %v6422 = vmul.f32 %v6384, %v6402
    %v6423 = vmul.f32 %v6385, %v6402
    %v6424 = vmul.f32 %v6386, %v6402
    %v6425 = vmul.f32 %v6387, %v6402
    %v6426 = vmul.f32 %v6388, %v6402
    %v6427 = vmul.f32 %v6389, %v6402
    %v6428 = vmul.f32 %v6390, %v6402
    %v6429 = vmul.f32 %v6391, %v6402
    %v6430 = vmul.f32 %v6392, %v6402
    %v6431 = vmul.f32 %v6393, %v6402
    %v6432 = vmul.f32 %v6394, %v6402
    %v6433 = vmul.f32 %v6395, %v6402
    %v6434 = vmul.f32 %v6396, %v6402
    %v6435 = vmul.f32 %v6397, %v6402
    %v6437 = vlaneseq
    %v6438 = vshrl.u32 %v6437, 7
    %v6439 = vsub.s32 0, %v6438
    %v6440 = vrot.slane %v6045, %v6439
    %v6442 = vadd.f32 %v6404, %v6440
    %v6443 = vadd.f32 %v6405, %v6440
    %v6444 = vadd.f32 %v6406, %v6440
    %v6445 = vadd.f32 %v6407, %v6440
    %v6446 = vadd.f32 %v6408, %v6440
    %v6447 = vadd.f32 %v6409, %v6440
    %v6448 = vadd.f32 %v6410, %v6440
    %v6449 = vadd.f32 %v6411, %v6440
    %v6450 = vadd.f32 %v6412, %v6440
    %v6451 = vadd.f32 %v6413, %v6440
    %v6452 = vadd.f32 %v6414, %v6440
    %v6453 = vadd.f32 %v6415, %v6440
    %v6454 = vadd.f32 %v6416, %v6440
    %v6455 = vadd.f32 %v6417, %v6440
    %v6456 = vadd.f32 %v6418, %v6440
    %v6457 = vadd.f32 %v6419, %v6440
    %v6458 = vadd.f32 %v6420, %v6440
    %v6459 = vadd.f32 %v6421, %v6440
    %v6460 = vadd.f32 %v6422, %v6440
    %v6461 = vadd.f32 %v6423, %v6440
    %v6462 = vadd.f32 %v6424, %v6440
    %v6463 = vadd.f32 %v6425, %v6440
    %v6464 = vadd.f32 %v6426, %v6440
    %v6465 = vadd.f32 %v6427, %v6440
    %v6466 = vadd.f32 %v6428, %v6440
    %v6467 = vadd.f32 %v6429, %v6440
    %v6468 = vadd.f32 %v6430, %v6440
    %v6469 = vadd.f32 %v6431, %v6440
    %v6470 = vadd.f32 %v6432, %v6440
    %v6471 = vadd.f32 %v6433, %v6440
    %v6472 = vadd.f32 %v6434, %v6440
    %v6473 = vadd.f32 %v6435, %v6440
    %v6474 = vpack.c.bf16 %v6443, %v6442
    %v6475 = vpack.c.bf16 %v6445, %v6444
    %v6476 = vpack.c.bf16 %v6447, %v6446
    %v6477 = vpack.c.bf16 %v6449, %v6448
    %v6478 = vpack.c.bf16 %v6451, %v6450
    %v6479 = vpack.c.bf16 %v6453, %v6452
    %v6480 = vpack.c.bf16 %v6455, %v6454
    %v6481 = vpack.c.bf16 %v6457, %v6456
    %v6482 = vpack.c.bf16 %v6459, %v6458
    %v6483 = vpack.c.bf16 %v6461, %v6460
    %v6484 = vpack.c.bf16 %v6463, %v6462
    %v6485 = vpack.c.bf16 %v6465, %v6464
    %v6486 = vpack.c.bf16 %v6467, %v6466
    %v6487 = vpack.c.bf16 %v6469, %v6468
    %v6488 = vpack.c.bf16 %v6471, %v6470
    %v6489 = vpack.c.bf16 %v6473, %v6472
    %v6490 = vld [vmem:[%s8] sm:$0xff]
    %v6491 = vld [vmem:[%s8 + $0x8] sm:$0xff]
    %v6492 = vld [vmem:[%s8 + $0x10] sm:$0xff]
    %v6493 = vld [vmem:[%s8 + $0x18] sm:$0xff]
    %v6494 = vld [vmem:[%s8 + $0x20] sm:$0xff]
    %v6495 = vld [vmem:[%s8 + $0x28] sm:$0xff]
    %v6496 = vld [vmem:[%s8 + $0x30] sm:$0xff]
    %v6497 = vld [vmem:[%s8 + $0x38] sm:$0xff]
    %v6498 = vld [vmem:[%s8 + $0x40] sm:$0xff]
    %v6499 = vld [vmem:[%s8 + $0x48] sm:$0xff]
    %v6500 = vld [vmem:[%s8 + $0x50] sm:$0xff]
    %v6501 = vld [vmem:[%s8 + $0x58] sm:$0xff]
    %v6502 = vld [vmem:[%s8 + $0x60] sm:$0xff]
    %v6503 = vld [vmem:[%s8 + $0x68] sm:$0xff]
    %v6504 = vld [vmem:[%s8 + $0x70] sm:$0xff]
    %v6505 = vld [vmem:[%s8 + $0x78] sm:$0xff]
    %v6506 = vld [vmem:[%s8 + $0x80] sm:$0xff]
    %v6507 = vld [vmem:[%s8 + $0x88] sm:$0xff]
    %v6508 = vld [vmem:[%s8 + $0x90] sm:$0xff]
    %v6509 = vld [vmem:[%s8 + $0x98] sm:$0xff]
    %v6510 = vld [vmem:[%s8 + $0xa0] sm:$0xff]
    %v6511 = vld [vmem:[%s8 + $0xa8] sm:$0xff]
    %v6512 = vld [vmem:[%s8 + $0xb0] sm:$0xff]
    %v6513 = vld [vmem:[%s8 + $0xb8] sm:$0xff]
    %v6514 = vld [vmem:[%s8 + $0xc0] sm:$0xff]
    %v6515 = vld [vmem:[%s8 + $0xc8] sm:$0xff]
    %v6516 = vld [vmem:[%s8 + $0xd0] sm:$0xff]
    %v6517 = vld [vmem:[%s8 + $0xd8] sm:$0xff]
    %v6518 = vld [vmem:[%s8 + $0xe0] sm:$0xff]
    %v6519 = vld [vmem:[%s8 + $0xe8] sm:$0xff]
    %v6520 = vld [vmem:[%s8 + $0xf0] sm:$0xff]
    %v6521 = vld [vmem:[%s8 + $0xf8] sm:$0xff]
    %v6522 = vld [vmem:[%s9] sm:$0xf]
    %v6524 = vlaneseq
    %v6525 = vshrl.u32 %v6524, 7
    %v6526 = vsub.s32 0, %v6525
    %v6527 = vrot.slane %v6522, %v6526
    %v6528 = vlaneseq
    %v6529 = vshrl.u32 %v6528, 7
    %v6530 = vsub.s32 1, %v6529
    %v6531 = vrot.slane %v6522, %v6530
    %v6532 = vlaneseq
    %v6533 = vshrl.u32 %v6532, 7
    %v6534 = vsub.s32 2, %v6533
    %v6535 = vrot.slane %v6522, %v6534
    %v6536 = vlaneseq
    %v6537 = vshrl.u32 %v6536, 7
    %v6538 = vsub.s32 3, %v6537
    %v6539 = vrot.slane %v6522, %v6538
    %v6576 = vunpack.c.l.b16 %v6490
    %v6577 = vunpack.c.h.b16 %v6490
    %v6578 = vunpack.c.l.b16 %v6491
    %v6579 = vunpack.c.h.b16 %v6491
    %v6580 = vunpack.c.l.b16 %v6492
    %v6581 = vunpack.c.h.b16 %v6492
    %v6582 = vunpack.c.l.b16 %v6493
    %v6583 = vunpack.c.h.b16 %v6493
    %v6584 = vunpack.c.l.b16 %v6494
    %v6585 = vunpack.c.h.b16 %v6494
    %v6586 = vunpack.c.l.b16 %v6495
    %v6587 = vunpack.c.h.b16 %v6495
    %v6588 = vunpack.c.l.b16 %v6496
    %v6589 = vunpack.c.h.b16 %v6496
    %v6590 = vunpack.c.l.b16 %v6497
    %v6591 = vunpack.c.h.b16 %v6497
    %v6592 = vunpack.c.l.b16 %v6498
    %v6593 = vunpack.c.h.b16 %v6498
    %v6594 = vunpack.c.l.b16 %v6499
    %v6595 = vunpack.c.h.b16 %v6499
    %v6596 = vunpack.c.l.b16 %v6500
    %v6597 = vunpack.c.h.b16 %v6500
    %v6598 = vunpack.c.l.b16 %v6501
    %v6599 = vunpack.c.h.b16 %v6501
    %v6600 = vunpack.c.l.b16 %v6502
    %v6601 = vunpack.c.h.b16 %v6502
    %v6602 = vunpack.c.l.b16 %v6503
    %v6603 = vunpack.c.h.b16 %v6503
    %v6604 = vunpack.c.l.b16 %v6504
    %v6605 = vunpack.c.h.b16 %v6504
    %v6606 = vunpack.c.l.b16 %v6505
    %v6607 = vunpack.c.h.b16 %v6505
    %v6608 = vunpack.c.l.b16 %v6506
    %v6609 = vunpack.c.h.b16 %v6506
    %v6610 = vunpack.c.l.b16 %v6507
    %v6611 = vunpack.c.h.b16 %v6507
    %v6612 = vunpack.c.l.b16 %v6508
    %v6613 = vunpack.c.h.b16 %v6508
    %v6614 = vunpack.c.l.b16 %v6509
    %v6615 = vunpack.c.h.b16 %v6509
    %v6616 = vunpack.c.l.b16 %v6510
    %v6617 = vunpack.c.h.b16 %v6510
    %v6618 = vunpack.c.l.b16 %v6511
    %v6619 = vunpack.c.h.b16 %v6511
    %v6620 = vunpack.c.l.b16 %v6512
    %v6621 = vunpack.c.h.b16 %v6512
    %v6622 = vunpack.c.l.b16 %v6513
    %v6623 = vunpack.c.h.b16 %v6513
    %v6624 = vunpack.c.l.b16 %v6514
    %v6625 = vunpack.c.h.b16 %v6514
    %v6626 = vunpack.c.l.b16 %v6515
    %v6627 = vunpack.c.h.b16 %v6515
    %v6628 = vunpack.c.l.b16 %v6516
    %v6629 = vunpack.c.h.b16 %v6516
    %v6630 = vunpack.c.l.b16 %v6517
    %v6631 = vunpack.c.h.b16 %v6517
    %v6632 = vunpack.c.l.b16 %v6518
    %v6633 = vunpack.c.h.b16 %v6518
    %v6634 = vunpack.c.l.b16 %v6519
    %v6635 = vunpack.c.h.b16 %v6519
    %v6636 = vunpack.c.l.b16 %v6520
    %v6637 = vunpack.c.h.b16 %v6520
    %v6638 = vunpack.c.l.b16 %v6521
    %v6639 = vunpack.c.h.b16 %v6521
    %v6640 = vpack.c.b16 %v6580, %v6576
    %v6641 = vpack.c.b16 %v6581, %v6577
    %v6642 = vpack.c.b16 %v6582, %v6578
    %v6643 = vpack.c.b16 %v6583, %v6579
    %v6644 = vpack.c.b16 %v6588, %v6584
    %v6645 = vpack.c.b16 %v6589, %v6585
    %v6646 = vpack.c.b16 %v6590, %v6586
    %v6647 = vpack.c.b16 %v6591, %v6587
    %v6648 = vpack.c.b16 %v6596, %v6592
    %v6649 = vpack.c.b16 %v6597, %v6593
    %v6650 = vpack.c.b16 %v6598, %v6594
    %v6651 = vpack.c.b16 %v6599, %v6595
    %v6652 = vpack.c.b16 %v6604, %v6600
    %v6653 = vpack.c.b16 %v6605, %v6601
    %v6654 = vpack.c.b16 %v6606, %v6602
    %v6655 = vpack.c.b16 %v6607, %v6603
    %v6656 = vpack.c.b16 %v6612, %v6608
    %v6657 = vpack.c.b16 %v6613, %v6609
    %v6658 = vpack.c.b16 %v6614, %v6610
    %v6659 = vpack.c.b16 %v6615, %v6611
    %v6660 = vpack.c.b16 %v6620, %v6616
    %v6661 = vpack.c.b16 %v6621, %v6617
    %v6662 = vpack.c.b16 %v6622, %v6618
    %v6663 = vpack.c.b16 %v6623, %v6619
    %v6664 = vpack.c.b16 %v6628, %v6624
    %v6665 = vpack.c.b16 %v6629, %v6625
    %v6666 = vpack.c.b16 %v6630, %v6626
    %v6667 = vpack.c.b16 %v6631, %v6627
    %v6668 = vpack.c.b16 %v6636, %v6632
    %v6669 = vpack.c.b16 %v6637, %v6633
    %v6670 = vpack.c.b16 %v6638, %v6634
    %v6671 = vpack.c.b16 %v6639, %v6635
    %6704 = vmatprep.subr.bf16.mxu0 %v6669
    %6705 = vmatpush1.bf16.msra.mxu0 %v6668
    %6706 = vmatprep.subr.bf16.mxu0 %v6665
    %6707 = vmatpush1.bf16.msra.mxu0 %v6664
    %6708 = vmatprep.subr.bf16.mxu0 %v6661
    %6709 = vmatpush1.bf16.msra.mxu0 %v6660
    %6710 = vmatprep.subr.bf16.mxu0 %v6657
    %6711 = vmatpush1.bf16.msra.mxu0 %v6656
    %6712 = vmatprep.subr.bf16.mxu0 %v6653
    %6713 = vmatpush1.bf16.msra.mxu0 %v6652
    %6714 = vmatprep.subr.bf16.mxu0 %v6649
    %6715 = vmatpush1.bf16.msra.mxu0 %v6648
    %6716 = vmatprep.subr.bf16.mxu0 %v6645
    %6717 = vmatpush1.bf16.msra.mxu0 %v6644
    %6718 = vmatprep.subr.bf16.mxu0 %v6641
    %6719 = vmatpush1.bf16.msra.mxu0 %v6640
    %6720 = vmatprep.subr.bf16.mxu0 0
    %6721 = vmatpush2.bf16.msra.mxu0 0
    %6722 = vmatprep.subr.bf16.mxu0 0
    %6723 = vmatpush2.bf16.msra.mxu0 0
    %6724 = vmatprep.subr.bf16.mxu0 0
    %6725 = vmatpush2.bf16.msra.mxu0 0
    %6726 = vmatprep.subr.bf16.mxu0 0
    %6727 = vmatpush2.bf16.msra.mxu0 0
    %6728 = vmatprep.subr.bf16.mxu0 0
    %6729 = vmatpush2.bf16.msra.mxu0 0
    %6730 = vmatprep.subr.bf16.mxu0 0
    %6731 = vmatpush2.bf16.msra.mxu0 0
    %6732 = vmatprep.subr.bf16.mxu0 0
    %6733 = vmatpush2.bf16.msra.mxu0 0
    %6734 = vmatprep.subr.bf16.mxu0 0
    %6735 = vmatpush2.bf16.msra.mxu0 0
    %6736 = vmatprep.mubr.bf16.mxu0 0
    %6737 = vmatmul.mubr.bf16.gmra.mxu0 %v6474
    %v6738 = vpop.f32.mrf.mxu0
    %v6739 = vadd.f32 %v6527, %v6738
    %v6740 = vpop.f32.mrf.mxu0
    %v6741 = vadd.f32 %v6531, %v6740
    %v6742 = vpop.f32.mrf.mxu0
    %v6743 = vadd.f32 %v6527, %v6742
    %v6744 = vpop.f32.mrf.mxu0
    %v6745 = vadd.f32 %v6531, %v6744
    %6746 = vmatprep.mubr.bf16.mxu0 0
    %6747 = vmatmul.mubr.bf16.gmra.mxu0 %v6475
    %v6748 = vpop.f32.mrf.mxu0
    %v6749 = vadd.f32 %v6527, %v6748
    %v6750 = vpop.f32.mrf.mxu0
    %v6751 = vadd.f32 %v6531, %v6750
    %v6752 = vpop.f32.mrf.mxu0
    %v6753 = vadd.f32 %v6527, %v6752
    %v6754 = vpop.f32.mrf.mxu0
    %v6755 = vadd.f32 %v6531, %v6754
    %6756 = vmatprep.mubr.bf16.mxu0 0
    %6757 = vmatmul.mubr.bf16.gmra.mxu0 %v6476
    %v6758 = vpop.f32.mrf.mxu0
    %v6759 = vadd.f32 %v6527, %v6758
    %v6760 = vpop.f32.mrf.mxu0
    %v6761 = vadd.f32 %v6531, %v6760
    %v6762 = vpop.f32.mrf.mxu0
    %v6763 = vadd.f32 %v6527, %v6762
    %v6764 = vpop.f32.mrf.mxu0
    %v6765 = vadd.f32 %v6531, %v6764
    %6766 = vmatprep.mubr.bf16.mxu0 0
    %6767 = vmatmul.mubr.bf16.gmra.mxu0 %v6477
    %v6768 = vpop.f32.mrf.mxu0
    %v6769 = vadd.f32 %v6527, %v6768
    %v6770 = vpop.f32.mrf.mxu0
    %v6771 = vadd.f32 %v6531, %v6770
    %v6772 = vpop.f32.mrf.mxu0
    %v6773 = vadd.f32 %v6527, %v6772
    %v6774 = vpop.f32.mrf.mxu0
    %v6775 = vadd.f32 %v6531, %v6774
    %6776 = vmatprep.mubr.bf16.mxu0 0
    %6777 = vmatmul.mubr.bf16.gmra.mxu0 %v6478
    %v6778 = vpop.f32.mrf.mxu0
    %v6779 = vadd.f32 %v6527, %v6778
    %v6780 = vpop.f32.mrf.mxu0
    %v6781 = vadd.f32 %v6531, %v6780
    %v6782 = vpop.f32.mrf.mxu0
    %v6783 = vadd.f32 %v6527, %v6782
    %v6784 = vpop.f32.mrf.mxu0
    %v6785 = vadd.f32 %v6531, %v6784
    %6786 = vmatprep.mubr.bf16.mxu0 0
    %6787 = vmatmul.mubr.bf16.gmra.mxu0 %v6479
    %v6788 = vpop.f32.mrf.mxu0
    %v6789 = vadd.f32 %v6527, %v6788
    %v6790 = vpop.f32.mrf.mxu0
    %v6791 = vadd.f32 %v6531, %v6790
    %v6792 = vpop.f32.mrf.mxu0
    %v6793 = vadd.f32 %v6527, %v6792
    %v6794 = vpop.f32.mrf.mxu0
    %v6795 = vadd.f32 %v6531, %v6794
    %6796 = vmatprep.mubr.bf16.mxu0 0
    %6797 = vmatmul.mubr.bf16.gmra.mxu0 %v6480
    %v6798 = vpop.f32.mrf.mxu0
    %v6799 = vadd.f32 %v6527, %v6798
    %v6800 = vpop.f32.mrf.mxu0
    %v6801 = vadd.f32 %v6531, %v6800
    %v6802 = vpop.f32.mrf.mxu0
    %v6803 = vadd.f32 %v6527, %v6802
    %v6804 = vpop.f32.mrf.mxu0
    %v6805 = vadd.f32 %v6531, %v6804
    %6806 = vmatprep.mubr.bf16.mxu0 0
    %6807 = vmatmul.mubr.bf16.gmra.mxu0 %v6481
    %v6808 = vpop.f32.mrf.mxu0
    %v6809 = vadd.f32 %v6527, %v6808
    %v6810 = vpop.f32.mrf.mxu0
    %v6811 = vadd.f32 %v6531, %v6810
    %v6812 = vpop.f32.mrf.mxu0
    %v6813 = vadd.f32 %v6527, %v6812
    %v6814 = vpop.f32.mrf.mxu0
    %v6815 = vadd.f32 %v6531, %v6814
    %6816 = vmatprep.mubr.bf16.mxu0 0
    %6817 = vmatmul.mubr.bf16.gmra.mxu0 %v6482
    %v6818 = vpop.f32.mrf.mxu0
    %v6819 = vadd.f32 %v6527, %v6818
    %v6820 = vpop.f32.mrf.mxu0
    %v6821 = vadd.f32 %v6531, %v6820
    %v6822 = vpop.f32.mrf.mxu0
    %v6823 = vadd.f32 %v6527, %v6822
    %v6824 = vpop.f32.mrf.mxu0
    %v6825 = vadd.f32 %v6531, %v6824
    %6826 = vmatprep.mubr.bf16.mxu0 0
    %6827 = vmatmul.mubr.bf16.gmra.mxu0 %v6483
    %v6828 = vpop.f32.mrf.mxu0
    %v6829 = vadd.f32 %v6527, %v6828
    %v6830 = vpop.f32.mrf.mxu0
    %v6831 = vadd.f32 %v6531, %v6830
    %v6832 = vpop.f32.mrf.mxu0
    %v6833 = vadd.f32 %v6527, %v6832
    %v6834 = vpop.f32.mrf.mxu0
    %v6835 = vadd.f32 %v6531, %v6834
    %6836 = vmatprep.mubr.bf16.mxu0 0
    %6837 = vmatmul.mubr.bf16.gmra.mxu0 %v6484
    %v6838 = vpop.f32.mrf.mxu0
    %v6839 = vadd.f32 %v6527, %v6838
    %v6840 = vpop.f32.mrf.mxu0
    %v6841 = vadd.f32 %v6531, %v6840
    %v6842 = vpop.f32.mrf.mxu0
    %v6843 = vadd.f32 %v6527, %v6842
    %v6844 = vpop.f32.mrf.mxu0
    %v6845 = vadd.f32 %v6531, %v6844
    %6846 = vmatprep.mubr.bf16.mxu0 0
    %6847 = vmatmul.mubr.bf16.gmra.mxu0 %v6485
    %v6848 = vpop.f32.mrf.mxu0
    %v6849 = vadd.f32 %v6527, %v6848
    %v6850 = vpop.f32.mrf.mxu0
    %v6851 = vadd.f32 %v6531, %v6850
    %v6852 = vpop.f32.mrf.mxu0
    %v6853 = vadd.f32 %v6527, %v6852
    %v6854 = vpop.f32.mrf.mxu0
    %v6855 = vadd.f32 %v6531, %v6854
    %6856 = vmatprep.mubr.bf16.mxu0 0
    %6857 = vmatmul.mubr.bf16.gmra.mxu0 %v6486
    %v6858 = vpop.f32.mrf.mxu0
    %v6859 = vadd.f32 %v6527, %v6858
    %v6860 = vpop.f32.mrf.mxu0
    %v6861 = vadd.f32 %v6531, %v6860
    %v6862 = vpop.f32.mrf.mxu0
    %v6863 = vadd.f32 %v6527, %v6862
    %v6864 = vpop.f32.mrf.mxu0
    %v6865 = vadd.f32 %v6531, %v6864
    %6866 = vmatprep.mubr.bf16.mxu0 0
    %6867 = vmatmul.mubr.bf16.gmra.mxu0 %v6487
    %v6868 = vpop.f32.mrf.mxu0
    %v6869 = vadd.f32 %v6527, %v6868
    %v6870 = vpop.f32.mrf.mxu0
    %v6871 = vadd.f32 %v6531, %v6870
    %v6872 = vpop.f32.mrf.mxu0
    %v6873 = vadd.f32 %v6527, %v6872
    %v6874 = vpop.f32.mrf.mxu0
    %v6875 = vadd.f32 %v6531, %v6874
    %6876 = vmatprep.mubr.bf16.mxu0 0
    %6877 = vmatmul.mubr.bf16.gmra.mxu0 %v6488
    %v6878 = vpop.f32.mrf.mxu0
    %v6879 = vadd.f32 %v6527, %v6878
    %v6880 = vpop.f32.mrf.mxu0
    %v6881 = vadd.f32 %v6531, %v6880
    %v6882 = vpop.f32.mrf.mxu0
    %v6883 = vadd.f32 %v6527, %v6882
    %v6884 = vpop.f32.mrf.mxu0
    %v6885 = vadd.f32 %v6531, %v6884
    %6886 = vmatprep.mubr.bf16.mxu0 0
    %6887 = vmatmul.mubr.bf16.gmra.mxu0 %v6489
    %v6888 = vpop.f32.mrf.mxu0
    %v6889 = vadd.f32 %v6527, %v6888
    %v6890 = vpop.f32.mrf.mxu0
    %v6891 = vadd.f32 %v6531, %v6890
    %v6892 = vpop.f32.mrf.mxu0
    %v6893 = vadd.f32 %v6527, %v6892
    %v6894 = vpop.f32.mrf.mxu0
    %v6895 = vadd.f32 %v6531, %v6894
    %6896 = vdwg.mxu0
    %6897 = vmatprep.subr.bf16.mxu0 %v6671
    %6898 = vmatpush1.bf16.msra.mxu0 %v6670
    %6899 = vmatprep.subr.bf16.mxu0 %v6667
    %6900 = vmatpush1.bf16.msra.mxu0 %v6666
    %6901 = vmatprep.subr.bf16.mxu0 %v6663
    %6902 = vmatpush1.bf16.msra.mxu0 %v6662
    %6903 = vmatprep.subr.bf16.mxu0 %v6659
    %6904 = vmatpush1.bf16.msra.mxu0 %v6658
    %6905 = vmatprep.subr.bf16.mxu0 %v6655
    %6906 = vmatpush1.bf16.msra.mxu0 %v6654
    %6907 = vmatprep.subr.bf16.mxu0 %v6651
    %6908 = vmatpush1.bf16.msra.mxu0 %v6650
    %6909 = vmatprep.subr.bf16.mxu0 %v6647
    %6910 = vmatpush1.bf16.msra.mxu0 %v6646
    %6911 = vmatprep.subr.bf16.mxu0 %v6643
    %6912 = vmatpush1.bf16.msra.mxu0 %v6642
    %6913 = vmatprep.subr.bf16.mxu0 0
    %6914 = vmatpush2.bf16.msra.mxu0 0
    %6915 = vmatprep.subr.bf16.mxu0 0
    %6916 = vmatpush2.bf16.msra.mxu0 0
    %6917 = vmatprep.subr.bf16.mxu0 0
    %6918 = vmatpush2.bf16.msra.mxu0 0
    %6919 = vmatprep.subr.bf16.mxu0 0
    %6920 = vmatpush2.bf16.msra.mxu0 0
    %6921 = vmatprep.subr.bf16.mxu0 0
    %6922 = vmatpush2.bf16.msra.mxu0 0
    %6923 = vmatprep.subr.bf16.mxu0 0
    %6924 = vmatpush2.bf16.msra.mxu0 0
    %6925 = vmatprep.subr.bf16.mxu0 0
    %6926 = vmatpush2.bf16.msra.mxu0 0
    %6927 = vmatprep.subr.bf16.mxu0 0
    %6928 = vmatpush2.bf16.msra.mxu0 0
    %6929 = vmatprep.mubr.bf16.mxu0 0
    %6930 = vmatmul.mubr.bf16.gmra.mxu0 %v6474
    %v6931 = vpop.f32.mrf.mxu0
    %v6932 = vadd.f32 %v6535, %v6931
    %v6933 = vpop.f32.mrf.mxu0
    %v6934 = vadd.f32 %v6539, %v6933
    %v6935 = vpop.f32.mrf.mxu0
    %v6936 = vadd.f32 %v6535, %v6935
    %v6937 = vpop.f32.mrf.mxu0
    %v6938 = vadd.f32 %v6539, %v6937
    %6939 = vmatprep.mubr.bf16.mxu0 0
    %6940 = vmatmul.mubr.bf16.gmra.mxu0 %v6475
    %v6941 = vpop.f32.mrf.mxu0
    %v6942 = vadd.f32 %v6535, %v6941
    %v6943 = vpop.f32.mrf.mxu0
    %v6944 = vadd.f32 %v6539, %v6943
    %v6945 = vpop.f32.mrf.mxu0
    %v6946 = vadd.f32 %v6535, %v6945
    %v6947 = vpop.f32.mrf.mxu0
    %v6948 = vadd.f32 %v6539, %v6947
    %6949 = vmatprep.mubr.bf16.mxu0 0
    %6950 = vmatmul.mubr.bf16.gmra.mxu0 %v6476
    %v6951 = vpop.f32.mrf.mxu0
    %v6952 = vadd.f32 %v6535, %v6951
    %v6953 = vpop.f32.mrf.mxu0
    %v6954 = vadd.f32 %v6539, %v6953
    %v6955 = vpop.f32.mrf.mxu0
    %v6956 = vadd.f32 %v6535, %v6955
    %v6957 = vpop.f32.mrf.mxu0
    %v6958 = vadd.f32 %v6539, %v6957
    %6959 = vmatprep.mubr.bf16.mxu0 0
    %6960 = vmatmul.mubr.bf16.gmra.mxu0 %v6477
    %v6961 = vpop.f32.mrf.mxu0
    %v6962 = vadd.f32 %v6535, %v6961
    %v6963 = vpop.f32.mrf.mxu0
    %v6964 = vadd.f32 %v6539, %v6963
    %v6965 = vpop.f32.mrf.mxu0
    %v6966 = vadd.f32 %v6535, %v6965
    %v6967 = vpop.f32.mrf.mxu0
    %v6968 = vadd.f32 %v6539, %v6967
    %6969 = vmatprep.mubr.bf16.mxu0 0
    %6970 = vmatmul.mubr.bf16.gmra.mxu0 %v6478
    %v6971 = vpop.f32.mrf.mxu0
    %v6972 = vadd.f32 %v6535, %v6971
    %v6973 = vpop.f32.mrf.mxu0
    %v6974 = vadd.f32 %v6539, %v6973
    %v6975 = vpop.f32.mrf.mxu0
    %v6976 = vadd.f32 %v6535, %v6975
    %v6977 = vpop.f32.mrf.mxu0
    %v6978 = vadd.f32 %v6539, %v6977
    %6979 = vmatprep.mubr.bf16.mxu0 0
    %6980 = vmatmul.mubr.bf16.gmra.mxu0 %v6479
    %v6981 = vpop.f32.mrf.mxu0
    %v6982 = vadd.f32 %v6535, %v6981
    %v6983 = vpop.f32.mrf.mxu0
    %v6984 = vadd.f32 %v6539, %v6983
    %v6985 = vpop.f32.mrf.mxu0
    %v6986 = vadd.f32 %v6535, %v6985
    %v6987 = vpop.f32.mrf.mxu0
    %v6988 = vadd.f32 %v6539, %v6987
    %6989 = vmatprep.mubr.bf16.mxu0 0
    %6990 = vmatmul.mubr.bf16.gmra.mxu0 %v6480
    %v6991 = vpop.f32.mrf.mxu0
    %v6992 = vadd.f32 %v6535, %v6991
    %v6993 = vpop.f32.mrf.mxu0
    %v6994 = vadd.f32 %v6539, %v6993
    %v6995 = vpop.f32.mrf.mxu0
    %v6996 = vadd.f32 %v6535, %v6995
    %v6997 = vpop.f32.mrf.mxu0
    %v6998 = vadd.f32 %v6539, %v6997
    %6999 = vmatprep.mubr.bf16.mxu0 0
    %7000 = vmatmul.mubr.bf16.gmra.mxu0 %v6481
    %v7001 = vpop.f32.mrf.mxu0
    %v7002 = vadd.f32 %v6535, %v7001
    %v7003 = vpop.f32.mrf.mxu0
    %v7004 = vadd.f32 %v6539, %v7003
    %v7005 = vpop.f32.mrf.mxu0
    %v7006 = vadd.f32 %v6535, %v7005
    %v7007 = vpop.f32.mrf.mxu0
    %v7008 = vadd.f32 %v6539, %v7007
    %7009 = vmatprep.mubr.bf16.mxu0 0
    %7010 = vmatmul.mubr.bf16.gmra.mxu0 %v6482
    %v7011 = vpop.f32.mrf.mxu0
    %v7012 = vadd.f32 %v6535, %v7011
    %v7013 = vpop.f32.mrf.mxu0
    %v7014 = vadd.f32 %v6539, %v7013
    %v7015 = vpop.f32.mrf.mxu0
    %v7016 = vadd.f32 %v6535, %v7015
    %v7017 = vpop.f32.mrf.mxu0
    %v7018 = vadd.f32 %v6539, %v7017
    %7019 = vmatprep.mubr.bf16.mxu0 0
    %7020 = vmatmul.mubr.bf16.gmra.mxu0 %v6483
    %v7021 = vpop.f32.mrf.mxu0
    %v7022 = vadd.f32 %v6535, %v7021
    %v7023 = vpop.f32.mrf.mxu0
    %v7024 = vadd.f32 %v6539, %v7023
    %v7025 = vpop.f32.mrf.mxu0
    %v7026 = vadd.f32 %v6535, %v7025
    %v7027 = vpop.f32.mrf.mxu0
    %v7028 = vadd.f32 %v6539, %v7027
    %7029 = vmatprep.mubr.bf16.mxu0 0
    %7030 = vmatmul.mubr.bf16.gmra.mxu0 %v6484
    %v7031 = vpop.f32.mrf.mxu0
    %v7032 = vadd.f32 %v6535, %v7031
    %v7033 = vpop.f32.mrf.mxu0
    %v7034 = vadd.f32 %v6539, %v7033
    %v7035 = vpop.f32.mrf.mxu0
    %v7036 = vadd.f32 %v6535, %v7035
    %v7037 = vpop.f32.mrf.mxu0
    %v7038 = vadd.f32 %v6539, %v7037
    %7039 = vmatprep.mubr.bf16.mxu0 0
    %7040 = vmatmul.mubr.bf16.gmra.mxu0 %v6485
    %v7041 = vpop.f32.mrf.mxu0
    %v7042 = vadd.f32 %v6535, %v7041
    %v7043 = vpop.f32.mrf.mxu0
    %v7044 = vadd.f32 %v6539, %v7043
    %v7045 = vpop.f32.mrf.mxu0
    %v7046 = vadd.f32 %v6535, %v7045
    %v7047 = vpop.f32.mrf.mxu0
    %v7048 = vadd.f32 %v6539, %v7047
    %7049 = vmatprep.mubr.bf16.mxu0 0
    %7050 = vmatmul.mubr.bf16.gmra.mxu0 %v6486
    %v7051 = vpop.f32.mrf.mxu0
    %v7052 = vadd.f32 %v6535, %v7051
    %v7053 = vpop.f32.mrf.mxu0
    %v7054 = vadd.f32 %v6539, %v7053
    %v7055 = vpop.f32.mrf.mxu0
    %v7056 = vadd.f32 %v6535, %v7055
    %v7057 = vpop.f32.mrf.mxu0
    %v7058 = vadd.f32 %v6539, %v7057
    %7059 = vmatprep.mubr.bf16.mxu0 0
    %7060 = vmatmul.mubr.bf16.gmra.mxu0 %v6487
    %v7061 = vpop.f32.mrf.mxu0
    %v7062 = vadd.f32 %v6535, %v7061
    %v7063 = vpop.f32.mrf.mxu0
    %v7064 = vadd.f32 %v6539, %v7063
    %v7065 = vpop.f32.mrf.mxu0
    %v7066 = vadd.f32 %v6535, %v7065
    %v7067 = vpop.f32.mrf.mxu0
    %v7068 = vadd.f32 %v6539, %v7067
    %7069 = vmatprep.mubr.bf16.mxu0 0
    %7070 = vmatmul.mubr.bf16.gmra.mxu0 %v6488
    %v7071 = vpop.f32.mrf.mxu0
    %v7072 = vadd.f32 %v6535, %v7071
    %v7073 = vpop.f32.mrf.mxu0
    %v7074 = vadd.f32 %v6539, %v7073
    %v7075 = vpop.f32.mrf.mxu0
    %v7076 = vadd.f32 %v6535, %v7075
    %v7077 = vpop.f32.mrf.mxu0
    %v7078 = vadd.f32 %v6539, %v7077
    %7079 = vmatprep.mubr.bf16.mxu0 0
    %7080 = vmatmul.mubr.bf16.gmra.mxu0 %v6489
    %v7081 = vpop.f32.mrf.mxu0
    %v7082 = vadd.f32 %v6535, %v7081
    %v7083 = vpop.f32.mrf.mxu0
    %v7084 = vadd.f32 %v6539, %v7083
    %v7085 = vpop.f32.mrf.mxu0
    %v7086 = vadd.f32 %v6535, %v7085
    %v7087 = vpop.f32.mrf.mxu0
    %v7088 = vadd.f32 %v6539, %v7087
    %7089 = vdwg.mxu0
    %v7090 = vmax.f32 %v6739, 0.0
    %v7091 = vmax.f32 %v6741, 0.0
    %v7092 = vmax.f32 %v6932, 0.0
    %v7093 = vmax.f32 %v6934, 0.0
    %v7094 = vmax.f32 %v6743, 0.0
    %v7095 = vmax.f32 %v6745, 0.0
    %v7096 = vmax.f32 %v6936, 0.0
    %v7097 = vmax.f32 %v6938, 0.0
    %v7098 = vmax.f32 %v6749, 0.0
    %v7099 = vmax.f32 %v6751, 0.0
    %v7100 = vmax.f32 %v6942, 0.0
    %v7101 = vmax.f32 %v6944, 0.0
    %v7102 = vmax.f32 %v6753, 0.0
    %v7103 = vmax.f32 %v6755, 0.0
    %v7104 = vmax.f32 %v6946, 0.0
    %v7105 = vmax.f32 %v6948, 0.0
    %v7106 = vmax.f32 %v6759, 0.0
    %v7107 = vmax.f32 %v6761, 0.0
    %v7108 = vmax.f32 %v6952, 0.0
    %v7109 = vmax.f32 %v6954, 0.0
    %v7110 = vmax.f32 %v6763, 0.0
    %v7111 = vmax.f32 %v6765, 0.0
    %v7112 = vmax.f32 %v6956, 0.0
    %v7113 = vmax.f32 %v6958, 0.0
    %v7114 = vmax.f32 %v6769, 0.0
    %v7115 = vmax.f32 %v6771, 0.0
    %v7116 = vmax.f32 %v6962, 0.0
    %v7117 = vmax.f32 %v6964, 0.0
    %v7118 = vmax.f32 %v6773, 0.0
    %v7119 = vmax.f32 %v6775, 0.0
    %v7120 = vmax.f32 %v6966, 0.0
    %v7121 = vmax.f32 %v6968, 0.0
    %v7122 = vmax.f32 %v6779, 0.0
    %v7123 = vmax.f32 %v6781, 0.0
    %v7124 = vmax.f32 %v6972, 0.0
    %v7125 = vmax.f32 %v6974, 0.0
    %v7126 = vmax.f32 %v6783, 0.0
    %v7127 = vmax.f32 %v6785, 0.0
    %v7128 = vmax.f32 %v6976, 0.0
    %v7129 = vmax.f32 %v6978, 0.0
    %v7130 = vmax.f32 %v6789, 0.0
    %v7131 = vmax.f32 %v6791, 0.0
    %v7132 = vmax.f32 %v6982, 0.0
    %v7133 = vmax.f32 %v6984, 0.0
    %v7134 = vmax.f32 %v6793, 0.0
    %v7135 = vmax.f32 %v6795, 0.0
    %v7136 = vmax.f32 %v6986, 0.0
    %v7137 = vmax.f32 %v6988, 0.0
    %v7138 = vmax.f32 %v6799, 0.0
    %v7139 = vmax.f32 %v6801, 0.0
    %v7140 = vmax.f32 %v6992, 0.0
    %v7141 = vmax.f32 %v6994, 0.0
    %v7142 = vmax.f32 %v6803, 0.0
    %v7143 = vmax.f32 %v6805, 0.0
    %v7144 = vmax.f32 %v6996, 0.0
    %v7145 = vmax.f32 %v6998, 0.0
    %v7146 = vmax.f32 %v6809, 0.0
    %v7147 = vmax.f32 %v6811, 0.0
    %v7148 = vmax.f32 %v7002, 0.0
    %v7149 = vmax.f32 %v7004, 0.0
    %v7150 = vmax.f32 %v6813, 0.0
    %v7151 = vmax.f32 %v6815, 0.0
    %v7152 = vmax.f32 %v7006, 0.0
    %v7153 = vmax.f32 %v7008, 0.0
    %v7154 = vmax.f32 %v6819, 0.0
    %v7155 = vmax.f32 %v6821, 0.0
    %v7156 = vmax.f32 %v7012, 0.0
    %v7157 = vmax.f32 %v7014, 0.0
    %v7158 = vmax.f32 %v6823, 0.0
    %v7159 = vmax.f32 %v6825, 0.0
    %v7160 = vmax.f32 %v7016, 0.0
    %v7161 = vmax.f32 %v7018, 0.0
    %v7162 = vmax.f32 %v6829, 0.0
    %v7163 = vmax.f32 %v6831, 0.0
    %v7164 = vmax.f32 %v7022, 0.0
    %v7165 = vmax.f32 %v7024, 0.0
    %v7166 = vmax.f32 %v6833, 0.0
    %v7167 = vmax.f32 %v6835, 0.0
    %v7168 = vmax.f32 %v7026, 0.0
    %v7169 = vmax.f32 %v7028, 0.0
    %v7170 = vmax.f32 %v6839, 0.0
    %v7171 = vmax.f32 %v6841, 0.0
    %v7172 = vmax.f32 %v7032, 0.0
    %v7173 = vmax.f32 %v7034, 0.0
    %v7174 = vmax.f32 %v6843, 0.0
    %v7175 = vmax.f32 %v6845, 0.0
    %v7176 = vmax.f32 %v7036, 0.0
    %v7177 = vmax.f32 %v7038, 0.0
    %v7178 = vmax.f32 %v6849, 0.0
    %v7179 = vmax.f32 %v6851, 0.0
    %v7180 = vmax.f32 %v7042, 0.0
    %v7181 = vmax.f32 %v7044, 0.0
    %v7182 = vmax.f32 %v6853, 0.0
    %v7183 = vmax.f32 %v6855, 0.0
    %v7184 = vmax.f32 %v7046, 0.0
    %v7185 = vmax.f32 %v7048, 0.0
    %v7186 = vmax.f32 %v6859, 0.0
    %v7187 = vmax.f32 %v6861, 0.0
    %v7188 = vmax.f32 %v7052, 0.0
    %v7189 = vmax.f32 %v7054, 0.0
    %v7190 = vmax.f32 %v6863, 0.0
    %v7191 = vmax.f32 %v6865, 0.0
    %v7192 = vmax.f32 %v7056, 0.0
    %v7193 = vmax.f32 %v7058, 0.0
    %v7194 = vmax.f32 %v6869, 0.0
    %v7195 = vmax.f32 %v6871, 0.0
    %v7196 = vmax.f32 %v7062, 0.0
    %v7197 = vmax.f32 %v7064, 0.0
    %v7198 = vmax.f32 %v6873, 0.0
    %v7199 = vmax.f32 %v6875, 0.0
    %v7200 = vmax.f32 %v7066, 0.0
    %v7201 = vmax.f32 %v7068, 0.0
    %v7202 = vmax.f32 %v6879, 0.0
    %v7203 = vmax.f32 %v6881, 0.0
    %v7204 = vmax.f32 %v7072, 0.0
    %v7205 = vmax.f32 %v7074, 0.0
    %v7206 = vmax.f32 %v6883, 0.0
    %v7207 = vmax.f32 %v6885, 0.0
    %v7208 = vmax.f32 %v7076, 0.0
    %v7209 = vmax.f32 %v7078, 0.0
    %v7210 = vmax.f32 %v6889, 0.0
    %v7211 = vmax.f32 %v6891, 0.0
    %v7212 = vmax.f32 %v7082, 0.0
    %v7213 = vmax.f32 %v7084, 0.0
    %v7214 = vmax.f32 %v6893, 0.0
    %v7215 = vmax.f32 %v6895, 0.0
    %v7216 = vmax.f32 %v7086, 0.0
    %v7217 = vmax.f32 %v7088, 0.0
    %v7218 = vpack.c.bf16 %v7094, %v7090
    %v7219 = vpack.c.bf16 %v7095, %v7091
    %v7220 = vpack.c.bf16 %v7096, %v7092
    %v7221 = vpack.c.bf16 %v7097, %v7093
    %v7222 = vpack.c.bf16 %v7102, %v7098
    %v7223 = vpack.c.bf16 %v7103, %v7099
    %v7224 = vpack.c.bf16 %v7104, %v7100
    %v7225 = vpack.c.bf16 %v7105, %v7101
    %v7226 = vpack.c.bf16 %v7110, %v7106
    %v7227 = vpack.c.bf16 %v7111, %v7107
    %v7228 = vpack.c.bf16 %v7112, %v7108
    %v7229 = vpack.c.bf16 %v7113, %v7109
    %v7230 = vpack.c.bf16 %v7118, %v7114
    %v7231 = vpack.c.bf16 %v7119, %v7115
    %v7232 = vpack.c.bf16 %v7120, %v7116
    %v7233 = vpack.c.bf16 %v7121, %v7117
    %v7234 = vpack.c.bf16 %v7126, %v7122
    %v7235 = vpack.c.bf16 %v7127, %v7123
    %v7236 = vpack.c.bf16 %v7128, %v7124
    %v7237 = vpack.c.bf16 %v7129, %v7125
    %v7238 = vpack.c.bf16 %v7134, %v7130
    %v7239 = vpack.c.bf16 %v7135, %v7131
    %v7240 = vpack.c.bf16 %v7136, %v7132
    %v7241 = vpack.c.bf16 %v7137, %v7133
    %v7242 = vpack.c.bf16 %v7142, %v7138
    %v7243 = vpack.c.bf16 %v7143, %v7139
    %v7244 = vpack.c.bf16 %v7144, %v7140
    %v7245 = vpack.c.bf16 %v7145, %v7141
    %v7246 = vpack.c.bf16 %v7150, %v7146
    %v7247 = vpack.c.bf16 %v7151, %v7147
    %v7248 = vpack.c.bf16 %v7152, %v7148
    %v7249 = vpack.c.bf16 %v7153, %v7149
    %v7250 = vpack.c.bf16 %v7158, %v7154
    %v7251 = vpack.c.bf16 %v7159, %v7155
    %v7252 = vpack.c.bf16 %v7160, %v7156
    %v7253 = vpack.c.bf16 %v7161, %v7157
    %v7254 = vpack.c.bf16 %v7166, %v7162
    %v7255 = vpack.c.bf16 %v7167, %v7163
    %v7256 = vpack.c.bf16 %v7168, %v7164
    %v7257 = vpack.c.bf16 %v7169, %v7165
    %v7258 = vpack.c.bf16 %v7174, %v7170
    %v7259 = vpack.c.bf16 %v7175, %v7171
    %v7260 = vpack.c.bf16 %v7176, %v7172
    %v7261 = vpack.c.bf16 %v7177, %v7173
    %v7262 = vpack.c.bf16 %v7182, %v7178
    %v7263 = vpack.c.bf16 %v7183, %v7179
    %v7264 = vpack.c.bf16 %v7184, %v7180
    %v7265 = vpack.c.bf16 %v7185, %v7181
    %v7266 = vpack.c.bf16 %v7190, %v7186
    %v7267 = vpack.c.bf16 %v7191, %v7187
    %v7268 = vpack.c.bf16 %v7192, %v7188
    %v7269 = vpack.c.bf16 %v7193, %v7189
    %v7270 = vpack.c.bf16 %v7198, %v7194
    %v7271 = vpack.c.bf16 %v7199, %v7195
    %v7272 = vpack.c.bf16 %v7200, %v7196
    %v7273 = vpack.c.bf16 %v7201, %v7197
    %v7274 = vpack.c.bf16 %v7206, %v7202
    %v7275 = vpack.c.bf16 %v7207, %v7203
    %v7276 = vpack.c.bf16 %v7208, %v7204
    %v7277 = vpack.c.bf16 %v7209, %v7205
    %v7278 = vpack.c.bf16 %v7214, %v7210
    %v7279 = vpack.c.bf16 %v7215, %v7211
    %v7280 = vpack.c.bf16 %v7216, %v7212
    %v7281 = vpack.c.bf16 %v7217, %v7213
    %v7282 = vld [vmem:[%s10] sm:$0xf]
    %v7283 = vld [vmem:[%s10 + $0x4] sm:$0xf]
    %v7284 = vld [vmem:[%s10 + $0x8] sm:$0xf]
    %v7285 = vld [vmem:[%s10 + $0xc] sm:$0xf]
    %v7286 = vld [vmem:[%s10 + $0x10] sm:$0xf]
    %v7287 = vld [vmem:[%s10 + $0x14] sm:$0xf]
    %v7288 = vld [vmem:[%s10 + $0x18] sm:$0xf]
    %v7289 = vld [vmem:[%s10 + $0x1c] sm:$0xf]
    %v7290 = vld [vmem:[%s10 + $0x20] sm:$0xf]
    %v7291 = vld [vmem:[%s10 + $0x24] sm:$0xf]
    %v7292 = vld [vmem:[%s10 + $0x28] sm:$0xf]
    %v7293 = vld [vmem:[%s10 + $0x2c] sm:$0xf]
    %v7294 = vld [vmem:[%s10 + $0x30] sm:$0xf]
    %v7295 = vld [vmem:[%s10 + $0x34] sm:$0xf]
    %v7296 = vld [vmem:[%s10 + $0x38] sm:$0xf]
    %v7297 = vld [vmem:[%s10 + $0x3c] sm:$0xf]
    %v7298 = vld [vmem:[%s10 + $0x40] sm:$0xf]
    %v7299 = vld [vmem:[%s10 + $0x44] sm:$0xf]
    %v7300 = vld [vmem:[%s10 + $0x48] sm:$0xf]
    %v7301 = vld [vmem:[%s10 + $0x4c] sm:$0xf]
    %v7302 = vld [vmem:[%s10 + $0x50] sm:$0xf]
    %v7303 = vld [vmem:[%s10 + $0x54] sm:$0xf]
    %v7304 = vld [vmem:[%s10 + $0x58] sm:$0xf]
    %v7305 = vld [vmem:[%s10 + $0x5c] sm:$0xf]
    %v7306 = vld [vmem:[%s10 + $0x60] sm:$0xf]
    %v7307 = vld [vmem:[%s10 + $0x64] sm:$0xf]
    %v7308 = vld [vmem:[%s10 + $0x68] sm:$0xf]
    %v7309 = vld [vmem:[%s10 + $0x6c] sm:$0xf]
    %v7310 = vld [vmem:[%s10 + $0x70] sm:$0xf]
    %v7311 = vld [vmem:[%s10 + $0x74] sm:$0xf]
    %v7312 = vld [vmem:[%s10 + $0x78] sm:$0xf]
    %v7313 = vld [vmem:[%s10 + $0x7c] sm:$0xf]
    %v7314 = vld [vmem:[%s10 + $0x80] sm:$0xf]
    %v7315 = vld [vmem:[%s10 + $0x84] sm:$0xf]
    %v7316 = vld [vmem:[%s10 + $0x88] sm:$0xf]
    %v7317 = vld [vmem:[%s10 + $0x8c] sm:$0xf]
    %v7318 = vld [vmem:[%s10 + $0x90] sm:$0xf]
    %v7319 = vld [vmem:[%s10 + $0x94] sm:$0xf]
    %v7320 = vld [vmem:[%s10 + $0x98] sm:$0xf]
    %v7321 = vld [vmem:[%s10 + $0x9c] sm:$0xf]
    %v7322 = vld [vmem:[%s10 + $0xa0] sm:$0xf]
    %v7323 = vld [vmem:[%s10 + $0xa4] sm:$0xf]
    %v7324 = vld [vmem:[%s10 + $0xa8] sm:$0xf]
    %v7325 = vld [vmem:[%s10 + $0xac] sm:$0xf]
    %v7326 = vld [vmem:[%s10 + $0xb0] sm:$0xf]
    %v7327 = vld [vmem:[%s10 + $0xb4] sm:$0xf]
    %v7328 = vld [vmem:[%s10 + $0xb8] sm:$0xf]
    %v7329 = vld [vmem:[%s10 + $0xbc] sm:$0xf]
    %v7330 = vld [vmem:[%s10 + $0xc0] sm:$0xf]
    %v7331 = vld [vmem:[%s10 + $0xc4] sm:$0xf]
    %v7332 = vld [vmem:[%s10 + $0xc8] sm:$0xf]
    %v7333 = vld [vmem:[%s10 + $0xcc] sm:$0xf]
    %v7334 = vld [vmem:[%s10 + $0xd0] sm:$0xf]
    %v7335 = vld [vmem:[%s10 + $0xd4] sm:$0xf]
    %v7336 = vld [vmem:[%s10 + $0xd8] sm:$0xf]
    %v7337 = vld [vmem:[%s10 + $0xdc] sm:$0xf]
    %v7338 = vld [vmem:[%s10 + $0xe0] sm:$0xf]
    %v7339 = vld [vmem:[%s10 + $0xe4] sm:$0xf]
    %v7340 = vld [vmem:[%s10 + $0xe8] sm:$0xf]
    %v7341 = vld [vmem:[%s10 + $0xec] sm:$0xf]
    %v7342 = vld [vmem:[%s10 + $0xf0] sm:$0xf]
    %v7343 = vld [vmem:[%s10 + $0xf4] sm:$0xf]
    %v7344 = vld [vmem:[%s10 + $0xf8] sm:$0xf]
    %v7345 = vld [vmem:[%s10 + $0xfc] sm:$0xf]
    %v7346 = vld [vmem:[%s11] sm:$0x1]
    %v7348 = vlaneseq
    %v7349 = vshrl.u32 %v7348, 7
    %v7350 = vsub.s32 0, %v7349
    %v7351 = vrot.slane %v7346, %v7350
    %v7417 = vunpack.c.l.b16 %v7282
    %v7418 = vunpack.c.l.b16 %v7283
    %v7419 = vunpack.c.l.b16 %v7284
    %v7420 = vunpack.c.l.b16 %v7285
    %v7421 = vunpack.c.l.b16 %v7286
    %v7422 = vunpack.c.l.b16 %v7287
    %v7423 = vunpack.c.l.b16 %v7288
    %v7424 = vunpack.c.l.b16 %v7289
    %v7425 = vunpack.c.l.b16 %v7290
    %v7426 = vunpack.c.l.b16 %v7291
    %v7427 = vunpack.c.l.b16 %v7292
    %v7428 = vunpack.c.l.b16 %v7293
    %v7429 = vunpack.c.l.b16 %v7294
    %v7430 = vunpack.c.l.b16 %v7295
    %v7431 = vunpack.c.l.b16 %v7296
    %v7432 = vunpack.c.l.b16 %v7297
    %v7433 = vunpack.c.l.b16 %v7298
    %v7434 = vunpack.c.l.b16 %v7299
    %v7435 = vunpack.c.l.b16 %v7300
    %v7436 = vunpack.c.l.b16 %v7301
    %v7437 = vunpack.c.l.b16 %v7302
    %v7438 = vunpack.c.l.b16 %v7303
    %v7439 = vunpack.c.l.b16 %v7304
    %v7440 = vunpack.c.l.b16 %v7305
    %v7441 = vunpack.c.l.b16 %v7306
    %v7442 = vunpack.c.l.b16 %v7307
    %v7443 = vunpack.c.l.b16 %v7308
    %v7444 = vunpack.c.l.b16 %v7309
    %v7445 = vunpack.c.l.b16 %v7310
    %v7446 = vunpack.c.l.b16 %v7311
    %v7447 = vunpack.c.l.b16 %v7312
    %v7448 = vunpack.c.l.b16 %v7313
    %v7449 = vunpack.c.l.b16 %v7314
    %v7450 = vunpack.c.l.b16 %v7315
    %v7451 = vunpack.c.l.b16 %v7316
    %v7452 = vunpack.c.l.b16 %v7317
    %v7453 = vunpack.c.l.b16 %v7318
    %v7454 = vunpack.c.l.b16 %v7319
    %v7455 = vunpack.c.l.b16 %v7320
    %v7456 = vunpack.c.l.b16 %v7321
    %v7457 = vunpack.c.l.b16 %v7322
    %v7458 = vunpack.c.l.b16 %v7323
    %v7459 = vunpack.c.l.b16 %v7324
    %v7460 = vunpack.c.l.b16 %v7325
    %v7461 = vunpack.c.l.b16 %v7326
    %v7462 = vunpack.c.l.b16 %v7327
    %v7463 = vunpack.c.l.b16 %v7328
    %v7464 = vunpack.c.l.b16 %v7329
    %v7465 = vunpack.c.l.b16 %v7330
    %v7466 = vunpack.c.l.b16 %v7331
    %v7467 = vunpack.c.l.b16 %v7332
    %v7468 = vunpack.c.l.b16 %v7333
    %v7469 = vunpack.c.l.b16 %v7334
    %v7470 = vunpack.c.l.b16 %v7335
    %v7471 = vunpack.c.l.b16 %v7336
    %v7472 = vunpack.c.l.b16 %v7337
    %v7473 = vunpack.c.l.b16 %v7338
    %v7474 = vunpack.c.l.b16 %v7339
    %v7475 = vunpack.c.l.b16 %v7340
    %v7476 = vunpack.c.l.b16 %v7341
    %v7477 = vunpack.c.l.b16 %v7342
    %v7478 = vunpack.c.l.b16 %v7343
    %v7479 = vunpack.c.l.b16 %v7344
    %v7480 = vunpack.c.l.b16 %v7345
    %v7481 = vpack.c.b16 %v7418, %v7417
    %v7482 = vpack.c.b16 %v7420, %v7419
    %v7483 = vpack.c.b16 %v7422, %v7421
    %v7484 = vpack.c.b16 %v7424, %v7423
    %v7485 = vpack.c.b16 %v7426, %v7425
    %v7486 = vpack.c.b16 %v7428, %v7427
    %v7487 = vpack.c.b16 %v7430, %v7429
    %v7488 = vpack.c.b16 %v7432, %v7431
    %v7489 = vpack.c.b16 %v7434, %v7433
    %v7490 = vpack.c.b16 %v7436, %v7435
    %v7491 = vpack.c.b16 %v7438, %v7437
    %v7492 = vpack.c.b16 %v7440, %v7439
    %v7493 = vpack.c.b16 %v7442, %v7441
    %v7494 = vpack.c.b16 %v7444, %v7443
    %v7495 = vpack.c.b16 %v7446, %v7445
    %v7496 = vpack.c.b16 %v7448, %v7447
    %v7497 = vpack.c.b16 %v7450, %v7449
    %v7498 = vpack.c.b16 %v7452, %v7451
    %v7499 = vpack.c.b16 %v7454, %v7453
    %v7500 = vpack.c.b16 %v7456, %v7455
    %v7501 = vpack.c.b16 %v7458, %v7457
    %v7502 = vpack.c.b16 %v7460, %v7459
    %v7503 = vpack.c.b16 %v7462, %v7461
    %v7504 = vpack.c.b16 %v7464, %v7463
    %v7505 = vpack.c.b16 %v7466, %v7465
    %v7506 = vpack.c.b16 %v7468, %v7467
    %v7507 = vpack.c.b16 %v7470, %v7469
    %v7508 = vpack.c.b16 %v7472, %v7471
    %v7509 = vpack.c.b16 %v7474, %v7473
    %v7510 = vpack.c.b16 %v7476, %v7475
    %v7511 = vpack.c.b16 %v7478, %v7477
    %v7512 = vpack.c.b16 %v7480, %v7479
    %7545 = vmatprep.subr.bf16.mxu0 0
    %7546 = vmatpush1.bf16.msra.mxu0 %v7488
    %7547 = vmatprep.subr.bf16.mxu0 0
    %7548 = vmatpush1.bf16.msra.mxu0 %v7487
    %7549 = vmatprep.subr.bf16.mxu0 0
    %7550 = vmatpush1.bf16.msra.mxu0 %v7486
    %7551 = vmatprep.subr.bf16.mxu0 0
    %7552 = vmatpush1.bf16.msra.mxu0 %v7485
    %7553 = vmatprep.subr.bf16.mxu0 0
    %7554 = vmatpush1.bf16.msra.mxu0 %v7484
    %7555 = vmatprep.subr.bf16.mxu0 0
    %7556 = vmatpush1.bf16.msra.mxu0 %v7483
    %7557 = vmatprep.subr.bf16.mxu0 0
    %7558 = vmatpush1.bf16.msra.mxu0 %v7482
    %7559 = vmatprep.subr.bf16.mxu0 0
    %7560 = vmatpush1.bf16.msra.mxu0 %v7481
    %7561 = vmatprep.subr.bf16.mxu0 0
    %7562 = vmatpush2.bf16.msra.mxu0 %v7496
    %7563 = vmatprep.subr.bf16.mxu0 0
    %7564 = vmatpush2.bf16.msra.mxu0 %v7495
    %7565 = vmatprep.subr.bf16.mxu0 0
    %7566 = vmatpush2.bf16.msra.mxu0 %v7494
    %7567 = vmatprep.subr.bf16.mxu0 0
    %7568 = vmatpush2.bf16.msra.mxu0 %v7493
    %7569 = vmatprep.subr.bf16.mxu0 0
    %7570 = vmatpush2.bf16.msra.mxu0 %v7492
    %7571 = vmatprep.subr.bf16.mxu0 0
    %7572 = vmatpush2.bf16.msra.mxu0 %v7491
    %7573 = vmatprep.subr.bf16.mxu0 0
    %7574 = vmatpush2.bf16.msra.mxu0 %v7490
    %7575 = vmatprep.subr.bf16.mxu0 0
    %7576 = vmatpush2.bf16.msra.mxu0 %v7489
    %7577 = vmatprep.mubr.bf16.mxu0 %v7219
    %7578 = vmatmul.mubr.bf16.gmra.mxu0 %v7218
    %v7579 = vpop.f32.mrf.mxu0
    %v7580 = vadd.f32 %v7351, %v7579
    %v7581 = vpop.f32.mrf.mxu0
    %v7582 = vpop.f32.mrf.mxu0
    %v7583 = vadd.f32 %v7351, %v7582
    %v7584 = vpop.f32.mrf.mxu0
    %7585 = vmatprep.mubr.bf16.mxu0 %v7223
    %7586 = vmatmul.mubr.bf16.gmra.mxu0 %v7222
    %v7587 = vpop.f32.mrf.mxu0
    %v7588 = vadd.f32 %v7351, %v7587
    %v7589 = vpop.f32.mrf.mxu0
    %v7590 = vpop.f32.mrf.mxu0
    %v7591 = vadd.f32 %v7351, %v7590
    %v7592 = vpop.f32.mrf.mxu0
    %7593 = vmatprep.mubr.bf16.mxu0 %v7227
    %7594 = vmatmul.mubr.bf16.gmra.mxu0 %v7226
    %v7595 = vpop.f32.mrf.mxu0
    %v7596 = vadd.f32 %v7351, %v7595
    %v7597 = vpop.f32.mrf.mxu0
    %v7598 = vpop.f32.mrf.mxu0
    %v7599 = vadd.f32 %v7351, %v7598
    %v7600 = vpop.f32.mrf.mxu0
    %7601 = vmatprep.mubr.bf16.mxu0 %v7231
    %7602 = vmatmul.mubr.bf16.gmra.mxu0 %v7230
    %v7603 = vpop.f32.mrf.mxu0
    %v7604 = vadd.f32 %v7351, %v7603
    %v7605 = vpop.f32.mrf.mxu0
    %v7606 = vpop.f32.mrf.mxu0
    %v7607 = vadd.f32 %v7351, %v7606
    %v7608 = vpop.f32.mrf.mxu0
    %7609 = vmatprep.mubr.bf16.mxu0 %v7235
    %7610 = vmatmul.mubr.bf16.gmra.mxu0 %v7234
    %v7611 = vpop.f32.mrf.mxu0
    %v7612 = vadd.f32 %v7351, %v7611
    %v7613 = vpop.f32.mrf.mxu0
    %v7614 = vpop.f32.mrf.mxu0
    %v7615 = vadd.f32 %v7351, %v7614
    %v7616 = vpop.f32.mrf.mxu0
    %7617 = vmatprep.mubr.bf16.mxu0 %v7239
    %7618 = vmatmul.mubr.bf16.gmra.mxu0 %v7238
    %v7619 = vpop.f32.mrf.mxu0
    %v7620 = vadd.f32 %v7351, %v7619
    %v7621 = vpop.f32.mrf.mxu0
    %v7622 = vpop.f32.mrf.mxu0
    %v7623 = vadd.f32 %v7351, %v7622
    %v7624 = vpop.f32.mrf.mxu0
    %7625 = vmatprep.mubr.bf16.mxu0 %v7243
    %7626 = vmatmul.mubr.bf16.gmra.mxu0 %v7242
    %v7627 = vpop.f32.mrf.mxu0
    %v7628 = vadd.f32 %v7351, %v7627
    %v7629 = vpop.f32.mrf.mxu0
    %v7630 = vpop.f32.mrf.mxu0
    %v7631 = vadd.f32 %v7351, %v7630
    %v7632 = vpop.f32.mrf.mxu0
    %7633 = vmatprep.mubr.bf16.mxu0 %v7247
    %7634 = vmatmul.mubr.bf16.gmra.mxu0 %v7246
    %v7635 = vpop.f32.mrf.mxu0
    %v7636 = vadd.f32 %v7351, %v7635
    %v7637 = vpop.f32.mrf.mxu0
    %v7638 = vpop.f32.mrf.mxu0
    %v7639 = vadd.f32 %v7351, %v7638
    %v7640 = vpop.f32.mrf.mxu0
    %7641 = vmatprep.mubr.bf16.mxu0 %v7251
    %7642 = vmatmul.mubr.bf16.gmra.mxu0 %v7250
    %v7643 = vpop.f32.mrf.mxu0
    %v7644 = vadd.f32 %v7351, %v7643
    %v7645 = vpop.f32.mrf.mxu0
    %v7646 = vpop.f32.mrf.mxu0
    %v7647 = vadd.f32 %v7351, %v7646
    %v7648 = vpop.f32.mrf.mxu0
    %7649 = vmatprep.mubr.bf16.mxu0 %v7255
    %7650 = vmatmul.mubr.bf16.gmra.mxu0 %v7254
    %v7651 = vpop.f32.mrf.mxu0
    %v7652 = vadd.f32 %v7351, %v7651
    %v7653 = vpop.f32.mrf.mxu0
    %v7654 = vpop.f32.mrf.mxu0
    %v7655 = vadd.f32 %v7351, %v7654
    %v7656 = vpop.f32.mrf.mxu0
    %7657 = vmatprep.mubr.bf16.mxu0 %v7259
    %7658 = vmatmul.mubr.bf16.gmra.mxu0 %v7258
    %v7659 = vpop.f32.mrf.mxu0
    %v7660 = vadd.f32 %v7351, %v7659
    %v7661 = vpop.f32.mrf.mxu0
    %v7662 = vpop.f32.mrf.mxu0
    %v7663 = vadd.f32 %v7351, %v7662
    %v7664 = vpop.f32.mrf.mxu0
    %7665 = vmatprep.mubr.bf16.mxu0 %v7263
    %7666 = vmatmul.mubr.bf16.gmra.mxu0 %v7262
    %v7667 = vpop.f32.mrf.mxu0
    %v7668 = vadd.f32 %v7351, %v7667
    %v7669 = vpop.f32.mrf.mxu0
    %v7670 = vpop.f32.mrf.mxu0
    %v7671 = vadd.f32 %v7351, %v7670
    %v7672 = vpop.f32.mrf.mxu0
    %7673 = vmatprep.mubr.bf16.mxu0 %v7267
    %7674 = vmatmul.mubr.bf16.gmra.mxu0 %v7266
    %v7675 = vpop.f32.mrf.mxu0
    %v7676 = vadd.f32 %v7351, %v7675
    %v7677 = vpop.f32.mrf.mxu0
    %v7678 = vpop.f32.mrf.mxu0
    %v7679 = vadd.f32 %v7351, %v7678
    %v7680 = vpop.f32.mrf.mxu0
    %7681 = vmatprep.mubr.bf16.mxu0 %v7271
    %7682 = vmatmul.mubr.bf16.gmra.mxu0 %v7270
    %v7683 = vpop.f32.mrf.mxu0
    %v7684 = vadd.f32 %v7351, %v7683
    %v7685 = vpop.f32.mrf.mxu0
    %v7686 = vpop.f32.mrf.mxu0
    %v7687 = vadd.f32 %v7351, %v7686
    %v7688 = vpop.f32.mrf.mxu0
    %7689 = vmatprep.mubr.bf16.mxu0 %v7275
    %7690 = vmatmul.mubr.bf16.gmra.mxu0 %v7274
    %v7691 = vpop.f32.mrf.mxu0
    %v7692 = vadd.f32 %v7351, %v7691
    %v7693 = vpop.f32.mrf.mxu0
    %v7694 = vpop.f32.mrf.mxu0
    %v7695 = vadd.f32 %v7351, %v7694
    %v7696 = vpop.f32.mrf.mxu0
    %7697 = vmatprep.mubr.bf16.mxu0 %v7279
    %7698 = vmatmul.mubr.bf16.gmra.mxu0 %v7278
    %v7699 = vpop.f32.mrf.mxu0
    %v7700 = vadd.f32 %v7351, %v7699
    %v7701 = vpop.f32.mrf.mxu0
    %v7702 = vpop.f32.mrf.mxu0
    %v7703 = vadd.f32 %v7351, %v7702
    %v7704 = vpop.f32.mrf.mxu0
    %7705 = vdwg.mxu0
    %7706 = vmatprep.subr.bf16.mxu0 0
    %7707 = vmatpush1.bf16.msra.mxu0 %v7504
    %7708 = vmatprep.subr.bf16.mxu0 0
    %7709 = vmatpush1.bf16.msra.mxu0 %v7503
    %7710 = vmatprep.subr.bf16.mxu0 0
    %7711 = vmatpush1.bf16.msra.mxu0 %v7502
    %7712 = vmatprep.subr.bf16.mxu0 0
    %7713 = vmatpush1.bf16.msra.mxu0 %v7501
    %7714 = vmatprep.subr.bf16.mxu0 0
    %7715 = vmatpush1.bf16.msra.mxu0 %v7500
    %7716 = vmatprep.subr.bf16.mxu0 0
    %7717 = vmatpush1.bf16.msra.mxu0 %v7499
    %7718 = vmatprep.subr.bf16.mxu0 0
    %7719 = vmatpush1.bf16.msra.mxu0 %v7498
    %7720 = vmatprep.subr.bf16.mxu0 0
    %7721 = vmatpush1.bf16.msra.mxu0 %v7497
    %7722 = vmatprep.subr.bf16.mxu0 0
    %7723 = vmatpush2.bf16.msra.mxu0 %v7512
    %7724 = vmatprep.subr.bf16.mxu0 0
    %7725 = vmatpush2.bf16.msra.mxu0 %v7511
    %7726 = vmatprep.subr.bf16.mxu0 0
    %7727 = vmatpush2.bf16.msra.mxu0 %v7510
    %7728 = vmatprep.subr.bf16.mxu0 0
    %7729 = vmatpush2.bf16.msra.mxu0 %v7509
    %7730 = vmatprep.subr.bf16.mxu0 0
    %7731 = vmatpush2.bf16.msra.mxu0 %v7508
    %7732 = vmatprep.subr.bf16.mxu0 0
    %7733 = vmatpush2.bf16.msra.mxu0 %v7507
    %7734 = vmatprep.subr.bf16.mxu0 0
    %7735 = vmatpush2.bf16.msra.mxu0 %v7506
    %7736 = vmatprep.subr.bf16.mxu0 0
    %7737 = vmatpush2.bf16.msra.mxu0 %v7505
    %7738 = vmatprep.mubr.bf16.mxu0 %v7221
    %7739 = vmatmul.mubr.bf16.gmra.mxu0 %v7220
    %v7740 = vpop.f32.mrf.mxu0
    %v7741 = vadd.f32 %v7580, %v7740
    %v7742 = vpop.f32.mrf.mxu0
    %v7743 = vpop.f32.mrf.mxu0
    %v7744 = vadd.f32 %v7583, %v7743
    %v7745 = vpop.f32.mrf.mxu0
    %7746 = vmatprep.mubr.bf16.mxu0 %v7225
    %7747 = vmatmul.mubr.bf16.gmra.mxu0 %v7224
    %v7748 = vpop.f32.mrf.mxu0
    %v7749 = vadd.f32 %v7588, %v7748
    %v7750 = vpop.f32.mrf.mxu0
    %v7751 = vpop.f32.mrf.mxu0
    %v7752 = vadd.f32 %v7591, %v7751
    %v7753 = vpop.f32.mrf.mxu0
    %7754 = vmatprep.mubr.bf16.mxu0 %v7229
    %7755 = vmatmul.mubr.bf16.gmra.mxu0 %v7228
    %v7756 = vpop.f32.mrf.mxu0
    %v7757 = vadd.f32 %v7596, %v7756
    %v7758 = vpop.f32.mrf.mxu0
    %v7759 = vpop.f32.mrf.mxu0
    %v7760 = vadd.f32 %v7599, %v7759
    %v7761 = vpop.f32.mrf.mxu0
    %7762 = vmatprep.mubr.bf16.mxu0 %v7233
    %7763 = vmatmul.mubr.bf16.gmra.mxu0 %v7232
    %v7764 = vpop.f32.mrf.mxu0
    %v7765 = vadd.f32 %v7604, %v7764
    %v7766 = vpop.f32.mrf.mxu0
    %v7767 = vpop.f32.mrf.mxu0
    %v7768 = vadd.f32 %v7607, %v7767
    %v7769 = vpop.f32.mrf.mxu0
    %7770 = vmatprep.mubr.bf16.mxu0 %v7237
    %7771 = vmatmul.mubr.bf16.gmra.mxu0 %v7236
    %v7772 = vpop.f32.mrf.mxu0
    %v7773 = vadd.f32 %v7612, %v7772
    %v7774 = vpop.f32.mrf.mxu0
    %v7775 = vpop.f32.mrf.mxu0
    %v7776 = vadd.f32 %v7615, %v7775
    %v7777 = vpop.f32.mrf.mxu0
    %7778 = vmatprep.mubr.bf16.mxu0 %v7241
    %7779 = vmatmul.mubr.bf16.gmra.mxu0 %v7240
    %v7780 = vpop.f32.mrf.mxu0
    %v7781 = vadd.f32 %v7620, %v7780
    %v7782 = vpop.f32.mrf.mxu0
    %v7783 = vpop.f32.mrf.mxu0
    %v7784 = vadd.f32 %v7623, %v7783
    %v7785 = vpop.f32.mrf.mxu0
    %7786 = vmatprep.mubr.bf16.mxu0 %v7245
    %7787 = vmatmul.mubr.bf16.gmra.mxu0 %v7244
    %v7788 = vpop.f32.mrf.mxu0
    %v7789 = vadd.f32 %v7628, %v7788
    %v7790 = vpop.f32.mrf.mxu0
    %v7791 = vpop.f32.mrf.mxu0
    %v7792 = vadd.f32 %v7631, %v7791
    %v7793 = vpop.f32.mrf.mxu0
    %7794 = vmatprep.mubr.bf16.mxu0 %v7249
    %7795 = vmatmul.mubr.bf16.gmra.mxu0 %v7248
    %v7796 = vpop.f32.mrf.mxu0
    %v7797 = vadd.f32 %v7636, %v7796
    %v7798 = vpop.f32.mrf.mxu0
    %v7799 = vpop.f32.mrf.mxu0
    %v7800 = vadd.f32 %v7639, %v7799
    %v7801 = vpop.f32.mrf.mxu0
    %7802 = vmatprep.mubr.bf16.mxu0 %v7253
    %7803 = vmatmul.mubr.bf16.gmra.mxu0 %v7252
    %v7804 = vpop.f32.mrf.mxu0
    %v7805 = vadd.f32 %v7644, %v7804
    %v7806 = vpop.f32.mrf.mxu0
    %v7807 = vpop.f32.mrf.mxu0
    %v7808 = vadd.f32 %v7647, %v7807
    %v7809 = vpop.f32.mrf.mxu0
    %7810 = vmatprep.mubr.bf16.mxu0 %v7257
    %7811 = vmatmul.mubr.bf16.gmra.mxu0 %v7256
    %v7812 = vpop.f32.mrf.mxu0
    %v7813 = vadd.f32 %v7652, %v7812
    %v7814 = vpop.f32.mrf.mxu0
    %v7815 = vpop.f32.mrf.mxu0
    %v7816 = vadd.f32 %v7655, %v7815
    %v7817 = vpop.f32.mrf.mxu0
    %7818 = vmatprep.mubr.bf16.mxu0 %v7261
    %7819 = vmatmul.mubr.bf16.gmra.mxu0 %v7260
    %v7820 = vpop.f32.mrf.mxu0
    %v7821 = vadd.f32 %v7660, %v7820
    %v7822 = vpop.f32.mrf.mxu0
    %v7823 = vpop.f32.mrf.mxu0
    %v7824 = vadd.f32 %v7663, %v7823
    %v7825 = vpop.f32.mrf.mxu0
    %7826 = vmatprep.mubr.bf16.mxu0 %v7265
    %7827 = vmatmul.mubr.bf16.gmra.mxu0 %v7264
    %v7828 = vpop.f32.mrf.mxu0
    %v7829 = vadd.f32 %v7668, %v7828
    %v7830 = vpop.f32.mrf.mxu0
    %v7831 = vpop.f32.mrf.mxu0
    %v7832 = vadd.f32 %v7671, %v7831
    %v7833 = vpop.f32.mrf.mxu0
    %7834 = vmatprep.mubr.bf16.mxu0 %v7269
    %7835 = vmatmul.mubr.bf16.gmra.mxu0 %v7268
    %v7836 = vpop.f32.mrf.mxu0
    %v7837 = vadd.f32 %v7676, %v7836
    %v7838 = vpop.f32.mrf.mxu0
    %v7839 = vpop.f32.mrf.mxu0
    %v7840 = vadd.f32 %v7679, %v7839
    %v7841 = vpop.f32.mrf.mxu0
    %7842 = vmatprep.mubr.bf16.mxu0 %v7273
    %7843 = vmatmul.mubr.bf16.gmra.mxu0 %v7272
    %v7844 = vpop.f32.mrf.mxu0
    %v7845 = vadd.f32 %v7684, %v7844
    %v7846 = vpop.f32.mrf.mxu0
    %v7847 = vpop.f32.mrf.mxu0
    %v7848 = vadd.f32 %v7687, %v7847
    %v7849 = vpop.f32.mrf.mxu0
    %7850 = vmatprep.mubr.bf16.mxu0 %v7277
    %7851 = vmatmul.mubr.bf16.gmra.mxu0 %v7276
    %v7852 = vpop.f32.mrf.mxu0
    %v7853 = vadd.f32 %v7692, %v7852
    %v7854 = vpop.f32.mrf.mxu0
    %v7855 = vpop.f32.mrf.mxu0
    %v7856 = vadd.f32 %v7695, %v7855
    %v7857 = vpop.f32.mrf.mxu0
    %7858 = vmatprep.mubr.bf16.mxu0 %v7281
    %7859 = vmatmul.mubr.bf16.gmra.mxu0 %v7280
    %v7860 = vpop.f32.mrf.mxu0
    %v7861 = vadd.f32 %v7700, %v7860
    %v7862 = vpop.f32.mrf.mxu0
    %v7863 = vpop.f32.mrf.mxu0
    %v7864 = vadd.f32 %v7703, %v7863
    %v7865 = vpop.f32.mrf.mxu0
    %7866 = vdwg.mxu0
    %v7867 = vadd.f32 %v6012, %v7741
    %v7868 = vadd.f32 %v6013, %v7744
    %v7869 = vadd.f32 %v6014, %v7749
    %v7870 = vadd.f32 %v6015, %v7752
    %v7871 = vadd.f32 %v6016, %v7757
    %v7872 = vadd.f32 %v6017, %v7760
    %v7873 = vadd.f32 %v6018, %v7765
    %v7874 = vadd.f32 %v6019, %v7768
    %v7875 = vadd.f32 %v6020, %v7773
    %v7876 = vadd.f32 %v6021, %v7776
    %v7877 = vadd.f32 %v6022, %v7781
    %v7878 = vadd.f32 %v6023, %v7784
    %v7879 = vadd.f32 %v6024, %v7789
    %v7880 = vadd.f32 %v6025, %v7792
    %v7881 = vadd.f32 %v6026, %v7797
    %v7882 = vadd.f32 %v6027, %v7800
    %v7883 = vadd.f32 %v6028, %v7805
    %v7884 = vadd.f32 %v6029, %v7808
    %v7885 = vadd.f32 %v6030, %v7813
    %v7886 = vadd.f32 %v6031, %v7816
    %v7887 = vadd.f32 %v6032, %v7821
    %v7888 = vadd.f32 %v6033, %v7824
    %v7889 = vadd.f32 %v6034, %v7829
    %v7890 = vadd.f32 %v6035, %v7832
    %v7891 = vadd.f32 %v6036, %v7837
    %v7892 = vadd.f32 %v6037, %v7840
    %v7893 = vadd.f32 %v6038, %v7845
    %v7894 = vadd.f32 %v6039, %v7848
    %v7895 = vadd.f32 %v6040, %v7853
    %v7896 = vadd.f32 %v6041, %v7856
    %v7897 = vadd.f32 %v6042, %v7861
    %v7898 = vadd.f32 %v6043, %v7864
    %7899 = vst [vmem:[#allocation3] sm:$0xff] %v7867
    %7900 = vst [vmem:[#allocation3 + $0x8] sm:$0xff] %v7868
    %7901 = vst [vmem:[#allocation3 + $0x10] sm:$0xff] %v7869
    %7902 = vst [vmem:[#allocation3 + $0x18] sm:$0xff] %v7870
    %7903 = vst [vmem:[#allocation3 + $0x20] sm:$0xff] %v7871
    %7904 = vst [vmem:[#allocation3 + $0x28] sm:$0xff] %v7872
    %7905 = vst [vmem:[#allocation3 + $0x30] sm:$0xff] %v7873
    %7906 = vst [vmem:[#allocation3 + $0x38] sm:$0xff] %v7874
    %7907 = vst [vmem:[#allocation3 + $0x40] sm:$0xff] %v7875
    %7908 = vst [vmem:[#allocation3 + $0x48] sm:$0xff] %v7876
    %7909 = vst [vmem:[#allocation3 + $0x50] sm:$0xff] %v7877
    %7910 = vst [vmem:[#allocation3 + $0x58] sm:$0xff] %v7878
    %7911 = vst [vmem:[#allocation3 + $0x60] sm:$0xff] %v7879
    %7912 = vst [vmem:[#allocation3 + $0x68] sm:$0xff] %v7880
    %7913 = vst [vmem:[#allocation3 + $0x70] sm:$0xff] %v7881
    %7914 = vst [vmem:[#allocation3 + $0x78] sm:$0xff] %v7882
    %7915 = vst [vmem:[#allocation3 + $0x80] sm:$0xff] %v7883
    %7916 = vst [vmem:[#allocation3 + $0x88] sm:$0xff] %v7884
    %7917 = vst [vmem:[#allocation3 + $0x90] sm:$0xff] %v7885
    %7918 = vst [vmem:[#allocation3 + $0x98] sm:$0xff] %v7886
    %7919 = vst [vmem:[#allocation3 + $0xa0] sm:$0xff] %v7887
    %7920 = vst [vmem:[#allocation3 + $0xa8] sm:$0xff] %v7888
    %7921 = vst [vmem:[#allocation3 + $0xb0] sm:$0xff] %v7889
    %7922 = vst [vmem:[#allocation3 + $0xb8] sm:$0xff] %v7890
    %7923 = vst [vmem:[#allocation3 + $0xc0] sm:$0xff] %v7891
    %7924 = vst [vmem:[#allocation3 + $0xc8] sm:$0xff] %v7892
    %7925 = vst [vmem:[#allocation3 + $0xd0] sm:$0xff] %v7893
    %7926 = vst [vmem:[#allocation3 + $0xd8] sm:$0xff] %v7894
    %7927 = vst [vmem:[#allocation3 + $0xe0] sm:$0xff] %v7895
    %7928 = vst [vmem:[#allocation3 + $0xe8] sm:$0xff] %v7896
    %7929 = vst [vmem:[#allocation3 + $0xf0] sm:$0xff] %v7897
    %7930 = vst [vmem:[#allocation3 + $0xf8] sm:$0xff] %v7898
    // Predicated region
    $region50: #{transformer_block.1} parent=1 // pred_check
      _
    $region51: #{transformer_block.1} parent=1 // pred_check_branch
      %7932 = sbr.rel (0) target = $region53
    $region52: #{transformer_block.1} parent=1 // pred_region
      %s7934 = ssub.s32 4096, 4096
      %7935 = vsyncadd [#allocation4], %s7934
      %s7936 = sshll.u32 [#allocation3], 4
      %s7937 = int_to_ptr.vmem [resolvable:$true] %s7936
      %7942 = dma.vmem_to_hbm [thread:$0]  %s7937, 4096, %s12, [#allocation4], 128, 128, 8
    $region53: #{transformer_block.1} parent=1 // pred_fallthru
      _
    // Predicated region
    $region54: #{transformer_block.1} parent=1 // pred_check
      _
    $region55: #{transformer_block.1} parent=1 // pred_check_branch
      %7944 = sbr.rel (0) target = $region57
    $region56: #{transformer_block.1} parent=1 // pred_region
      %7945 = dma.done [#allocation4], 4096
    $region57: #{transformer_block.1} parent=1 // pred_fallthru
      _
    %7946 = vsyncpa [#allocation4], 1

</llo_original>
